<compile_context>
chip_gen: v7x
topology: tpu7x:2x2x1
jax: 0.10.0
libtpu: 0.0.40
codegen_flags: <defaults>
</compile_context>

<pallas_src>
import functools

import jax
import jax.numpy as jnp
from jax.experimental import pallas as pl
from jax.experimental.pallas import tpu as pltpu

VMEM = pltpu.MemorySpace.VMEM

HID_CH = 32
KSIZE = 4
HIDDEN = 256


# ----------------------------------------------------------------------------
# Pallas kernels
# ----------------------------------------------------------------------------
def _gemm_bias_act_kernel(x_ref, w_ref, b_ref, o_ref, *, activation):
    """One bf16 GEMM + f32 bias/activation epilogue (used for encoder convs)."""
    acc = jnp.dot(x_ref[...], w_ref[...], preferred_element_type=jnp.float32)
    acc = acc + b_ref[...]
    if activation == "relu":
        acc = jnp.maximum(acc, 0.0)
    elif activation == "sigmoid":
        acc = jax.nn.sigmoid(acc)
    o_ref[...] = acc.astype(o_ref.dtype)


def gemm_bias_act(x, w, b, activation, out_dtype):
    M = x.shape[0]
    N = w.shape[-1]
    return pl.pallas_call(
        functools.partial(_gemm_bias_act_kernel, activation=activation),
        out_shape=jax.ShapeDtypeStruct((M, N), out_dtype),
        in_specs=[pl.BlockSpec(memory_space=VMEM)] * 3,
        out_specs=pl.BlockSpec(memory_space=VMEM),
    )(x.astype(jnp.bfloat16), w, b)


def _encoder_head_kernel(h_ref, w1_ref, b1_ref, w2_ref, b2_ref,
                         wmu_ref, bmu_ref, wlv_ref, blv_ref, eps_ref,
                         mean_ref, logvar_ref, z_ref):
    """Fused encoder FC stack (lin1 -> lin2 -> mu/logvar) + reparameterize.

    All intermediate (B, 256) activations stay in VMEM/vregs; bf16 matmul
    operands, f32 accumulation and epilogue.
    """
    h1 = jnp.dot(h_ref[...], w1_ref[...], preferred_element_type=jnp.float32)
    h1 = jnp.maximum(h1 + b1_ref[...], 0.0).astype(jnp.bfloat16)
    h2 = jnp.dot(h1, w2_ref[...], preferred_element_type=jnp.float32)
    h2 = jnp.maximum(h2 + b2_ref[...], 0.0).astype(jnp.bfloat16)
    mean = jnp.dot(h2, wmu_ref[...], preferred_element_type=jnp.float32) + bmu_ref[...]
    logvar = jnp.dot(h2, wlv_ref[...], preferred_element_type=jnp.float32) + blv_ref[...]
    std = jnp.exp(0.5 * logvar)
    mean_ref[...] = mean
    logvar_ref[...] = logvar
    z_ref[...] = mean + std * eps_ref[...]


def _decoder_fc_kernel(z_ref, w1_ref, b1_ref, w2_ref, b2_ref, w3_ref, b3_ref, o_ref):
    """Fused decoder FC stack (lin1 -> lin2 -> lin3), all ReLU, VMEM-resident."""
    h = jnp.dot(z_ref[...], w1_ref[...], preferred_element_type=jnp.float32)
    h = jnp.maximum(h + b1_ref[...], 0.0).astype(jnp.bfloat16)
    h = jnp.dot(h, w2_ref[...], preferred_element_type=jnp.float32)
    h = jnp.maximum(h + b2_ref[...], 0.0).astype(jnp.bfloat16)
    h = jnp.dot(h, w3_ref[...], preferred_element_type=jnp.float32)
    h = jnp.maximum(h + b3_ref[...], 0.0)
    o_ref[...] = h.astype(o_ref.dtype)


def _convT_phase_kernel(p_ref, w_ref, b_ref, o_ref, *, activation):
    """Transposed conv as 4 sub-pixel phase GEMMs fused in one kernel.

    p_ref: (4, M, 4*C_in) bf16 per-phase 2x2-window patches
    w_ref: (4, 4*C_in, C_out) bf16 per-phase sub-kernels
    b_ref: (1, C_out) f32
    o_ref: (4, M, C_out)
    """
    for p in range(4):
        acc = jnp.dot(p_ref[p], w_ref[p], preferred_element_type=jnp.float32)
        acc = acc + b_ref[...]
        if activation == "relu":
            acc = jnp.maximum(acc, 0.0)
        elif activation == "sigmoid":
            acc = jax.nn.sigmoid(acc)
        o_ref[p] = acc.astype(o_ref.dtype)


# ----------------------------------------------------------------------------
# Conv glue (patch extraction in XLA, GEMMs in Pallas)
# ----------------------------------------------------------------------------
def conv2d_s2(x_nhwc, w_gemm, b, activation):
    """Conv2d k=4, stride=2, pad=1 as a single im2col GEMM (bf16 -> f32 acc)."""
    B, H, W, C = x_nhwc.shape
    Ho, Wo = H // 2, W // 2
    xp = jnp.pad(x_nhwc, ((0, 0), (1, 1), (1, 1), (0, 0)))
    taps = [xp[:, di:di + 2 * Ho:2, dj:dj + 2 * Wo:2, :]
            for di in range(KSIZE) for dj in range(KSIZE)]
    patches = jnp.concatenate(taps, axis=-1).reshape(B * Ho * Wo, KSIZE * KSIZE * C)
    y = gemm_bias_act(patches, w_gemm, b, activation, out_dtype=jnp.bfloat16)
    return y.reshape(B, Ho, Wo, -1)


def conv_transpose2d_subpixel(x_nhwc, w_sub, b, activation):
    """PyTorch ConvTranspose2d(k=4, stride=2, pad=1) via stride^2 phase decomposition.

    Each output phase (r, s) = a stride-1 2x2 conv of the (zero-padded) input with
    sub-kernel w[:, :, 3-2a-r, 3-2b-s]; no zero-upsampled taps reach the MXU.
    """
    B, H, W, C = x_nhwc.shape
    C_out = w_sub.shape[-1]
    xp = jnp.pad(x_nhwc, ((0, 0), (1, 1), (1, 1), (0, 0)))
    phases = []
    for r in range(2):
        for s in range(2):
            taps = [xp[:, r + a:r + a + H, s + bb:s + bb + W, :]
                    for a in range(2) for bb in range(2)]
            phases.append(jnp.concatenate(taps, axis=-1).reshape(B * H * W, 4 * C))
    patches = jnp.stack(phases, axis=0).astype(jnp.bfloat16)        # (4, M, 4*C)

    out_dtype = jnp.float32 if activation == "sigmoid" else jnp.bfloat16
    out = pl.pallas_call(
        functools.partial(_convT_phase_kernel, activation=activation),
        out_shape=jax.ShapeDtypeStruct((4, B * H * W, C_out), out_dtype),
        in_specs=[pl.BlockSpec(memory_space=VMEM)] * 3,
        out_specs=pl.BlockSpec(memory_space=VMEM),
    )(patches, w_sub, b)

    # interleave phases: y[:, 2i+r, 2j+s, :] = out[2r+s]
    out = out.reshape(2, 2, B, H, W, C_out)        # (r, s, b, i, j, c)
    out = out.transpose(2, 3, 0, 4, 1, 5)          # (b, i, r, j, s, c)
    return out.reshape(B, 2 * H, 2 * W, C_out)


# ----------------------------------------------------------------------------
# Parameters (deterministic, synthetic) — Burgess architecture for 32x32 images.
# Weights are stored GEMM-ready in bf16; biases as (1, N) f32.
# ----------------------------------------------------------------------------
def init_params(key, img_size, latent_dim):
    if tuple(img_size[1:]) != (32, 32):
        raise RuntimeError("{} sized images not supported here; only (None, 32, 32)."
                           .format(img_size))
    n_chan = img_size[0]
    keys = jax.random.split(key, 16)

    def nrm(i, shape, fan_in):
        return jax.random.normal(keys[i], shape, jnp.float32) / jnp.sqrt(float(fan_in))

    def conv_gemm_w(i, c_out, c_in):
        # PyTorch Conv2d layout (C_out, C_in, kh, kw) -> (kh*kw*C_in, C_out), matching
        # the (di, dj, c) ordering of the im2col patches.
        w = nrm(i, (c_out, c_in, KSIZE, KSIZE), c_in * KSIZE * KSIZE)
        return w.transpose(2, 3, 1, 0).reshape(KSIZE * KSIZE * c_in, c_out).astype(jnp.bfloat16)

    def convT_sub_w(i, c_in, c_out):
        # PyTorch ConvTranspose2d layout (C_in, C_out, kh, kw) -> 4 per-phase 2x2
        # sub-kernels stacked as (4, 4*C_in, C_out).
        w = nrm(i, (c_in, c_out, KSIZE, KSIZE), c_in * KSIZE * KSIZE)
        subs = []
        for r in range(2):
            for s in range(2):
                taps = [w[:, :, 3 - 2 * a - r, 3 - 2 * bb - s]
                        for a in range(2) for bb in range(2)]
                subs.append(jnp.concatenate(taps, axis=0))          # (4*C_in, C_out)
        return jnp.stack(subs, axis=0).astype(jnp.bfloat16)

    def lin_w(i, d_in, d_out):
        return nrm(i, (d_in, d_out), d_in).astype(jnp.bfloat16)

    def bias(n):
        return jnp.zeros((1, n), jnp.float32)

    feat = HID_CH * 4 * 4  # 512 after three stride-2 convs on 32x32
    return {
        # encoder (e_lin1 rows are in NHWC-flatten order -> no runtime transpose)
        "e_conv1_w": conv_gemm_w(0, HID_CH, n_chan), "e_conv1_b": bias(HID_CH),
        "e_conv2_w": conv_gemm_w(1, HID_CH, HID_CH), "e_conv2_b": bias(HID_CH),
        "e_conv3_w": conv_gemm_w(2, HID_CH, HID_CH), "e_conv3_b": bias(HID_CH),
        "e_lin1_w": lin_w(3, feat, HIDDEN), "e_lin1_b": bias(HIDDEN),
        "e_lin2_w": lin_w(4, HIDDEN, HIDDEN), "e_lin2_b": bias(HIDDEN),
        "e_mu_w": lin_w(5, HIDDEN, latent_dim), "e_mu_b": bias(latent_dim),
        "e_lv_w": lin_w(6, HIDDEN, latent_dim), "e_lv_b": bias(latent_dim),
        # decoder (d_lin3 columns are in NHWC-flatten order -> no runtime transpose)
        "d_lin1_w": lin_w(7, latent_dim, HIDDEN), "d_lin1_b": bias(HIDDEN),
        "d_lin2_w": lin_w(8, HIDDEN, HIDDEN), "d_lin2_b": bias(HIDDEN),
        "d_lin3_w": lin_w(9, HIDDEN, feat), "d_lin3_b": bias(feat),
        "d_ct1_w": convT_sub_w(10, HID_CH, HID_CH), "d_ct1_b": bias(HID_CH),
        "d_ct2_w": convT_sub_w(11, HID_CH, HID_CH), "d_ct2_b": bias(HID_CH),
        "d_ct3_w": convT_sub_w(12, HID_CH, n_chan), "d_ct3_b": bias(n_chan),
    }


# ----------------------------------------------------------------------------
# VAE forward
# ----------------------------------------------------------------------------
def encoder_fwd(params, x_nchw, eps):
    B = x_nchw.shape[0]
    x = jnp.transpose(x_nchw, (0, 2, 3, 1))              # NCHW -> NHWC (API boundary)
    h = conv2d_s2(x, params["e_conv1_w"], params["e_conv1_b"], "relu")
    h = conv2d_s2(h, params["e_conv2_w"], params["e_conv2_b"], "relu")
    h = conv2d_s2(h, params["e_conv3_w"], params["e_conv3_b"], "relu")
    h = h.reshape(B, -1)                                  # NHWC flatten (weights match)
    latent_dim = params["e_mu_w"].shape[-1]
    mean, logvar, z = pl.pallas_call(
        _encoder_head_kernel,
        out_shape=(jax.ShapeDtypeStruct((B, latent_dim), jnp.float32),
                   jax.ShapeDtypeStruct((B, latent_dim), jnp.float32),
                   jax.ShapeDtypeStruct((B, latent_dim), jnp.float32)),
        in_specs=[pl.BlockSpec(memory_space=VMEM)] * 10,
        out_specs=(pl.BlockSpec(memory_space=VMEM),) * 3,
    )(h.astype(jnp.bfloat16),
      params["e_lin1_w"], params["e_lin1_b"],
      params["e_lin2_w"], params["e_lin2_b"],
      params["e_mu_w"], params["e_mu_b"],
      params["e_lv_w"], params["e_lv_b"], eps)
    return mean, logvar, z


def decoder_fwd(params, z):
    B = z.shape[0]
    h = pl.pallas_call(
        _decoder_fc_kernel,
        out_shape=jax.ShapeDtypeStruct((B, HID_CH * 4 * 4), jnp.bfloat16),
        in_specs=[pl.BlockSpec(memory_space=VMEM)] * 7,
        out_specs=pl.BlockSpec(memory_space=VMEM),
    )(z.astype(jnp.bfloat16),
      params["d_lin1_w"], params["d_lin1_b"],
      params["d_lin2_w"], params["d_lin2_b"],
      params["d_lin3_w"], params["d_lin3_b"])
    h = h.reshape(B, 4, 4, HID_CH)                        # NHWC (weights match)
    h = conv_transpose2d_subpixel(h, params["d_ct1_w"], params["d_ct1_b"], "relu")
    h = conv_transpose2d_subpixel(h, params["d_ct2_w"], params["d_ct2_b"], "relu")
    h = conv_transpose2d_subpixel(h, params["d_ct3_w"], params["d_ct3_b"], "sigmoid")
    return jnp.transpose(h, (0, 3, 1, 2))                 # NHWC -> NCHW (API boundary)


@jax.jit
def vae_forward(params, x_nchw, eps):
    mean, logvar, latent_sample = encoder_fwd(params, x_nchw, eps)
    reconstruct = decoder_fwd(params, latent_sample)
    return reconstruct, (mean, logvar), latent_sample


# ----------------------------------------------------------------------------
if __name__ == "__main__":
    img_size = (1, 32, 32)
    latent_dim = 10
    latent_dim_unq = 2  # only affects the auxiliary encoder arg in the reference (see TODO)
    batch = 2

    key = jax.random.PRNGKey(0)
    k_param, k_x, k_eps = jax.random.split(key, 3)

    params = init_params(k_param, img_size, latent_dim)
    x = jax.random.normal(k_x, (batch,) + img_size, jnp.float32)
    eps = jax.random.normal(k_eps, (batch, latent_dim), jnp.float32)

    recon, (mean, logvar), z = vae_forward(params, x, eps)
    jax.block_until_ready((recon, mean, logvar, z))

    assert recon.shape == (batch,) + img_size
    assert mean.shape == (batch, latent_dim)
    assert logvar.shape == (batch, latent_dim)
    assert z.shape == (batch, latent_dim)
    assert bool(jnp.all(jnp.isfinite(recon)))
    assert bool(jnp.all((recon >= 0.0) & (recon <= 1.0)))  # sigmoid output

    print("KERNEL_OK")
</pallas_src>

<mosaic_0001>
module attributes {stable_mosaic.version = 11 : i64} {
  func.func @_gemm_bias_act_kernel(%arg0: memref<512x16xbf16, #tpu.memory_space<vmem>>, %arg1: memref<16x32xbf16, #tpu.memory_space<vmem>>, %arg2: memref<1x32xf32, #tpu.memory_space<vmem>>, %arg3: memref<512x32xbf16, #tpu.memory_space<vmem>>) attributes {dimension_semantics = [], scalar_prefetch = 0 : i64, scratch_operands = 0 : i64, tpu.core_type = #tpu.core_type<tc>} {
    %c0 = arith.constant 0 : index
    %c0_0 = arith.constant 0 : index
    %0 = vector.load %arg0[%c0, %c0_0] : memref<512x16xbf16, #tpu.memory_space<vmem>>, vector<512x16xbf16>
    %c0_1 = arith.constant 0 : index
    %c0_2 = arith.constant 0 : index
    %1 = vector.load %arg1[%c0_1, %c0_2] : memref<16x32xbf16, #tpu.memory_space<vmem>>, vector<16x32xbf16>
    %cst = arith.constant dense<0.000000e+00> : vector<512x32xf32>
    %2 = tpu.matmul %0, %1, %cst {dimension_numbers = #tpu.dot_dimension_numbers<[1], [0], [0], [1], [0, 0, 1, 1], [], []>} : vector<512x16xbf16>, vector<16x32xbf16>, vector<512x32xf32> -> vector<512x32xf32>
    %c0_3 = arith.constant 0 : index
    %c0_4 = arith.constant 0 : index
    %3 = vector.load %arg2[%c0_3, %c0_4] : memref<1x32xf32, #tpu.memory_space<vmem>>, vector<1x32xf32>
    %4 = vector.broadcast %3 : vector<1x32xf32> to vector<512x32xf32>
    %5 = arith.addf %2, %4 : vector<512x32xf32>
    %cst_5 = arith.constant 0.000000e+00 : f32
    %6 = vector.broadcast %cst_5 : f32 to vector<512x32xf32>
    %7 = arith.maximumf %5, %6 : vector<512x32xf32>
    %8 = arith.truncf %7 : vector<512x32xf32> to vector<512x32xbf16>
    %c0_6 = arith.constant 0 : index
    %c0_7 = arith.constant 0 : index
    %9 = vector.load %arg3[%c0_6, %c0_7] : memref<512x32xbf16, #tpu.memory_space<vmem>>, vector<512x32xbf16>
    tpu.vector_store %arg3[%c0_6, %c0_7], %8 {strides = array<i32>} : memref<512x32xbf16, #tpu.memory_space<vmem>>, vector<512x32xbf16>,
    return
  }
}

module attributes {stable_mosaic.version = 11 : i64} {
  func.func @_gemm_bias_act_kernel(%arg0: memref<128x512xbf16, #tpu.memory_space<vmem>>, %arg1: memref<512x32xbf16, #tpu.memory_space<vmem>>, %arg2: memref<1x32xf32, #tpu.memory_space<vmem>>, %arg3: memref<128x32xbf16, #tpu.memory_space<vmem>>) attributes {dimension_semantics = [], scalar_prefetch = 0 : i64, scratch_operands = 0 : i64, tpu.core_type = #tpu.core_type<tc>} {
    %c0 = arith.constant 0 : index
    %c0_0 = arith.constant 0 : index
    %0 = vector.load %arg0[%c0, %c0_0] : memref<128x512xbf16, #tpu.memory_space<vmem>>, vector<128x512xbf16>
    %c0_1 = arith.constant 0 : index
    %c0_2 = arith.constant 0 : index
    %1 = vector.load %arg1[%c0_1, %c0_2] : memref<512x32xbf16, #tpu.memory_space<vmem>>, vector<512x32xbf16>
    %cst = arith.constant dense<0.000000e+00> : vector<128x32xf32>
    %2 = tpu.matmul %0, %1, %cst {dimension_numbers = #tpu.dot_dimension_numbers<[1], [0], [0], [1], [0, 0, 1, 1], [], []>} : vector<128x512xbf16>, vector<512x32xbf16>, vector<128x32xf32> -> vector<128x32xf32>
    %c0_3 = arith.constant 0 : index
    %c0_4 = arith.constant 0 : index
    %3 = vector.load %arg2[%c0_3, %c0_4] : memref<1x32xf32, #tpu.memory_space<vmem>>, vector<1x32xf32>
    %4 = vector.broadcast %3 : vector<1x32xf32> to vector<128x32xf32>
    %5 = arith.addf %2, %4 : vector<128x32xf32>
    %cst_5 = arith.constant 0.000000e+00 : f32
    %6 = vector.broadcast %cst_5 : f32 to vector<128x32xf32>
    %7 = arith.maximumf %5, %6 : vector<128x32xf32>
    %8 = arith.truncf %7 : vector<128x32xf32> to vector<128x32xbf16>
    %c0_6 = arith.constant 0 : index
    %c0_7 = arith.constant 0 : index
    %9 = vector.load %arg3[%c0_6, %c0_7] : memref<128x32xbf16, #tpu.memory_space<vmem>>, vector<128x32xbf16>
    tpu.vector_store %arg3[%c0_6, %c0_7], %8 {strides = array<i32>} : memref<128x32xbf16, #tpu.memory_space<vmem>>, vector<128x32xbf16>,
    return
  }
}

module attributes {stable_mosaic.version = 11 : i64} {
  func.func @_encoder_head_kernel(%arg0: memref<2x512xbf16, #tpu.memory_space<vmem>>, %arg1: memref<512x256xbf16, #tpu.memory_space<vmem>>, %arg2: memref<1x256xf32, #tpu.memory_space<vmem>>, %arg3: memref<256x256xbf16, #tpu.memory_space<vmem>>, %arg4: memref<1x256xf32, #tpu.memory_space<vmem>>, %arg5: memref<256x10xbf16, #tpu.memory_space<vmem>>, %arg6: memref<1x10xf32, #tpu.memory_space<vmem>>, %arg7: memref<256x10xbf16, #tpu.memory_space<vmem>>, %arg8: memref<1x10xf32, #tpu.memory_space<vmem>>, %arg9: memref<2x10xf32, #tpu.memory_space<vmem>>, %arg10: memref<2x10xf32, #tpu.memory_space<vmem>>, %arg11: memref<2x10xf32, #tpu.memory_space<vmem>>, %arg12: memref<2x10xf32, #tpu.memory_space<vmem>>) attributes {dimension_semantics = [], scalar_prefetch = 0 : i64, scratch_operands = 0 : i64, tpu.core_type = #tpu.core_type<tc>} {
    %c0 = arith.constant 0 : index
    %c0_0 = arith.constant 0 : index
    %0 = vector.load %arg0[%c0, %c0_0] : memref<2x512xbf16, #tpu.memory_space<vmem>>, vector<2x512xbf16>
    %c0_1 = arith.constant 0 : index
    %c0_2 = arith.constant 0 : index
    %1 = vector.load %arg1[%c0_1, %c0_2] : memref<512x256xbf16, #tpu.memory_space<vmem>>, vector<512x256xbf16>
    %cst = arith.constant dense<0.000000e+00> : vector<2x256xf32>
    %2 = tpu.matmul %0, %1, %cst {dimension_numbers = #tpu.dot_dimension_numbers<[1], [0], [0], [1], [0, 0, 1, 1], [], []>} : vector<2x512xbf16>, vector<512x256xbf16>, vector<2x256xf32> -> vector<2x256xf32>
    %c0_3 = arith.constant 0 : index
    %c0_4 = arith.constant 0 : index
    %3 = vector.load %arg2[%c0_3, %c0_4] : memref<1x256xf32, #tpu.memory_space<vmem>>, vector<1x256xf32>
    %4 = vector.broadcast %3 : vector<1x256xf32> to vector<2x256xf32>
    %5 = arith.addf %2, %4 : vector<2x256xf32>
    %cst_5 = arith.constant 0.000000e+00 : f32
    %6 = vector.broadcast %cst_5 : f32 to vector<2x256xf32>
    %7 = arith.maximumf %5, %6 : vector<2x256xf32>
    %8 = arith.truncf %7 : vector<2x256xf32> to vector<2x256xbf16>
    %c0_6 = arith.constant 0 : index
    %c0_7 = arith.constant 0 : index
    %9 = vector.load %arg3[%c0_6, %c0_7] : memref<256x256xbf16, #tpu.memory_space<vmem>>, vector<256x256xbf16>
    %cst_8 = arith.constant dense<0.000000e+00> : vector<2x256xf32>
    %10 = tpu.matmul %8, %9, %cst_8 {dimension_numbers = #tpu.dot_dimension_numbers<[1], [0], [0], [1], [0, 0, 1, 1], [], []>} : vector<2x256xbf16>, vector<256x256xbf16>, vector<2x256xf32> -> vector<2x256xf32>
    %c0_9 = arith.constant 0 : index
    %c0_10 = arith.constant 0 : index
    %11 = vector.load %arg4[%c0_9, %c0_10] : memref<1x256xf32, #tpu.memory_space<vmem>>, vector<1x256xf32>
    %12 = vector.broadcast %11 : vector<1x256xf32> to vector<2x256xf32>
    %13 = arith.addf %10, %12 : vector<2x256xf32>
    %cst_11 = arith.constant 0.000000e+00 : f32
    %14 = vector.broadcast %cst_11 : f32 to vector<2x256xf32>
    %15 = arith.maximumf %13, %14 : vector<2x256xf32>
    %16 = arith.truncf %15 : vector<2x256xf32> to vector<2x256xbf16>
    %c0_12 = arith.constant 0 : index
    %c0_13 = arith.constant 0 : index
    %17 = vector.load %arg5[%c0_12, %c0_13] : memref<256x10xbf16, #tpu.memory_space<vmem>>, vector<256x10xbf16>
    %cst_14 = arith.constant dense<0.000000e+00> : vector<2x10xf32>
    %18 = tpu.matmul %16, %17, %cst_14 {dimension_numbers = #tpu.dot_dimension_numbers<[1], [0], [0], [1], [0, 0, 1, 1], [], []>} : vector<2x256xbf16>, vector<256x10xbf16>, vector<2x10xf32> -> vector<2x10xf32>
    %c0_15 = arith.constant 0 : index
    %c0_16 = arith.constant 0 : index
    %19 = vector.load %arg6[%c0_15, %c0_16] : memref<1x10xf32, #tpu.memory_space<vmem>>, vector<1x10xf32>
    %20 = vector.broadcast %19 : vector<1x10xf32> to vector<2x10xf32>
    %21 = arith.addf %18, %20 : vector<2x10xf32>
    %c0_17 = arith.constant 0 : index
    %c0_18 = arith.constant 0 : index
    %22 = vector.load %arg7[%c0_17, %c0_18] : memref<256x10xbf16, #tpu.memory_space<vmem>>, vector<256x10xbf16>
    %cst_19 = arith.constant dense<0.000000e+00> : vector<2x10xf32>
    %23 = tpu.matmul %16, %22, %cst_19 {dimension_numbers = #tpu.dot_dimension_numbers<[1], [0], [0], [1], [0, 0, 1, 1], [], []>} : vector<2x256xbf16>, vector<256x10xbf16>, vector<2x10xf32> -> vector<2x10xf32>
    %c0_20 = arith.constant 0 : index
    %c0_21 = arith.constant 0 : index
    %24 = vector.load %arg8[%c0_20, %c0_21] : memref<1x10xf32, #tpu.memory_space<vmem>>, vector<1x10xf32>
    %25 = vector.broadcast %24 : vector<1x10xf32> to vector<2x10xf32>
    %26 = arith.addf %23, %25 : vector<2x10xf32>
    %cst_22 = arith.constant 5.000000e-01 : f32
    %27 = vector.broadcast %cst_22 : f32 to vector<2x10xf32>
    %28 = arith.mulf %27, %26 : vector<2x10xf32>
    %29 = math.exp %28 : vector<2x10xf32>
    %c0_23 = arith.constant 0 : index
    %c0_24 = arith.constant 0 : index
    %30 = vector.load %arg10[%c0_23, %c0_24] : memref<2x10xf32, #tpu.memory_space<vmem>>, vector<2x10xf32>
    tpu.vector_store %arg10[%c0_23, %c0_24], %21 {strides = array<i32>} : memref<2x10xf32, #tpu.memory_space<vmem>>, vector<2x10xf32>,
    %c0_25 = arith.constant 0 : index
    %c0_26 = arith.constant 0 : index
    %31 = vector.load %arg11[%c0_25, %c0_26] : memref<2x10xf32, #tpu.memory_space<vmem>>, vector<2x10xf32>
    tpu.vector_store %arg11[%c0_25, %c0_26], %26 {strides = array<i32>} : memref<2x10xf32, #tpu.memory_space<vmem>>, vector<2x10xf32>,
    %c0_27 = arith.constant 0 : index
    %c0_28 = arith.constant 0 : index
    %32 = vector.load %arg9[%c0_27, %c0_28] : memref<2x10xf32, #tpu.memory_space<vmem>>, vector<2x10xf32>
    %33 = arith.mulf %29, %32 : vector<2x10xf32>
    %34 = arith.addf %21, %33 : vector<2x10xf32>
    %c0_29 = arith.constant 0 : index
    %c0_30 = arith.constant 0 : index
    %35 = vector.load %arg12[%c0_29, %c0_30] : memref<2x10xf32, #tpu.memory_space<vmem>>, vector<2x10xf32>
    tpu.vector_store %arg12[%c0_29, %c0_30], %34 {strides = array<i32>} : memref<2x10xf32, #tpu.memory_space<vmem>>, vector<2x10xf32>,
    return
  }
}

module attributes {stable_mosaic.version = 11 : i64} {
  func.func @_decoder_fc_kernel(%arg0: memref<2x10xbf16, #tpu.memory_space<vmem>>, %arg1: memref<10x256xbf16, #tpu.memory_space<vmem>>, %arg2: memref<1x256xf32, #tpu.memory_space<vmem>>, %arg3: memref<256x256xbf16, #tpu.memory_space<vmem>>, %arg4: memref<1x256xf32, #tpu.memory_space<vmem>>, %arg5: memref<256x512xbf16, #tpu.memory_space<vmem>>, %arg6: memref<1x512xf32, #tpu.memory_space<vmem>>, %arg7: memref<2x512xbf16, #tpu.memory_space<vmem>>) attributes {dimension_semantics = [], scalar_prefetch = 0 : i64, scratch_operands = 0 : i64, tpu.core_type = #tpu.core_type<tc>} {
    %c0 = arith.constant 0 : index
    %c0_0 = arith.constant 0 : index
    %0 = vector.load %arg0[%c0, %c0_0] : memref<2x10xbf16, #tpu.memory_space<vmem>>, vector<2x10xbf16>
    %c0_1 = arith.constant 0 : index
    %c0_2 = arith.constant 0 : index
    %1 = vector.load %arg1[%c0_1, %c0_2] : memref<10x256xbf16, #tpu.memory_space<vmem>>, vector<10x256xbf16>
    %cst = arith.constant dense<0.000000e+00> : vector<2x256xf32>
    %2 = tpu.matmul %0, %1, %cst {dimension_numbers = #tpu.dot_dimension_numbers<[1], [0], [0], [1], [0, 0, 1, 1], [], []>} : vector<2x10xbf16>, vector<10x256xbf16>, vector<2x256xf32> -> vector<2x256xf32>
    %c0_3 = arith.constant 0 : index
    %c0_4 = arith.constant 0 : index
    %3 = vector.load %arg2[%c0_3, %c0_4] : memref<1x256xf32, #tpu.memory_space<vmem>>, vector<1x256xf32>
    %4 = vector.broadcast %3 : vector<1x256xf32> to vector<2x256xf32>
    %5 = arith.addf %2, %4 : vector<2x256xf32>
    %cst_5 = arith.constant 0.000000e+00 : f32
    %6 = vector.broadcast %cst_5 : f32 to vector<2x256xf32>
    %7 = arith.maximumf %5, %6 : vector<2x256xf32>
    %8 = arith.truncf %7 : vector<2x256xf32> to vector<2x256xbf16>
    %c0_6 = arith.constant 0 : index
    %c0_7 = arith.constant 0 : index
    %9 = vector.load %arg3[%c0_6, %c0_7] : memref<256x256xbf16, #tpu.memory_space<vmem>>, vector<256x256xbf16>
    %cst_8 = arith.constant dense<0.000000e+00> : vector<2x256xf32>
    %10 = tpu.matmul %8, %9, %cst_8 {dimension_numbers = #tpu.dot_dimension_numbers<[1], [0], [0], [1], [0, 0, 1, 1], [], []>} : vector<2x256xbf16>, vector<256x256xbf16>, vector<2x256xf32> -> vector<2x256xf32>
    %c0_9 = arith.constant 0 : index
    %c0_10 = arith.constant 0 : index
    %11 = vector.load %arg4[%c0_9, %c0_10] : memref<1x256xf32, #tpu.memory_space<vmem>>, vector<1x256xf32>
    %12 = vector.broadcast %11 : vector<1x256xf32> to vector<2x256xf32>
    %13 = arith.addf %10, %12 : vector<2x256xf32>
    %cst_11 = arith.constant 0.000000e+00 : f32
    %14 = vector.broadcast %cst_11 : f32 to vector<2x256xf32>
    %15 = arith.maximumf %13, %14 : vector<2x256xf32>
    %16 = arith.truncf %15 : vector<2x256xf32> to vector<2x256xbf16>
    %c0_12 = arith.constant 0 : index
    %c0_13 = arith.constant 0 : index
    %17 = vector.load %arg5[%c0_12, %c0_13] : memref<256x512xbf16, #tpu.memory_space<vmem>>, vector<256x512xbf16>
    %cst_14 = arith.constant dense<0.000000e+00> : vector<2x512xf32>
    %18 = tpu.matmul %16, %17, %cst_14 {dimension_numbers = #tpu.dot_dimension_numbers<[1], [0], [0], [1], [0, 0, 1, 1], [], []>} : vector<2x256xbf16>, vector<256x512xbf16>, vector<2x512xf32> -> vector<2x512xf32>
    %c0_15 = arith.constant 0 : index
    %c0_16 = arith.constant 0 : index
    %19 = vector.load %arg6[%c0_15, %c0_16] : memref<1x512xf32, #tpu.memory_space<vmem>>, vector<1x512xf32>
    %20 = vector.broadcast %19 : vector<1x512xf32> to vector<2x512xf32>
    %21 = arith.addf %18, %20 : vector<2x512xf32>
    %cst_17 = arith.constant 0.000000e+00 : f32
    %22 = vector.broadcast %cst_17 : f32 to vector<2x512xf32>
    %23 = arith.maximumf %21, %22 : vector<2x512xf32>
    %24 = arith.truncf %23 : vector<2x512xf32> to vector<2x512xbf16>
    %c0_18 = arith.constant 0 : index
    %c0_19 = arith.constant 0 : index
    %25 = vector.load %arg7[%c0_18, %c0_19] : memref<2x512xbf16, #tpu.memory_space<vmem>>, vector<2x512xbf16>
    tpu.vector_store %arg7[%c0_18, %c0_19], %24 {strides = array<i32>} : memref<2x512xbf16, #tpu.memory_space<vmem>>, vector<2x512xbf16>,
    return
  }
}

module attributes {stable_mosaic.version = 11 : i64} {
  func.func @_gemm_bias_act_kernel(%arg0: memref<32x512xbf16, #tpu.memory_space<vmem>>, %arg1: memref<512x32xbf16, #tpu.memory_space<vmem>>, %arg2: memref<1x32xf32, #tpu.memory_space<vmem>>, %arg3: memref<32x32xbf16, #tpu.memory_space<vmem>>) attributes {dimension_semantics = [], scalar_prefetch = 0 : i64, scratch_operands = 0 : i64, tpu.core_type = #tpu.core_type<tc>} {
    %c0 = arith.constant 0 : index
    %c0_0 = arith.constant 0 : index
    %0 = vector.load %arg0[%c0, %c0_0] : memref<32x512xbf16, #tpu.memory_space<vmem>>, vector<32x512xbf16>
    %c0_1 = arith.constant 0 : index
    %c0_2 = arith.constant 0 : index
    %1 = vector.load %arg1[%c0_1, %c0_2] : memref<512x32xbf16, #tpu.memory_space<vmem>>, vector<512x32xbf16>
    %cst = arith.constant dense<0.000000e+00> : vector<32x32xf32>
    %2 = tpu.matmul %0, %1, %cst {dimension_numbers = #tpu.dot_dimension_numbers<[1], [0], [0], [1], [0, 0, 1, 1], [], []>} : vector<32x512xbf16>, vector<512x32xbf16>, vector<32x32xf32> -> vector<32x32xf32>
    %c0_3 = arith.constant 0 : index
    %c0_4 = arith.constant 0 : index
    %3 = vector.load %arg2[%c0_3, %c0_4] : memref<1x32xf32, #tpu.memory_space<vmem>>, vector<1x32xf32>
    %4 = vector.broadcast %3 : vector<1x32xf32> to vector<32x32xf32>
    %5 = arith.addf %2, %4 : vector<32x32xf32>
    %cst_5 = arith.constant 0.000000e+00 : f32
    %6 = vector.broadcast %cst_5 : f32 to vector<32x32xf32>
    %7 = arith.maximumf %5, %6 : vector<32x32xf32>
    %8 = arith.truncf %7 : vector<32x32xf32> to vector<32x32xbf16>
    %c0_6 = arith.constant 0 : index
    %c0_7 = arith.constant 0 : index
    %9 = vector.load %arg3[%c0_6, %c0_7] : memref<32x32xbf16, #tpu.memory_space<vmem>>, vector<32x32xbf16>
    tpu.vector_store %arg3[%c0_6, %c0_7], %8 {strides = array<i32>} : memref<32x32xbf16, #tpu.memory_space<vmem>>, vector<32x32xbf16>,
    return
  }
}

module attributes {stable_mosaic.version = 11 : i64} {
  func.func @_convT_phase_kernel(%arg0: memref<4x32x128xbf16, #tpu.memory_space<vmem>>, %arg1: memref<4x128x32xbf16, #tpu.memory_space<vmem>>, %arg2: memref<1x32xf32, #tpu.memory_space<vmem>>, %arg3: memref<4x32x32xbf16, #tpu.memory_space<vmem>>) attributes {dimension_semantics = [], scalar_prefetch = 0 : i64, scratch_operands = 0 : i64, tpu.core_type = #tpu.core_type<tc>} {
    %c0 = arith.constant 0 : index
    %c0_0 = arith.constant 0 : index
    %c0_1 = arith.constant 0 : index
    %0 = vector.load %arg0[%c0, %c0_0, %c0_1] : memref<4x32x128xbf16, #tpu.memory_space<vmem>>, vector<1x32x128xbf16>
    %1 = vector.shape_cast %0 : vector<1x32x128xbf16> to vector<32x128xbf16>
    %c0_2 = arith.constant 0 : index
    %c0_3 = arith.constant 0 : index
    %c0_4 = arith.constant 0 : index
    %2 = vector.load %arg1[%c0_2, %c0_3, %c0_4] : memref<4x128x32xbf16, #tpu.memory_space<vmem>>, vector<1x128x32xbf16>
    %3 = vector.shape_cast %2 : vector<1x128x32xbf16> to vector<128x32xbf16>
    %cst = arith.constant dense<0.000000e+00> : vector<32x32xf32>
    %4 = tpu.matmul %1, %3, %cst {dimension_numbers = #tpu.dot_dimension_numbers<[1], [0], [0], [1], [0, 0, 1, 1], [], []>} : vector<32x128xbf16>, vector<128x32xbf16>, vector<32x32xf32> -> vector<32x32xf32>
    %c0_5 = arith.constant 0 : index
    %c0_6 = arith.constant 0 : index
    %5 = vector.load %arg2[%c0_5, %c0_6] : memref<1x32xf32, #tpu.memory_space<vmem>>, vector<1x32xf32>
    %6 = vector.broadcast %5 : vector<1x32xf32> to vector<32x32xf32>
    %7 = arith.addf %4, %6 : vector<32x32xf32>
    %cst_7 = arith.constant 0.000000e+00 : f32
    %8 = vector.broadcast %cst_7 : f32 to vector<32x32xf32>
    %9 = arith.maximumf %7, %8 : vector<32x32xf32>
    %10 = arith.truncf %9 : vector<32x32xf32> to vector<32x32xbf16>
    %c0_8 = arith.constant 0 : index
    %c0_9 = arith.constant 0 : index
    %c0_10 = arith.constant 0 : index
    %11 = vector.load %arg3[%c0_8, %c0_9, %c0_10] : memref<4x32x32xbf16, #tpu.memory_space<vmem>>, vector<1x32x32xbf16>
    %12 = vector.shape_cast %11 : vector<1x32x32xbf16> to vector<32x32xbf16>
    %13 = vector.shape_cast %10 : vector<32x32xbf16> to vector<1x32x32xbf16>
    tpu.vector_store %arg3[%c0_8, %c0_9, %c0_10], %13 {strides = array<i32>} : memref<4x32x32xbf16, #tpu.memory_space<vmem>>, vector<1x32x32xbf16>,
    %c1 = arith.constant 1 : index
    %c0_11 = arith.constant 0 : index
    %c0_12 = arith.constant 0 : index
    %14 = vector.load %arg0[%c1, %c0_11, %c0_12] : memref<4x32x128xbf16, #tpu.memory_space<vmem>>, vector<1x32x128xbf16>
    %15 = vector.shape_cast %14 : vector<1x32x128xbf16> to vector<32x128xbf16>
    %c1_13 = arith.constant 1 : index
    %c0_14 = arith.constant 0 : index
    %c0_15 = arith.constant 0 : index
    %16 = vector.load %arg1[%c1_13, %c0_14, %c0_15] : memref<4x128x32xbf16, #tpu.memory_space<vmem>>, vector<1x128x32xbf16>
    %17 = vector.shape_cast %16 : vector<1x128x32xbf16> to vector<128x32xbf16>
    %cst_16 = arith.constant dense<0.000000e+00> : vector<32x32xf32>
    %18 = tpu.matmul %15, %17, %cst_16 {dimension_numbers = #tpu.dot_dimension_numbers<[1], [0], [0], [1], [0, 0, 1, 1], [], []>} : vector<32x128xbf16>, vector<128x32xbf16>, vector<32x32xf32> -> vector<32x32xf32>
    %c0_17 = arith.constant 0 : index
    %c0_18 = arith.constant 0 : index
    %19 = vector.load %arg2[%c0_17, %c0_18] : memref<1x32xf32, #tpu.memory_space<vmem>>, vector<1x32xf32>
    %20 = vector.broadcast %19 : vector<1x32xf32> to vector<32x32xf32>
    %21 = arith.addf %18, %20 : vector<32x32xf32>
    %cst_19 = arith.constant 0.000000e+00 : f32
    %22 = vector.broadcast %cst_19 : f32 to vector<32x32xf32>
    %23 = arith.maximumf %21, %22 : vector<32x32xf32>
    %24 = arith.truncf %23 : vector<32x32xf32> to vector<32x32xbf16>
    %c1_20 = arith.constant 1 : index
    %c0_21 = arith.constant 0 : index
    %c0_22 = arith.constant 0 : index
    %25 = vector.load %arg3[%c1_20, %c0_21, %c0_22] : memref<4x32x32xbf16, #tpu.memory_space<vmem>>, vector<1x32x32xbf16>
    %26 = vector.shape_cast %25 : vector<1x32x32xbf16> to vector<32x32xbf16>
    %27 = vector.shape_cast %24 : vector<32x32xbf16> to vector<1x32x32xbf16>
    tpu.vector_store %arg3[%c1_20, %c0_21, %c0_22], %27 {strides = array<i32>} : memref<4x32x32xbf16, #tpu.memory_space<vmem>>, vector<1x32x32xbf16>,
    %c2 = arith.constant 2 : index
    %c0_23 = arith.constant 0 : index
    %c0_24 = arith.constant 0 : index
    %28 = vector.load %arg0[%c2, %c0_23, %c0_24] : memref<4x32x128xbf16, #tpu.memory_space<vmem>>, vector<1x32x128xbf16>
    %29 = vector.shape_cast %28 : vector<1x32x128xbf16> to vector<32x128xbf16>
    %c2_25 = arith.constant 2 : index
    %c0_26 = arith.constant 0 : index
    %c0_27 = arith.constant 0 : index
    %30 = vector.load %arg1[%c2_25, %c0_26, %c0_27] : memref<4x128x32xbf16, #tpu.memory_space<vmem>>, vector<1x128x32xbf16>
    %31 = vector.shape_cast %30 : vector<1x128x32xbf16> to vector<128x32xbf16>
    %cst_28 = arith.constant dense<0.000000e+00> : vector<32x32xf32>
    %32 = tpu.matmul %29, %31, %cst_28 {dimension_numbers = #tpu.dot_dimension_numbers<[1], [0], [0], [1], [0, 0, 1, 1], [], []>} : vector<32x128xbf16>, vector<128x32xbf16>, vector<32x32xf32> -> vector<32x32xf32>
    %c0_29 = arith.constant 0 : index
    %c0_30 = arith.constant 0 : index
    %33 = vector.load %arg2[%c0_29, %c0_30] : memref<1x32xf32, #tpu.memory_space<vmem>>, vector<1x32xf32>
    %34 = vector.broadcast %33 : vector<1x32xf32> to vector<32x32xf32>
    %35 = arith.addf %32, %34 : vector<32x32xf32>
    %cst_31 = arith.constant 0.000000e+00 : f32
    %36 = vector.broadcast %cst_31 : f32 to vector<32x32xf32>
    %37 = arith.maximumf %35, %36 : vector<32x32xf32>
    %38 = arith.truncf %37 : vector<32x32xf32> to vector<32x32xbf16>
    %c2_32 = arith.constant 2 : index
    %c0_33 = arith.constant 0 : index
    %c0_34 = arith.constant 0 : index
    %39 = vector.load %arg3[%c2_32, %c0_33, %c0_34] : memref<4x32x32xbf16, #tpu.memory_space<vmem>>, vector<1x32x32xbf16>
    %40 = vector.shape_cast %39 : vector<1x32x32xbf16> to vector<32x32xbf16>
    %41 = vector.shape_cast %38 : vector<32x32xbf16> to vector<1x32x32xbf16>
    tpu.vector_store %arg3[%c2_32, %c0_33, %c0_34], %41 {strides = array<i32>} : memref<4x32x32xbf16, #tpu.memory_space<vmem>>, vector<1x32x32xbf16>,
    %c3 = arith.constant 3 : index
    %c0_35 = arith.constant 0 : index
    %c0_36 = arith.constant 0 : index
    %42 = vector.load %arg0[%c3, %c0_35, %c0_36] : memref<4x32x128xbf16, #tpu.memory_space<vmem>>, vector<1x32x128xbf16>
    %43 = vector.shape_cast %42 : vector<1x32x128xbf16> to vector<32x128xbf16>
    %c3_37 = arith.constant 3 : index
    %c0_38 = arith.constant 0 : index
    %c0_39 = arith.constant 0 : index
    %44 = vector.load %arg1[%c3_37, %c0_38, %c0_39] : memref<4x128x32xbf16, #tpu.memory_space<vmem>>, vector<1x128x32xbf16>
    %45 = vector.shape_cast %44 : vector<1x128x32xbf16> to vector<128x32xbf16>
    %cst_40 = arith.constant dense<0.000000e+00> : vector<32x32xf32>
    %46 = tpu.matmul %43, %45, %cst_40 {dimension_numbers = #tpu.dot_dimension_numbers<[1], [0], [0], [1], [0, 0, 1, 1], [], []>} : vector<32x128xbf16>, vector<128x32xbf16>, vector<32x32xf32> -> vector<32x32xf32>
    %c0_41 = arith.constant 0 : index
    %c0_42 = arith.constant 0 : index
    %47 = vector.load %arg2[%c0_41, %c0_42] : memref<1x32xf32, #tpu.memory_space<vmem>>, vector<1x32xf32>
    %48 = vector.broadcast %47 : vector<1x32xf32> to vector<32x32xf32>
    %49 = arith.addf %46, %48 : vector<32x32xf32>
    %cst_43 = arith.constant 0.000000e+00 : f32
    %50 = vector.broadcast %cst_43 : f32 to vector<32x32xf32>
    %51 = arith.maximumf %49, %50 : vector<32x32xf32>
    %52 = arith.truncf %51 : vector<32x32xf32> to vector<32x32xbf16>
    %c3_44 = arith.constant 3 : index
    %c0_45 = arith.constant 0 : index
    %c0_46 = arith.constant 0 : index
    %53 = vector.load %arg3[%c3_44, %c0_45, %c0_46] : memref<4x32x32xbf16, #tpu.memory_space<vmem>>, vector<1x32x32xbf16>
    %54 = vector.shape_cast %53 : vector<1x32x32xbf16> to vector<32x32xbf16>
    %55 = vector.shape_cast %52 : vector<32x32xbf16> to vector<1x32x32xbf16>
    tpu.vector_store %arg3[%c3_44, %c0_45, %c0_46], %55 {strides = array<i32>} : memref<4x32x32xbf16, #tpu.memory_space<vmem>>, vector<1x32x32xbf16>,
    return
  }
}

module attributes {stable_mosaic.version = 11 : i64} {
  func.func @_convT_phase_kernel(%arg0: memref<4x128x128xbf16, #tpu.memory_space<vmem>>, %arg1: memref<4x128x32xbf16, #tpu.memory_space<vmem>>, %arg2: memref<1x32xf32, #tpu.memory_space<vmem>>, %arg3: memref<4x128x32xbf16, #tpu.memory_space<vmem>>) attributes {dimension_semantics = [], scalar_prefetch = 0 : i64, scratch_operands = 0 : i64, tpu.core_type = #tpu.core_type<tc>} {
    %c0 = arith.constant 0 : index
    %c0_0 = arith.constant 0 : index
    %c0_1 = arith.constant 0 : index
    %0 = vector.load %arg0[%c0, %c0_0, %c0_1] : memref<4x128x128xbf16, #tpu.memory_space<vmem>>, vector<1x128x128xbf16>
    %1 = vector.shape_cast %0 : vector<1x128x128xbf16> to vector<128x128xbf16>
    %c0_2 = arith.constant 0 : index
    %c0_3 = arith.constant 0 : index
    %c0_4 = arith.constant 0 : index
    %2 = vector.load %arg1[%c0_2, %c0_3, %c0_4] : memref<4x128x32xbf16, #tpu.memory_space<vmem>>, vector<1x128x32xbf16>
    %3 = vector.shape_cast %2 : vector<1x128x32xbf16> to vector<128x32xbf16>
    %cst = arith.constant dense<0.000000e+00> : vector<128x32xf32>
    %4 = tpu.matmul %1, %3, %cst {dimension_numbers = #tpu.dot_dimension_numbers<[1], [0], [0], [1], [0, 0, 1, 1], [], []>} : vector<128x128xbf16>, vector<128x32xbf16>, vector<128x32xf32> -> vector<128x32xf32>
    %c0_5 = arith.constant 0 : index
    %c0_6 = arith.constant 0 : index
    %5 = vector.load %arg2[%c0_5, %c0_6] : memref<1x32xf32, #tpu.memory_space<vmem>>, vector<1x32xf32>
    %6 = vector.broadcast %5 : vector<1x32xf32> to vector<128x32xf32>
    %7 = arith.addf %4, %6 : vector<128x32xf32>
    %cst_7 = arith.constant 0.000000e+00 : f32
    %8 = vector.broadcast %cst_7 : f32 to vector<128x32xf32>
    %9 = arith.maximumf %7, %8 : vector<128x32xf32>
    %10 = arith.truncf %9 : vector<128x32xf32> to vector<128x32xbf16>
    %c0_8 = arith.constant 0 : index
    %c0_9 = arith.constant 0 : index
    %c0_10 = arith.constant 0 : index
    %11 = vector.load %arg3[%c0_8, %c0_9, %c0_10] : memref<4x128x32xbf16, #tpu.memory_space<vmem>>, vector<1x128x32xbf16>
    %12 = vector.shape_cast %11 : vector<1x128x32xbf16> to vector<128x32xbf16>
    %13 = vector.shape_cast %10 : vector<128x32xbf16> to vector<1x128x32xbf16>
    tpu.vector_store %arg3[%c0_8, %c0_9, %c0_10], %13 {strides = array<i32>} : memref<4x128x32xbf16, #tpu.memory_space<vmem>>, vector<1x128x32xbf16>,
    %c1 = arith.constant 1 : index
    %c0_11 = arith.constant 0 : index
    %c0_12 = arith.constant 0 : index
    %14 = vector.load %arg0[%c1, %c0_11, %c0_12] : memref<4x128x128xbf16, #tpu.memory_space<vmem>>, vector<1x128x128xbf16>
    %15 = vector.shape_cast %14 : vector<1x128x128xbf16> to vector<128x128xbf16>
    %c1_13 = arith.constant 1 : index
    %c0_14 = arith.constant 0 : index
    %c0_15 = arith.constant 0 : index
    %16 = vector.load %arg1[%c1_13, %c0_14, %c0_15] : memref<4x128x32xbf16, #tpu.memory_space<vmem>>, vector<1x128x32xbf16>
    %17 = vector.shape_cast %16 : vector<1x128x32xbf16> to vector<128x32xbf16>
    %cst_16 = arith.constant dense<0.000000e+00> : vector<128x32xf32>
    %18 = tpu.matmul %15, %17, %cst_16 {dimension_numbers = #tpu.dot_dimension_numbers<[1], [0], [0], [1], [0, 0, 1, 1], [], []>} : vector<128x128xbf16>, vector<128x32xbf16>, vector<128x32xf32> -> vector<128x32xf32>
    %c0_17 = arith.constant 0 : index
    %c0_18 = arith.constant 0 : index
    %19 = vector.load %arg2[%c0_17, %c0_18] : memref<1x32xf32, #tpu.memory_space<vmem>>, vector<1x32xf32>
    %20 = vector.broadcast %19 : vector<1x32xf32> to vector<128x32xf32>
    %21 = arith.addf %18, %20 : vector<128x32xf32>
    %cst_19 = arith.constant 0.000000e+00 : f32
    %22 = vector.broadcast %cst_19 : f32 to vector<128x32xf32>
    %23 = arith.maximumf %21, %22 : vector<128x32xf32>
    %24 = arith.truncf %23 : vector<128x32xf32> to vector<128x32xbf16>
    %c1_20 = arith.constant 1 : index
    %c0_21 = arith.constant 0 : index
    %c0_22 = arith.constant 0 : index
    %25 = vector.load %arg3[%c1_20, %c0_21, %c0_22] : memref<4x128x32xbf16, #tpu.memory_space<vmem>>, vector<1x128x32xbf16>
    %26 = vector.shape_cast %25 : vector<1x128x32xbf16> to vector<128x32xbf16>
    %27 = vector.shape_cast %24 : vector<128x32xbf16> to vector<1x128x32xbf16>
    tpu.vector_store %arg3[%c1_20, %c0_21, %c0_22], %27 {strides = array<i32>} : memref<4x128x32xbf16, #tpu.memory_space<vmem>>, vector<1x128x32xbf16>,
    %c2 = arith.constant 2 : index
    %c0_23 = arith.constant 0 : index
    %c0_24 = arith.constant 0 : index
    %28 = vector.load %arg0[%c2, %c0_23, %c0_24] : memref<4x128x128xbf16, #tpu.memory_space<vmem>>, vector<1x128x128xbf16>
    %29 = vector.shape_cast %28 : vector<1x128x128xbf16> to vector<128x128xbf16>
    %c2_25 = arith.constant 2 : index
    %c0_26 = arith.constant 0 : index
    %c0_27 = arith.constant 0 : index
    %30 = vector.load %arg1[%c2_25, %c0_26, %c0_27] : memref<4x128x32xbf16, #tpu.memory_space<vmem>>, vector<1x128x32xbf16>
    %31 = vector.shape_cast %30 : vector<1x128x32xbf16> to vector<128x32xbf16>
    %cst_28 = arith.constant dense<0.000000e+00> : vector<128x32xf32>
    %32 = tpu.matmul %29, %31, %cst_28 {dimension_numbers = #tpu.dot_dimension_numbers<[1], [0], [0], [1], [0, 0, 1, 1], [], []>} : vector<128x128xbf16>, vector<128x32xbf16>, vector<128x32xf32> -> vector<128x32xf32>
    %c0_29 = arith.constant 0 : index
    %c0_30 = arith.constant 0 : index
    %33 = vector.load %arg2[%c0_29, %c0_30] : memref<1x32xf32, #tpu.memory_space<vmem>>, vector<1x32xf32>
    %34 = vector.broadcast %33 : vector<1x32xf32> to vector<128x32xf32>
    %35 = arith.addf %32, %34 : vector<128x32xf32>
    %cst_31 = arith.constant 0.000000e+00 : f32
    %36 = vector.broadcast %cst_31 : f32 to vector<128x32xf32>
    %37 = arith.maximumf %35, %36 : vector<128x32xf32>
    %38 = arith.truncf %37 : vector<128x32xf32> to vector<128x32xbf16>
    %c2_32 = arith.constant 2 : index
    %c0_33 = arith.constant 0 : index
    %c0_34 = arith.constant 0 : index
    %39 = vector.load %arg3[%c2_32, %c0_33, %c0_34] : memref<4x128x32xbf16, #tpu.memory_space<vmem>>, vector<1x128x32xbf16>
    %40 = vector.shape_cast %39 : vector<1x128x32xbf16> to vector<128x32xbf16>
    %41 = vector.shape_cast %38 : vector<128x32xbf16> to vector<1x128x32xbf16>
    tpu.vector_store %arg3[%c2_32, %c0_33, %c0_34], %41 {strides = array<i32>} : memref<4x128x32xbf16, #tpu.memory_space<vmem>>, vector<1x128x32xbf16>,
    %c3 = arith.constant 3 : index
    %c0_35 = arith.constant 0 : index
    %c0_36 = arith.constant 0 : index
    %42 = vector.load %arg0[%c3, %c0_35, %c0_36] : memref<4x128x128xbf16, #tpu.memory_space<vmem>>, vector<1x128x128xbf16>
    %43 = vector.shape_cast %42 : vector<1x128x128xbf16> to vector<128x128xbf16>
    %c3_37 = arith.constant 3 : index
    %c0_38 = arith.constant 0 : index
    %c0_39 = arith.constant 0 : index
    %44 = vector.load %arg1[%c3_37, %c0_38, %c0_39] : memref<4x128x32xbf16, #tpu.memory_space<vmem>>, vector<1x128x32xbf16>
    %45 = vector.shape_cast %44 : vector<1x128x32xbf16> to vector<128x32xbf16>
    %cst_40 = arith.constant dense<0.000000e+00> : vector<128x32xf32>
    %46 = tpu.matmul %43, %45, %cst_40 {dimension_numbers = #tpu.dot_dimension_numbers<[1], [0], [0], [1], [0, 0, 1, 1], [], []>} : vector<128x128xbf16>, vector<128x32xbf16>, vector<128x32xf32> -> vector<128x32xf32>
    %c0_41 = arith.constant 0 : index
    %c0_42 = arith.constant 0 : index
    %47 = vector.load %arg2[%c0_41, %c0_42] : memref<1x32xf32, #tpu.memory_space<vmem>>, vector<1x32xf32>
    %48 = vector.broadcast %47 : vector<1x32xf32> to vector<128x32xf32>
    %49 = arith.addf %46, %48 : vector<128x32xf32>
    %cst_43 = arith.constant 0.000000e+00 : f32
    %50 = vector.broadcast %cst_43 : f32 to vector<128x32xf32>
    %51 = arith.maximumf %49, %50 : vector<128x32xf32>
    %52 = arith.truncf %51 : vector<128x32xf32> to vector<128x32xbf16>
    %c3_44 = arith.constant 3 : index
    %c0_45 = arith.constant 0 : index
    %c0_46 = arith.constant 0 : index
    %53 = vector.load %arg3[%c3_44, %c0_45, %c0_46] : memref<4x128x32xbf16, #tpu.memory_space<vmem>>, vector<1x128x32xbf16>
    %54 = vector.shape_cast %53 : vector<1x128x32xbf16> to vector<128x32xbf16>
    %55 = vector.shape_cast %52 : vector<128x32xbf16> to vector<1x128x32xbf16>
    tpu.vector_store %arg3[%c3_44, %c0_45, %c0_46], %55 {strides = array<i32>} : memref<4x128x32xbf16, #tpu.memory_space<vmem>>, vector<1x128x32xbf16>,
    return
  }
}

module attributes {stable_mosaic.version = 11 : i64} {
  func.func @_convT_phase_kernel(%arg0: memref<4x512x128xbf16, #tpu.memory_space<vmem>>, %arg1: memref<4x128x1xbf16, #tpu.memory_space<vmem>>, %arg2: memref<1x1xf32, #tpu.memory_space<vmem>>, %arg3: memref<4x512x1xf32, #tpu.memory_space<vmem>>) attributes {dimension_semantics = [], scalar_prefetch = 0 : i64, scratch_operands = 0 : i64, tpu.core_type = #tpu.core_type<tc>} {
    %c0 = arith.constant 0 : index
    %c0_0 = arith.constant 0 : index
    %c0_1 = arith.constant 0 : index
    %0 = vector.load %arg0[%c0, %c0_0, %c0_1] : memref<4x512x128xbf16, #tpu.memory_space<vmem>>, vector<1x512x128xbf16>
    %1 = vector.shape_cast %0 : vector<1x512x128xbf16> to vector<512x128xbf16>
    %c0_2 = arith.constant 0 : index
    %c0_3 = arith.constant 0 : index
    %c0_4 = arith.constant 0 : index
    %2 = vector.load %arg1[%c0_2, %c0_3, %c0_4] : memref<4x128x1xbf16, #tpu.memory_space<vmem>>, vector<1x128x1xbf16>
    %3 = vector.shape_cast %2 : vector<1x128x1xbf16> to vector<128x1xbf16>
    %cst = arith.constant dense<0.000000e+00> : vector<512x1xf32>
    %4 = tpu.matmul %1, %3, %cst {dimension_numbers = #tpu.dot_dimension_numbers<[1], [0], [0], [1], [0, 0, 1, 1], [], []>} : vector<512x128xbf16>, vector<128x1xbf16>, vector<512x1xf32> -> vector<512x1xf32>
    %c0_5 = arith.constant 0 : index
    %c0_6 = arith.constant 0 : index
    %5 = vector.load %arg2[%c0_5, %c0_6] : memref<1x1xf32, #tpu.memory_space<vmem>>, vector<1x1xf32>
    %6 = vector.broadcast %5 : vector<1x1xf32> to vector<512x1xf32>
    %7 = arith.addf %4, %6 : vector<512x1xf32>
    %8 = arith.negf %7 : vector<512x1xf32>
    %9 = math.exp %8 : vector<512x1xf32>
    %cst_7 = arith.constant 1.000000e+00 : f32
    %10 = vector.broadcast %cst_7 : f32 to vector<512x1xf32>
    %11 = arith.addf %10, %9 : vector<512x1xf32>
    %12 = arith.divf %10, %11 : vector<512x1xf32>
    %c0_8 = arith.constant 0 : index
    %c0_9 = arith.constant 0 : index
    %c0_10 = arith.constant 0 : index
    %13 = vector.load %arg3[%c0_8, %c0_9, %c0_10] : memref<4x512x1xf32, #tpu.memory_space<vmem>>, vector<1x512x1xf32>
    %14 = vector.shape_cast %13 : vector<1x512x1xf32> to vector<512x1xf32>
    %15 = vector.shape_cast %12 : vector<512x1xf32> to vector<1x512x1xf32>
    tpu.vector_store %arg3[%c0_8, %c0_9, %c0_10], %15 {strides = array<i32>} : memref<4x512x1xf32, #tpu.memory_space<vmem>>, vector<1x512x1xf32>,
    %c1 = arith.constant 1 : index
    %c0_11 = arith.constant 0 : index
    %c0_12 = arith.constant 0 : index
    %16 = vector.load %arg0[%c1, %c0_11, %c0_12] : memref<4x512x128xbf16, #tpu.memory_space<vmem>>, vector<1x512x128xbf16>
    %17 = vector.shape_cast %16 : vector<1x512x128xbf16> to vector<512x128xbf16>
    %c1_13 = arith.constant 1 : index
    %c0_14 = arith.constant 0 : index
    %c0_15 = arith.constant 0 : index
    %18 = vector.load %arg1[%c1_13, %c0_14, %c0_15] : memref<4x128x1xbf16, #tpu.memory_space<vmem>>, vector<1x128x1xbf16>
    %19 = vector.shape_cast %18 : vector<1x128x1xbf16> to vector<128x1xbf16>
    %cst_16 = arith.constant dense<0.000000e+00> : vector<512x1xf32>
    %20 = tpu.matmul %17, %19, %cst_16 {dimension_numbers = #tpu.dot_dimension_numbers<[1], [0], [0], [1], [0, 0, 1, 1], [], []>} : vector<512x128xbf16>, vector<128x1xbf16>, vector<512x1xf32> -> vector<512x1xf32>
    %c0_17 = arith.constant 0 : index
    %c0_18 = arith.constant 0 : index
    %21 = vector.load %arg2[%c0_17, %c0_18] : memref<1x1xf32, #tpu.memory_space<vmem>>, vector<1x1xf32>
    %22 = vector.broadcast %21 : vector<1x1xf32> to vector<512x1xf32>
    %23 = arith.addf %20, %22 : vector<512x1xf32>
    %24 = arith.negf %23 : vector<512x1xf32>
    %25 = math.exp %24 : vector<512x1xf32>
    %cst_19 = arith.constant 1.000000e+00 : f32
    %26 = vector.broadcast %cst_19 : f32 to vector<512x1xf32>
    %27 = arith.addf %26, %25 : vector<512x1xf32>
    %28 = arith.divf %26, %27 : vector<512x1xf32>
    %c1_20 = arith.constant 1 : index
    %c0_21 = arith.constant 0 : index
    %c0_22 = arith.constant 0 : index
    %29 = vector.load %arg3[%c1_20, %c0_21, %c0_22] : memref<4x512x1xf32, #tpu.memory_space<vmem>>, vector<1x512x1xf32>
    %30 = vector.shape_cast %29 : vector<1x512x1xf32> to vector<512x1xf32>
    %31 = vector.shape_cast %28 : vector<512x1xf32> to vector<1x512x1xf32>
    tpu.vector_store %arg3[%c1_20, %c0_21, %c0_22], %31 {strides = array<i32>} : memref<4x512x1xf32, #tpu.memory_space<vmem>>, vector<1x512x1xf32>,
    %c2 = arith.constant 2 : index
    %c0_23 = arith.constant 0 : index
    %c0_24 = arith.constant 0 : index
    %32 = vector.load %arg0[%c2, %c0_23, %c0_24] : memref<4x512x128xbf16, #tpu.memory_space<vmem>>, vector<1x512x128xbf16>
    %33 = vector.shape_cast %32 : vector<1x512x128xbf16> to vector<512x128xbf16>
    %c2_25 = arith.constant 2 : index
    %c0_26 = arith.constant 0 : index
    %c0_27 = arith.constant 0 : index
    %34 = vector.load %arg1[%c2_25, %c0_26, %c0_27] : memref<4x128x1xbf16, #tpu.memory_space<vmem>>, vector<1x128x1xbf16>
    %35 = vector.shape_cast %34 : vector<1x128x1xbf16> to vector<128x1xbf16>
    %cst_28 = arith.constant dense<0.000000e+00> : vector<512x1xf32>
    %36 = tpu.matmul %33, %35, %cst_28 {dimension_numbers = #tpu.dot_dimension_numbers<[1], [0], [0], [1], [0, 0, 1, 1], [], []>} : vector<512x128xbf16>, vector<128x1xbf16>, vector<512x1xf32> -> vector<512x1xf32>
    %c0_29 = arith.constant 0 : index
    %c0_30 = arith.constant 0 : index
    %37 = vector.load %arg2[%c0_29, %c0_30] : memref<1x1xf32, #tpu.memory_space<vmem>>, vector<1x1xf32>
    %38 = vector.broadcast %37 : vector<1x1xf32> to vector<512x1xf32>
    %39 = arith.addf %36, %38 : vector<512x1xf32>
    %40 = arith.negf %39 : vector<512x1xf32>
    %41 = math.exp %40 : vector<512x1xf32>
    %cst_31 = arith.constant 1.000000e+00 : f32
    %42 = vector.broadcast %cst_31 : f32 to vector<512x1xf32>
    %43 = arith.addf %42, %41 : vector<512x1xf32>
    %44 = arith.divf %42, %43 : vector<512x1xf32>
    %c2_32 = arith.constant 2 : index
    %c0_33 = arith.constant 0 : index
    %c0_34 = arith.constant 0 : index
    %45 = vector.load %arg3[%c2_32, %c0_33, %c0_34] : memref<4x512x1xf32, #tpu.memory_space<vmem>>, vector<1x512x1xf32>
    %46 = vector.shape_cast %45 : vector<1x512x1xf32> to vector<512x1xf32>
    %47 = vector.shape_cast %44 : vector<512x1xf32> to vector<1x512x1xf32>
    tpu.vector_store %arg3[%c2_32, %c0_33, %c0_34], %47 {strides = array<i32>} : memref<4x512x1xf32, #tpu.memory_space<vmem>>, vector<1x512x1xf32>,
    %c3 = arith.constant 3 : index
    %c0_35 = arith.constant 0 : index
    %c0_36 = arith.constant 0 : index
    %48 = vector.load %arg0[%c3, %c0_35, %c0_36] : memref<4x512x128xbf16, #tpu.memory_space<vmem>>, vector<1x512x128xbf16>
    %49 = vector.shape_cast %48 : vector<1x512x128xbf16> to vector<512x128xbf16>
    %c3_37 = arith.constant 3 : index
    %c0_38 = arith.constant 0 : index
    %c0_39 = arith.constant 0 : index
    %50 = vector.load %arg1[%c3_37, %c0_38, %c0_39] : memref<4x128x1xbf16, #tpu.memory_space<vmem>>, vector<1x128x1xbf16>
    %51 = vector.shape_cast %50 : vector<1x128x1xbf16> to vector<128x1xbf16>
    %cst_40 = arith.constant dense<0.000000e+00> : vector<512x1xf32>
    %52 = tpu.matmul %49, %51, %cst_40 {dimension_numbers = #tpu.dot_dimension_numbers<[1], [0], [0], [1], [0, 0, 1, 1], [], []>} : vector<512x128xbf16>, vector<128x1xbf16>, vector<512x1xf32> -> vector<512x1xf32>
    %c0_41 = arith.constant 0 : index
    %c0_42 = arith.constant 0 : index
    %53 = vector.load %arg2[%c0_41, %c0_42] : memref<1x1xf32, #tpu.memory_space<vmem>>, vector<1x1xf32>
    %54 = vector.broadcast %53 : vector<1x1xf32> to vector<512x1xf32>
    %55 = arith.addf %52, %54 : vector<512x1xf32>
    %56 = arith.negf %55 : vector<512x1xf32>
    %57 = math.exp %56 : vector<512x1xf32>
    %cst_43 = arith.constant 1.000000e+00 : f32
    %58 = vector.broadcast %cst_43 : f32 to vector<512x1xf32>
    %59 = arith.addf %58, %57 : vector<512x1xf32>
    %60 = arith.divf %58, %59 : vector<512x1xf32>
    %c3_44 = arith.constant 3 : index
    %c0_45 = arith.constant 0 : index
    %c0_46 = arith.constant 0 : index
    %61 = vector.load %arg3[%c3_44, %c0_45, %c0_46] : memref<4x512x1xf32, #tpu.memory_space<vmem>>, vector<1x512x1xf32>
    %62 = vector.shape_cast %61 : vector<1x512x1xf32> to vector<512x1xf32>
    %63 = vector.shape_cast %60 : vector<512x1xf32> to vector<1x512x1xf32>
    tpu.vector_store %arg3[%c3_44, %c0_45, %c0_46], %63 {strides = array<i32>} : memref<4x512x1xf32, #tpu.memory_space<vmem>>, vector<1x512x1xf32>,
    return
  }
}

</mosaic_0001>

<llo_original>
// kernel: vae_forward.8
$region0: #{vae_forward.8}
  #allocation0 [shape = 'u32[]', space=smem, size = 0x4, offset = 0x4, fixed_abs, tag = 'smem constant byte address 0x4 - core index']
  #allocation1 [shape = 'u32[144,128]{1,0:T(1,128)}', space=vmem, size = 0x12000, scoped, tag = 'internal scratch']
  %s0 = inlined_call_operand.vmem [shape: bf16[512,16], index: 0, kind: input, shape index: {}]
  %s1 = inlined_call_operand.vmem [shape: bf16[16,32], index: 1, kind: input, shape index: {}]
  %s2 = inlined_call_operand.vmem [shape: f32[1,32], index: 2, kind: input, shape index: {}]
  %s3 = inlined_call_operand.vmem [shape: bf16[512,32], index: 3, kind: output, shape index: {}]
  %s4 = sld [smem:[#allocation0]]
  $region22: #{vae_forward.8} parent=0
    _
  %s6 = ssub.s32 1, %s4
  %s7 = scalar_select 0, %s6, %s4
  // Predicated region
  $region2: #{vae_forward.8} parent=0 // pred_check
    _
  $region3: #{vae_forward.8} parent=0 // pred_check_branch
    %9 = sbr.rel (0) target = $region5
  $region4: #{vae_forward.8} parent=0 // pred_region
    _
  $region5: #{vae_forward.8} parent=0 // pred_fallthru
    _
  // Predicated region
  $region6: #{vae_forward.8} parent=0 // pred_check
    _
  $region7: #{vae_forward.8} parent=0 // pred_check_branch
    %11 = sbr.rel (0) target = $region9
  $region8: #{vae_forward.8} parent=0 // pred_region
    _
  $region9: #{vae_forward.8} parent=0 // pred_fallthru
    _
  // Predicated region
  $region10: #{vae_forward.8} parent=0 // pred_check
    _
  $region11: #{vae_forward.8} parent=0 // pred_check_branch
    %13 = sbr.rel (0) target = $region13
  $region12: #{vae_forward.8} parent=0 // pred_region
    _
  $region13: #{vae_forward.8} parent=0 // pred_fallthru
    _
  %v15 = vld [vmem:[%s0] sm:$0xf]
  %v16 = vld [vmem:[%s0 + $0x4] sm:$0xf]
  %v17 = vld [vmem:[%s0 + $0x8] sm:$0xf]
  %v18 = vld [vmem:[%s0 + $0xc] sm:$0xf]
  %v19 = vld [vmem:[%s0 + $0x10] sm:$0xf]
  %v20 = vld [vmem:[%s0 + $0x14] sm:$0xf]
  %v21 = vld [vmem:[%s0 + $0x18] sm:$0xf]
  %v22 = vld [vmem:[%s0 + $0x1c] sm:$0xf]
  %v23 = vld [vmem:[%s0 + $0x20] sm:$0xf]
  %v24 = vld [vmem:[%s0 + $0x24] sm:$0xf]
  %v25 = vld [vmem:[%s0 + $0x28] sm:$0xf]
  %v26 = vld [vmem:[%s0 + $0x2c] sm:$0xf]
  %v27 = vld [vmem:[%s0 + $0x30] sm:$0xf]
  %v28 = vld [vmem:[%s0 + $0x34] sm:$0xf]
  %v29 = vld [vmem:[%s0 + $0x38] sm:$0xf]
  %v30 = vld [vmem:[%s0 + $0x3c] sm:$0xf]
  %v31 = vld [vmem:[%s0 + $0x40] sm:$0xf]
  %v32 = vld [vmem:[%s0 + $0x44] sm:$0xf]
  %v33 = vld [vmem:[%s0 + $0x48] sm:$0xf]
  %v34 = vld [vmem:[%s0 + $0x4c] sm:$0xf]
  %v35 = vld [vmem:[%s0 + $0x50] sm:$0xf]
  %v36 = vld [vmem:[%s0 + $0x54] sm:$0xf]
  %v37 = vld [vmem:[%s0 + $0x58] sm:$0xf]
  %v38 = vld [vmem:[%s0 + $0x5c] sm:$0xf]
  %v39 = vld [vmem:[%s0 + $0x60] sm:$0xf]
  %v40 = vld [vmem:[%s0 + $0x64] sm:$0xf]
  %v41 = vld [vmem:[%s0 + $0x68] sm:$0xf]
  %v42 = vld [vmem:[%s0 + $0x6c] sm:$0xf]
  %v43 = vld [vmem:[%s0 + $0x70] sm:$0xf]
  %v44 = vld [vmem:[%s0 + $0x74] sm:$0xf]
  %v45 = vld [vmem:[%s0 + $0x78] sm:$0xf]
  %v46 = vld [vmem:[%s0 + $0x7c] sm:$0xf]
  %v47 = vld [vmem:[%s0 + $0x80] sm:$0xf]
  %v48 = vld [vmem:[%s0 + $0x84] sm:$0xf]
  %v49 = vld [vmem:[%s0 + $0x88] sm:$0xf]
  %v50 = vld [vmem:[%s0 + $0x8c] sm:$0xf]
  %v51 = vld [vmem:[%s0 + $0x90] sm:$0xf]
  %v52 = vld [vmem:[%s0 + $0x94] sm:$0xf]
  %v53 = vld [vmem:[%s0 + $0x98] sm:$0xf]
  %v54 = vld [vmem:[%s0 + $0x9c] sm:$0xf]
  %v55 = vld [vmem:[%s0 + $0xa0] sm:$0xf]
  %v56 = vld [vmem:[%s0 + $0xa4] sm:$0xf]
  %v57 = vld [vmem:[%s0 + $0xa8] sm:$0xf]
  %v58 = vld [vmem:[%s0 + $0xac] sm:$0xf]
  %v59 = vld [vmem:[%s0 + $0xb0] sm:$0xf]
  %v60 = vld [vmem:[%s0 + $0xb4] sm:$0xf]
  %v61 = vld [vmem:[%s0 + $0xb8] sm:$0xf]
  %v62 = vld [vmem:[%s0 + $0xbc] sm:$0xf]
  %v63 = vld [vmem:[%s0 + $0xc0] sm:$0xf]
  %v64 = vld [vmem:[%s0 + $0xc4] sm:$0xf]
  %v65 = vld [vmem:[%s0 + $0xc8] sm:$0xf]
  %v66 = vld [vmem:[%s0 + $0xcc] sm:$0xf]
  %v67 = vld [vmem:[%s0 + $0xd0] sm:$0xf]
  %v68 = vld [vmem:[%s0 + $0xd4] sm:$0xf]
  %v69 = vld [vmem:[%s0 + $0xd8] sm:$0xf]
  %v70 = vld [vmem:[%s0 + $0xdc] sm:$0xf]
  %v71 = vld [vmem:[%s0 + $0xe0] sm:$0xf]
  %v72 = vld [vmem:[%s0 + $0xe4] sm:$0xf]
  %v73 = vld [vmem:[%s0 + $0xe8] sm:$0xf]
  %v74 = vld [vmem:[%s0 + $0xec] sm:$0xf]
  %v75 = vld [vmem:[%s0 + $0xf0] sm:$0xf]
  %v76 = vld [vmem:[%s0 + $0xf4] sm:$0xf]
  %v77 = vld [vmem:[%s0 + $0xf8] sm:$0xf]
  %v78 = vld [vmem:[%s0 + $0xfc] sm:$0xf]
  %v79 = vld [vmem:[%s1] sm:$0xf]
  %v80 = vld [vmem:[%s1 + $0x4] sm:$0xf]
  %v81 = vld [vmem:[%s2] sm:$0x1]
  %v83 = vlaneseq
  %v84 = vshrl.u32 %v83, 7
  %v85 = vsub.s32 0, %v84
  %v86 = vrot.slane %v81, %v85
  %v152 = vunpack.c.l.b16 %v15
  %v153 = vunpack.c.l.b16 %v16
  %v154 = vunpack.c.l.b16 %v17
  %v155 = vunpack.c.l.b16 %v18
  %v156 = vunpack.c.l.b16 %v19
  %v157 = vunpack.c.l.b16 %v20
  %v158 = vunpack.c.l.b16 %v21
  %v159 = vunpack.c.l.b16 %v22
  %v160 = vunpack.c.l.b16 %v23
  %v161 = vunpack.c.l.b16 %v24
  %v162 = vunpack.c.l.b16 %v25
  %v163 = vunpack.c.l.b16 %v26
  %v164 = vunpack.c.l.b16 %v27
  %v165 = vunpack.c.l.b16 %v28
  %v166 = vunpack.c.l.b16 %v29
  %v167 = vunpack.c.l.b16 %v30
  %v168 = vunpack.c.l.b16 %v31
  %v169 = vunpack.c.l.b16 %v32
  %v170 = vunpack.c.l.b16 %v33
  %v171 = vunpack.c.l.b16 %v34
  %v172 = vunpack.c.l.b16 %v35
  %v173 = vunpack.c.l.b16 %v36
  %v174 = vunpack.c.l.b16 %v37
  %v175 = vunpack.c.l.b16 %v38
  %v176 = vunpack.c.l.b16 %v39
  %v177 = vunpack.c.l.b16 %v40
  %v178 = vunpack.c.l.b16 %v41
  %v179 = vunpack.c.l.b16 %v42
  %v180 = vunpack.c.l.b16 %v43
  %v181 = vunpack.c.l.b16 %v44
  %v182 = vunpack.c.l.b16 %v45
  %v183 = vunpack.c.l.b16 %v46
  %v184 = vunpack.c.l.b16 %v47
  %v185 = vunpack.c.l.b16 %v48
  %v186 = vunpack.c.l.b16 %v49
  %v187 = vunpack.c.l.b16 %v50
  %v188 = vunpack.c.l.b16 %v51
  %v189 = vunpack.c.l.b16 %v52
  %v190 = vunpack.c.l.b16 %v53
  %v191 = vunpack.c.l.b16 %v54
  %v192 = vunpack.c.l.b16 %v55
  %v193 = vunpack.c.l.b16 %v56
  %v194 = vunpack.c.l.b16 %v57
  %v195 = vunpack.c.l.b16 %v58
  %v196 = vunpack.c.l.b16 %v59
  %v197 = vunpack.c.l.b16 %v60
  %v198 = vunpack.c.l.b16 %v61
  %v199 = vunpack.c.l.b16 %v62
  %v200 = vunpack.c.l.b16 %v63
  %v201 = vunpack.c.l.b16 %v64
  %v202 = vunpack.c.l.b16 %v65
  %v203 = vunpack.c.l.b16 %v66
  %v204 = vunpack.c.l.b16 %v67
  %v205 = vunpack.c.l.b16 %v68
  %v206 = vunpack.c.l.b16 %v69
  %v207 = vunpack.c.l.b16 %v70
  %v208 = vunpack.c.l.b16 %v71
  %v209 = vunpack.c.l.b16 %v72
  %v210 = vunpack.c.l.b16 %v73
  %v211 = vunpack.c.l.b16 %v74
  %v212 = vunpack.c.l.b16 %v75
  %v213 = vunpack.c.l.b16 %v76
  %v214 = vunpack.c.l.b16 %v77
  %v215 = vunpack.c.l.b16 %v78
  %v216 = vpack.c.b16 %v153, %v152
  %v217 = vpack.c.b16 %v155, %v154
  %v218 = vpack.c.b16 %v157, %v156
  %v219 = vpack.c.b16 %v159, %v158
  %v220 = vpack.c.b16 %v161, %v160
  %v221 = vpack.c.b16 %v163, %v162
  %v222 = vpack.c.b16 %v165, %v164
  %v223 = vpack.c.b16 %v167, %v166
  %v224 = vpack.c.b16 %v169, %v168
  %v225 = vpack.c.b16 %v171, %v170
  %v226 = vpack.c.b16 %v173, %v172
  %v227 = vpack.c.b16 %v175, %v174
  %v228 = vpack.c.b16 %v177, %v176
  %v229 = vpack.c.b16 %v179, %v178
  %v230 = vpack.c.b16 %v181, %v180
  %v231 = vpack.c.b16 %v183, %v182
  %v232 = vpack.c.b16 %v185, %v184
  %v233 = vpack.c.b16 %v187, %v186
  %v234 = vpack.c.b16 %v189, %v188
  %v235 = vpack.c.b16 %v191, %v190
  %v236 = vpack.c.b16 %v193, %v192
  %v237 = vpack.c.b16 %v195, %v194
  %v238 = vpack.c.b16 %v197, %v196
  %v239 = vpack.c.b16 %v199, %v198
  %v240 = vpack.c.b16 %v201, %v200
  %v241 = vpack.c.b16 %v203, %v202
  %v242 = vpack.c.b16 %v205, %v204
  %v243 = vpack.c.b16 %v207, %v206
  %v244 = vpack.c.b16 %v209, %v208
  %v245 = vpack.c.b16 %v211, %v210
  %v246 = vpack.c.b16 %v213, %v212
  %v247 = vpack.c.b16 %v215, %v214
  %v250 = vunpack.c.l.b16 %v79
  %v251 = vunpack.c.l.b16 %v80
  %v252 = vpack.c.b16 %v251, %v250
  %vm254 = vcmask 130048
  %v256 = vsel %vm254, %v216, 0
  %v259 = vsel %vm254, %v217, 0
  %v262 = vsel %vm254, %v218, 0
  %v265 = vsel %vm254, %v219, 0
  %v268 = vsel %vm254, %v220, 0
  %v271 = vsel %vm254, %v221, 0
  %v274 = vsel %vm254, %v222, 0
  %v277 = vsel %vm254, %v223, 0
  %v280 = vsel %vm254, %v224, 0
  %v283 = vsel %vm254, %v225, 0
  %v286 = vsel %vm254, %v226, 0
  %v289 = vsel %vm254, %v227, 0
  %v292 = vsel %vm254, %v228, 0
  %v295 = vsel %vm254, %v229, 0
  %v298 = vsel %vm254, %v230, 0
  %v301 = vsel %vm254, %v231, 0
  %v304 = vsel %vm254, %v232, 0
  %v307 = vsel %vm254, %v233, 0
  %v310 = vsel %vm254, %v234, 0
  %v313 = vsel %vm254, %v235, 0
  %v316 = vsel %vm254, %v236, 0
  %v319 = vsel %vm254, %v237, 0
  %v322 = vsel %vm254, %v238, 0
  %v325 = vsel %vm254, %v239, 0
  %v328 = vsel %vm254, %v240, 0
  %v331 = vsel %vm254, %v241, 0
  %v334 = vsel %vm254, %v242, 0
  %v337 = vsel %vm254, %v243, 0
  %v340 = vsel %vm254, %v244, 0
  %v343 = vsel %vm254, %v245, 0
  %v346 = vsel %vm254, %v246, 0
  %v349 = vsel %vm254, %v247, 0
  %351 = vmatprep.subr.bf16.mxu0 0
  %352 = vmatpush1.bf16.msra.mxu0 %v252
  %353 = vmatprep.subr.bf16.mxu0 0
  %354 = vmatpush1.bf16.msra.mxu0 0
  %355 = vmatprep.subr.bf16.mxu0 0
  %356 = vmatpush1.bf16.msra.mxu0 0
  %357 = vmatprep.subr.bf16.mxu0 0
  %358 = vmatpush1.bf16.msra.mxu0 0
  %359 = vmatprep.subr.bf16.mxu0 0
  %360 = vmatpush1.bf16.msra.mxu0 0
  %361 = vmatprep.subr.bf16.mxu0 0
  %362 = vmatpush1.bf16.msra.mxu0 0
  %363 = vmatprep.subr.bf16.mxu0 0
  %364 = vmatpush1.bf16.msra.mxu0 0
  %365 = vmatprep.subr.bf16.mxu0 0
  %366 = vmatpush1.bf16.msra.mxu0 0
  %367 = vmatprep.subr.bf16.mxu0 0
  %368 = vmatpush1.bf16.msra.mxu0 0
  %369 = vmatprep.subr.bf16.mxu0 0
  %370 = vmatpush1.bf16.msra.mxu0 0
  %371 = vmatprep.subr.bf16.mxu0 0
  %372 = vmatpush1.bf16.msra.mxu0 0
  %373 = vmatprep.subr.bf16.mxu0 0
  %374 = vmatpush1.bf16.msra.mxu0 0
  %375 = vmatprep.subr.bf16.mxu0 0
  %376 = vmatpush1.bf16.msra.mxu0 0
  %377 = vmatprep.subr.bf16.mxu0 0
  %378 = vmatpush1.bf16.msra.mxu0 0
  %379 = vmatprep.subr.bf16.mxu0 0
  %380 = vmatpush1.bf16.msra.mxu0 0
  %381 = vmatprep.subr.bf16.mxu0 0
  %382 = vmatpush1.bf16.msra.mxu0 0
  %383 = vmatprep.mubr.bf16.mxu0 0
  %384 = vmatmul.mubr.bf16.gmra.mrb[0].mxu0 %v256
  %v385 = vpop.f32.mrb[0].mxu0
  %v386 = vadd.f32 %v86, %v385
  %v387 = vpop.f32.mrb[0].mxu0
  %v388 = vpop.f32.mrb[0].mxu0
  %v389 = vadd.f32 %v86, %v388
  %v390 = vpop.f32.mrb[0].mxu0
  %391 = vmatprep.mubr.bf16.mxu0 0
  %392 = vmatmul.mubr.bf16.gmra.mrb[0].mxu0 %v259
  %v393 = vpop.f32.mrb[0].mxu0
  %v394 = vadd.f32 %v86, %v393
  %v395 = vpop.f32.mrb[0].mxu0
  %v396 = vpop.f32.mrb[0].mxu0
  %v397 = vadd.f32 %v86, %v396
  %v398 = vpop.f32.mrb[0].mxu0
  %399 = vmatprep.mubr.bf16.mxu0 0
  %400 = vmatmul.mubr.bf16.gmra.mrb[0].mxu0 %v262
  %v401 = vpop.f32.mrb[0].mxu0
  %v402 = vadd.f32 %v86, %v401
  %v403 = vpop.f32.mrb[0].mxu0
  %v404 = vpop.f32.mrb[0].mxu0
  %v405 = vadd.f32 %v86, %v404
  %v406 = vpop.f32.mrb[0].mxu0
  %407 = vmatprep.mubr.bf16.mxu0 0
  %408 = vmatmul.mubr.bf16.gmra.mrb[0].mxu0 %v265
  %v409 = vpop.f32.mrb[0].mxu0
  %v410 = vadd.f32 %v86, %v409
  %v411 = vpop.f32.mrb[0].mxu0
  %v412 = vpop.f32.mrb[0].mxu0
  %v413 = vadd.f32 %v86, %v412
  %v414 = vpop.f32.mrb[0].mxu0
  %415 = vmatprep.mubr.bf16.mxu0 0
  %416 = vmatmul.mubr.bf16.gmra.mrb[0].mxu0 %v268
  %v417 = vpop.f32.mrb[0].mxu0
  %v418 = vadd.f32 %v86, %v417
  %v419 = vpop.f32.mrb[0].mxu0
  %v420 = vpop.f32.mrb[0].mxu0
  %v421 = vadd.f32 %v86, %v420
  %v422 = vpop.f32.mrb[0].mxu0
  %423 = vmatprep.mubr.bf16.mxu0 0
  %424 = vmatmul.mubr.bf16.gmra.mrb[0].mxu0 %v271
  %v425 = vpop.f32.mrb[0].mxu0
  %v426 = vadd.f32 %v86, %v425
  %v427 = vpop.f32.mrb[0].mxu0
  %v428 = vpop.f32.mrb[0].mxu0
  %v429 = vadd.f32 %v86, %v428
  %v430 = vpop.f32.mrb[0].mxu0
  %431 = vmatprep.mubr.bf16.mxu0 0
  %432 = vmatmul.mubr.bf16.gmra.mrb[0].mxu0 %v274
  %v433 = vpop.f32.mrb[0].mxu0
  %v434 = vadd.f32 %v86, %v433
  %v435 = vpop.f32.mrb[0].mxu0
  %v436 = vpop.f32.mrb[0].mxu0
  %v437 = vadd.f32 %v86, %v436
  %v438 = vpop.f32.mrb[0].mxu0
  %439 = vmatprep.mubr.bf16.mxu0 0
  %440 = vmatmul.mubr.bf16.gmra.mrb[0].mxu0 %v277
  %v441 = vpop.f32.mrb[0].mxu0
  %v442 = vadd.f32 %v86, %v441
  %v443 = vpop.f32.mrb[0].mxu0
  %v444 = vpop.f32.mrb[0].mxu0
  %v445 = vadd.f32 %v86, %v444
  %v446 = vpop.f32.mrb[0].mxu0
  %447 = vmatprep.mubr.bf16.mxu0 0
  %448 = vmatmul.mubr.bf16.gmra.mrb[0].mxu0 %v280
  %v449 = vpop.f32.mrb[0].mxu0
  %v450 = vadd.f32 %v86, %v449
  %v451 = vpop.f32.mrb[0].mxu0
  %v452 = vpop.f32.mrb[0].mxu0
  %v453 = vadd.f32 %v86, %v452
  %v454 = vpop.f32.mrb[0].mxu0
  %455 = vmatprep.mubr.bf16.mxu0 0
  %456 = vmatmul.mubr.bf16.gmra.mrb[0].mxu0 %v283
  %v457 = vpop.f32.mrb[0].mxu0
  %v458 = vadd.f32 %v86, %v457
  %v459 = vpop.f32.mrb[0].mxu0
  %v460 = vpop.f32.mrb[0].mxu0
  %v461 = vadd.f32 %v86, %v460
  %v462 = vpop.f32.mrb[0].mxu0
  %463 = vmatprep.mubr.bf16.mxu0 0
  %464 = vmatmul.mubr.bf16.gmra.mrb[0].mxu0 %v286
  %v465 = vpop.f32.mrb[0].mxu0
  %v466 = vadd.f32 %v86, %v465
  %v467 = vpop.f32.mrb[0].mxu0
  %v468 = vpop.f32.mrb[0].mxu0
  %v469 = vadd.f32 %v86, %v468
  %v470 = vpop.f32.mrb[0].mxu0
  %471 = vmatprep.mubr.bf16.mxu0 0
  %472 = vmatmul.mubr.bf16.gmra.mrb[0].mxu0 %v289
  %v473 = vpop.f32.mrb[0].mxu0
  %v474 = vadd.f32 %v86, %v473
  %v475 = vpop.f32.mrb[0].mxu0
  %v476 = vpop.f32.mrb[0].mxu0
  %v477 = vadd.f32 %v86, %v476
  %v478 = vpop.f32.mrb[0].mxu0
  %479 = vmatprep.mubr.bf16.mxu0 0
  %480 = vmatmul.mubr.bf16.gmra.mrb[0].mxu0 %v292
  %v481 = vpop.f32.mrb[0].mxu0
  %v482 = vadd.f32 %v86, %v481
  %v483 = vpop.f32.mrb[0].mxu0
  %v484 = vpop.f32.mrb[0].mxu0
  %v485 = vadd.f32 %v86, %v484
  %v486 = vpop.f32.mrb[0].mxu0
  %487 = vmatprep.mubr.bf16.mxu0 0
  %488 = vmatmul.mubr.bf16.gmra.mrb[0].mxu0 %v295
  %v489 = vpop.f32.mrb[0].mxu0
  %v490 = vadd.f32 %v86, %v489
  %v491 = vpop.f32.mrb[0].mxu0
  %v492 = vpop.f32.mrb[0].mxu0
  %v493 = vadd.f32 %v86, %v492
  %v494 = vpop.f32.mrb[0].mxu0
  %495 = vmatprep.mubr.bf16.mxu0 0
  %496 = vmatmul.mubr.bf16.gmra.mrb[0].mxu0 %v298
  %v497 = vpop.f32.mrb[0].mxu0
  %v498 = vadd.f32 %v86, %v497
  %v499 = vpop.f32.mrb[0].mxu0
  %v500 = vpop.f32.mrb[0].mxu0
  %v501 = vadd.f32 %v86, %v500
  %v502 = vpop.f32.mrb[0].mxu0
  %503 = vmatprep.mubr.bf16.mxu0 0
  %504 = vmatmul.mubr.bf16.gmra.mrb[0].mxu0 %v301
  %v505 = vpop.f32.mrb[0].mxu0
  %v506 = vadd.f32 %v86, %v505
  %v507 = vpop.f32.mrb[0].mxu0
  %v508 = vpop.f32.mrb[0].mxu0
  %v509 = vadd.f32 %v86, %v508
  %v510 = vpop.f32.mrb[0].mxu0
  %511 = vmatprep.mubr.bf16.mxu0 0
  %512 = vmatmul.mubr.bf16.gmra.mrb[0].mxu0 %v304
  %v513 = vpop.f32.mrb[0].mxu0
  %v514 = vadd.f32 %v86, %v513
  %v515 = vpop.f32.mrb[0].mxu0
  %v516 = vpop.f32.mrb[0].mxu0
  %v517 = vadd.f32 %v86, %v516
  %v518 = vpop.f32.mrb[0].mxu0
  %519 = vmatprep.mubr.bf16.mxu0 0
  %520 = vmatmul.mubr.bf16.gmra.mrb[0].mxu0 %v307
  %v521 = vpop.f32.mrb[0].mxu0
  %v522 = vadd.f32 %v86, %v521
  %v523 = vpop.f32.mrb[0].mxu0
  %v524 = vpop.f32.mrb[0].mxu0
  %v525 = vadd.f32 %v86, %v524
  %v526 = vpop.f32.mrb[0].mxu0
  %527 = vmatprep.mubr.bf16.mxu0 0
  %528 = vmatmul.mubr.bf16.gmra.mrb[0].mxu0 %v310
  %v529 = vpop.f32.mrb[0].mxu0
  %v530 = vadd.f32 %v86, %v529
  %v531 = vpop.f32.mrb[0].mxu0
  %v532 = vpop.f32.mrb[0].mxu0
  %v533 = vadd.f32 %v86, %v532
  %v534 = vpop.f32.mrb[0].mxu0
  %535 = vmatprep.mubr.bf16.mxu0 0
  %536 = vmatmul.mubr.bf16.gmra.mrb[0].mxu0 %v313
  %v537 = vpop.f32.mrb[0].mxu0
  %v538 = vadd.f32 %v86, %v537
  %v539 = vpop.f32.mrb[0].mxu0
  %v540 = vpop.f32.mrb[0].mxu0
  %v541 = vadd.f32 %v86, %v540
  %v542 = vpop.f32.mrb[0].mxu0
  %543 = vmatprep.mubr.bf16.mxu0 0
  %544 = vmatmul.mubr.bf16.gmra.mrb[0].mxu0 %v316
  %v545 = vpop.f32.mrb[0].mxu0
  %v546 = vadd.f32 %v86, %v545
  %v547 = vpop.f32.mrb[0].mxu0
  %v548 = vpop.f32.mrb[0].mxu0
  %v549 = vadd.f32 %v86, %v548
  %v550 = vpop.f32.mrb[0].mxu0
  %551 = vmatprep.mubr.bf16.mxu0 0
  %552 = vmatmul.mubr.bf16.gmra.mrb[0].mxu0 %v319
  %v553 = vpop.f32.mrb[0].mxu0
  %v554 = vadd.f32 %v86, %v553
  %v555 = vpop.f32.mrb[0].mxu0
  %v556 = vpop.f32.mrb[0].mxu0
  %v557 = vadd.f32 %v86, %v556
  %v558 = vpop.f32.mrb[0].mxu0
  %559 = vmatprep.mubr.bf16.mxu0 0
  %560 = vmatmul.mubr.bf16.gmra.mrb[0].mxu0 %v322
  %v561 = vpop.f32.mrb[0].mxu0
  %v562 = vadd.f32 %v86, %v561
  %v563 = vpop.f32.mrb[0].mxu0
  %v564 = vpop.f32.mrb[0].mxu0
  %v565 = vadd.f32 %v86, %v564
  %v566 = vpop.f32.mrb[0].mxu0
  %567 = vmatprep.mubr.bf16.mxu0 0
  %568 = vmatmul.mubr.bf16.gmra.mrb[0].mxu0 %v325
  %v569 = vpop.f32.mrb[0].mxu0
  %v570 = vadd.f32 %v86, %v569
  %v571 = vpop.f32.mrb[0].mxu0
  %v572 = vpop.f32.mrb[0].mxu0
  %v573 = vadd.f32 %v86, %v572
  %v574 = vpop.f32.mrb[0].mxu0
  %575 = vmatprep.mubr.bf16.mxu0 0
  %576 = vmatmul.mubr.bf16.gmra.mrb[0].mxu0 %v328
  %v577 = vpop.f32.mrb[0].mxu0
  %v578 = vadd.f32 %v86, %v577
  %v579 = vpop.f32.mrb[0].mxu0
  %v580 = vpop.f32.mrb[0].mxu0
  %v581 = vadd.f32 %v86, %v580
  %v582 = vpop.f32.mrb[0].mxu0
  %583 = vmatprep.mubr.bf16.mxu0 0
  %584 = vmatmul.mubr.bf16.gmra.mrb[0].mxu0 %v331
  %v585 = vpop.f32.mrb[0].mxu0
  %v586 = vadd.f32 %v86, %v585
  %v587 = vpop.f32.mrb[0].mxu0
  %v588 = vpop.f32.mrb[0].mxu0
  %v589 = vadd.f32 %v86, %v588
  %v590 = vpop.f32.mrb[0].mxu0
  %591 = vmatprep.mubr.bf16.mxu0 0
  %592 = vmatmul.mubr.bf16.gmra.mrb[0].mxu0 %v334
  %v593 = vpop.f32.mrb[0].mxu0
  %v594 = vadd.f32 %v86, %v593
  %v595 = vpop.f32.mrb[0].mxu0
  %v596 = vpop.f32.mrb[0].mxu0
  %v597 = vadd.f32 %v86, %v596
  %v598 = vpop.f32.mrb[0].mxu0
  %599 = vmatprep.mubr.bf16.mxu0 0
  %600 = vmatmul.mubr.bf16.gmra.mrb[0].mxu0 %v337
  %v601 = vpop.f32.mrb[0].mxu0
  %v602 = vadd.f32 %v86, %v601
  %v603 = vpop.f32.mrb[0].mxu0
  %v604 = vpop.f32.mrb[0].mxu0
  %v605 = vadd.f32 %v86, %v604
  %v606 = vpop.f32.mrb[0].mxu0
  %607 = vmatprep.mubr.bf16.mxu0 0
  %608 = vmatmul.mubr.bf16.gmra.mrb[0].mxu0 %v340
  %v609 = vpop.f32.mrb[0].mxu0
  %v610 = vadd.f32 %v86, %v609
  %v611 = vpop.f32.mrb[0].mxu0
  %v612 = vpop.f32.mrb[0].mxu0
  %v613 = vadd.f32 %v86, %v612
  %v614 = vpop.f32.mrb[0].mxu0
  %615 = vmatprep.mubr.bf16.mxu0 0
  %616 = vmatmul.mubr.bf16.gmra.mrb[0].mxu0 %v343
  %v617 = vpop.f32.mrb[0].mxu0
  %v618 = vadd.f32 %v86, %v617
  %v619 = vpop.f32.mrb[0].mxu0
  %v620 = vpop.f32.mrb[0].mxu0
  %v621 = vadd.f32 %v86, %v620
  %v622 = vpop.f32.mrb[0].mxu0
  %623 = vmatprep.mubr.bf16.mxu0 0
  %624 = vmatmul.mubr.bf16.gmra.mrb[0].mxu0 %v346
  %v625 = vpop.f32.mrb[0].mxu0
  %v626 = vadd.f32 %v86, %v625
  %v627 = vpop.f32.mrb[0].mxu0
  %v628 = vpop.f32.mrb[0].mxu0
  %v629 = vadd.f32 %v86, %v628
  %v630 = vpop.f32.mrb[0].mxu0
  %631 = vmatprep.mubr.bf16.mxu0 0
  %632 = vmatmul.mubr.bf16.gmra.mrb[0].mxu0 %v349
  %v633 = vpop.f32.mrb[0].mxu0
  %v634 = vadd.f32 %v86, %v633
  %v635 = vpop.f32.mrb[0].mxu0
  %v636 = vpop.f32.mrb[0].mxu0
  %v637 = vadd.f32 %v86, %v636
  %v638 = vpop.f32.mrb[0].mxu0
  %639 = vdwg.mxu0
  %v640 = vmax.f32 %v386, 0.0
  %v641 = vmax.f32 %v389, 0.0
  %v642 = vmax.f32 %v394, 0.0
  %v643 = vmax.f32 %v397, 0.0
  %v644 = vmax.f32 %v402, 0.0
  %v645 = vmax.f32 %v405, 0.0
  %v646 = vmax.f32 %v410, 0.0
  %v647 = vmax.f32 %v413, 0.0
  %v648 = vmax.f32 %v418, 0.0
  %v649 = vmax.f32 %v421, 0.0
  %v650 = vmax.f32 %v426, 0.0
  %v651 = vmax.f32 %v429, 0.0
  %v652 = vmax.f32 %v434, 0.0
  %v653 = vmax.f32 %v437, 0.0
  %v654 = vmax.f32 %v442, 0.0
  %v655 = vmax.f32 %v445, 0.0
  %v656 = vmax.f32 %v450, 0.0
  %v657 = vmax.f32 %v453, 0.0
  %v658 = vmax.f32 %v458, 0.0
  %v659 = vmax.f32 %v461, 0.0
  %v660 = vmax.f32 %v466, 0.0
  %v661 = vmax.f32 %v469, 0.0
  %v662 = vmax.f32 %v474, 0.0
  %v663 = vmax.f32 %v477, 0.0
  %v664 = vmax.f32 %v482, 0.0
  %v665 = vmax.f32 %v485, 0.0
  %v666 = vmax.f32 %v490, 0.0
  %v667 = vmax.f32 %v493, 0.0
  %v668 = vmax.f32 %v498, 0.0
  %v669 = vmax.f32 %v501, 0.0
  %v670 = vmax.f32 %v506, 0.0
  %v671 = vmax.f32 %v509, 0.0
  %v672 = vmax.f32 %v514, 0.0
  %v673 = vmax.f32 %v517, 0.0
  %v674 = vmax.f32 %v522, 0.0
  %v675 = vmax.f32 %v525, 0.0
  %v676 = vmax.f32 %v530, 0.0
  %v677 = vmax.f32 %v533, 0.0
  %v678 = vmax.f32 %v538, 0.0
  %v679 = vmax.f32 %v541, 0.0
  %v680 = vmax.f32 %v546, 0.0
  %v681 = vmax.f32 %v549, 0.0
  %v682 = vmax.f32 %v554, 0.0
  %v683 = vmax.f32 %v557, 0.0
  %v684 = vmax.f32 %v562, 0.0
  %v685 = vmax.f32 %v565, 0.0
  %v686 = vmax.f32 %v570, 0.0
  %v687 = vmax.f32 %v573, 0.0
  %v688 = vmax.f32 %v578, 0.0
  %v689 = vmax.f32 %v581, 0.0
  %v690 = vmax.f32 %v586, 0.0
  %v691 = vmax.f32 %v589, 0.0
  %v692 = vmax.f32 %v594, 0.0
  %v693 = vmax.f32 %v597, 0.0
  %v694 = vmax.f32 %v602, 0.0
  %v695 = vmax.f32 %v605, 0.0
  %v696 = vmax.f32 %v610, 0.0
  %v697 = vmax.f32 %v613, 0.0
  %v698 = vmax.f32 %v618, 0.0
  %v699 = vmax.f32 %v621, 0.0
  %v700 = vmax.f32 %v626, 0.0
  %v701 = vmax.f32 %v629, 0.0
  %v702 = vmax.f32 %v634, 0.0
  %v703 = vmax.f32 %v637, 0.0
  %v704 = vpack.c.bf16 %v641, %v640
  %v705 = vpack.c.bf16 %v643, %v642
  %v706 = vpack.c.bf16 %v645, %v644
  %v707 = vpack.c.bf16 %v647, %v646
  %v708 = vpack.c.bf16 %v649, %v648
  %v709 = vpack.c.bf16 %v651, %v650
  %v710 = vpack.c.bf16 %v653, %v652
  %v711 = vpack.c.bf16 %v655, %v654
  %v712 = vpack.c.bf16 %v657, %v656
  %v713 = vpack.c.bf16 %v659, %v658
  %v714 = vpack.c.bf16 %v661, %v660
  %v715 = vpack.c.bf16 %v663, %v662
  %v716 = vpack.c.bf16 %v665, %v664
  %v717 = vpack.c.bf16 %v667, %v666
  %v718 = vpack.c.bf16 %v669, %v668
  %v719 = vpack.c.bf16 %v671, %v670
  %v720 = vpack.c.bf16 %v673, %v672
  %v721 = vpack.c.bf16 %v675, %v674
  %v722 = vpack.c.bf16 %v677, %v676
  %v723 = vpack.c.bf16 %v679, %v678
  %v724 = vpack.c.bf16 %v681, %v680
  %v725 = vpack.c.bf16 %v683, %v682
  %v726 = vpack.c.bf16 %v685, %v684
  %v727 = vpack.c.bf16 %v687, %v686
  %v728 = vpack.c.bf16 %v689, %v688
  %v729 = vpack.c.bf16 %v691, %v690
  %v730 = vpack.c.bf16 %v693, %v692
  %v731 = vpack.c.bf16 %v695, %v694
  %v732 = vpack.c.bf16 %v697, %v696
  %v733 = vpack.c.bf16 %v699, %v698
  %v734 = vpack.c.bf16 %v701, %v700
  %v735 = vpack.c.bf16 %v703, %v702
  %v768 = vunpack.c.l.b16 %v704
  %v769 = vunpack.c.h.b16 %v704
  %v770 = vunpack.c.l.b16 %v705
  %v771 = vunpack.c.h.b16 %v705
  %v772 = vunpack.c.l.b16 %v706
  %v773 = vunpack.c.h.b16 %v706
  %v774 = vunpack.c.l.b16 %v707
  %v775 = vunpack.c.h.b16 %v707
  %v776 = vunpack.c.l.b16 %v708
  %v777 = vunpack.c.h.b16 %v708
  %v778 = vunpack.c.l.b16 %v709
  %v779 = vunpack.c.h.b16 %v709
  %v780 = vunpack.c.l.b16 %v710
  %v781 = vunpack.c.h.b16 %v710
  %v782 = vunpack.c.l.b16 %v711
  %v783 = vunpack.c.h.b16 %v711
  %v784 = vunpack.c.l.b16 %v712
  %v785 = vunpack.c.h.b16 %v712
  %v786 = vunpack.c.l.b16 %v713
  %v787 = vunpack.c.h.b16 %v713
  %v788 = vunpack.c.l.b16 %v714
  %v789 = vunpack.c.h.b16 %v714
  %v790 = vunpack.c.l.b16 %v715
  %v791 = vunpack.c.h.b16 %v715
  %v792 = vunpack.c.l.b16 %v716
  %v793 = vunpack.c.h.b16 %v716
  %v794 = vunpack.c.l.b16 %v717
  %v795 = vunpack.c.h.b16 %v717
  %v796 = vunpack.c.l.b16 %v718
  %v797 = vunpack.c.h.b16 %v718
  %v798 = vunpack.c.l.b16 %v719
  %v799 = vunpack.c.h.b16 %v719
  %v800 = vunpack.c.l.b16 %v720
  %v801 = vunpack.c.h.b16 %v720
  %v802 = vunpack.c.l.b16 %v721
  %v803 = vunpack.c.h.b16 %v721
  %v804 = vunpack.c.l.b16 %v722
  %v805 = vunpack.c.h.b16 %v722
  %v806 = vunpack.c.l.b16 %v723
  %v807 = vunpack.c.h.b16 %v723
  %v808 = vunpack.c.l.b16 %v724
  %v809 = vunpack.c.h.b16 %v724
  %v810 = vunpack.c.l.b16 %v725
  %v811 = vunpack.c.h.b16 %v725
  %v812 = vunpack.c.l.b16 %v726
  %v813 = vunpack.c.h.b16 %v726
  %v814 = vunpack.c.l.b16 %v727
  %v815 = vunpack.c.h.b16 %v727
  %v816 = vunpack.c.l.b16 %v728
  %v817 = vunpack.c.h.b16 %v728
  %v818 = vunpack.c.l.b16 %v729
  %v819 = vunpack.c.h.b16 %v729
  %v820 = vunpack.c.l.b16 %v730
  %v821 = vunpack.c.h.b16 %v730
  %v822 = vunpack.c.l.b16 %v731
  %v823 = vunpack.c.h.b16 %v731
  %v824 = vunpack.c.l.b16 %v732
  %v825 = vunpack.c.h.b16 %v732
  %v826 = vunpack.c.l.b16 %v733
  %v827 = vunpack.c.h.b16 %v733
  %v828 = vunpack.c.l.b16 %v734
  %v829 = vunpack.c.h.b16 %v734
  %v830 = vunpack.c.l.b16 %v735
  %v831 = vunpack.c.h.b16 %v735
  %v832 = vpack.c.b16 %v768, %v768
  %v833 = vpack.c.b16 %v769, %v769
  %v834 = vpack.c.b16 %v770, %v770
  %v835 = vpack.c.b16 %v771, %v771
  %v836 = vpack.c.b16 %v772, %v772
  %v837 = vpack.c.b16 %v773, %v773
  %v838 = vpack.c.b16 %v774, %v774
  %v839 = vpack.c.b16 %v775, %v775
  %v840 = vpack.c.b16 %v776, %v776
  %v841 = vpack.c.b16 %v777, %v777
  %v842 = vpack.c.b16 %v778, %v778
  %v843 = vpack.c.b16 %v779, %v779
  %v844 = vpack.c.b16 %v780, %v780
  %v845 = vpack.c.b16 %v781, %v781
  %v846 = vpack.c.b16 %v782, %v782
  %v847 = vpack.c.b16 %v783, %v783
  %v848 = vpack.c.b16 %v784, %v784
  %v849 = vpack.c.b16 %v785, %v785
  %v850 = vpack.c.b16 %v786, %v786
  %v851 = vpack.c.b16 %v787, %v787
  %v852 = vpack.c.b16 %v788, %v788
  %v853 = vpack.c.b16 %v789, %v789
  %v854 = vpack.c.b16 %v790, %v790
  %v855 = vpack.c.b16 %v791, %v791
  %v856 = vpack.c.b16 %v792, %v792
  %v857 = vpack.c.b16 %v793, %v793
  %v858 = vpack.c.b16 %v794, %v794
  %v859 = vpack.c.b16 %v795, %v795
  %v860 = vpack.c.b16 %v796, %v796
  %v861 = vpack.c.b16 %v797, %v797
  %v862 = vpack.c.b16 %v798, %v798
  %v863 = vpack.c.b16 %v799, %v799
  %v864 = vpack.c.b16 %v800, %v800
  %v865 = vpack.c.b16 %v801, %v801
  %v866 = vpack.c.b16 %v802, %v802
  %v867 = vpack.c.b16 %v803, %v803
  %v868 = vpack.c.b16 %v804, %v804
  %v869 = vpack.c.b16 %v805, %v805
  %v870 = vpack.c.b16 %v806, %v806
  %v871 = vpack.c.b16 %v807, %v807
  %v872 = vpack.c.b16 %v808, %v808
  %v873 = vpack.c.b16 %v809, %v809
  %v874 = vpack.c.b16 %v810, %v810
  %v875 = vpack.c.b16 %v811, %v811
  %v876 = vpack.c.b16 %v812, %v812
  %v877 = vpack.c.b16 %v813, %v813
  %v878 = vpack.c.b16 %v814, %v814
  %v879 = vpack.c.b16 %v815, %v815
  %v880 = vpack.c.b16 %v816, %v816
  %v881 = vpack.c.b16 %v817, %v817
  %v882 = vpack.c.b16 %v818, %v818
  %v883 = vpack.c.b16 %v819, %v819
  %v884 = vpack.c.b16 %v820, %v820
  %v885 = vpack.c.b16 %v821, %v821
  %v886 = vpack.c.b16 %v822, %v822
  %v887 = vpack.c.b16 %v823, %v823
  %v888 = vpack.c.b16 %v824, %v824
  %v889 = vpack.c.b16 %v825, %v825
  %v890 = vpack.c.b16 %v826, %v826
  %v891 = vpack.c.b16 %v827, %v827
  %v892 = vpack.c.b16 %v828, %v828
  %v893 = vpack.c.b16 %v829, %v829
  %v894 = vpack.c.b16 %v830, %v830
  %v895 = vpack.c.b16 %v831, %v831
  %vm960 = vcmask 257024
  %961 = vst.msk [vmem:[%s3] sm:$0xf] %vm960, %v832
  %962 = vst.msk [vmem:[%s3 + $0x4] sm:$0xf] %vm960, %v833
  %963 = vst.msk [vmem:[%s3 + $0x8] sm:$0xf] %vm960, %v834
  %964 = vst.msk [vmem:[%s3 + $0xc] sm:$0xf] %vm960, %v835
  %965 = vst.msk [vmem:[%s3 + $0x10] sm:$0xf] %vm960, %v836
  %966 = vst.msk [vmem:[%s3 + $0x14] sm:$0xf] %vm960, %v837
  %967 = vst.msk [vmem:[%s3 + $0x18] sm:$0xf] %vm960, %v838
  %968 = vst.msk [vmem:[%s3 + $0x1c] sm:$0xf] %vm960, %v839
  %969 = vst.msk [vmem:[%s3 + $0x20] sm:$0xf] %vm960, %v840
  %970 = vst.msk [vmem:[%s3 + $0x24] sm:$0xf] %vm960, %v841
  %971 = vst.msk [vmem:[%s3 + $0x28] sm:$0xf] %vm960, %v842
  %972 = vst.msk [vmem:[%s3 + $0x2c] sm:$0xf] %vm960, %v843
  %973 = vst.msk [vmem:[%s3 + $0x30] sm:$0xf] %vm960, %v844
  %974 = vst.msk [vmem:[%s3 + $0x34] sm:$0xf] %vm960, %v845
  %975 = vst.msk [vmem:[%s3 + $0x38] sm:$0xf] %vm960, %v846
  %976 = vst.msk [vmem:[%s3 + $0x3c] sm:$0xf] %vm960, %v847
  %977 = vst.msk [vmem:[%s3 + $0x40] sm:$0xf] %vm960, %v848
  %978 = vst.msk [vmem:[%s3 + $0x44] sm:$0xf] %vm960, %v849
  %979 = vst.msk [vmem:[%s3 + $0x48] sm:$0xf] %vm960, %v850
  %980 = vst.msk [vmem:[%s3 + $0x4c] sm:$0xf] %vm960, %v851
  %981 = vst.msk [vmem:[%s3 + $0x50] sm:$0xf] %vm960, %v852
  %982 = vst.msk [vmem:[%s3 + $0x54] sm:$0xf] %vm960, %v853
  %983 = vst.msk [vmem:[%s3 + $0x58] sm:$0xf] %vm960, %v854
  %984 = vst.msk [vmem:[%s3 + $0x5c] sm:$0xf] %vm960, %v855
  %985 = vst.msk [vmem:[%s3 + $0x60] sm:$0xf] %vm960, %v856
  %986 = vst.msk [vmem:[%s3 + $0x64] sm:$0xf] %vm960, %v857
  %987 = vst.msk [vmem:[%s3 + $0x68] sm:$0xf] %vm960, %v858
  %988 = vst.msk [vmem:[%s3 + $0x6c] sm:$0xf] %vm960, %v859
  %989 = vst.msk [vmem:[%s3 + $0x70] sm:$0xf] %vm960, %v860
  %990 = vst.msk [vmem:[%s3 + $0x74] sm:$0xf] %vm960, %v861
  %991 = vst.msk [vmem:[%s3 + $0x78] sm:$0xf] %vm960, %v862
  %992 = vst.msk [vmem:[%s3 + $0x7c] sm:$0xf] %vm960, %v863
  %993 = vst.msk [vmem:[%s3 + $0x80] sm:$0xf] %vm960, %v864
  %994 = vst.msk [vmem:[%s3 + $0x84] sm:$0xf] %vm960, %v865
  %995 = vst.msk [vmem:[%s3 + $0x88] sm:$0xf] %vm960, %v866
  %996 = vst.msk [vmem:[%s3 + $0x8c] sm:$0xf] %vm960, %v867
  %997 = vst.msk [vmem:[%s3 + $0x90] sm:$0xf] %vm960, %v868
  %998 = vst.msk [vmem:[%s3 + $0x94] sm:$0xf] %vm960, %v869
  %999 = vst.msk [vmem:[%s3 + $0x98] sm:$0xf] %vm960, %v870
  %1000 = vst.msk [vmem:[%s3 + $0x9c] sm:$0xf] %vm960, %v871
  %1001 = vst.msk [vmem:[%s3 + $0xa0] sm:$0xf] %vm960, %v872
  %1002 = vst.msk [vmem:[%s3 + $0xa4] sm:$0xf] %vm960, %v873
  %1003 = vst.msk [vmem:[%s3 + $0xa8] sm:$0xf] %vm960, %v874
  %1004 = vst.msk [vmem:[%s3 + $0xac] sm:$0xf] %vm960, %v875
  %1005 = vst.msk [vmem:[%s3 + $0xb0] sm:$0xf] %vm960, %v876
  %1006 = vst.msk [vmem:[%s3 + $0xb4] sm:$0xf] %vm960, %v877
  %1007 = vst.msk [vmem:[%s3 + $0xb8] sm:$0xf] %vm960, %v878
  %1008 = vst.msk [vmem:[%s3 + $0xbc] sm:$0xf] %vm960, %v879
  %1009 = vst.msk [vmem:[%s3 + $0xc0] sm:$0xf] %vm960, %v880
  %1010 = vst.msk [vmem:[%s3 + $0xc4] sm:$0xf] %vm960, %v881
  %1011 = vst.msk [vmem:[%s3 + $0xc8] sm:$0xf] %vm960, %v882
  %1012 = vst.msk [vmem:[%s3 + $0xcc] sm:$0xf] %vm960, %v883
  %1013 = vst.msk [vmem:[%s3 + $0xd0] sm:$0xf] %vm960, %v884
  %1014 = vst.msk [vmem:[%s3 + $0xd4] sm:$0xf] %vm960, %v885
  %1015 = vst.msk [vmem:[%s3 + $0xd8] sm:$0xf] %vm960, %v886
  %1016 = vst.msk [vmem:[%s3 + $0xdc] sm:$0xf] %vm960, %v887
  %1017 = vst.msk [vmem:[%s3 + $0xe0] sm:$0xf] %vm960, %v888
  %1018 = vst.msk [vmem:[%s3 + $0xe4] sm:$0xf] %vm960, %v889
  %1019 = vst.msk [vmem:[%s3 + $0xe8] sm:$0xf] %vm960, %v890
  %1020 = vst.msk [vmem:[%s3 + $0xec] sm:$0xf] %vm960, %v891
  %1021 = vst.msk [vmem:[%s3 + $0xf0] sm:$0xf] %vm960, %v892
  %1022 = vst.msk [vmem:[%s3 + $0xf4] sm:$0xf] %vm960, %v893
  %1023 = vst.msk [vmem:[%s3 + $0xf8] sm:$0xf] %vm960, %v894
  %1024 = vst.msk [vmem:[%s3 + $0xfc] sm:$0xf] %vm960, %v895
  // Predicated region
  $region14: #{vae_forward.8} parent=0 // pred_check
    _
  $region15: #{vae_forward.8} parent=0 // pred_check_branch
    %1026 = sbr.rel (0) target = $region17
  $region16: #{vae_forward.8} parent=0 // pred_region
    _
  $region17: #{vae_forward.8} parent=0 // pred_fallthru
    _
  // Predicated region
  $region18: #{vae_forward.8} parent=0 // pred_check
    _
  $region19: #{vae_forward.8} parent=0 // pred_check_branch
    %1028 = sbr.rel (0) target = $region21
  $region20: #{vae_forward.8} parent=0 // pred_region
    _
  $region21: #{vae_forward.8} parent=0 // pred_fallthru
    _

// kernel: vae_forward.9
$region0: #{vae_forward.9}
  #allocation0 [shape = 'u32[]', space=smem, size = 0x4, offset = 0x4, fixed_abs, tag = 'smem constant byte address 0x4 - core index']
  #allocation1 [shape = 'u32[144,128]{1,0:T(1,128)}', space=vmem, size = 0x12000, scoped, tag = 'internal scratch']
  %s0 = inlined_call_operand.vmem [shape: bf16[128,512], index: 0, kind: input, shape index: {}]
  %s1 = inlined_call_operand.vmem [shape: bf16[512,32], index: 1, kind: input, shape index: {}]
  %s2 = inlined_call_operand.vmem [shape: f32[1,32], index: 2, kind: input, shape index: {}]
  %s3 = inlined_call_operand.vmem [shape: bf16[128,32], index: 3, kind: output, shape index: {}]
  %s4 = sld [smem:[#allocation0]]
  $region22: #{vae_forward.9} parent=0
    _
  %s6 = ssub.s32 1, %s4
  %s7 = scalar_select 0, %s6, %s4
  // Predicated region
  $region2: #{vae_forward.9} parent=0 // pred_check
    _
  $region3: #{vae_forward.9} parent=0 // pred_check_branch
    %9 = sbr.rel (0) target = $region5
  $region4: #{vae_forward.9} parent=0 // pred_region
    _
  $region5: #{vae_forward.9} parent=0 // pred_fallthru
    _
  // Predicated region
  $region6: #{vae_forward.9} parent=0 // pred_check
    _
  $region7: #{vae_forward.9} parent=0 // pred_check_branch
    %11 = sbr.rel (0) target = $region9
  $region8: #{vae_forward.9} parent=0 // pred_region
    _
  $region9: #{vae_forward.9} parent=0 // pred_fallthru
    _
  // Predicated region
  $region10: #{vae_forward.9} parent=0 // pred_check
    _
  $region11: #{vae_forward.9} parent=0 // pred_check_branch
    %13 = sbr.rel (0) target = $region13
  $region12: #{vae_forward.9} parent=0 // pred_region
    _
  $region13: #{vae_forward.9} parent=0 // pred_fallthru
    _
  %v15 = vld [vmem:[%s0] sm:$0xff]
  %v16 = vld [vmem:[%s0 + $0x8] sm:$0xff]
  %v17 = vld [vmem:[%s0 + $0x10] sm:$0xff]
  %v18 = vld [vmem:[%s0 + $0x18] sm:$0xff]
  %v19 = vld [vmem:[%s0 + $0x20] sm:$0xff]
  %v20 = vld [vmem:[%s0 + $0x28] sm:$0xff]
  %v21 = vld [vmem:[%s0 + $0x30] sm:$0xff]
  %v22 = vld [vmem:[%s0 + $0x38] sm:$0xff]
  %v23 = vld [vmem:[%s0 + $0x40] sm:$0xff]
  %v24 = vld [vmem:[%s0 + $0x48] sm:$0xff]
  %v25 = vld [vmem:[%s0 + $0x50] sm:$0xff]
  %v26 = vld [vmem:[%s0 + $0x58] sm:$0xff]
  %v27 = vld [vmem:[%s0 + $0x60] sm:$0xff]
  %v28 = vld [vmem:[%s0 + $0x68] sm:$0xff]
  %v29 = vld [vmem:[%s0 + $0x70] sm:$0xff]
  %v30 = vld [vmem:[%s0 + $0x78] sm:$0xff]
  %v31 = vld [vmem:[%s0 + $0x80] sm:$0xff]
  %v32 = vld [vmem:[%s0 + $0x88] sm:$0xff]
  %v33 = vld [vmem:[%s0 + $0x90] sm:$0xff]
  %v34 = vld [vmem:[%s0 + $0x98] sm:$0xff]
  %v35 = vld [vmem:[%s0 + $0xa0] sm:$0xff]
  %v36 = vld [vmem:[%s0 + $0xa8] sm:$0xff]
  %v37 = vld [vmem:[%s0 + $0xb0] sm:$0xff]
  %v38 = vld [vmem:[%s0 + $0xb8] sm:$0xff]
  %v39 = vld [vmem:[%s0 + $0xc0] sm:$0xff]
  %v40 = vld [vmem:[%s0 + $0xc8] sm:$0xff]
  %v41 = vld [vmem:[%s0 + $0xd0] sm:$0xff]
  %v42 = vld [vmem:[%s0 + $0xd8] sm:$0xff]
  %v43 = vld [vmem:[%s0 + $0xe0] sm:$0xff]
  %v44 = vld [vmem:[%s0 + $0xe8] sm:$0xff]
  %v45 = vld [vmem:[%s0 + $0xf0] sm:$0xff]
  %v46 = vld [vmem:[%s0 + $0xf8] sm:$0xff]
  %v47 = vld [vmem:[%s1] sm:$0xf]
  %v48 = vld [vmem:[%s1 + $0x4] sm:$0xf]
  %v49 = vld [vmem:[%s1 + $0x8] sm:$0xf]
  %v50 = vld [vmem:[%s1 + $0xc] sm:$0xf]
  %v51 = vld [vmem:[%s1 + $0x10] sm:$0xf]
  %v52 = vld [vmem:[%s1 + $0x14] sm:$0xf]
  %v53 = vld [vmem:[%s1 + $0x18] sm:$0xf]
  %v54 = vld [vmem:[%s1 + $0x1c] sm:$0xf]
  %v55 = vld [vmem:[%s1 + $0x20] sm:$0xf]
  %v56 = vld [vmem:[%s1 + $0x24] sm:$0xf]
  %v57 = vld [vmem:[%s1 + $0x28] sm:$0xf]
  %v58 = vld [vmem:[%s1 + $0x2c] sm:$0xf]
  %v59 = vld [vmem:[%s1 + $0x30] sm:$0xf]
  %v60 = vld [vmem:[%s1 + $0x34] sm:$0xf]
  %v61 = vld [vmem:[%s1 + $0x38] sm:$0xf]
  %v62 = vld [vmem:[%s1 + $0x3c] sm:$0xf]
  %v63 = vld [vmem:[%s1 + $0x40] sm:$0xf]
  %v64 = vld [vmem:[%s1 + $0x44] sm:$0xf]
  %v65 = vld [vmem:[%s1 + $0x48] sm:$0xf]
  %v66 = vld [vmem:[%s1 + $0x4c] sm:$0xf]
  %v67 = vld [vmem:[%s1 + $0x50] sm:$0xf]
  %v68 = vld [vmem:[%s1 + $0x54] sm:$0xf]
  %v69 = vld [vmem:[%s1 + $0x58] sm:$0xf]
  %v70 = vld [vmem:[%s1 + $0x5c] sm:$0xf]
  %v71 = vld [vmem:[%s1 + $0x60] sm:$0xf]
  %v72 = vld [vmem:[%s1 + $0x64] sm:$0xf]
  %v73 = vld [vmem:[%s1 + $0x68] sm:$0xf]
  %v74 = vld [vmem:[%s1 + $0x6c] sm:$0xf]
  %v75 = vld [vmem:[%s1 + $0x70] sm:$0xf]
  %v76 = vld [vmem:[%s1 + $0x74] sm:$0xf]
  %v77 = vld [vmem:[%s1 + $0x78] sm:$0xf]
  %v78 = vld [vmem:[%s1 + $0x7c] sm:$0xf]
  %v79 = vld [vmem:[%s1 + $0x80] sm:$0xf]
  %v80 = vld [vmem:[%s1 + $0x84] sm:$0xf]
  %v81 = vld [vmem:[%s1 + $0x88] sm:$0xf]
  %v82 = vld [vmem:[%s1 + $0x8c] sm:$0xf]
  %v83 = vld [vmem:[%s1 + $0x90] sm:$0xf]
  %v84 = vld [vmem:[%s1 + $0x94] sm:$0xf]
  %v85 = vld [vmem:[%s1 + $0x98] sm:$0xf]
  %v86 = vld [vmem:[%s1 + $0x9c] sm:$0xf]
  %v87 = vld [vmem:[%s1 + $0xa0] sm:$0xf]
  %v88 = vld [vmem:[%s1 + $0xa4] sm:$0xf]
  %v89 = vld [vmem:[%s1 + $0xa8] sm:$0xf]
  %v90 = vld [vmem:[%s1 + $0xac] sm:$0xf]
  %v91 = vld [vmem:[%s1 + $0xb0] sm:$0xf]
  %v92 = vld [vmem:[%s1 + $0xb4] sm:$0xf]
  %v93 = vld [vmem:[%s1 + $0xb8] sm:$0xf]
  %v94 = vld [vmem:[%s1 + $0xbc] sm:$0xf]
  %v95 = vld [vmem:[%s1 + $0xc0] sm:$0xf]
  %v96 = vld [vmem:[%s1 + $0xc4] sm:$0xf]
  %v97 = vld [vmem:[%s1 + $0xc8] sm:$0xf]
  %v98 = vld [vmem:[%s1 + $0xcc] sm:$0xf]
  %v99 = vld [vmem:[%s1 + $0xd0] sm:$0xf]
  %v100 = vld [vmem:[%s1 + $0xd4] sm:$0xf]
  %v101 = vld [vmem:[%s1 + $0xd8] sm:$0xf]
  %v102 = vld [vmem:[%s1 + $0xdc] sm:$0xf]
  %v103 = vld [vmem:[%s1 + $0xe0] sm:$0xf]
  %v104 = vld [vmem:[%s1 + $0xe4] sm:$0xf]
  %v105 = vld [vmem:[%s1 + $0xe8] sm:$0xf]
  %v106 = vld [vmem:[%s1 + $0xec] sm:$0xf]
  %v107 = vld [vmem:[%s1 + $0xf0] sm:$0xf]
  %v108 = vld [vmem:[%s1 + $0xf4] sm:$0xf]
  %v109 = vld [vmem:[%s1 + $0xf8] sm:$0xf]
  %v110 = vld [vmem:[%s1 + $0xfc] sm:$0xf]
  %v111 = vld [vmem:[%s2] sm:$0x1]
  %v113 = vlaneseq
  %v114 = vshrl.u32 %v113, 7
  %v115 = vsub.s32 0, %v114
  %v116 = vrot.slane %v111, %v115
  %v150 = vunpack.c.l.b16 %v15
  %v151 = vunpack.c.h.b16 %v15
  %v152 = vunpack.c.l.b16 %v16
  %v153 = vunpack.c.h.b16 %v16
  %v154 = vunpack.c.l.b16 %v17
  %v155 = vunpack.c.h.b16 %v17
  %v156 = vunpack.c.l.b16 %v18
  %v157 = vunpack.c.h.b16 %v18
  %v158 = vunpack.c.l.b16 %v19
  %v159 = vunpack.c.h.b16 %v19
  %v160 = vunpack.c.l.b16 %v20
  %v161 = vunpack.c.h.b16 %v20
  %v162 = vunpack.c.l.b16 %v21
  %v163 = vunpack.c.h.b16 %v21
  %v164 = vunpack.c.l.b16 %v22
  %v165 = vunpack.c.h.b16 %v22
  %v166 = vunpack.c.l.b16 %v23
  %v167 = vunpack.c.h.b16 %v23
  %v168 = vunpack.c.l.b16 %v24
  %v169 = vunpack.c.h.b16 %v24
  %v170 = vunpack.c.l.b16 %v25
  %v171 = vunpack.c.h.b16 %v25
  %v172 = vunpack.c.l.b16 %v26
  %v173 = vunpack.c.h.b16 %v26
  %v174 = vunpack.c.l.b16 %v27
  %v175 = vunpack.c.h.b16 %v27
  %v176 = vunpack.c.l.b16 %v28
  %v177 = vunpack.c.h.b16 %v28
  %v178 = vunpack.c.l.b16 %v29
  %v179 = vunpack.c.h.b16 %v29
  %v180 = vunpack.c.l.b16 %v30
  %v181 = vunpack.c.h.b16 %v30
  %v182 = vunpack.c.l.b16 %v31
  %v183 = vunpack.c.h.b16 %v31
  %v184 = vunpack.c.l.b16 %v32
  %v185 = vunpack.c.h.b16 %v32
  %v186 = vunpack.c.l.b16 %v33
  %v187 = vunpack.c.h.b16 %v33
  %v188 = vunpack.c.l.b16 %v34
  %v189 = vunpack.c.h.b16 %v34
  %v190 = vunpack.c.l.b16 %v35
  %v191 = vunpack.c.h.b16 %v35
  %v192 = vunpack.c.l.b16 %v36
  %v193 = vunpack.c.h.b16 %v36
  %v194 = vunpack.c.l.b16 %v37
  %v195 = vunpack.c.h.b16 %v37
  %v196 = vunpack.c.l.b16 %v38
  %v197 = vunpack.c.h.b16 %v38
  %v198 = vunpack.c.l.b16 %v39
  %v199 = vunpack.c.h.b16 %v39
  %v200 = vunpack.c.l.b16 %v40
  %v201 = vunpack.c.h.b16 %v40
  %v202 = vunpack.c.l.b16 %v41
  %v203 = vunpack.c.h.b16 %v41
  %v204 = vunpack.c.l.b16 %v42
  %v205 = vunpack.c.h.b16 %v42
  %v206 = vunpack.c.l.b16 %v43
  %v207 = vunpack.c.h.b16 %v43
  %v208 = vunpack.c.l.b16 %v44
  %v209 = vunpack.c.h.b16 %v44
  %v210 = vunpack.c.l.b16 %v45
  %v211 = vunpack.c.h.b16 %v45
  %v212 = vunpack.c.l.b16 %v46
  %v213 = vunpack.c.h.b16 %v46
  %v214 = vpack.c.b16 %v154, %v150
  %v215 = vpack.c.b16 %v155, %v151
  %v216 = vpack.c.b16 %v156, %v152
  %v217 = vpack.c.b16 %v157, %v153
  %v218 = vpack.c.b16 %v162, %v158
  %v219 = vpack.c.b16 %v163, %v159
  %v220 = vpack.c.b16 %v164, %v160
  %v221 = vpack.c.b16 %v165, %v161
  %v222 = vpack.c.b16 %v170, %v166
  %v223 = vpack.c.b16 %v171, %v167
  %v224 = vpack.c.b16 %v172, %v168
  %v225 = vpack.c.b16 %v173, %v169
  %v226 = vpack.c.b16 %v178, %v174
  %v227 = vpack.c.b16 %v179, %v175
  %v228 = vpack.c.b16 %v180, %v176
  %v229 = vpack.c.b16 %v181, %v177
  %v230 = vpack.c.b16 %v186, %v182
  %v231 = vpack.c.b16 %v187, %v183
  %v232 = vpack.c.b16 %v188, %v184
  %v233 = vpack.c.b16 %v189, %v185
  %v234 = vpack.c.b16 %v194, %v190
  %v235 = vpack.c.b16 %v195, %v191
  %v236 = vpack.c.b16 %v196, %v192
  %v237 = vpack.c.b16 %v197, %v193
  %v238 = vpack.c.b16 %v202, %v198
  %v239 = vpack.c.b16 %v203, %v199
  %v240 = vpack.c.b16 %v204, %v200
  %v241 = vpack.c.b16 %v205, %v201
  %v242 = vpack.c.b16 %v210, %v206
  %v243 = vpack.c.b16 %v211, %v207
  %v244 = vpack.c.b16 %v212, %v208
  %v245 = vpack.c.b16 %v213, %v209
  %v342 = vunpack.c.l.b16 %v47
  %v343 = vunpack.c.l.b16 %v48
  %v344 = vunpack.c.l.b16 %v49
  %v345 = vunpack.c.l.b16 %v50
  %v346 = vunpack.c.l.b16 %v51
  %v347 = vunpack.c.l.b16 %v52
  %v348 = vunpack.c.l.b16 %v53
  %v349 = vunpack.c.l.b16 %v54
  %v350 = vunpack.c.l.b16 %v55
  %v351 = vunpack.c.l.b16 %v56
  %v352 = vunpack.c.l.b16 %v57
  %v353 = vunpack.c.l.b16 %v58
  %v354 = vunpack.c.l.b16 %v59
  %v355 = vunpack.c.l.b16 %v60
  %v356 = vunpack.c.l.b16 %v61
  %v357 = vunpack.c.l.b16 %v62
  %v358 = vunpack.c.l.b16 %v63
  %v359 = vunpack.c.l.b16 %v64
  %v360 = vunpack.c.l.b16 %v65
  %v361 = vunpack.c.l.b16 %v66
  %v362 = vunpack.c.l.b16 %v67
  %v363 = vunpack.c.l.b16 %v68
  %v364 = vunpack.c.l.b16 %v69
  %v365 = vunpack.c.l.b16 %v70
  %v366 = vunpack.c.l.b16 %v71
  %v367 = vunpack.c.l.b16 %v72
  %v368 = vunpack.c.l.b16 %v73
  %v369 = vunpack.c.l.b16 %v74
  %v370 = vunpack.c.l.b16 %v75
  %v371 = vunpack.c.l.b16 %v76
  %v372 = vunpack.c.l.b16 %v77
  %v373 = vunpack.c.l.b16 %v78
  %v374 = vunpack.c.l.b16 %v79
  %v375 = vunpack.c.l.b16 %v80
  %v376 = vunpack.c.l.b16 %v81
  %v377 = vunpack.c.l.b16 %v82
  %v378 = vunpack.c.l.b16 %v83
  %v379 = vunpack.c.l.b16 %v84
  %v380 = vunpack.c.l.b16 %v85
  %v381 = vunpack.c.l.b16 %v86
  %v382 = vunpack.c.l.b16 %v87
  %v383 = vunpack.c.l.b16 %v88
  %v384 = vunpack.c.l.b16 %v89
  %v385 = vunpack.c.l.b16 %v90
  %v386 = vunpack.c.l.b16 %v91
  %v387 = vunpack.c.l.b16 %v92
  %v388 = vunpack.c.l.b16 %v93
  %v389 = vunpack.c.l.b16 %v94
  %v390 = vunpack.c.l.b16 %v95
  %v391 = vunpack.c.l.b16 %v96
  %v392 = vunpack.c.l.b16 %v97
  %v393 = vunpack.c.l.b16 %v98
  %v394 = vunpack.c.l.b16 %v99
  %v395 = vunpack.c.l.b16 %v100
  %v396 = vunpack.c.l.b16 %v101
  %v397 = vunpack.c.l.b16 %v102
  %v398 = vunpack.c.l.b16 %v103
  %v399 = vunpack.c.l.b16 %v104
  %v400 = vunpack.c.l.b16 %v105
  %v401 = vunpack.c.l.b16 %v106
  %v402 = vunpack.c.l.b16 %v107
  %v403 = vunpack.c.l.b16 %v108
  %v404 = vunpack.c.l.b16 %v109
  %v405 = vunpack.c.l.b16 %v110
  %v406 = vpack.c.b16 %v343, %v342
  %v407 = vpack.c.b16 %v345, %v344
  %v408 = vpack.c.b16 %v347, %v346
  %v409 = vpack.c.b16 %v349, %v348
  %v410 = vpack.c.b16 %v351, %v350
  %v411 = vpack.c.b16 %v353, %v352
  %v412 = vpack.c.b16 %v355, %v354
  %v413 = vpack.c.b16 %v357, %v356
  %v414 = vpack.c.b16 %v359, %v358
  %v415 = vpack.c.b16 %v361, %v360
  %v416 = vpack.c.b16 %v363, %v362
  %v417 = vpack.c.b16 %v365, %v364
  %v418 = vpack.c.b16 %v367, %v366
  %v419 = vpack.c.b16 %v369, %v368
  %v420 = vpack.c.b16 %v371, %v370
  %v421 = vpack.c.b16 %v373, %v372
  %v422 = vpack.c.b16 %v375, %v374
  %v423 = vpack.c.b16 %v377, %v376
  %v424 = vpack.c.b16 %v379, %v378
  %v425 = vpack.c.b16 %v381, %v380
  %v426 = vpack.c.b16 %v383, %v382
  %v427 = vpack.c.b16 %v385, %v384
  %v428 = vpack.c.b16 %v387, %v386
  %v429 = vpack.c.b16 %v389, %v388
  %v430 = vpack.c.b16 %v391, %v390
  %v431 = vpack.c.b16 %v393, %v392
  %v432 = vpack.c.b16 %v395, %v394
  %v433 = vpack.c.b16 %v397, %v396
  %v434 = vpack.c.b16 %v399, %v398
  %v435 = vpack.c.b16 %v401, %v400
  %v436 = vpack.c.b16 %v403, %v402
  %v437 = vpack.c.b16 %v405, %v404
  %470 = vmatprep.subr.bf16.mxu0 0
  %471 = vmatpush1.bf16.msra.mxu0 %v406
  %472 = vmatprep.subr.bf16.mxu0 0
  %473 = vmatpush1.bf16.msra.mxu0 %v407
  %474 = vmatprep.subr.bf16.mxu0 0
  %475 = vmatpush1.bf16.msra.mxu0 %v408
  %476 = vmatprep.subr.bf16.mxu0 0
  %477 = vmatpush1.bf16.msra.mxu0 %v409
  %478 = vmatprep.subr.bf16.mxu0 0
  %479 = vmatpush1.bf16.msra.mxu0 %v410
  %480 = vmatprep.subr.bf16.mxu0 0
  %481 = vmatpush1.bf16.msra.mxu0 %v411
  %482 = vmatprep.subr.bf16.mxu0 0
  %483 = vmatpush1.bf16.msra.mxu0 %v412
  %484 = vmatprep.subr.bf16.mxu0 0
  %485 = vmatpush1.bf16.msra.mxu0 %v413
  %486 = vmatprep.subr.bf16.mxu0 0
  %487 = vmatpush1.bf16.msra.mxu0 %v414
  %488 = vmatprep.subr.bf16.mxu0 0
  %489 = vmatpush1.bf16.msra.mxu0 %v415
  %490 = vmatprep.subr.bf16.mxu0 0
  %491 = vmatpush1.bf16.msra.mxu0 %v416
  %492 = vmatprep.subr.bf16.mxu0 0
  %493 = vmatpush1.bf16.msra.mxu0 %v417
  %494 = vmatprep.subr.bf16.mxu0 0
  %495 = vmatpush1.bf16.msra.mxu0 %v418
  %496 = vmatprep.subr.bf16.mxu0 0
  %497 = vmatpush1.bf16.msra.mxu0 %v419
  %498 = vmatprep.subr.bf16.mxu0 0
  %499 = vmatpush1.bf16.msra.mxu0 %v420
  %500 = vmatprep.subr.bf16.mxu0 0
  %501 = vmatpush1.bf16.msra.mxu0 %v421
  %502 = vmatprep.mubr.bf16.mxu0 %v215
  %503 = vmatmul.mubr.bf16.gmra.mrb[0].mxu0 %v214
  %v504 = vpop.f32.mrb[0].mxu0
  %v505 = vadd.f32 %v116, %v504
  %v506 = vpop.f32.mrb[0].mxu0
  %v507 = vpop.f32.mrb[0].mxu0
  %v508 = vadd.f32 %v116, %v507
  %v509 = vpop.f32.mrb[0].mxu0
  %510 = vmatprep.mubr.bf16.mxu0 %v219
  %511 = vmatmul.mubr.bf16.gmra.mrb[0].mxu0 %v218
  %v512 = vpop.f32.mrb[0].mxu0
  %v513 = vadd.f32 %v116, %v512
  %v514 = vpop.f32.mrb[0].mxu0
  %v515 = vpop.f32.mrb[0].mxu0
  %v516 = vadd.f32 %v116, %v515
  %v517 = vpop.f32.mrb[0].mxu0
  %518 = vmatprep.mubr.bf16.mxu0 %v223
  %519 = vmatmul.mubr.bf16.gmra.mrb[0].mxu0 %v222
  %v520 = vpop.f32.mrb[0].mxu0
  %v521 = vadd.f32 %v116, %v520
  %v522 = vpop.f32.mrb[0].mxu0
  %v523 = vpop.f32.mrb[0].mxu0
  %v524 = vadd.f32 %v116, %v523
  %v525 = vpop.f32.mrb[0].mxu0
  %526 = vmatprep.mubr.bf16.mxu0 %v227
  %527 = vmatmul.mubr.bf16.gmra.mrb[0].mxu0 %v226
  %v528 = vpop.f32.mrb[0].mxu0
  %v529 = vadd.f32 %v116, %v528
  %v530 = vpop.f32.mrb[0].mxu0
  %v531 = vpop.f32.mrb[0].mxu0
  %v532 = vadd.f32 %v116, %v531
  %v533 = vpop.f32.mrb[0].mxu0
  %534 = vmatprep.mubr.bf16.mxu0 %v231
  %535 = vmatmul.mubr.bf16.gmra.mrb[0].mxu0 %v230
  %v536 = vpop.f32.mrb[0].mxu0
  %v537 = vadd.f32 %v116, %v536
  %v538 = vpop.f32.mrb[0].mxu0
  %v539 = vpop.f32.mrb[0].mxu0
  %v540 = vadd.f32 %v116, %v539
  %v541 = vpop.f32.mrb[0].mxu0
  %542 = vmatprep.mubr.bf16.mxu0 %v235
  %543 = vmatmul.mubr.bf16.gmra.mrb[0].mxu0 %v234
  %v544 = vpop.f32.mrb[0].mxu0
  %v545 = vadd.f32 %v116, %v544
  %v546 = vpop.f32.mrb[0].mxu0
  %v547 = vpop.f32.mrb[0].mxu0
  %v548 = vadd.f32 %v116, %v547
  %v549 = vpop.f32.mrb[0].mxu0
  %550 = vmatprep.mubr.bf16.mxu0 %v239
  %551 = vmatmul.mubr.bf16.gmra.mrb[0].mxu0 %v238
  %v552 = vpop.f32.mrb[0].mxu0
  %v553 = vadd.f32 %v116, %v552
  %v554 = vpop.f32.mrb[0].mxu0
  %v555 = vpop.f32.mrb[0].mxu0
  %v556 = vadd.f32 %v116, %v555
  %v557 = vpop.f32.mrb[0].mxu0
  %558 = vmatprep.mubr.bf16.mxu0 %v243
  %559 = vmatmul.mubr.bf16.gmra.mrb[0].mxu0 %v242
  %v560 = vpop.f32.mrb[0].mxu0
  %v561 = vadd.f32 %v116, %v560
  %v562 = vpop.f32.mrb[0].mxu0
  %v563 = vpop.f32.mrb[0].mxu0
  %v564 = vadd.f32 %v116, %v563
  %v565 = vpop.f32.mrb[0].mxu0
  %566 = vdwg.mxu0
  %567 = vmatprep.subr.bf16.mxu0 0
  %568 = vmatpush1.bf16.msra.mxu0 %v422
  %569 = vmatprep.subr.bf16.mxu0 0
  %570 = vmatpush1.bf16.msra.mxu0 %v423
  %571 = vmatprep.subr.bf16.mxu0 0
  %572 = vmatpush1.bf16.msra.mxu0 %v424
  %573 = vmatprep.subr.bf16.mxu0 0
  %574 = vmatpush1.bf16.msra.mxu0 %v425
  %575 = vmatprep.subr.bf16.mxu0 0
  %576 = vmatpush1.bf16.msra.mxu0 %v426
  %577 = vmatprep.subr.bf16.mxu0 0
  %578 = vmatpush1.bf16.msra.mxu0 %v427
  %579 = vmatprep.subr.bf16.mxu0 0
  %580 = vmatpush1.bf16.msra.mxu0 %v428
  %581 = vmatprep.subr.bf16.mxu0 0
  %582 = vmatpush1.bf16.msra.mxu0 %v429
  %583 = vmatprep.subr.bf16.mxu0 0
  %584 = vmatpush1.bf16.msra.mxu0 %v430
  %585 = vmatprep.subr.bf16.mxu0 0
  %586 = vmatpush1.bf16.msra.mxu0 %v431
  %587 = vmatprep.subr.bf16.mxu0 0
  %588 = vmatpush1.bf16.msra.mxu0 %v432
  %589 = vmatprep.subr.bf16.mxu0 0
  %590 = vmatpush1.bf16.msra.mxu0 %v433
  %591 = vmatprep.subr.bf16.mxu0 0
  %592 = vmatpush1.bf16.msra.mxu0 %v434
  %593 = vmatprep.subr.bf16.mxu0 0
  %594 = vmatpush1.bf16.msra.mxu0 %v435
  %595 = vmatprep.subr.bf16.mxu0 0
  %596 = vmatpush1.bf16.msra.mxu0 %v436
  %597 = vmatprep.subr.bf16.mxu0 0
  %598 = vmatpush1.bf16.msra.mxu0 %v437
  %599 = vmatprep.mubr.bf16.mxu0 %v217
  %600 = vmatmul.mubr.bf16.gmra.mrb[0].mxu0 %v216
  %v601 = vpop.f32.mrb[0].mxu0
  %v602 = vadd.f32 %v505, %v601
  %v603 = vpop.f32.mrb[0].mxu0
  %v604 = vpop.f32.mrb[0].mxu0
  %v605 = vadd.f32 %v508, %v604
  %v606 = vpop.f32.mrb[0].mxu0
  %607 = vmatprep.mubr.bf16.mxu0 %v221
  %608 = vmatmul.mubr.bf16.gmra.mrb[0].mxu0 %v220
  %v609 = vpop.f32.mrb[0].mxu0
  %v610 = vadd.f32 %v513, %v609
  %v611 = vpop.f32.mrb[0].mxu0
  %v612 = vpop.f32.mrb[0].mxu0
  %v613 = vadd.f32 %v516, %v612
  %v614 = vpop.f32.mrb[0].mxu0
  %615 = vmatprep.mubr.bf16.mxu0 %v225
  %616 = vmatmul.mubr.bf16.gmra.mrb[0].mxu0 %v224
  %v617 = vpop.f32.mrb[0].mxu0
  %v618 = vadd.f32 %v521, %v617
  %v619 = vpop.f32.mrb[0].mxu0
  %v620 = vpop.f32.mrb[0].mxu0
  %v621 = vadd.f32 %v524, %v620
  %v622 = vpop.f32.mrb[0].mxu0
  %623 = vmatprep.mubr.bf16.mxu0 %v229
  %624 = vmatmul.mubr.bf16.gmra.mrb[0].mxu0 %v228
  %v625 = vpop.f32.mrb[0].mxu0
  %v626 = vadd.f32 %v529, %v625
  %v627 = vpop.f32.mrb[0].mxu0
  %v628 = vpop.f32.mrb[0].mxu0
  %v629 = vadd.f32 %v532, %v628
  %v630 = vpop.f32.mrb[0].mxu0
  %631 = vmatprep.mubr.bf16.mxu0 %v233
  %632 = vmatmul.mubr.bf16.gmra.mrb[0].mxu0 %v232
  %v633 = vpop.f32.mrb[0].mxu0
  %v634 = vadd.f32 %v537, %v633
  %v635 = vpop.f32.mrb[0].mxu0
  %v636 = vpop.f32.mrb[0].mxu0
  %v637 = vadd.f32 %v540, %v636
  %v638 = vpop.f32.mrb[0].mxu0
  %639 = vmatprep.mubr.bf16.mxu0 %v237
  %640 = vmatmul.mubr.bf16.gmra.mrb[0].mxu0 %v236
  %v641 = vpop.f32.mrb[0].mxu0
  %v642 = vadd.f32 %v545, %v641
  %v643 = vpop.f32.mrb[0].mxu0
  %v644 = vpop.f32.mrb[0].mxu0
  %v645 = vadd.f32 %v548, %v644
  %v646 = vpop.f32.mrb[0].mxu0
  %647 = vmatprep.mubr.bf16.mxu0 %v241
  %648 = vmatmul.mubr.bf16.gmra.mrb[0].mxu0 %v240
  %v649 = vpop.f32.mrb[0].mxu0
  %v650 = vadd.f32 %v553, %v649
  %v651 = vpop.f32.mrb[0].mxu0
  %v652 = vpop.f32.mrb[0].mxu0
  %v653 = vadd.f32 %v556, %v652
  %v654 = vpop.f32.mrb[0].mxu0
  %655 = vmatprep.mubr.bf16.mxu0 %v245
  %656 = vmatmul.mubr.bf16.gmra.mrb[0].mxu0 %v244
  %v657 = vpop.f32.mrb[0].mxu0
  %v658 = vadd.f32 %v561, %v657
  %v659 = vpop.f32.mrb[0].mxu0
  %v660 = vpop.f32.mrb[0].mxu0
  %v661 = vadd.f32 %v564, %v660
  %v662 = vpop.f32.mrb[0].mxu0
  %663 = vdwg.mxu0
  %v664 = vmax.f32 %v602, 0.0
  %v665 = vmax.f32 %v605, 0.0
  %v666 = vmax.f32 %v610, 0.0
  %v667 = vmax.f32 %v613, 0.0
  %v668 = vmax.f32 %v618, 0.0
  %v669 = vmax.f32 %v621, 0.0
  %v670 = vmax.f32 %v626, 0.0
  %v671 = vmax.f32 %v629, 0.0
  %v672 = vmax.f32 %v634, 0.0
  %v673 = vmax.f32 %v637, 0.0
  %v674 = vmax.f32 %v642, 0.0
  %v675 = vmax.f32 %v645, 0.0
  %v676 = vmax.f32 %v650, 0.0
  %v677 = vmax.f32 %v653, 0.0
  %v678 = vmax.f32 %v658, 0.0
  %v679 = vmax.f32 %v661, 0.0
  %v680 = vpack.c.bf16 %v665, %v664
  %v681 = vpack.c.bf16 %v667, %v666
  %v682 = vpack.c.bf16 %v669, %v668
  %v683 = vpack.c.bf16 %v671, %v670
  %v684 = vpack.c.bf16 %v673, %v672
  %v685 = vpack.c.bf16 %v675, %v674
  %v686 = vpack.c.bf16 %v677, %v676
  %v687 = vpack.c.bf16 %v679, %v678
  %v696 = vunpack.c.l.b16 %v680
  %v697 = vunpack.c.h.b16 %v680
  %v698 = vunpack.c.l.b16 %v681
  %v699 = vunpack.c.h.b16 %v681
  %v700 = vunpack.c.l.b16 %v682
  %v701 = vunpack.c.h.b16 %v682
  %v702 = vunpack.c.l.b16 %v683
  %v703 = vunpack.c.h.b16 %v683
  %v704 = vunpack.c.l.b16 %v684
  %v705 = vunpack.c.h.b16 %v684
  %v706 = vunpack.c.l.b16 %v685
  %v707 = vunpack.c.h.b16 %v685
  %v708 = vunpack.c.l.b16 %v686
  %v709 = vunpack.c.h.b16 %v686
  %v710 = vunpack.c.l.b16 %v687
  %v711 = vunpack.c.h.b16 %v687
  %v712 = vpack.c.b16 %v696, %v696
  %v713 = vpack.c.b16 %v697, %v697
  %v714 = vpack.c.b16 %v698, %v698
  %v715 = vpack.c.b16 %v699, %v699
  %v716 = vpack.c.b16 %v700, %v700
  %v717 = vpack.c.b16 %v701, %v701
  %v718 = vpack.c.b16 %v702, %v702
  %v719 = vpack.c.b16 %v703, %v703
  %v720 = vpack.c.b16 %v704, %v704
  %v721 = vpack.c.b16 %v705, %v705
  %v722 = vpack.c.b16 %v706, %v706
  %v723 = vpack.c.b16 %v707, %v707
  %v724 = vpack.c.b16 %v708, %v708
  %v725 = vpack.c.b16 %v709, %v709
  %v726 = vpack.c.b16 %v710, %v710
  %v727 = vpack.c.b16 %v711, %v711
  %vm744 = vcmask 257024
  %745 = vst.msk [vmem:[%s3] sm:$0xf] %vm744, %v712
  %746 = vst.msk [vmem:[%s3 + $0x4] sm:$0xf] %vm744, %v713
  %747 = vst.msk [vmem:[%s3 + $0x8] sm:$0xf] %vm744, %v714
  %748 = vst.msk [vmem:[%s3 + $0xc] sm:$0xf] %vm744, %v715
  %749 = vst.msk [vmem:[%s3 + $0x10] sm:$0xf] %vm744, %v716
  %750 = vst.msk [vmem:[%s3 + $0x14] sm:$0xf] %vm744, %v717
  %751 = vst.msk [vmem:[%s3 + $0x18] sm:$0xf] %vm744, %v718
  %752 = vst.msk [vmem:[%s3 + $0x1c] sm:$0xf] %vm744, %v719
  %753 = vst.msk [vmem:[%s3 + $0x20] sm:$0xf] %vm744, %v720
  %754 = vst.msk [vmem:[%s3 + $0x24] sm:$0xf] %vm744, %v721
  %755 = vst.msk [vmem:[%s3 + $0x28] sm:$0xf] %vm744, %v722
  %756 = vst.msk [vmem:[%s3 + $0x2c] sm:$0xf] %vm744, %v723
  %757 = vst.msk [vmem:[%s3 + $0x30] sm:$0xf] %vm744, %v724
  %758 = vst.msk [vmem:[%s3 + $0x34] sm:$0xf] %vm744, %v725
  %759 = vst.msk [vmem:[%s3 + $0x38] sm:$0xf] %vm744, %v726
  %760 = vst.msk [vmem:[%s3 + $0x3c] sm:$0xf] %vm744, %v727
  // Predicated region
  $region14: #{vae_forward.9} parent=0 // pred_check
    _
  $region15: #{vae_forward.9} parent=0 // pred_check_branch
    %762 = sbr.rel (0) target = $region17
  $region16: #{vae_forward.9} parent=0 // pred_region
    _
  $region17: #{vae_forward.9} parent=0 // pred_fallthru
    _
  // Predicated region
  $region18: #{vae_forward.9} parent=0 // pred_check
    _
  $region19: #{vae_forward.9} parent=0 // pred_check_branch
    %764 = sbr.rel (0) target = $region21
  $region20: #{vae_forward.9} parent=0 // pred_region
    _
  $region21: #{vae_forward.9} parent=0 // pred_fallthru
    _

// kernel: vae_forward.10
$region0: #{vae_forward.10}
  #allocation0 [shape = 'u32[]', space=smem, size = 0x4, offset = 0x4, fixed_abs, tag = 'smem constant byte address 0x4 - core index']
  #allocation1 [shape = 'u32[144,128]{1,0:T(1,128)}', space=vmem, size = 0x12000, scoped, tag = 'internal scratch']
  %s0 = inlined_call_operand.vmem [shape: bf16[32,512], index: 0, kind: input, shape index: {}]
  %s1 = inlined_call_operand.vmem [shape: bf16[512,32], index: 1, kind: input, shape index: {}]
  %s2 = inlined_call_operand.vmem [shape: f32[1,32], index: 2, kind: input, shape index: {}]
  %s3 = inlined_call_operand.vmem [shape: bf16[32,32], index: 3, kind: output, shape index: {}]
  %s4 = sld [smem:[#allocation0]]
  $region22: #{vae_forward.10} parent=0
    _
  %s6 = ssub.s32 1, %s4
  %s7 = scalar_select 0, %s6, %s4
  // Predicated region
  $region2: #{vae_forward.10} parent=0 // pred_check
    _
  $region3: #{vae_forward.10} parent=0 // pred_check_branch
    %9 = sbr.rel (0) target = $region5
  $region4: #{vae_forward.10} parent=0 // pred_region
    _
  $region5: #{vae_forward.10} parent=0 // pred_fallthru
    _
  // Predicated region
  $region6: #{vae_forward.10} parent=0 // pred_check
    _
  $region7: #{vae_forward.10} parent=0 // pred_check_branch
    %11 = sbr.rel (0) target = $region9
  $region8: #{vae_forward.10} parent=0 // pred_region
    _
  $region9: #{vae_forward.10} parent=0 // pred_fallthru
    _
  // Predicated region
  $region10: #{vae_forward.10} parent=0 // pred_check
    _
  $region11: #{vae_forward.10} parent=0 // pred_check_branch
    %13 = sbr.rel (0) target = $region13
  $region12: #{vae_forward.10} parent=0 // pred_region
    _
  $region13: #{vae_forward.10} parent=0 // pred_fallthru
    _
  %v15 = vld [vmem:[%s0] sm:$0xff]
  %v16 = vld [vmem:[%s0 + $0x8] sm:$0xff]
  %v17 = vld [vmem:[%s0 + $0x10] sm:$0xff]
  %v18 = vld [vmem:[%s0 + $0x18] sm:$0xff]
  %v19 = vld [vmem:[%s0 + $0x20] sm:$0xff]
  %v20 = vld [vmem:[%s0 + $0x28] sm:$0xff]
  %v21 = vld [vmem:[%s0 + $0x30] sm:$0xff]
  %v22 = vld [vmem:[%s0 + $0x38] sm:$0xff]
  %v23 = vld [vmem:[%s1] sm:$0xf]
  %v24 = vld [vmem:[%s1 + $0x4] sm:$0xf]
  %v25 = vld [vmem:[%s1 + $0x8] sm:$0xf]
  %v26 = vld [vmem:[%s1 + $0xc] sm:$0xf]
  %v27 = vld [vmem:[%s1 + $0x10] sm:$0xf]
  %v28 = vld [vmem:[%s1 + $0x14] sm:$0xf]
  %v29 = vld [vmem:[%s1 + $0x18] sm:$0xf]
  %v30 = vld [vmem:[%s1 + $0x1c] sm:$0xf]
  %v31 = vld [vmem:[%s1 + $0x20] sm:$0xf]
  %v32 = vld [vmem:[%s1 + $0x24] sm:$0xf]
  %v33 = vld [vmem:[%s1 + $0x28] sm:$0xf]
  %v34 = vld [vmem:[%s1 + $0x2c] sm:$0xf]
  %v35 = vld [vmem:[%s1 + $0x30] sm:$0xf]
  %v36 = vld [vmem:[%s1 + $0x34] sm:$0xf]
  %v37 = vld [vmem:[%s1 + $0x38] sm:$0xf]
  %v38 = vld [vmem:[%s1 + $0x3c] sm:$0xf]
  %v39 = vld [vmem:[%s1 + $0x40] sm:$0xf]
  %v40 = vld [vmem:[%s1 + $0x44] sm:$0xf]
  %v41 = vld [vmem:[%s1 + $0x48] sm:$0xf]
  %v42 = vld [vmem:[%s1 + $0x4c] sm:$0xf]
  %v43 = vld [vmem:[%s1 + $0x50] sm:$0xf]
  %v44 = vld [vmem:[%s1 + $0x54] sm:$0xf]
  %v45 = vld [vmem:[%s1 + $0x58] sm:$0xf]
  %v46 = vld [vmem:[%s1 + $0x5c] sm:$0xf]
  %v47 = vld [vmem:[%s1 + $0x60] sm:$0xf]
  %v48 = vld [vmem:[%s1 + $0x64] sm:$0xf]
  %v49 = vld [vmem:[%s1 + $0x68] sm:$0xf]
  %v50 = vld [vmem:[%s1 + $0x6c] sm:$0xf]
  %v51 = vld [vmem:[%s1 + $0x70] sm:$0xf]
  %v52 = vld [vmem:[%s1 + $0x74] sm:$0xf]
  %v53 = vld [vmem:[%s1 + $0x78] sm:$0xf]
  %v54 = vld [vmem:[%s1 + $0x7c] sm:$0xf]
  %v55 = vld [vmem:[%s1 + $0x80] sm:$0xf]
  %v56 = vld [vmem:[%s1 + $0x84] sm:$0xf]
  %v57 = vld [vmem:[%s1 + $0x88] sm:$0xf]
  %v58 = vld [vmem:[%s1 + $0x8c] sm:$0xf]
  %v59 = vld [vmem:[%s1 + $0x90] sm:$0xf]
  %v60 = vld [vmem:[%s1 + $0x94] sm:$0xf]
  %v61 = vld [vmem:[%s1 + $0x98] sm:$0xf]
  %v62 = vld [vmem:[%s1 + $0x9c] sm:$0xf]
  %v63 = vld [vmem:[%s1 + $0xa0] sm:$0xf]
  %v64 = vld [vmem:[%s1 + $0xa4] sm:$0xf]
  %v65 = vld [vmem:[%s1 + $0xa8] sm:$0xf]
  %v66 = vld [vmem:[%s1 + $0xac] sm:$0xf]
  %v67 = vld [vmem:[%s1 + $0xb0] sm:$0xf]
  %v68 = vld [vmem:[%s1 + $0xb4] sm:$0xf]
  %v69 = vld [vmem:[%s1 + $0xb8] sm:$0xf]
  %v70 = vld [vmem:[%s1 + $0xbc] sm:$0xf]
  %v71 = vld [vmem:[%s1 + $0xc0] sm:$0xf]
  %v72 = vld [vmem:[%s1 + $0xc4] sm:$0xf]
  %v73 = vld [vmem:[%s1 + $0xc8] sm:$0xf]
  %v74 = vld [vmem:[%s1 + $0xcc] sm:$0xf]
  %v75 = vld [vmem:[%s1 + $0xd0] sm:$0xf]
  %v76 = vld [vmem:[%s1 + $0xd4] sm:$0xf]
  %v77 = vld [vmem:[%s1 + $0xd8] sm:$0xf]
  %v78 = vld [vmem:[%s1 + $0xdc] sm:$0xf]
  %v79 = vld [vmem:[%s1 + $0xe0] sm:$0xf]
  %v80 = vld [vmem:[%s1 + $0xe4] sm:$0xf]
  %v81 = vld [vmem:[%s1 + $0xe8] sm:$0xf]
  %v82 = vld [vmem:[%s1 + $0xec] sm:$0xf]
  %v83 = vld [vmem:[%s1 + $0xf0] sm:$0xf]
  %v84 = vld [vmem:[%s1 + $0xf4] sm:$0xf]
  %v85 = vld [vmem:[%s1 + $0xf8] sm:$0xf]
  %v86 = vld [vmem:[%s1 + $0xfc] sm:$0xf]
  %v87 = vld [vmem:[%s2] sm:$0x1]
  %v89 = vlaneseq
  %v90 = vshrl.u32 %v89, 7
  %v91 = vsub.s32 0, %v90
  %v92 = vrot.slane %v87, %v91
  %v102 = vunpack.c.l.b16 %v15
  %v103 = vunpack.c.h.b16 %v15
  %v104 = vunpack.c.l.b16 %v16
  %v105 = vunpack.c.h.b16 %v16
  %v106 = vunpack.c.l.b16 %v17
  %v107 = vunpack.c.h.b16 %v17
  %v108 = vunpack.c.l.b16 %v18
  %v109 = vunpack.c.h.b16 %v18
  %v110 = vunpack.c.l.b16 %v19
  %v111 = vunpack.c.h.b16 %v19
  %v112 = vunpack.c.l.b16 %v20
  %v113 = vunpack.c.h.b16 %v20
  %v114 = vunpack.c.l.b16 %v21
  %v115 = vunpack.c.h.b16 %v21
  %v116 = vunpack.c.l.b16 %v22
  %v117 = vunpack.c.h.b16 %v22
  %v118 = vpack.c.b16 %v106, %v102
  %v119 = vpack.c.b16 %v107, %v103
  %v120 = vpack.c.b16 %v108, %v104
  %v121 = vpack.c.b16 %v109, %v105
  %v122 = vpack.c.b16 %v114, %v110
  %v123 = vpack.c.b16 %v115, %v111
  %v124 = vpack.c.b16 %v116, %v112
  %v125 = vpack.c.b16 %v117, %v113
  %v198 = vunpack.c.l.b16 %v23
  %v199 = vunpack.c.l.b16 %v24
  %v200 = vunpack.c.l.b16 %v25
  %v201 = vunpack.c.l.b16 %v26
  %v202 = vunpack.c.l.b16 %v27
  %v203 = vunpack.c.l.b16 %v28
  %v204 = vunpack.c.l.b16 %v29
  %v205 = vunpack.c.l.b16 %v30
  %v206 = vunpack.c.l.b16 %v31
  %v207 = vunpack.c.l.b16 %v32
  %v208 = vunpack.c.l.b16 %v33
  %v209 = vunpack.c.l.b16 %v34
  %v210 = vunpack.c.l.b16 %v35
  %v211 = vunpack.c.l.b16 %v36
  %v212 = vunpack.c.l.b16 %v37
  %v213 = vunpack.c.l.b16 %v38
  %v214 = vunpack.c.l.b16 %v39
  %v215 = vunpack.c.l.b16 %v40
  %v216 = vunpack.c.l.b16 %v41
  %v217 = vunpack.c.l.b16 %v42
  %v218 = vunpack.c.l.b16 %v43
  %v219 = vunpack.c.l.b16 %v44
  %v220 = vunpack.c.l.b16 %v45
  %v221 = vunpack.c.l.b16 %v46
  %v222 = vunpack.c.l.b16 %v47
  %v223 = vunpack.c.l.b16 %v48
  %v224 = vunpack.c.l.b16 %v49
  %v225 = vunpack.c.l.b16 %v50
  %v226 = vunpack.c.l.b16 %v51
  %v227 = vunpack.c.l.b16 %v52
  %v228 = vunpack.c.l.b16 %v53
  %v229 = vunpack.c.l.b16 %v54
  %v230 = vunpack.c.l.b16 %v55
  %v231 = vunpack.c.l.b16 %v56
  %v232 = vunpack.c.l.b16 %v57
  %v233 = vunpack.c.l.b16 %v58
  %v234 = vunpack.c.l.b16 %v59
  %v235 = vunpack.c.l.b16 %v60
  %v236 = vunpack.c.l.b16 %v61
  %v237 = vunpack.c.l.b16 %v62
  %v238 = vunpack.c.l.b16 %v63
  %v239 = vunpack.c.l.b16 %v64
  %v240 = vunpack.c.l.b16 %v65
  %v241 = vunpack.c.l.b16 %v66
  %v242 = vunpack.c.l.b16 %v67
  %v243 = vunpack.c.l.b16 %v68
  %v244 = vunpack.c.l.b16 %v69
  %v245 = vunpack.c.l.b16 %v70
  %v246 = vunpack.c.l.b16 %v71
  %v247 = vunpack.c.l.b16 %v72
  %v248 = vunpack.c.l.b16 %v73
  %v249 = vunpack.c.l.b16 %v74
  %v250 = vunpack.c.l.b16 %v75
  %v251 = vunpack.c.l.b16 %v76
  %v252 = vunpack.c.l.b16 %v77
  %v253 = vunpack.c.l.b16 %v78
  %v254 = vunpack.c.l.b16 %v79
  %v255 = vunpack.c.l.b16 %v80
  %v256 = vunpack.c.l.b16 %v81
  %v257 = vunpack.c.l.b16 %v82
  %v258 = vunpack.c.l.b16 %v83
  %v259 = vunpack.c.l.b16 %v84
  %v260 = vunpack.c.l.b16 %v85
  %v261 = vunpack.c.l.b16 %v86
  %v262 = vpack.c.b16 %v199, %v198
  %v263 = vpack.c.b16 %v201, %v200
  %v264 = vpack.c.b16 %v203, %v202
  %v265 = vpack.c.b16 %v205, %v204
  %v266 = vpack.c.b16 %v207, %v206
  %v267 = vpack.c.b16 %v209, %v208
  %v268 = vpack.c.b16 %v211, %v210
  %v269 = vpack.c.b16 %v213, %v212
  %v270 = vpack.c.b16 %v215, %v214
  %v271 = vpack.c.b16 %v217, %v216
  %v272 = vpack.c.b16 %v219, %v218
  %v273 = vpack.c.b16 %v221, %v220
  %v274 = vpack.c.b16 %v223, %v222
  %v275 = vpack.c.b16 %v225, %v224
  %v276 = vpack.c.b16 %v227, %v226
  %v277 = vpack.c.b16 %v229, %v228
  %v278 = vpack.c.b16 %v231, %v230
  %v279 = vpack.c.b16 %v233, %v232
  %v280 = vpack.c.b16 %v235, %v234
  %v281 = vpack.c.b16 %v237, %v236
  %v282 = vpack.c.b16 %v239, %v238
  %v283 = vpack.c.b16 %v241, %v240
  %v284 = vpack.c.b16 %v243, %v242
  %v285 = vpack.c.b16 %v245, %v244
  %v286 = vpack.c.b16 %v247, %v246
  %v287 = vpack.c.b16 %v249, %v248
  %v288 = vpack.c.b16 %v251, %v250
  %v289 = vpack.c.b16 %v253, %v252
  %v290 = vpack.c.b16 %v255, %v254
  %v291 = vpack.c.b16 %v257, %v256
  %v292 = vpack.c.b16 %v259, %v258
  %v293 = vpack.c.b16 %v261, %v260
  %326 = vmatprep.subr.bf16.mxu0 0
  %327 = vmatpush1.bf16.msra.mxu0 %v262
  %328 = vmatprep.subr.bf16.mxu0 0
  %329 = vmatpush1.bf16.msra.mxu0 %v263
  %330 = vmatprep.subr.bf16.mxu0 0
  %331 = vmatpush1.bf16.msra.mxu0 %v264
  %332 = vmatprep.subr.bf16.mxu0 0
  %333 = vmatpush1.bf16.msra.mxu0 %v265
  %334 = vmatprep.subr.bf16.mxu0 0
  %335 = vmatpush1.bf16.msra.mxu0 %v266
  %336 = vmatprep.subr.bf16.mxu0 0
  %337 = vmatpush1.bf16.msra.mxu0 %v267
  %338 = vmatprep.subr.bf16.mxu0 0
  %339 = vmatpush1.bf16.msra.mxu0 %v268
  %340 = vmatprep.subr.bf16.mxu0 0
  %341 = vmatpush1.bf16.msra.mxu0 %v269
  %342 = vmatprep.subr.bf16.mxu0 0
  %343 = vmatpush1.bf16.msra.mxu0 %v270
  %344 = vmatprep.subr.bf16.mxu0 0
  %345 = vmatpush1.bf16.msra.mxu0 %v271
  %346 = vmatprep.subr.bf16.mxu0 0
  %347 = vmatpush1.bf16.msra.mxu0 %v272
  %348 = vmatprep.subr.bf16.mxu0 0
  %349 = vmatpush1.bf16.msra.mxu0 %v273
  %350 = vmatprep.subr.bf16.mxu0 0
  %351 = vmatpush1.bf16.msra.mxu0 %v274
  %352 = vmatprep.subr.bf16.mxu0 0
  %353 = vmatpush1.bf16.msra.mxu0 %v275
  %354 = vmatprep.subr.bf16.mxu0 0
  %355 = vmatpush1.bf16.msra.mxu0 %v276
  %356 = vmatprep.subr.bf16.mxu0 0
  %357 = vmatpush1.bf16.msra.mxu0 %v277
  %358 = vmatprep.mubr.bf16.mxu0 %v119
  %359 = vmatmul.mubr.bf16.gmra.mrb[0].mxu0 %v118
  %v360 = vpop.f32.mrb[0].mxu0
  %v361 = vadd.f32 %v92, %v360
  %v362 = vpop.f32.mrb[0].mxu0
  %v363 = vpop.f32.mrb[0].mxu0
  %v364 = vadd.f32 %v92, %v363
  %v365 = vpop.f32.mrb[0].mxu0
  %366 = vmatprep.mubr.bf16.mxu0 %v123
  %367 = vmatmul.mubr.bf16.gmra.mrb[0].mxu0 %v122
  %v368 = vpop.f32.mrb[0].mxu0
  %v369 = vadd.f32 %v92, %v368
  %v370 = vpop.f32.mrb[0].mxu0
  %v371 = vpop.f32.mrb[0].mxu0
  %v372 = vadd.f32 %v92, %v371
  %v373 = vpop.f32.mrb[0].mxu0
  %374 = vdwg.mxu0
  %375 = vmatprep.subr.bf16.mxu0 0
  %376 = vmatpush1.bf16.msra.mxu0 %v278
  %377 = vmatprep.subr.bf16.mxu0 0
  %378 = vmatpush1.bf16.msra.mxu0 %v279
  %379 = vmatprep.subr.bf16.mxu0 0
  %380 = vmatpush1.bf16.msra.mxu0 %v280
  %381 = vmatprep.subr.bf16.mxu0 0
  %382 = vmatpush1.bf16.msra.mxu0 %v281
  %383 = vmatprep.subr.bf16.mxu0 0
  %384 = vmatpush1.bf16.msra.mxu0 %v282
  %385 = vmatprep.subr.bf16.mxu0 0
  %386 = vmatpush1.bf16.msra.mxu0 %v283
  %387 = vmatprep.subr.bf16.mxu0 0
  %388 = vmatpush1.bf16.msra.mxu0 %v284
  %389 = vmatprep.subr.bf16.mxu0 0
  %390 = vmatpush1.bf16.msra.mxu0 %v285
  %391 = vmatprep.subr.bf16.mxu0 0
  %392 = vmatpush1.bf16.msra.mxu0 %v286
  %393 = vmatprep.subr.bf16.mxu0 0
  %394 = vmatpush1.bf16.msra.mxu0 %v287
  %395 = vmatprep.subr.bf16.mxu0 0
  %396 = vmatpush1.bf16.msra.mxu0 %v288
  %397 = vmatprep.subr.bf16.mxu0 0
  %398 = vmatpush1.bf16.msra.mxu0 %v289
  %399 = vmatprep.subr.bf16.mxu0 0
  %400 = vmatpush1.bf16.msra.mxu0 %v290
  %401 = vmatprep.subr.bf16.mxu0 0
  %402 = vmatpush1.bf16.msra.mxu0 %v291
  %403 = vmatprep.subr.bf16.mxu0 0
  %404 = vmatpush1.bf16.msra.mxu0 %v292
  %405 = vmatprep.subr.bf16.mxu0 0
  %406 = vmatpush1.bf16.msra.mxu0 %v293
  %407 = vmatprep.mubr.bf16.mxu0 %v121
  %408 = vmatmul.mubr.bf16.gmra.mrb[0].mxu0 %v120
  %v409 = vpop.f32.mrb[0].mxu0
  %v410 = vadd.f32 %v361, %v409
  %v411 = vpop.f32.mrb[0].mxu0
  %v412 = vpop.f32.mrb[0].mxu0
  %v413 = vadd.f32 %v364, %v412
  %v414 = vpop.f32.mrb[0].mxu0
  %415 = vmatprep.mubr.bf16.mxu0 %v125
  %416 = vmatmul.mubr.bf16.gmra.mrb[0].mxu0 %v124
  %v417 = vpop.f32.mrb[0].mxu0
  %v418 = vadd.f32 %v369, %v417
  %v419 = vpop.f32.mrb[0].mxu0
  %v420 = vpop.f32.mrb[0].mxu0
  %v421 = vadd.f32 %v372, %v420
  %v422 = vpop.f32.mrb[0].mxu0
  %423 = vdwg.mxu0
  %v424 = vmax.f32 %v410, 0.0
  %v425 = vmax.f32 %v413, 0.0
  %v426 = vmax.f32 %v418, 0.0
  %v427 = vmax.f32 %v421, 0.0
  %v428 = vpack.c.bf16 %v425, %v424
  %v429 = vpack.c.bf16 %v427, %v426
  %v432 = vunpack.c.l.b16 %v428
  %v433 = vunpack.c.h.b16 %v428
  %v434 = vunpack.c.l.b16 %v429
  %v435 = vunpack.c.h.b16 %v429
  %v436 = vpack.c.b16 %v432, %v432
  %v437 = vpack.c.b16 %v433, %v433
  %v438 = vpack.c.b16 %v434, %v434
  %v439 = vpack.c.b16 %v435, %v435
  %vm444 = vcmask 257024
  %445 = vst.msk [vmem:[%s3] sm:$0xf] %vm444, %v436
  %446 = vst.msk [vmem:[%s3 + $0x4] sm:$0xf] %vm444, %v437
  %447 = vst.msk [vmem:[%s3 + $0x8] sm:$0xf] %vm444, %v438
  %448 = vst.msk [vmem:[%s3 + $0xc] sm:$0xf] %vm444, %v439
  // Predicated region
  $region14: #{vae_forward.10} parent=0 // pred_check
    _
  $region15: #{vae_forward.10} parent=0 // pred_check_branch
    %450 = sbr.rel (0) target = $region17
  $region16: #{vae_forward.10} parent=0 // pred_region
    _
  $region17: #{vae_forward.10} parent=0 // pred_fallthru
    _
  // Predicated region
  $region18: #{vae_forward.10} parent=0 // pred_check
    _
  $region19: #{vae_forward.10} parent=0 // pred_check_branch
    %452 = sbr.rel (0) target = $region21
  $region20: #{vae_forward.10} parent=0 // pred_region
    _
  $region21: #{vae_forward.10} parent=0 // pred_fallthru
    _

// kernel: vae_forward.12
$region0: #{vae_forward.12}
  #allocation0 [shape = 'u32[]', space=smem, size = 0x4, offset = 0x4, fixed_abs, tag = 'smem constant byte address 0x4 - core index']
  #allocation1 [shape = 'u32[144,128]{1,0:T(1,128)}', space=vmem, size = 0x12000, scoped, tag = 'internal scratch']
  %s0 = inlined_call_operand.vmem [shape: bf16[2,10], index: 0, kind: input, shape index: {}]
  %s1 = inlined_call_operand.vmem [shape: bf16[10,256], index: 1, kind: input, shape index: {}]
  %s2 = inlined_call_operand.vmem [shape: f32[1,256], index: 2, kind: input, shape index: {}]
  %s3 = inlined_call_operand.vmem [shape: bf16[256,256], index: 3, kind: input, shape index: {}]
  %s4 = inlined_call_operand.vmem [shape: f32[1,256], index: 4, kind: input, shape index: {}]
  %s5 = inlined_call_operand.vmem [shape: bf16[256,512], index: 5, kind: input, shape index: {}]
  %s6 = inlined_call_operand.vmem [shape: f32[1,512], index: 6, kind: input, shape index: {}]
  %s7 = inlined_call_operand.vmem [shape: bf16[2,512], index: 7, kind: output, shape index: {}]
  %s8 = sld [smem:[#allocation0]]
  $region38: #{vae_forward.12} parent=0
    _
  %s10 = ssub.s32 1, %s8
  %s11 = scalar_select 0, %s10, %s8
  // Predicated region
  $region2: #{vae_forward.12} parent=0 // pred_check
    _
  $region3: #{vae_forward.12} parent=0 // pred_check_branch
    %13 = sbr.rel (0) target = $region5
  $region4: #{vae_forward.12} parent=0 // pred_region
    _
  $region5: #{vae_forward.12} parent=0 // pred_fallthru
    _
  // Predicated region
  $region6: #{vae_forward.12} parent=0 // pred_check
    _
  $region7: #{vae_forward.12} parent=0 // pred_check_branch
    %15 = sbr.rel (0) target = $region9
  $region8: #{vae_forward.12} parent=0 // pred_region
    _
  $region9: #{vae_forward.12} parent=0 // pred_fallthru
    _
  // Predicated region
  $region10: #{vae_forward.12} parent=0 // pred_check
    _
  $region11: #{vae_forward.12} parent=0 // pred_check_branch
    %17 = sbr.rel (0) target = $region13
  $region12: #{vae_forward.12} parent=0 // pred_region
    _
  $region13: #{vae_forward.12} parent=0 // pred_fallthru
    _
  // Predicated region
  $region14: #{vae_forward.12} parent=0 // pred_check
    _
  $region15: #{vae_forward.12} parent=0 // pred_check_branch
    %19 = sbr.rel (0) target = $region17
  $region16: #{vae_forward.12} parent=0 // pred_region
    _
  $region17: #{vae_forward.12} parent=0 // pred_fallthru
    _
  // Predicated region
  $region18: #{vae_forward.12} parent=0 // pred_check
    _
  $region19: #{vae_forward.12} parent=0 // pred_check_branch
    %21 = sbr.rel (0) target = $region21
  $region20: #{vae_forward.12} parent=0 // pred_region
    _
  $region21: #{vae_forward.12} parent=0 // pred_fallthru
    _
  // Predicated region
  $region22: #{vae_forward.12} parent=0 // pred_check
    _
  $region23: #{vae_forward.12} parent=0 // pred_check_branch
    %23 = sbr.rel (0) target = $region25
  $region24: #{vae_forward.12} parent=0 // pred_region
    _
  $region25: #{vae_forward.12} parent=0 // pred_fallthru
    _
  // Predicated region
  $region26: #{vae_forward.12} parent=0 // pred_check
    _
  $region27: #{vae_forward.12} parent=0 // pred_check_branch
    %25 = sbr.rel (0) target = $region29
  $region28: #{vae_forward.12} parent=0 // pred_region
    _
  $region29: #{vae_forward.12} parent=0 // pred_fallthru
    _
  %v27 = vld [vmem:[%s0] sm:$0x1]
  %v28 = vld [vmem:[%s1] sm:$0xff]
  %v29 = vld [vmem:[%s1 + $0x8] sm:$0x11]
  %v30 = vld [vmem:[%s2] sm:$0x3]
  %v32 = vlaneseq
  %v33 = vshrl.u32 %v32, 7
  %v34 = vsub.s32 0, %v33
  %v35 = vrot.slane %v30, %v34
  %v36 = vlaneseq
  %v37 = vshrl.u32 %v36, 7
  %v38 = vsub.s32 1, %v37
  %v39 = vrot.slane %v30, %v38
  %v44 = vunpack.c.l.b16 %v28
  %v45 = vunpack.c.h.b16 %v28
  %v46 = vunpack.c.l.b16 %v29
  %v47 = vunpack.c.h.b16 %v29
  %v48 = vpack.c.b16 %v46, %v44
  %v49 = vpack.c.b16 %v47, %v45
  %vm50 = vcmask 80896
  %v52 = vsel %vm50, %v27, 0
  %vm54 = vcmask 1044480
  %v56 = vsel %vm54, %v48, 0
  %v59 = vsel %vm54, %v49, 0
  %61 = vmatprep.subr.bf16.mxu0 %v59
  %62 = vmatpush1.bf16.msra.mxu0 %v56
  %63 = vmatprep.subr.bf16.mxu0 0
  %64 = vmatpush1.bf16.msra.mxu0 0
  %65 = vmatprep.subr.bf16.mxu0 0
  %66 = vmatpush1.bf16.msra.mxu0 0
  %67 = vmatprep.subr.bf16.mxu0 0
  %68 = vmatpush1.bf16.msra.mxu0 0
  %69 = vmatprep.subr.bf16.mxu0 0
  %70 = vmatpush1.bf16.msra.mxu0 0
  %71 = vmatprep.subr.bf16.mxu0 0
  %72 = vmatpush1.bf16.msra.mxu0 0
  %73 = vmatprep.subr.bf16.mxu0 0
  %74 = vmatpush1.bf16.msra.mxu0 0
  %75 = vmatprep.subr.bf16.mxu0 0
  %76 = vmatpush1.bf16.msra.mxu0 0
  %77 = vmatprep.subr.bf16.mxu0 0
  %78 = vmatpush1.bf16.msra.mxu0 0
  %79 = vmatprep.subr.bf16.mxu0 0
  %80 = vmatpush1.bf16.msra.mxu0 0
  %81 = vmatprep.subr.bf16.mxu0 0
  %82 = vmatpush1.bf16.msra.mxu0 0
  %83 = vmatprep.subr.bf16.mxu0 0
  %84 = vmatpush1.bf16.msra.mxu0 0
  %85 = vmatprep.subr.bf16.mxu0 0
  %86 = vmatpush1.bf16.msra.mxu0 0
  %87 = vmatprep.subr.bf16.mxu0 0
  %88 = vmatpush1.bf16.msra.mxu0 0
  %89 = vmatprep.subr.bf16.mxu0 0
  %90 = vmatpush1.bf16.msra.mxu0 0
  %91 = vmatprep.subr.bf16.mxu0 0
  %92 = vmatpush1.bf16.msra.mxu0 0
  %93 = vmatprep.mubr.bf16.mxu0 0
  %94 = vmatmul.mubr.bf16.gmra.mrb[0].mxu0 %v52
  %v95 = vpop.f32.mrb[0].mxu0
  %v96 = vadd.f32 %v35, %v95
  %v97 = vpop.f32.mrb[0].mxu0
  %v98 = vadd.f32 %v39, %v97
  %v99 = vpop.f32.mrb[0].mxu0
  %v100 = vpop.f32.mrb[0].mxu0
  %101 = vdwg.mxu0
  %v102 = vmax.f32 %v96, 0.0
  %v103 = vmax.f32 %v98, 0.0
  %v104 = vpack.c.bf16 %v102, %v102
  %v105 = vpack.c.bf16 %v103, %v103
  %v106 = vld [vmem:[%s3] sm:$0xff]
  %v107 = vld [vmem:[%s3 + $0x8] sm:$0xff]
  %v108 = vld [vmem:[%s3 + $0x10] sm:$0xff]
  %v109 = vld [vmem:[%s3 + $0x18] sm:$0xff]
  %v110 = vld [vmem:[%s3 + $0x20] sm:$0xff]
  %v111 = vld [vmem:[%s3 + $0x28] sm:$0xff]
  %v112 = vld [vmem:[%s3 + $0x30] sm:$0xff]
  %v113 = vld [vmem:[%s3 + $0x38] sm:$0xff]
  %v114 = vld [vmem:[%s3 + $0x40] sm:$0xff]
  %v115 = vld [vmem:[%s3 + $0x48] sm:$0xff]
  %v116 = vld [vmem:[%s3 + $0x50] sm:$0xff]
  %v117 = vld [vmem:[%s3 + $0x58] sm:$0xff]
  %v118 = vld [vmem:[%s3 + $0x60] sm:$0xff]
  %v119 = vld [vmem:[%s3 + $0x68] sm:$0xff]
  %v120 = vld [vmem:[%s3 + $0x70] sm:$0xff]
  %v121 = vld [vmem:[%s3 + $0x78] sm:$0xff]
  %v122 = vld [vmem:[%s3 + $0x80] sm:$0xff]
  %v123 = vld [vmem:[%s3 + $0x88] sm:$0xff]
  %v124 = vld [vmem:[%s3 + $0x90] sm:$0xff]
  %v125 = vld [vmem:[%s3 + $0x98] sm:$0xff]
  %v126 = vld [vmem:[%s3 + $0xa0] sm:$0xff]
  %v127 = vld [vmem:[%s3 + $0xa8] sm:$0xff]
  %v128 = vld [vmem:[%s3 + $0xb0] sm:$0xff]
  %v129 = vld [vmem:[%s3 + $0xb8] sm:$0xff]
  %v130 = vld [vmem:[%s3 + $0xc0] sm:$0xff]
  %v131 = vld [vmem:[%s3 + $0xc8] sm:$0xff]
  %v132 = vld [vmem:[%s3 + $0xd0] sm:$0xff]
  %v133 = vld [vmem:[%s3 + $0xd8] sm:$0xff]
  %v134 = vld [vmem:[%s3 + $0xe0] sm:$0xff]
  %v135 = vld [vmem:[%s3 + $0xe8] sm:$0xff]
  %v136 = vld [vmem:[%s3 + $0xf0] sm:$0xff]
  %v137 = vld [vmem:[%s3 + $0xf8] sm:$0xff]
  %v138 = vld [vmem:[%s4] sm:$0x3]
  %v140 = vlaneseq
  %v141 = vshrl.u32 %v140, 7
  %v142 = vsub.s32 0, %v141
  %v143 = vrot.slane %v138, %v142
  %v144 = vlaneseq
  %v145 = vshrl.u32 %v144, 7
  %v146 = vsub.s32 1, %v145
  %v147 = vrot.slane %v138, %v146
  %v182 = vunpack.c.l.b16 %v106
  %v183 = vunpack.c.h.b16 %v106
  %v184 = vunpack.c.l.b16 %v107
  %v185 = vunpack.c.h.b16 %v107
  %v186 = vunpack.c.l.b16 %v108
  %v187 = vunpack.c.h.b16 %v108
  %v188 = vunpack.c.l.b16 %v109
  %v189 = vunpack.c.h.b16 %v109
  %v190 = vunpack.c.l.b16 %v110
  %v191 = vunpack.c.h.b16 %v110
  %v192 = vunpack.c.l.b16 %v111
  %v193 = vunpack.c.h.b16 %v111
  %v194 = vunpack.c.l.b16 %v112
  %v195 = vunpack.c.h.b16 %v112
  %v196 = vunpack.c.l.b16 %v113
  %v197 = vunpack.c.h.b16 %v113
  %v198 = vunpack.c.l.b16 %v114
  %v199 = vunpack.c.h.b16 %v114
  %v200 = vunpack.c.l.b16 %v115
  %v201 = vunpack.c.h.b16 %v115
  %v202 = vunpack.c.l.b16 %v116
  %v203 = vunpack.c.h.b16 %v116
  %v204 = vunpack.c.l.b16 %v117
  %v205 = vunpack.c.h.b16 %v117
  %v206 = vunpack.c.l.b16 %v118
  %v207 = vunpack.c.h.b16 %v118
  %v208 = vunpack.c.l.b16 %v119
  %v209 = vunpack.c.h.b16 %v119
  %v210 = vunpack.c.l.b16 %v120
  %v211 = vunpack.c.h.b16 %v120
  %v212 = vunpack.c.l.b16 %v121
  %v213 = vunpack.c.h.b16 %v121
  %v214 = vunpack.c.l.b16 %v122
  %v215 = vunpack.c.h.b16 %v122
  %v216 = vunpack.c.l.b16 %v123
  %v217 = vunpack.c.h.b16 %v123
  %v218 = vunpack.c.l.b16 %v124
  %v219 = vunpack.c.h.b16 %v124
  %v220 = vunpack.c.l.b16 %v125
  %v221 = vunpack.c.h.b16 %v125
  %v222 = vunpack.c.l.b16 %v126
  %v223 = vunpack.c.h.b16 %v126
  %v224 = vunpack.c.l.b16 %v127
  %v225 = vunpack.c.h.b16 %v127
  %v226 = vunpack.c.l.b16 %v128
  %v227 = vunpack.c.h.b16 %v128
  %v228 = vunpack.c.l.b16 %v129
  %v229 = vunpack.c.h.b16 %v129
  %v230 = vunpack.c.l.b16 %v130
  %v231 = vunpack.c.h.b16 %v130
  %v232 = vunpack.c.l.b16 %v131
  %v233 = vunpack.c.h.b16 %v131
  %v234 = vunpack.c.l.b16 %v132
  %v235 = vunpack.c.h.b16 %v132
  %v236 = vunpack.c.l.b16 %v133
  %v237 = vunpack.c.h.b16 %v133
  %v238 = vunpack.c.l.b16 %v134
  %v239 = vunpack.c.h.b16 %v134
  %v240 = vunpack.c.l.b16 %v135
  %v241 = vunpack.c.h.b16 %v135
  %v242 = vunpack.c.l.b16 %v136
  %v243 = vunpack.c.h.b16 %v136
  %v244 = vunpack.c.l.b16 %v137
  %v245 = vunpack.c.h.b16 %v137
  %v246 = vpack.c.b16 %v184, %v182
  %v247 = vpack.c.b16 %v185, %v183
  %v248 = vpack.c.b16 %v188, %v186
  %v249 = vpack.c.b16 %v189, %v187
  %v250 = vpack.c.b16 %v192, %v190
  %v251 = vpack.c.b16 %v193, %v191
  %v252 = vpack.c.b16 %v196, %v194
  %v253 = vpack.c.b16 %v197, %v195
  %v254 = vpack.c.b16 %v200, %v198
  %v255 = vpack.c.b16 %v201, %v199
  %v256 = vpack.c.b16 %v204, %v202
  %v257 = vpack.c.b16 %v205, %v203
  %v258 = vpack.c.b16 %v208, %v206
  %v259 = vpack.c.b16 %v209, %v207
  %v260 = vpack.c.b16 %v212, %v210
  %v261 = vpack.c.b16 %v213, %v211
  %v262 = vpack.c.b16 %v216, %v214
  %v263 = vpack.c.b16 %v217, %v215
  %v264 = vpack.c.b16 %v220, %v218
  %v265 = vpack.c.b16 %v221, %v219
  %v266 = vpack.c.b16 %v224, %v222
  %v267 = vpack.c.b16 %v225, %v223
  %v268 = vpack.c.b16 %v228, %v226
  %v269 = vpack.c.b16 %v229, %v227
  %v270 = vpack.c.b16 %v232, %v230
  %v271 = vpack.c.b16 %v233, %v231
  %v272 = vpack.c.b16 %v236, %v234
  %v273 = vpack.c.b16 %v237, %v235
  %v274 = vpack.c.b16 %v240, %v238
  %v275 = vpack.c.b16 %v241, %v239
  %v276 = vpack.c.b16 %v244, %v242
  %v277 = vpack.c.b16 %v245, %v243
  %310 = vmatprep.subr.bf16.mxu0 %v247
  %311 = vmatpush1.bf16.msra.mxu0 %v246
  %312 = vmatprep.subr.bf16.mxu0 %v249
  %313 = vmatpush1.bf16.msra.mxu0 %v248
  %314 = vmatprep.subr.bf16.mxu0 %v251
  %315 = vmatpush1.bf16.msra.mxu0 %v250
  %316 = vmatprep.subr.bf16.mxu0 %v253
  %317 = vmatpush1.bf16.msra.mxu0 %v252
  %318 = vmatprep.subr.bf16.mxu0 %v255
  %319 = vmatpush1.bf16.msra.mxu0 %v254
  %320 = vmatprep.subr.bf16.mxu0 %v257
  %321 = vmatpush1.bf16.msra.mxu0 %v256
  %322 = vmatprep.subr.bf16.mxu0 %v259
  %323 = vmatpush1.bf16.msra.mxu0 %v258
  %324 = vmatprep.subr.bf16.mxu0 %v261
  %325 = vmatpush1.bf16.msra.mxu0 %v260
  %326 = vmatprep.subr.bf16.mxu0 %v263
  %327 = vmatpush1.bf16.msra.mxu0 %v262
  %328 = vmatprep.subr.bf16.mxu0 %v265
  %329 = vmatpush1.bf16.msra.mxu0 %v264
  %330 = vmatprep.subr.bf16.mxu0 %v267
  %331 = vmatpush1.bf16.msra.mxu0 %v266
  %332 = vmatprep.subr.bf16.mxu0 %v269
  %333 = vmatpush1.bf16.msra.mxu0 %v268
  %334 = vmatprep.subr.bf16.mxu0 %v271
  %335 = vmatpush1.bf16.msra.mxu0 %v270
  %336 = vmatprep.subr.bf16.mxu0 %v273
  %337 = vmatpush1.bf16.msra.mxu0 %v272
  %338 = vmatprep.subr.bf16.mxu0 %v275
  %339 = vmatpush1.bf16.msra.mxu0 %v274
  %340 = vmatprep.subr.bf16.mxu0 %v277
  %341 = vmatpush1.bf16.msra.mxu0 %v276
  %342 = vmatprep.mubr.bf16.mxu0 %v105
  %343 = vmatmul.mubr.bf16.gmra.mrb[0].mxu0 %v104
  %v344 = vpop.f32.mrb[0].mxu0
  %v345 = vadd.f32 %v143, %v344
  %v346 = vpop.f32.mrb[0].mxu0
  %v347 = vadd.f32 %v147, %v346
  %v348 = vpop.f32.mrb[0].mxu0
  %v349 = vpop.f32.mrb[0].mxu0
  %350 = vdwg.mxu0
  %v351 = vmax.f32 %v345, 0.0
  %v352 = vmax.f32 %v347, 0.0
  %v353 = vpack.c.bf16 %v351, %v351
  %v354 = vpack.c.bf16 %v352, %v352
  %v355 = vld [vmem:[%s5] sm:$0xff]
  %v356 = vld [vmem:[%s5 + $0x8] sm:$0xff]
  %v357 = vld [vmem:[%s5 + $0x10] sm:$0xff]
  %v358 = vld [vmem:[%s5 + $0x18] sm:$0xff]
  %v359 = vld [vmem:[%s5 + $0x20] sm:$0xff]
  %v360 = vld [vmem:[%s5 + $0x28] sm:$0xff]
  %v361 = vld [vmem:[%s5 + $0x30] sm:$0xff]
  %v362 = vld [vmem:[%s5 + $0x38] sm:$0xff]
  %v363 = vld [vmem:[%s5 + $0x40] sm:$0xff]
  %v364 = vld [vmem:[%s5 + $0x48] sm:$0xff]
  %v365 = vld [vmem:[%s5 + $0x50] sm:$0xff]
  %v366 = vld [vmem:[%s5 + $0x58] sm:$0xff]
  %v367 = vld [vmem:[%s5 + $0x60] sm:$0xff]
  %v368 = vld [vmem:[%s5 + $0x68] sm:$0xff]
  %v369 = vld [vmem:[%s5 + $0x70] sm:$0xff]
  %v370 = vld [vmem:[%s5 + $0x78] sm:$0xff]
  %v371 = vld [vmem:[%s5 + $0x80] sm:$0xff]
  %v372 = vld [vmem:[%s5 + $0x88] sm:$0xff]
  %v373 = vld [vmem:[%s5 + $0x90] sm:$0xff]
  %v374 = vld [vmem:[%s5 + $0x98] sm:$0xff]
  %v375 = vld [vmem:[%s5 + $0xa0] sm:$0xff]
  %v376 = vld [vmem:[%s5 + $0xa8] sm:$0xff]
  %v377 = vld [vmem:[%s5 + $0xb0] sm:$0xff]
  %v378 = vld [vmem:[%s5 + $0xb8] sm:$0xff]
  %v379 = vld [vmem:[%s5 + $0xc0] sm:$0xff]
  %v380 = vld [vmem:[%s5 + $0xc8] sm:$0xff]
  %v381 = vld [vmem:[%s5 + $0xd0] sm:$0xff]
  %v382 = vld [vmem:[%s5 + $0xd8] sm:$0xff]
  %v383 = vld [vmem:[%s5 + $0xe0] sm:$0xff]
  %v384 = vld [vmem:[%s5 + $0xe8] sm:$0xff]
  %v385 = vld [vmem:[%s5 + $0xf0] sm:$0xff]
  %v386 = vld [vmem:[%s5 + $0xf8] sm:$0xff]
  %v387 = vld [vmem:[%s5 + $0x100] sm:$0xff]
  %v388 = vld [vmem:[%s5 + $0x108] sm:$0xff]
  %v389 = vld [vmem:[%s5 + $0x110] sm:$0xff]
  %v390 = vld [vmem:[%s5 + $0x118] sm:$0xff]
  %v391 = vld [vmem:[%s5 + $0x120] sm:$0xff]
  %v392 = vld [vmem:[%s5 + $0x128] sm:$0xff]
  %v393 = vld [vmem:[%s5 + $0x130] sm:$0xff]
  %v394 = vld [vmem:[%s5 + $0x138] sm:$0xff]
  %v395 = vld [vmem:[%s5 + $0x140] sm:$0xff]
  %v396 = vld [vmem:[%s5 + $0x148] sm:$0xff]
  %v397 = vld [vmem:[%s5 + $0x150] sm:$0xff]
  %v398 = vld [vmem:[%s5 + $0x158] sm:$0xff]
  %v399 = vld [vmem:[%s5 + $0x160] sm:$0xff]
  %v400 = vld [vmem:[%s5 + $0x168] sm:$0xff]
  %v401 = vld [vmem:[%s5 + $0x170] sm:$0xff]
  %v402 = vld [vmem:[%s5 + $0x178] sm:$0xff]
  %v403 = vld [vmem:[%s5 + $0x180] sm:$0xff]
  %v404 = vld [vmem:[%s5 + $0x188] sm:$0xff]
  %v405 = vld [vmem:[%s5 + $0x190] sm:$0xff]
  %v406 = vld [vmem:[%s5 + $0x198] sm:$0xff]
  %v407 = vld [vmem:[%s5 + $0x1a0] sm:$0xff]
  %v408 = vld [vmem:[%s5 + $0x1a8] sm:$0xff]
  %v409 = vld [vmem:[%s5 + $0x1b0] sm:$0xff]
  %v410 = vld [vmem:[%s5 + $0x1b8] sm:$0xff]
  %v411 = vld [vmem:[%s5 + $0x1c0] sm:$0xff]
  %v412 = vld [vmem:[%s5 + $0x1c8] sm:$0xff]
  %v413 = vld [vmem:[%s5 + $0x1d0] sm:$0xff]
  %v414 = vld [vmem:[%s5 + $0x1d8] sm:$0xff]
  %v415 = vld [vmem:[%s5 + $0x1e0] sm:$0xff]
  %v416 = vld [vmem:[%s5 + $0x1e8] sm:$0xff]
  %v417 = vld [vmem:[%s5 + $0x1f0] sm:$0xff]
  %v418 = vld [vmem:[%s5 + $0x1f8] sm:$0xff]
  %v419 = vld [vmem:[%s6] sm:$0xf]
  %v421 = vlaneseq
  %v422 = vshrl.u32 %v421, 7
  %v423 = vsub.s32 0, %v422
  %v424 = vrot.slane %v419, %v423
  %v425 = vlaneseq
  %v426 = vshrl.u32 %v425, 7
  %v427 = vsub.s32 1, %v426
  %v428 = vrot.slane %v419, %v427
  %v429 = vlaneseq
  %v430 = vshrl.u32 %v429, 7
  %v431 = vsub.s32 2, %v430
  %v432 = vrot.slane %v419, %v431
  %v433 = vlaneseq
  %v434 = vshrl.u32 %v433, 7
  %v435 = vsub.s32 3, %v434
  %v436 = vrot.slane %v419, %v435
  %v505 = vunpack.c.l.b16 %v355
  %v506 = vunpack.c.h.b16 %v355
  %v507 = vunpack.c.l.b16 %v356
  %v508 = vunpack.c.h.b16 %v356
  %v509 = vunpack.c.l.b16 %v357
  %v510 = vunpack.c.h.b16 %v357
  %v511 = vunpack.c.l.b16 %v358
  %v512 = vunpack.c.h.b16 %v358
  %v513 = vunpack.c.l.b16 %v359
  %v514 = vunpack.c.h.b16 %v359
  %v515 = vunpack.c.l.b16 %v360
  %v516 = vunpack.c.h.b16 %v360
  %v517 = vunpack.c.l.b16 %v361
  %v518 = vunpack.c.h.b16 %v361
  %v519 = vunpack.c.l.b16 %v362
  %v520 = vunpack.c.h.b16 %v362
  %v521 = vunpack.c.l.b16 %v363
  %v522 = vunpack.c.h.b16 %v363
  %v523 = vunpack.c.l.b16 %v364
  %v524 = vunpack.c.h.b16 %v364
  %v525 = vunpack.c.l.b16 %v365
  %v526 = vunpack.c.h.b16 %v365
  %v527 = vunpack.c.l.b16 %v366
  %v528 = vunpack.c.h.b16 %v366
  %v529 = vunpack.c.l.b16 %v367
  %v530 = vunpack.c.h.b16 %v367
  %v531 = vunpack.c.l.b16 %v368
  %v532 = vunpack.c.h.b16 %v368
  %v533 = vunpack.c.l.b16 %v369
  %v534 = vunpack.c.h.b16 %v369
  %v535 = vunpack.c.l.b16 %v370
  %v536 = vunpack.c.h.b16 %v370
  %v537 = vunpack.c.l.b16 %v371
  %v538 = vunpack.c.h.b16 %v371
  %v539 = vunpack.c.l.b16 %v372
  %v540 = vunpack.c.h.b16 %v372
  %v541 = vunpack.c.l.b16 %v373
  %v542 = vunpack.c.h.b16 %v373
  %v543 = vunpack.c.l.b16 %v374
  %v544 = vunpack.c.h.b16 %v374
  %v545 = vunpack.c.l.b16 %v375
  %v546 = vunpack.c.h.b16 %v375
  %v547 = vunpack.c.l.b16 %v376
  %v548 = vunpack.c.h.b16 %v376
  %v549 = vunpack.c.l.b16 %v377
  %v550 = vunpack.c.h.b16 %v377
  %v551 = vunpack.c.l.b16 %v378
  %v552 = vunpack.c.h.b16 %v378
  %v553 = vunpack.c.l.b16 %v379
  %v554 = vunpack.c.h.b16 %v379
  %v555 = vunpack.c.l.b16 %v380
  %v556 = vunpack.c.h.b16 %v380
  %v557 = vunpack.c.l.b16 %v381
  %v558 = vunpack.c.h.b16 %v381
  %v559 = vunpack.c.l.b16 %v382
  %v560 = vunpack.c.h.b16 %v382
  %v561 = vunpack.c.l.b16 %v383
  %v562 = vunpack.c.h.b16 %v383
  %v563 = vunpack.c.l.b16 %v384
  %v564 = vunpack.c.h.b16 %v384
  %v565 = vunpack.c.l.b16 %v385
  %v566 = vunpack.c.h.b16 %v385
  %v567 = vunpack.c.l.b16 %v386
  %v568 = vunpack.c.h.b16 %v386
  %v569 = vunpack.c.l.b16 %v387
  %v570 = vunpack.c.h.b16 %v387
  %v571 = vunpack.c.l.b16 %v388
  %v572 = vunpack.c.h.b16 %v388
  %v573 = vunpack.c.l.b16 %v389
  %v574 = vunpack.c.h.b16 %v389
  %v575 = vunpack.c.l.b16 %v390
  %v576 = vunpack.c.h.b16 %v390
  %v577 = vunpack.c.l.b16 %v391
  %v578 = vunpack.c.h.b16 %v391
  %v579 = vunpack.c.l.b16 %v392
  %v580 = vunpack.c.h.b16 %v392
  %v581 = vunpack.c.l.b16 %v393
  %v582 = vunpack.c.h.b16 %v393
  %v583 = vunpack.c.l.b16 %v394
  %v584 = vunpack.c.h.b16 %v394
  %v585 = vunpack.c.l.b16 %v395
  %v586 = vunpack.c.h.b16 %v395
  %v587 = vunpack.c.l.b16 %v396
  %v588 = vunpack.c.h.b16 %v396
  %v589 = vunpack.c.l.b16 %v397
  %v590 = vunpack.c.h.b16 %v397
  %v591 = vunpack.c.l.b16 %v398
  %v592 = vunpack.c.h.b16 %v398
  %v593 = vunpack.c.l.b16 %v399
  %v594 = vunpack.c.h.b16 %v399
  %v595 = vunpack.c.l.b16 %v400
  %v596 = vunpack.c.h.b16 %v400
  %v597 = vunpack.c.l.b16 %v401
  %v598 = vunpack.c.h.b16 %v401
  %v599 = vunpack.c.l.b16 %v402
  %v600 = vunpack.c.h.b16 %v402
  %v601 = vunpack.c.l.b16 %v403
  %v602 = vunpack.c.h.b16 %v403
  %v603 = vunpack.c.l.b16 %v404
  %v604 = vunpack.c.h.b16 %v404
  %v605 = vunpack.c.l.b16 %v405
  %v606 = vunpack.c.h.b16 %v405
  %v607 = vunpack.c.l.b16 %v406
  %v608 = vunpack.c.h.b16 %v406
  %v609 = vunpack.c.l.b16 %v407
  %v610 = vunpack.c.h.b16 %v407
  %v611 = vunpack.c.l.b16 %v408
  %v612 = vunpack.c.h.b16 %v408
  %v613 = vunpack.c.l.b16 %v409
  %v614 = vunpack.c.h.b16 %v409
  %v615 = vunpack.c.l.b16 %v410
  %v616 = vunpack.c.h.b16 %v410
  %v617 = vunpack.c.l.b16 %v411
  %v618 = vunpack.c.h.b16 %v411
  %v619 = vunpack.c.l.b16 %v412
  %v620 = vunpack.c.h.b16 %v412
  %v621 = vunpack.c.l.b16 %v413
  %v622 = vunpack.c.h.b16 %v413
  %v623 = vunpack.c.l.b16 %v414
  %v624 = vunpack.c.h.b16 %v414
  %v625 = vunpack.c.l.b16 %v415
  %v626 = vunpack.c.h.b16 %v415
  %v627 = vunpack.c.l.b16 %v416
  %v628 = vunpack.c.h.b16 %v416
  %v629 = vunpack.c.l.b16 %v417
  %v630 = vunpack.c.h.b16 %v417
  %v631 = vunpack.c.l.b16 %v418
  %v632 = vunpack.c.h.b16 %v418
  %v633 = vpack.c.b16 %v509, %v505
  %v634 = vpack.c.b16 %v510, %v506
  %v635 = vpack.c.b16 %v511, %v507
  %v636 = vpack.c.b16 %v512, %v508
  %v637 = vpack.c.b16 %v517, %v513
  %v638 = vpack.c.b16 %v518, %v514
  %v639 = vpack.c.b16 %v519, %v515
  %v640 = vpack.c.b16 %v520, %v516
  %v641 = vpack.c.b16 %v525, %v521
  %v642 = vpack.c.b16 %v526, %v522
  %v643 = vpack.c.b16 %v527, %v523
  %v644 = vpack.c.b16 %v528, %v524
  %v645 = vpack.c.b16 %v533, %v529
  %v646 = vpack.c.b16 %v534, %v530
  %v647 = vpack.c.b16 %v535, %v531
  %v648 = vpack.c.b16 %v536, %v532
  %v649 = vpack.c.b16 %v541, %v537
  %v650 = vpack.c.b16 %v542, %v538
  %v651 = vpack.c.b16 %v543, %v539
  %v652 = vpack.c.b16 %v544, %v540
  %v653 = vpack.c.b16 %v549, %v545
  %v654 = vpack.c.b16 %v550, %v546
  %v655 = vpack.c.b16 %v551, %v547
  %v656 = vpack.c.b16 %v552, %v548
  %v657 = vpack.c.b16 %v557, %v553
  %v658 = vpack.c.b16 %v558, %v554
  %v659 = vpack.c.b16 %v559, %v555
  %v660 = vpack.c.b16 %v560, %v556
  %v661 = vpack.c.b16 %v565, %v561
  %v662 = vpack.c.b16 %v566, %v562
  %v663 = vpack.c.b16 %v567, %v563
  %v664 = vpack.c.b16 %v568, %v564
  %v665 = vpack.c.b16 %v573, %v569
  %v666 = vpack.c.b16 %v574, %v570
  %v667 = vpack.c.b16 %v575, %v571
  %v668 = vpack.c.b16 %v576, %v572
  %v669 = vpack.c.b16 %v581, %v577
  %v670 = vpack.c.b16 %v582, %v578
  %v671 = vpack.c.b16 %v583, %v579
  %v672 = vpack.c.b16 %v584, %v580
  %v673 = vpack.c.b16 %v589, %v585
  %v674 = vpack.c.b16 %v590, %v586
  %v675 = vpack.c.b16 %v591, %v587
  %v676 = vpack.c.b16 %v592, %v588
  %v677 = vpack.c.b16 %v597, %v593
  %v678 = vpack.c.b16 %v598, %v594
  %v679 = vpack.c.b16 %v599, %v595
  %v680 = vpack.c.b16 %v600, %v596
  %v681 = vpack.c.b16 %v605, %v601
  %v682 = vpack.c.b16 %v606, %v602
  %v683 = vpack.c.b16 %v607, %v603
  %v684 = vpack.c.b16 %v608, %v604
  %v685 = vpack.c.b16 %v613, %v609
  %v686 = vpack.c.b16 %v614, %v610
  %v687 = vpack.c.b16 %v615, %v611
  %v688 = vpack.c.b16 %v616, %v612
  %v689 = vpack.c.b16 %v621, %v617
  %v690 = vpack.c.b16 %v622, %v618
  %v691 = vpack.c.b16 %v623, %v619
  %v692 = vpack.c.b16 %v624, %v620
  %v693 = vpack.c.b16 %v629, %v625
  %v694 = vpack.c.b16 %v630, %v626
  %v695 = vpack.c.b16 %v631, %v627
  %v696 = vpack.c.b16 %v632, %v628
  %761 = vmatprep.subr.bf16.mxu0 %v634
  %762 = vmatpush1.bf16.msra.mxu0 %v633
  %763 = vmatprep.subr.bf16.mxu0 %v638
  %764 = vmatpush1.bf16.msra.mxu0 %v637
  %765 = vmatprep.subr.bf16.mxu0 %v642
  %766 = vmatpush1.bf16.msra.mxu0 %v641
  %767 = vmatprep.subr.bf16.mxu0 %v646
  %768 = vmatpush1.bf16.msra.mxu0 %v645
  %769 = vmatprep.subr.bf16.mxu0 %v650
  %770 = vmatpush1.bf16.msra.mxu0 %v649
  %771 = vmatprep.subr.bf16.mxu0 %v654
  %772 = vmatpush1.bf16.msra.mxu0 %v653
  %773 = vmatprep.subr.bf16.mxu0 %v658
  %774 = vmatpush1.bf16.msra.mxu0 %v657
  %775 = vmatprep.subr.bf16.mxu0 %v662
  %776 = vmatpush1.bf16.msra.mxu0 %v661
  %777 = vmatprep.subr.bf16.mxu0 %v666
  %778 = vmatpush1.bf16.msra.mxu0 %v665
  %779 = vmatprep.subr.bf16.mxu0 %v670
  %780 = vmatpush1.bf16.msra.mxu0 %v669
  %781 = vmatprep.subr.bf16.mxu0 %v674
  %782 = vmatpush1.bf16.msra.mxu0 %v673
  %783 = vmatprep.subr.bf16.mxu0 %v678
  %784 = vmatpush1.bf16.msra.mxu0 %v677
  %785 = vmatprep.subr.bf16.mxu0 %v682
  %786 = vmatpush1.bf16.msra.mxu0 %v681
  %787 = vmatprep.subr.bf16.mxu0 %v686
  %788 = vmatpush1.bf16.msra.mxu0 %v685
  %789 = vmatprep.subr.bf16.mxu0 %v690
  %790 = vmatpush1.bf16.msra.mxu0 %v689
  %791 = vmatprep.subr.bf16.mxu0 %v694
  %792 = vmatpush1.bf16.msra.mxu0 %v693
  %793 = vmatprep.mubr.bf16.mxu0 %v354
  %794 = vmatmul.mubr.bf16.gmra.mrb[0].mxu0 %v353
  %v795 = vpop.f32.mrb[0].mxu0
  %v796 = vadd.f32 %v424, %v795
  %v797 = vpop.f32.mrb[0].mxu0
  %v798 = vadd.f32 %v428, %v797
  %v799 = vpop.f32.mrb[0].mxu0
  %v800 = vpop.f32.mrb[0].mxu0
  %801 = vdwg.mxu0
  %802 = vmatprep.subr.bf16.mxu0 %v636
  %803 = vmatpush1.bf16.msra.mxu0 %v635
  %804 = vmatprep.subr.bf16.mxu0 %v640
  %805 = vmatpush1.bf16.msra.mxu0 %v639
  %806 = vmatprep.subr.bf16.mxu0 %v644
  %807 = vmatpush1.bf16.msra.mxu0 %v643
  %808 = vmatprep.subr.bf16.mxu0 %v648
  %809 = vmatpush1.bf16.msra.mxu0 %v647
  %810 = vmatprep.subr.bf16.mxu0 %v652
  %811 = vmatpush1.bf16.msra.mxu0 %v651
  %812 = vmatprep.subr.bf16.mxu0 %v656
  %813 = vmatpush1.bf16.msra.mxu0 %v655
  %814 = vmatprep.subr.bf16.mxu0 %v660
  %815 = vmatpush1.bf16.msra.mxu0 %v659
  %816 = vmatprep.subr.bf16.mxu0 %v664
  %817 = vmatpush1.bf16.msra.mxu0 %v663
  %818 = vmatprep.subr.bf16.mxu0 %v668
  %819 = vmatpush1.bf16.msra.mxu0 %v667
  %820 = vmatprep.subr.bf16.mxu0 %v672
  %821 = vmatpush1.bf16.msra.mxu0 %v671
  %822 = vmatprep.subr.bf16.mxu0 %v676
  %823 = vmatpush1.bf16.msra.mxu0 %v675
  %824 = vmatprep.subr.bf16.mxu0 %v680
  %825 = vmatpush1.bf16.msra.mxu0 %v679
  %826 = vmatprep.subr.bf16.mxu0 %v684
  %827 = vmatpush1.bf16.msra.mxu0 %v683
  %828 = vmatprep.subr.bf16.mxu0 %v688
  %829 = vmatpush1.bf16.msra.mxu0 %v687
  %830 = vmatprep.subr.bf16.mxu0 %v692
  %831 = vmatpush1.bf16.msra.mxu0 %v691
  %832 = vmatprep.subr.bf16.mxu0 %v696
  %833 = vmatpush1.bf16.msra.mxu0 %v695
  %834 = vmatprep.mubr.bf16.mxu0 %v354
  %835 = vmatmul.mubr.bf16.gmra.mrb[0].mxu0 %v353
  %v836 = vpop.f32.mrb[0].mxu0
  %v837 = vadd.f32 %v432, %v836
  %v838 = vpop.f32.mrb[0].mxu0
  %v839 = vadd.f32 %v436, %v838
  %v840 = vpop.f32.mrb[0].mxu0
  %v841 = vpop.f32.mrb[0].mxu0
  %842 = vdwg.mxu0
  %v843 = vmax.f32 %v796, 0.0
  %v844 = vmax.f32 %v798, 0.0
  %v845 = vmax.f32 %v837, 0.0
  %v846 = vmax.f32 %v839, 0.0
  %v847 = vpack.c.bf16 %v843, %v843
  %v848 = vpack.c.bf16 %v844, %v844
  %v849 = vpack.c.bf16 %v845, %v845
  %v850 = vpack.c.bf16 %v846, %v846
  %v855 = vcombine.low %v847, %v848
  %v856 = vcombine.low %v849, %v850
  %v858 = vunpack.c.l.s4 1966171168
  %v859 = vunpack.c.0.s8 %v858
  %v860 = vlaneseq
  %v861 = vshrl.u32 %v860, 7
  %v862 = vsub.s32 %v859, %v861
  %v863 = vrot.slane %v855, %v862
  %v865 = vunpack.c.l.s4 1966171168
  %v866 = vunpack.c.0.s8 %v865
  %v867 = vlaneseq
  %v868 = vshrl.u32 %v867, 7
  %v869 = vsub.s32 %v866, %v868
  %v870 = vrot.slane %v856, %v869
  %v871 = vcombine.low %v863, %v870
  %v873 = vunpack.c.l.s4 1966171168
  %v874 = vunpack.c.0.s8 %v873
  %v875 = vlaneseq
  %v876 = vshrl.u32 %v875, 7
  %v877 = vsub.s32 %v874, %v876
  %v878 = vrot.slane %v871, %v877
  %880 = vst [vmem:[%s7] sm:$0xf] %v878
  // Predicated region
  $region30: #{vae_forward.12} parent=0 // pred_check
    _
  $region31: #{vae_forward.12} parent=0 // pred_check_branch
    %882 = sbr.rel (0) target = $region33
  $region32: #{vae_forward.12} parent=0 // pred_region
    _
  $region33: #{vae_forward.12} parent=0 // pred_fallthru
    _
  // Predicated region
  $region34: #{vae_forward.12} parent=0 // pred_check
    _
  $region35: #{vae_forward.12} parent=0 // pred_check_branch
    %884 = sbr.rel (0) target = $region37
  $region36: #{vae_forward.12} parent=0 // pred_region
    _
  $region37: #{vae_forward.12} parent=0 // pred_fallthru
    _

// kernel: vae_forward.11
$region0: #{vae_forward.11}
  #allocation0 [shape = 'u32[]', space=smem, size = 0x4, offset = 0x4, fixed_abs, tag = 'smem constant byte address 0x4 - core index']
  #allocation1 [shape = 'u32[144,128]{1,0:T(1,128)}', space=vmem, size = 0x12000, scoped, tag = 'internal scratch']
  %s0 = inlined_call_operand.vmem [shape: bf16[2,512], index: 0, kind: input, shape index: {}]
  %s1 = inlined_call_operand.vmem [shape: bf16[512,256], index: 1, kind: input, shape index: {}]
  %s2 = inlined_call_operand.vmem [shape: f32[1,256], index: 2, kind: input, shape index: {}]
  %s3 = inlined_call_operand.vmem [shape: bf16[256,256], index: 3, kind: input, shape index: {}]
  %s4 = inlined_call_operand.vmem [shape: f32[1,256], index: 4, kind: input, shape index: {}]
  %s5 = inlined_call_operand.vmem [shape: bf16[256,10], index: 5, kind: input, shape index: {}]
  %s6 = inlined_call_operand.vmem [shape: f32[1,10], index: 6, kind: input, shape index: {}]
  %s7 = inlined_call_operand.vmem [shape: bf16[256,10], index: 7, kind: input, shape index: {}]
  %s8 = inlined_call_operand.vmem [shape: f32[1,10], index: 8, kind: input, shape index: {}]
  %s9 = inlined_call_operand.vmem [shape: f32[2,10], index: 9, kind: input, shape index: {}]
  %s10 = inlined_call_operand.hbm [shape: f32[2,10], index: 10, kind: output, shape index: {0}]
  %s11 = inlined_call_operand.hbm [shape: f32[2,10], index: 11, kind: output, shape index: {1}]
  %s12 = inlined_call_operand.vmem [shape: f32[2,10], index: 12, kind: output, shape index: {2}]
  %13 = xla_tuple %s10, %s11, %s12
  %s14 = sld [smem:[#allocation0]]
  $region66: #{vae_forward.11} parent=0
    _
  %s16 = ssub.s32 1, %s14
  %s17 = scalar_select 0, %s16, %s14
  $region1: #{vae_forward.11} parent=0
    #allocation2 [shape = 'u8[1024]{0}', space=vmem, size = 0x400, scoped, tag = 'output window, operand 0, single buffered']
    #allocation3 [shape = 's32[1]{0}', space=sflag, size = 0x4, scoped, tag = 'scoped memory for vae_forward.11']
    #allocation4 [shape = 'u8[1024]{0}', space=vmem, size = 0x400, scoped, tag = 'output window, operand 1, single buffered']
    #allocation5 [shape = 's32[1]{0}', space=sflag, size = 0x4, scoped, tag = 'scoped memory for vae_forward.11']
    %18 = vsyncpa [#allocation3], 0
    %19 = vsyncpa [#allocation5], 0
    // Predicated region
    $region2: #{vae_forward.11} parent=1 // pred_check
      _
    $region3: #{vae_forward.11} parent=1 // pred_check_branch
      %21 = sbr.rel (0) target = $region5
    $region4: #{vae_forward.11} parent=1 // pred_region
      _
    $region5: #{vae_forward.11} parent=1 // pred_fallthru
      _
    // Predicated region
    $region6: #{vae_forward.11} parent=1 // pred_check
      _
    $region7: #{vae_forward.11} parent=1 // pred_check_branch
      %23 = sbr.rel (0) target = $region9
    $region8: #{vae_forward.11} parent=1 // pred_region
      _
    $region9: #{vae_forward.11} parent=1 // pred_fallthru
      _
    // Predicated region
    $region10: #{vae_forward.11} parent=1 // pred_check
      _
    $region11: #{vae_forward.11} parent=1 // pred_check_branch
      %25 = sbr.rel (0) target = $region13
    $region12: #{vae_forward.11} parent=1 // pred_region
      _
    $region13: #{vae_forward.11} parent=1 // pred_fallthru
      _
    // Predicated region
    $region14: #{vae_forward.11} parent=1 // pred_check
      _
    $region15: #{vae_forward.11} parent=1 // pred_check_branch
      %27 = sbr.rel (0) target = $region17
    $region16: #{vae_forward.11} parent=1 // pred_region
      _
    $region17: #{vae_forward.11} parent=1 // pred_fallthru
      _
    // Predicated region
    $region18: #{vae_forward.11} parent=1 // pred_check
      _
    $region19: #{vae_forward.11} parent=1 // pred_check_branch
      %29 = sbr.rel (0) target = $region21
    $region20: #{vae_forward.11} parent=1 // pred_region
      _
    $region21: #{vae_forward.11} parent=1 // pred_fallthru
      _
    // Predicated region
    $region22: #{vae_forward.11} parent=1 // pred_check
      _
    $region23: #{vae_forward.11} parent=1 // pred_check_branch
      %31 = sbr.rel (0) target = $region25
    $region24: #{vae_forward.11} parent=1 // pred_region
      _
    $region25: #{vae_forward.11} parent=1 // pred_fallthru
      _
    // Predicated region
    $region26: #{vae_forward.11} parent=1 // pred_check
      _
    $region27: #{vae_forward.11} parent=1 // pred_check_branch
      %33 = sbr.rel (0) target = $region29
    $region28: #{vae_forward.11} parent=1 // pred_region
      _
    $region29: #{vae_forward.11} parent=1 // pred_fallthru
      _
    // Predicated region
    $region30: #{vae_forward.11} parent=1 // pred_check
      _
    $region31: #{vae_forward.11} parent=1 // pred_check_branch
      %35 = sbr.rel (0) target = $region33
    $region32: #{vae_forward.11} parent=1 // pred_region
      _
    $region33: #{vae_forward.11} parent=1 // pred_fallthru
      _
    // Predicated region
    $region34: #{vae_forward.11} parent=1 // pred_check
      _
    $region35: #{vae_forward.11} parent=1 // pred_check_branch
      %37 = sbr.rel (0) target = $region37
    $region36: #{vae_forward.11} parent=1 // pred_region
      _
    $region37: #{vae_forward.11} parent=1 // pred_fallthru
      _
    // Predicated region
    $region38: #{vae_forward.11} parent=1 // pred_check
      _
    $region39: #{vae_forward.11} parent=1 // pred_check_branch
      %39 = sbr.rel (0) target = $region41
    $region40: #{vae_forward.11} parent=1 // pred_region
      _
    $region41: #{vae_forward.11} parent=1 // pred_fallthru
      _
    %v41 = vld [vmem:[%s0] sm:$0xf]
    %v42 = vld [vmem:[%s1] sm:$0xff]
    %v43 = vld [vmem:[%s1 + $0x8] sm:$0xff]
    %v44 = vld [vmem:[%s1 + $0x10] sm:$0xff]
    %v45 = vld [vmem:[%s1 + $0x18] sm:$0xff]
    %v46 = vld [vmem:[%s1 + $0x20] sm:$0xff]
    %v47 = vld [vmem:[%s1 + $0x28] sm:$0xff]
    %v48 = vld [vmem:[%s1 + $0x30] sm:$0xff]
    %v49 = vld [vmem:[%s1 + $0x38] sm:$0xff]
    %v50 = vld [vmem:[%s1 + $0x40] sm:$0xff]
    %v51 = vld [vmem:[%s1 + $0x48] sm:$0xff]
    %v52 = vld [vmem:[%s1 + $0x50] sm:$0xff]
    %v53 = vld [vmem:[%s1 + $0x58] sm:$0xff]
    %v54 = vld [vmem:[%s1 + $0x60] sm:$0xff]
    %v55 = vld [vmem:[%s1 + $0x68] sm:$0xff]
    %v56 = vld [vmem:[%s1 + $0x70] sm:$0xff]
    %v57 = vld [vmem:[%s1 + $0x78] sm:$0xff]
    %v58 = vld [vmem:[%s1 + $0x80] sm:$0xff]
    %v59 = vld [vmem:[%s1 + $0x88] sm:$0xff]
    %v60 = vld [vmem:[%s1 + $0x90] sm:$0xff]
    %v61 = vld [vmem:[%s1 + $0x98] sm:$0xff]
    %v62 = vld [vmem:[%s1 + $0xa0] sm:$0xff]
    %v63 = vld [vmem:[%s1 + $0xa8] sm:$0xff]
    %v64 = vld [vmem:[%s1 + $0xb0] sm:$0xff]
    %v65 = vld [vmem:[%s1 + $0xb8] sm:$0xff]
    %v66 = vld [vmem:[%s1 + $0xc0] sm:$0xff]
    %v67 = vld [vmem:[%s1 + $0xc8] sm:$0xff]
    %v68 = vld [vmem:[%s1 + $0xd0] sm:$0xff]
    %v69 = vld [vmem:[%s1 + $0xd8] sm:$0xff]
    %v70 = vld [vmem:[%s1 + $0xe0] sm:$0xff]
    %v71 = vld [vmem:[%s1 + $0xe8] sm:$0xff]
    %v72 = vld [vmem:[%s1 + $0xf0] sm:$0xff]
    %v73 = vld [vmem:[%s1 + $0xf8] sm:$0xff]
    %v74 = vld [vmem:[%s1 + $0x100] sm:$0xff]
    %v75 = vld [vmem:[%s1 + $0x108] sm:$0xff]
    %v76 = vld [vmem:[%s1 + $0x110] sm:$0xff]
    %v77 = vld [vmem:[%s1 + $0x118] sm:$0xff]
    %v78 = vld [vmem:[%s1 + $0x120] sm:$0xff]
    %v79 = vld [vmem:[%s1 + $0x128] sm:$0xff]
    %v80 = vld [vmem:[%s1 + $0x130] sm:$0xff]
    %v81 = vld [vmem:[%s1 + $0x138] sm:$0xff]
    %v82 = vld [vmem:[%s1 + $0x140] sm:$0xff]
    %v83 = vld [vmem:[%s1 + $0x148] sm:$0xff]
    %v84 = vld [vmem:[%s1 + $0x150] sm:$0xff]
    %v85 = vld [vmem:[%s1 + $0x158] sm:$0xff]
    %v86 = vld [vmem:[%s1 + $0x160] sm:$0xff]
    %v87 = vld [vmem:[%s1 + $0x168] sm:$0xff]
    %v88 = vld [vmem:[%s1 + $0x170] sm:$0xff]
    %v89 = vld [vmem:[%s1 + $0x178] sm:$0xff]
    %v90 = vld [vmem:[%s1 + $0x180] sm:$0xff]
    %v91 = vld [vmem:[%s1 + $0x188] sm:$0xff]
    %v92 = vld [vmem:[%s1 + $0x190] sm:$0xff]
    %v93 = vld [vmem:[%s1 + $0x198] sm:$0xff]
    %v94 = vld [vmem:[%s1 + $0x1a0] sm:$0xff]
    %v95 = vld [vmem:[%s1 + $0x1a8] sm:$0xff]
    %v96 = vld [vmem:[%s1 + $0x1b0] sm:$0xff]
    %v97 = vld [vmem:[%s1 + $0x1b8] sm:$0xff]
    %v98 = vld [vmem:[%s1 + $0x1c0] sm:$0xff]
    %v99 = vld [vmem:[%s1 + $0x1c8] sm:$0xff]
    %v100 = vld [vmem:[%s1 + $0x1d0] sm:$0xff]
    %v101 = vld [vmem:[%s1 + $0x1d8] sm:$0xff]
    %v102 = vld [vmem:[%s1 + $0x1e0] sm:$0xff]
    %v103 = vld [vmem:[%s1 + $0x1e8] sm:$0xff]
    %v104 = vld [vmem:[%s1 + $0x1f0] sm:$0xff]
    %v105 = vld [vmem:[%s1 + $0x1f8] sm:$0xff]
    %v106 = vld [vmem:[%s2] sm:$0x3]
    %v108 = vlaneseq
    %v109 = vshrl.u32 %v108, 7
    %v110 = vsub.s32 0, %v109
    %v111 = vrot.slane %v106, %v110
    %v112 = vlaneseq
    %v113 = vshrl.u32 %v112, 7
    %v114 = vsub.s32 1, %v113
    %v115 = vrot.slane %v106, %v114
    %v120 = vunpack.c.l.s4 1966171168
    %v121 = vunpack.c.0.s8 %v120
    %v122 = vlaneseq
    %v123 = vshrl.u32 %v122, 7
    %v124 = vsub.s32 %v121, %v123
    %v125 = vrot.slane %v41, %v124
    %v126 = vcombine.high %v125, %v125
    %v128 = vunpack.c.l.s4 1966171168
    %v129 = vunpack.c.0.s8 %v128
    %v130 = vlaneseq
    %v131 = vshrl.u32 %v130, 7
    %v132 = vsub.s32 %v129, %v131
    %v133 = vrot.slane %v125, %v132
    %v135 = vunpack.c.l.s4 1966171168
    %v136 = vunpack.c.0.s8 %v135
    %v137 = vlaneseq
    %v138 = vshrl.u32 %v137, 7
    %v139 = vsub.s32 %v136, %v138
    %v140 = vrot.slane %v126, %v139
    %v141 = vcombine.high %v133, %v133
    %v142 = vcombine.high %v140, %v140
    %v211 = vunpack.c.l.b16 %v42
    %v212 = vunpack.c.h.b16 %v42
    %v213 = vunpack.c.l.b16 %v43
    %v214 = vunpack.c.h.b16 %v43
    %v215 = vunpack.c.l.b16 %v44
    %v216 = vunpack.c.h.b16 %v44
    %v217 = vunpack.c.l.b16 %v45
    %v218 = vunpack.c.h.b16 %v45
    %v219 = vunpack.c.l.b16 %v46
    %v220 = vunpack.c.h.b16 %v46
    %v221 = vunpack.c.l.b16 %v47
    %v222 = vunpack.c.h.b16 %v47
    %v223 = vunpack.c.l.b16 %v48
    %v224 = vunpack.c.h.b16 %v48
    %v225 = vunpack.c.l.b16 %v49
    %v226 = vunpack.c.h.b16 %v49
    %v227 = vunpack.c.l.b16 %v50
    %v228 = vunpack.c.h.b16 %v50
    %v229 = vunpack.c.l.b16 %v51
    %v230 = vunpack.c.h.b16 %v51
    %v231 = vunpack.c.l.b16 %v52
    %v232 = vunpack.c.h.b16 %v52
    %v233 = vunpack.c.l.b16 %v53
    %v234 = vunpack.c.h.b16 %v53
    %v235 = vunpack.c.l.b16 %v54
    %v236 = vunpack.c.h.b16 %v54
    %v237 = vunpack.c.l.b16 %v55
    %v238 = vunpack.c.h.b16 %v55
    %v239 = vunpack.c.l.b16 %v56
    %v240 = vunpack.c.h.b16 %v56
    %v241 = vunpack.c.l.b16 %v57
    %v242 = vunpack.c.h.b16 %v57
    %v243 = vunpack.c.l.b16 %v58
    %v244 = vunpack.c.h.b16 %v58
    %v245 = vunpack.c.l.b16 %v59
    %v246 = vunpack.c.h.b16 %v59
    %v247 = vunpack.c.l.b16 %v60
    %v248 = vunpack.c.h.b16 %v60
    %v249 = vunpack.c.l.b16 %v61
    %v250 = vunpack.c.h.b16 %v61
    %v251 = vunpack.c.l.b16 %v62
    %v252 = vunpack.c.h.b16 %v62
    %v253 = vunpack.c.l.b16 %v63
    %v254 = vunpack.c.h.b16 %v63
    %v255 = vunpack.c.l.b16 %v64
    %v256 = vunpack.c.h.b16 %v64
    %v257 = vunpack.c.l.b16 %v65
    %v258 = vunpack.c.h.b16 %v65
    %v259 = vunpack.c.l.b16 %v66
    %v260 = vunpack.c.h.b16 %v66
    %v261 = vunpack.c.l.b16 %v67
    %v262 = vunpack.c.h.b16 %v67
    %v263 = vunpack.c.l.b16 %v68
    %v264 = vunpack.c.h.b16 %v68
    %v265 = vunpack.c.l.b16 %v69
    %v266 = vunpack.c.h.b16 %v69
    %v267 = vunpack.c.l.b16 %v70
    %v268 = vunpack.c.h.b16 %v70
    %v269 = vunpack.c.l.b16 %v71
    %v270 = vunpack.c.h.b16 %v71
    %v271 = vunpack.c.l.b16 %v72
    %v272 = vunpack.c.h.b16 %v72
    %v273 = vunpack.c.l.b16 %v73
    %v274 = vunpack.c.h.b16 %v73
    %v275 = vunpack.c.l.b16 %v74
    %v276 = vunpack.c.h.b16 %v74
    %v277 = vunpack.c.l.b16 %v75
    %v278 = vunpack.c.h.b16 %v75
    %v279 = vunpack.c.l.b16 %v76
    %v280 = vunpack.c.h.b16 %v76
    %v281 = vunpack.c.l.b16 %v77
    %v282 = vunpack.c.h.b16 %v77
    %v283 = vunpack.c.l.b16 %v78
    %v284 = vunpack.c.h.b16 %v78
    %v285 = vunpack.c.l.b16 %v79
    %v286 = vunpack.c.h.b16 %v79
    %v287 = vunpack.c.l.b16 %v80
    %v288 = vunpack.c.h.b16 %v80
    %v289 = vunpack.c.l.b16 %v81
    %v290 = vunpack.c.h.b16 %v81
    %v291 = vunpack.c.l.b16 %v82
    %v292 = vunpack.c.h.b16 %v82
    %v293 = vunpack.c.l.b16 %v83
    %v294 = vunpack.c.h.b16 %v83
    %v295 = vunpack.c.l.b16 %v84
    %v296 = vunpack.c.h.b16 %v84
    %v297 = vunpack.c.l.b16 %v85
    %v298 = vunpack.c.h.b16 %v85
    %v299 = vunpack.c.l.b16 %v86
    %v300 = vunpack.c.h.b16 %v86
    %v301 = vunpack.c.l.b16 %v87
    %v302 = vunpack.c.h.b16 %v87
    %v303 = vunpack.c.l.b16 %v88
    %v304 = vunpack.c.h.b16 %v88
    %v305 = vunpack.c.l.b16 %v89
    %v306 = vunpack.c.h.b16 %v89
    %v307 = vunpack.c.l.b16 %v90
    %v308 = vunpack.c.h.b16 %v90
    %v309 = vunpack.c.l.b16 %v91
    %v310 = vunpack.c.h.b16 %v91
    %v311 = vunpack.c.l.b16 %v92
    %v312 = vunpack.c.h.b16 %v92
    %v313 = vunpack.c.l.b16 %v93
    %v314 = vunpack.c.h.b16 %v93
    %v315 = vunpack.c.l.b16 %v94
    %v316 = vunpack.c.h.b16 %v94
    %v317 = vunpack.c.l.b16 %v95
    %v318 = vunpack.c.h.b16 %v95
    %v319 = vunpack.c.l.b16 %v96
    %v320 = vunpack.c.h.b16 %v96
    %v321 = vunpack.c.l.b16 %v97
    %v322 = vunpack.c.h.b16 %v97
    %v323 = vunpack.c.l.b16 %v98
    %v324 = vunpack.c.h.b16 %v98
    %v325 = vunpack.c.l.b16 %v99
    %v326 = vunpack.c.h.b16 %v99
    %v327 = vunpack.c.l.b16 %v100
    %v328 = vunpack.c.h.b16 %v100
    %v329 = vunpack.c.l.b16 %v101
    %v330 = vunpack.c.h.b16 %v101
    %v331 = vunpack.c.l.b16 %v102
    %v332 = vunpack.c.h.b16 %v102
    %v333 = vunpack.c.l.b16 %v103
    %v334 = vunpack.c.h.b16 %v103
    %v335 = vunpack.c.l.b16 %v104
    %v336 = vunpack.c.h.b16 %v104
    %v337 = vunpack.c.l.b16 %v105
    %v338 = vunpack.c.h.b16 %v105
    %v339 = vpack.c.b16 %v213, %v211
    %v340 = vpack.c.b16 %v214, %v212
    %v341 = vpack.c.b16 %v217, %v215
    %v342 = vpack.c.b16 %v218, %v216
    %v343 = vpack.c.b16 %v221, %v219
    %v344 = vpack.c.b16 %v222, %v220
    %v345 = vpack.c.b16 %v225, %v223
    %v346 = vpack.c.b16 %v226, %v224
    %v347 = vpack.c.b16 %v229, %v227
    %v348 = vpack.c.b16 %v230, %v228
    %v349 = vpack.c.b16 %v233, %v231
    %v350 = vpack.c.b16 %v234, %v232
    %v351 = vpack.c.b16 %v237, %v235
    %v352 = vpack.c.b16 %v238, %v236
    %v353 = vpack.c.b16 %v241, %v239
    %v354 = vpack.c.b16 %v242, %v240
    %v355 = vpack.c.b16 %v245, %v243
    %v356 = vpack.c.b16 %v246, %v244
    %v357 = vpack.c.b16 %v249, %v247
    %v358 = vpack.c.b16 %v250, %v248
    %v359 = vpack.c.b16 %v253, %v251
    %v360 = vpack.c.b16 %v254, %v252
    %v361 = vpack.c.b16 %v257, %v255
    %v362 = vpack.c.b16 %v258, %v256
    %v363 = vpack.c.b16 %v261, %v259
    %v364 = vpack.c.b16 %v262, %v260
    %v365 = vpack.c.b16 %v265, %v263
    %v366 = vpack.c.b16 %v266, %v264
    %v367 = vpack.c.b16 %v269, %v267
    %v368 = vpack.c.b16 %v270, %v268
    %v369 = vpack.c.b16 %v273, %v271
    %v370 = vpack.c.b16 %v274, %v272
    %v371 = vpack.c.b16 %v277, %v275
    %v372 = vpack.c.b16 %v278, %v276
    %v373 = vpack.c.b16 %v281, %v279
    %v374 = vpack.c.b16 %v282, %v280
    %v375 = vpack.c.b16 %v285, %v283
    %v376 = vpack.c.b16 %v286, %v284
    %v377 = vpack.c.b16 %v289, %v287
    %v378 = vpack.c.b16 %v290, %v288
    %v379 = vpack.c.b16 %v293, %v291
    %v380 = vpack.c.b16 %v294, %v292
    %v381 = vpack.c.b16 %v297, %v295
    %v382 = vpack.c.b16 %v298, %v296
    %v383 = vpack.c.b16 %v301, %v299
    %v384 = vpack.c.b16 %v302, %v300
    %v385 = vpack.c.b16 %v305, %v303
    %v386 = vpack.c.b16 %v306, %v304
    %v387 = vpack.c.b16 %v309, %v307
    %v388 = vpack.c.b16 %v310, %v308
    %v389 = vpack.c.b16 %v313, %v311
    %v390 = vpack.c.b16 %v314, %v312
    %v391 = vpack.c.b16 %v317, %v315
    %v392 = vpack.c.b16 %v318, %v316
    %v393 = vpack.c.b16 %v321, %v319
    %v394 = vpack.c.b16 %v322, %v320
    %v395 = vpack.c.b16 %v325, %v323
    %v396 = vpack.c.b16 %v326, %v324
    %v397 = vpack.c.b16 %v329, %v327
    %v398 = vpack.c.b16 %v330, %v328
    %v399 = vpack.c.b16 %v333, %v331
    %v400 = vpack.c.b16 %v334, %v332
    %v401 = vpack.c.b16 %v337, %v335
    %v402 = vpack.c.b16 %v338, %v336
    %467 = vmatprep.subr.bf16.mxu0 %v340
    %468 = vmatpush1.bf16.msra.mxu0 %v339
    %469 = vmatprep.subr.bf16.mxu0 %v342
    %470 = vmatpush1.bf16.msra.mxu0 %v341
    %471 = vmatprep.subr.bf16.mxu0 %v344
    %472 = vmatpush1.bf16.msra.mxu0 %v343
    %473 = vmatprep.subr.bf16.mxu0 %v346
    %474 = vmatpush1.bf16.msra.mxu0 %v345
    %475 = vmatprep.subr.bf16.mxu0 %v348
    %476 = vmatpush1.bf16.msra.mxu0 %v347
    %477 = vmatprep.subr.bf16.mxu0 %v350
    %478 = vmatpush1.bf16.msra.mxu0 %v349
    %479 = vmatprep.subr.bf16.mxu0 %v352
    %480 = vmatpush1.bf16.msra.mxu0 %v351
    %481 = vmatprep.subr.bf16.mxu0 %v354
    %482 = vmatpush1.bf16.msra.mxu0 %v353
    %483 = vmatprep.subr.bf16.mxu0 %v356
    %484 = vmatpush1.bf16.msra.mxu0 %v355
    %485 = vmatprep.subr.bf16.mxu0 %v358
    %486 = vmatpush1.bf16.msra.mxu0 %v357
    %487 = vmatprep.subr.bf16.mxu0 %v360
    %488 = vmatpush1.bf16.msra.mxu0 %v359
    %489 = vmatprep.subr.bf16.mxu0 %v362
    %490 = vmatpush1.bf16.msra.mxu0 %v361
    %491 = vmatprep.subr.bf16.mxu0 %v364
    %492 = vmatpush1.bf16.msra.mxu0 %v363
    %493 = vmatprep.subr.bf16.mxu0 %v366
    %494 = vmatpush1.bf16.msra.mxu0 %v365
    %495 = vmatprep.subr.bf16.mxu0 %v368
    %496 = vmatpush1.bf16.msra.mxu0 %v367
    %497 = vmatprep.subr.bf16.mxu0 %v370
    %498 = vmatpush1.bf16.msra.mxu0 %v369
    %499 = vmatprep.mubr.bf16.mxu0 %v140
    %500 = vmatmul.mubr.bf16.gmra.mrb[0].mxu0 %v133
    %v501 = vpop.f32.mrb[0].mxu0
    %v502 = vadd.f32 %v111, %v501
    %v503 = vpop.f32.mrb[0].mxu0
    %v504 = vadd.f32 %v115, %v503
    %v505 = vpop.f32.mrb[0].mxu0
    %v506 = vpop.f32.mrb[0].mxu0
    %507 = vdwg.mxu0
    %508 = vmatprep.subr.bf16.mxu0 %v372
    %509 = vmatpush1.bf16.msra.mxu0 %v371
    %510 = vmatprep.subr.bf16.mxu0 %v374
    %511 = vmatpush1.bf16.msra.mxu0 %v373
    %512 = vmatprep.subr.bf16.mxu0 %v376
    %513 = vmatpush1.bf16.msra.mxu0 %v375
    %514 = vmatprep.subr.bf16.mxu0 %v378
    %515 = vmatpush1.bf16.msra.mxu0 %v377
    %516 = vmatprep.subr.bf16.mxu0 %v380
    %517 = vmatpush1.bf16.msra.mxu0 %v379
    %518 = vmatprep.subr.bf16.mxu0 %v382
    %519 = vmatpush1.bf16.msra.mxu0 %v381
    %520 = vmatprep.subr.bf16.mxu0 %v384
    %521 = vmatpush1.bf16.msra.mxu0 %v383
    %522 = vmatprep.subr.bf16.mxu0 %v386
    %523 = vmatpush1.bf16.msra.mxu0 %v385
    %524 = vmatprep.subr.bf16.mxu0 %v388
    %525 = vmatpush1.bf16.msra.mxu0 %v387
    %526 = vmatprep.subr.bf16.mxu0 %v390
    %527 = vmatpush1.bf16.msra.mxu0 %v389
    %528 = vmatprep.subr.bf16.mxu0 %v392
    %529 = vmatpush1.bf16.msra.mxu0 %v391
    %530 = vmatprep.subr.bf16.mxu0 %v394
    %531 = vmatpush1.bf16.msra.mxu0 %v393
    %532 = vmatprep.subr.bf16.mxu0 %v396
    %533 = vmatpush1.bf16.msra.mxu0 %v395
    %534 = vmatprep.subr.bf16.mxu0 %v398
    %535 = vmatpush1.bf16.msra.mxu0 %v397
    %536 = vmatprep.subr.bf16.mxu0 %v400
    %537 = vmatpush1.bf16.msra.mxu0 %v399
    %538 = vmatprep.subr.bf16.mxu0 %v402
    %539 = vmatpush1.bf16.msra.mxu0 %v401
    %540 = vmatprep.mubr.bf16.mxu0 %v142
    %541 = vmatmul.mubr.bf16.gmra.mrb[0].mxu0 %v141
    %v542 = vpop.f32.mrb[0].mxu0
    %v543 = vadd.f32 %v502, %v542
    %v544 = vpop.f32.mrb[0].mxu0
    %v545 = vadd.f32 %v504, %v544
    %v546 = vpop.f32.mrb[0].mxu0
    %v547 = vpop.f32.mrb[0].mxu0
    %548 = vdwg.mxu0
    %v549 = vmax.f32 %v543, 0.0
    %v550 = vmax.f32 %v545, 0.0
    %v551 = vpack.c.bf16 %v549, %v549
    %v552 = vpack.c.bf16 %v550, %v550
    %v553 = vld [vmem:[%s3] sm:$0xff]
    %v554 = vld [vmem:[%s3 + $0x8] sm:$0xff]
    %v555 = vld [vmem:[%s3 + $0x10] sm:$0xff]
    %v556 = vld [vmem:[%s3 + $0x18] sm:$0xff]
    %v557 = vld [vmem:[%s3 + $0x20] sm:$0xff]
    %v558 = vld [vmem:[%s3 + $0x28] sm:$0xff]
    %v559 = vld [vmem:[%s3 + $0x30] sm:$0xff]
    %v560 = vld [vmem:[%s3 + $0x38] sm:$0xff]
    %v561 = vld [vmem:[%s3 + $0x40] sm:$0xff]
    %v562 = vld [vmem:[%s3 + $0x48] sm:$0xff]
    %v563 = vld [vmem:[%s3 + $0x50] sm:$0xff]
    %v564 = vld [vmem:[%s3 + $0x58] sm:$0xff]
    %v565 = vld [vmem:[%s3 + $0x60] sm:$0xff]
    %v566 = vld [vmem:[%s3 + $0x68] sm:$0xff]
    %v567 = vld [vmem:[%s3 + $0x70] sm:$0xff]
    %v568 = vld [vmem:[%s3 + $0x78] sm:$0xff]
    %v569 = vld [vmem:[%s3 + $0x80] sm:$0xff]
    %v570 = vld [vmem:[%s3 + $0x88] sm:$0xff]
    %v571 = vld [vmem:[%s3 + $0x90] sm:$0xff]
    %v572 = vld [vmem:[%s3 + $0x98] sm:$0xff]
    %v573 = vld [vmem:[%s3 + $0xa0] sm:$0xff]
    %v574 = vld [vmem:[%s3 + $0xa8] sm:$0xff]
    %v575 = vld [vmem:[%s3 + $0xb0] sm:$0xff]
    %v576 = vld [vmem:[%s3 + $0xb8] sm:$0xff]
    %v577 = vld [vmem:[%s3 + $0xc0] sm:$0xff]
    %v578 = vld [vmem:[%s3 + $0xc8] sm:$0xff]
    %v579 = vld [vmem:[%s3 + $0xd0] sm:$0xff]
    %v580 = vld [vmem:[%s3 + $0xd8] sm:$0xff]
    %v581 = vld [vmem:[%s3 + $0xe0] sm:$0xff]
    %v582 = vld [vmem:[%s3 + $0xe8] sm:$0xff]
    %v583 = vld [vmem:[%s3 + $0xf0] sm:$0xff]
    %v584 = vld [vmem:[%s3 + $0xf8] sm:$0xff]
    %v585 = vld [vmem:[%s4] sm:$0x3]
    %v587 = vlaneseq
    %v588 = vshrl.u32 %v587, 7
    %v589 = vsub.s32 0, %v588
    %v590 = vrot.slane %v585, %v589
    %v591 = vlaneseq
    %v592 = vshrl.u32 %v591, 7
    %v593 = vsub.s32 1, %v592
    %v594 = vrot.slane %v585, %v593
    %v629 = vunpack.c.l.b16 %v553
    %v630 = vunpack.c.h.b16 %v553
    %v631 = vunpack.c.l.b16 %v554
    %v632 = vunpack.c.h.b16 %v554
    %v633 = vunpack.c.l.b16 %v555
    %v634 = vunpack.c.h.b16 %v555
    %v635 = vunpack.c.l.b16 %v556
    %v636 = vunpack.c.h.b16 %v556
    %v637 = vunpack.c.l.b16 %v557
    %v638 = vunpack.c.h.b16 %v557
    %v639 = vunpack.c.l.b16 %v558
    %v640 = vunpack.c.h.b16 %v558
    %v641 = vunpack.c.l.b16 %v559
    %v642 = vunpack.c.h.b16 %v559
    %v643 = vunpack.c.l.b16 %v560
    %v644 = vunpack.c.h.b16 %v560
    %v645 = vunpack.c.l.b16 %v561
    %v646 = vunpack.c.h.b16 %v561
    %v647 = vunpack.c.l.b16 %v562
    %v648 = vunpack.c.h.b16 %v562
    %v649 = vunpack.c.l.b16 %v563
    %v650 = vunpack.c.h.b16 %v563
    %v651 = vunpack.c.l.b16 %v564
    %v652 = vunpack.c.h.b16 %v564
    %v653 = vunpack.c.l.b16 %v565
    %v654 = vunpack.c.h.b16 %v565
    %v655 = vunpack.c.l.b16 %v566
    %v656 = vunpack.c.h.b16 %v566
    %v657 = vunpack.c.l.b16 %v567
    %v658 = vunpack.c.h.b16 %v567
    %v659 = vunpack.c.l.b16 %v568
    %v660 = vunpack.c.h.b16 %v568
    %v661 = vunpack.c.l.b16 %v569
    %v662 = vunpack.c.h.b16 %v569
    %v663 = vunpack.c.l.b16 %v570
    %v664 = vunpack.c.h.b16 %v570
    %v665 = vunpack.c.l.b16 %v571
    %v666 = vunpack.c.h.b16 %v571
    %v667 = vunpack.c.l.b16 %v572
    %v668 = vunpack.c.h.b16 %v572
    %v669 = vunpack.c.l.b16 %v573
    %v670 = vunpack.c.h.b16 %v573
    %v671 = vunpack.c.l.b16 %v574
    %v672 = vunpack.c.h.b16 %v574
    %v673 = vunpack.c.l.b16 %v575
    %v674 = vunpack.c.h.b16 %v575
    %v675 = vunpack.c.l.b16 %v576
    %v676 = vunpack.c.h.b16 %v576
    %v677 = vunpack.c.l.b16 %v577
    %v678 = vunpack.c.h.b16 %v577
    %v679 = vunpack.c.l.b16 %v578
    %v680 = vunpack.c.h.b16 %v578
    %v681 = vunpack.c.l.b16 %v579
    %v682 = vunpack.c.h.b16 %v579
    %v683 = vunpack.c.l.b16 %v580
    %v684 = vunpack.c.h.b16 %v580
    %v685 = vunpack.c.l.b16 %v581
    %v686 = vunpack.c.h.b16 %v581
    %v687 = vunpack.c.l.b16 %v582
    %v688 = vunpack.c.h.b16 %v582
    %v689 = vunpack.c.l.b16 %v583
    %v690 = vunpack.c.h.b16 %v583
    %v691 = vunpack.c.l.b16 %v584
    %v692 = vunpack.c.h.b16 %v584
    %v693 = vpack.c.b16 %v631, %v629
    %v694 = vpack.c.b16 %v632, %v630
    %v695 = vpack.c.b16 %v635, %v633
    %v696 = vpack.c.b16 %v636, %v634
    %v697 = vpack.c.b16 %v639, %v637
    %v698 = vpack.c.b16 %v640, %v638
    %v699 = vpack.c.b16 %v643, %v641
    %v700 = vpack.c.b16 %v644, %v642
    %v701 = vpack.c.b16 %v647, %v645
    %v702 = vpack.c.b16 %v648, %v646
    %v703 = vpack.c.b16 %v651, %v649
    %v704 = vpack.c.b16 %v652, %v650
    %v705 = vpack.c.b16 %v655, %v653
    %v706 = vpack.c.b16 %v656, %v654
    %v707 = vpack.c.b16 %v659, %v657
    %v708 = vpack.c.b16 %v660, %v658
    %v709 = vpack.c.b16 %v663, %v661
    %v710 = vpack.c.b16 %v664, %v662
    %v711 = vpack.c.b16 %v667, %v665
    %v712 = vpack.c.b16 %v668, %v666
    %v713 = vpack.c.b16 %v671, %v669
    %v714 = vpack.c.b16 %v672, %v670
    %v715 = vpack.c.b16 %v675, %v673
    %v716 = vpack.c.b16 %v676, %v674
    %v717 = vpack.c.b16 %v679, %v677
    %v718 = vpack.c.b16 %v680, %v678
    %v719 = vpack.c.b16 %v683, %v681
    %v720 = vpack.c.b16 %v684, %v682
    %v721 = vpack.c.b16 %v687, %v685
    %v722 = vpack.c.b16 %v688, %v686
    %v723 = vpack.c.b16 %v691, %v689
    %v724 = vpack.c.b16 %v692, %v690
    %757 = vmatprep.subr.bf16.mxu0 %v694
    %758 = vmatpush1.bf16.msra.mxu0 %v693
    %759 = vmatprep.subr.bf16.mxu0 %v696
    %760 = vmatpush1.bf16.msra.mxu0 %v695
    %761 = vmatprep.subr.bf16.mxu0 %v698
    %762 = vmatpush1.bf16.msra.mxu0 %v697
    %763 = vmatprep.subr.bf16.mxu0 %v700
    %764 = vmatpush1.bf16.msra.mxu0 %v699
    %765 = vmatprep.subr.bf16.mxu0 %v702
    %766 = vmatpush1.bf16.msra.mxu0 %v701
    %767 = vmatprep.subr.bf16.mxu0 %v704
    %768 = vmatpush1.bf16.msra.mxu0 %v703
    %769 = vmatprep.subr.bf16.mxu0 %v706
    %770 = vmatpush1.bf16.msra.mxu0 %v705
    %771 = vmatprep.subr.bf16.mxu0 %v708
    %772 = vmatpush1.bf16.msra.mxu0 %v707
    %773 = vmatprep.subr.bf16.mxu0 %v710
    %774 = vmatpush1.bf16.msra.mxu0 %v709
    %775 = vmatprep.subr.bf16.mxu0 %v712
    %776 = vmatpush1.bf16.msra.mxu0 %v711
    %777 = vmatprep.subr.bf16.mxu0 %v714
    %778 = vmatpush1.bf16.msra.mxu0 %v713
    %779 = vmatprep.subr.bf16.mxu0 %v716
    %780 = vmatpush1.bf16.msra.mxu0 %v715
    %781 = vmatprep.subr.bf16.mxu0 %v718
    %782 = vmatpush1.bf16.msra.mxu0 %v717
    %783 = vmatprep.subr.bf16.mxu0 %v720
    %784 = vmatpush1.bf16.msra.mxu0 %v719
    %785 = vmatprep.subr.bf16.mxu0 %v722
    %786 = vmatpush1.bf16.msra.mxu0 %v721
    %787 = vmatprep.subr.bf16.mxu0 %v724
    %788 = vmatpush1.bf16.msra.mxu0 %v723
    %789 = vmatprep.mubr.bf16.mxu0 %v552
    %790 = vmatmul.mubr.bf16.gmra.mrb[0].mxu0 %v551
    %v791 = vpop.f32.mrb[0].mxu0
    %v792 = vadd.f32 %v590, %v791
    %v793 = vpop.f32.mrb[0].mxu0
    %v794 = vadd.f32 %v594, %v793
    %v795 = vpop.f32.mrb[0].mxu0
    %v796 = vpop.f32.mrb[0].mxu0
    %797 = vdwg.mxu0
    %v798 = vmax.f32 %v792, 0.0
    %v799 = vmax.f32 %v794, 0.0
    %v800 = vpack.c.bf16 %v798, %v798
    %v801 = vpack.c.bf16 %v799, %v799
    %v802 = vld [vmem:[%s5] sm:$0xf]
    %v803 = vld [vmem:[%s5 + $0x4] sm:$0xf]
    %v804 = vld [vmem:[%s5 + $0x8] sm:$0xf]
    %v805 = vld [vmem:[%s5 + $0xc] sm:$0xf]
    %v806 = vld [vmem:[%s5 + $0x10] sm:$0xf]
    %v807 = vld [vmem:[%s5 + $0x14] sm:$0xf]
    %v808 = vld [vmem:[%s5 + $0x18] sm:$0xf]
    %v809 = vld [vmem:[%s5 + $0x1c] sm:$0xf]
    %v810 = vld [vmem:[%s5 + $0x20] sm:$0xf]
    %v811 = vld [vmem:[%s5 + $0x24] sm:$0xf]
    %v812 = vld [vmem:[%s5 + $0x28] sm:$0xf]
    %v813 = vld [vmem:[%s5 + $0x2c] sm:$0xf]
    %v814 = vld [vmem:[%s5 + $0x30] sm:$0xf]
    %v815 = vld [vmem:[%s5 + $0x34] sm:$0xf]
    %v816 = vld [vmem:[%s5 + $0x38] sm:$0xf]
    %v817 = vld [vmem:[%s5 + $0x3c] sm:$0xf]
    %v818 = vld [vmem:[%s5 + $0x40] sm:$0xf]
    %v819 = vld [vmem:[%s5 + $0x44] sm:$0xf]
    %v820 = vld [vmem:[%s5 + $0x48] sm:$0xf]
    %v821 = vld [vmem:[%s5 + $0x4c] sm:$0xf]
    %v822 = vld [vmem:[%s5 + $0x50] sm:$0xf]
    %v823 = vld [vmem:[%s5 + $0x54] sm:$0xf]
    %v824 = vld [vmem:[%s5 + $0x58] sm:$0xf]
    %v825 = vld [vmem:[%s5 + $0x5c] sm:$0xf]
    %v826 = vld [vmem:[%s5 + $0x60] sm:$0xf]
    %v827 = vld [vmem:[%s5 + $0x64] sm:$0xf]
    %v828 = vld [vmem:[%s5 + $0x68] sm:$0xf]
    %v829 = vld [vmem:[%s5 + $0x6c] sm:$0xf]
    %v830 = vld [vmem:[%s5 + $0x70] sm:$0xf]
    %v831 = vld [vmem:[%s5 + $0x74] sm:$0xf]
    %v832 = vld [vmem:[%s5 + $0x78] sm:$0xf]
    %v833 = vld [vmem:[%s5 + $0x7c] sm:$0xf]
    %v834 = vld [vmem:[%s6] sm:$0x1]
    %v836 = vlaneseq
    %v837 = vshrl.u32 %v836, 7
    %v838 = vsub.s32 0, %v837
    %v839 = vrot.slane %v834, %v838
    %v873 = vunpack.c.l.b16 %v802
    %v874 = vunpack.c.l.b16 %v803
    %v875 = vunpack.c.l.b16 %v804
    %v876 = vunpack.c.l.b16 %v805
    %v877 = vunpack.c.l.b16 %v806
    %v878 = vunpack.c.l.b16 %v807
    %v879 = vunpack.c.l.b16 %v808
    %v880 = vunpack.c.l.b16 %v809
    %v881 = vunpack.c.l.b16 %v810
    %v882 = vunpack.c.l.b16 %v811
    %v883 = vunpack.c.l.b16 %v812
    %v884 = vunpack.c.l.b16 %v813
    %v885 = vunpack.c.l.b16 %v814
    %v886 = vunpack.c.l.b16 %v815
    %v887 = vunpack.c.l.b16 %v816
    %v888 = vunpack.c.l.b16 %v817
    %v889 = vunpack.c.l.b16 %v818
    %v890 = vunpack.c.l.b16 %v819
    %v891 = vunpack.c.l.b16 %v820
    %v892 = vunpack.c.l.b16 %v821
    %v893 = vunpack.c.l.b16 %v822
    %v894 = vunpack.c.l.b16 %v823
    %v895 = vunpack.c.l.b16 %v824
    %v896 = vunpack.c.l.b16 %v825
    %v897 = vunpack.c.l.b16 %v826
    %v898 = vunpack.c.l.b16 %v827
    %v899 = vunpack.c.l.b16 %v828
    %v900 = vunpack.c.l.b16 %v829
    %v901 = vunpack.c.l.b16 %v830
    %v902 = vunpack.c.l.b16 %v831
    %v903 = vunpack.c.l.b16 %v832
    %v904 = vunpack.c.l.b16 %v833
    %v905 = vpack.c.b16 %v874, %v873
    %v906 = vpack.c.b16 %v876, %v875
    %v907 = vpack.c.b16 %v878, %v877
    %v908 = vpack.c.b16 %v880, %v879
    %v909 = vpack.c.b16 %v882, %v881
    %v910 = vpack.c.b16 %v884, %v883
    %v911 = vpack.c.b16 %v886, %v885
    %v912 = vpack.c.b16 %v888, %v887
    %v913 = vpack.c.b16 %v890, %v889
    %v914 = vpack.c.b16 %v892, %v891
    %v915 = vpack.c.b16 %v894, %v893
    %v916 = vpack.c.b16 %v896, %v895
    %v917 = vpack.c.b16 %v898, %v897
    %v918 = vpack.c.b16 %v900, %v899
    %v919 = vpack.c.b16 %v902, %v901
    %v920 = vpack.c.b16 %v904, %v903
    %937 = vmatprep.subr.bf16.mxu0 0
    %938 = vmatpush1.bf16.msra.mxu0 %v905
    %939 = vmatprep.subr.bf16.mxu0 0
    %940 = vmatpush1.bf16.msra.mxu0 %v906
    %941 = vmatprep.subr.bf16.mxu0 0
    %942 = vmatpush1.bf16.msra.mxu0 %v907
    %943 = vmatprep.subr.bf16.mxu0 0
    %944 = vmatpush1.bf16.msra.mxu0 %v908
    %945 = vmatprep.subr.bf16.mxu0 0
    %946 = vmatpush1.bf16.msra.mxu0 %v909
    %947 = vmatprep.subr.bf16.mxu0 0
    %948 = vmatpush1.bf16.msra.mxu0 %v910
    %949 = vmatprep.subr.bf16.mxu0 0
    %950 = vmatpush1.bf16.msra.mxu0 %v911
    %951 = vmatprep.subr.bf16.mxu0 0
    %952 = vmatpush1.bf16.msra.mxu0 %v912
    %953 = vmatprep.subr.bf16.mxu0 0
    %954 = vmatpush1.bf16.msra.mxu0 %v913
    %955 = vmatprep.subr.bf16.mxu0 0
    %956 = vmatpush1.bf16.msra.mxu0 %v914
    %957 = vmatprep.subr.bf16.mxu0 0
    %958 = vmatpush1.bf16.msra.mxu0 %v915
    %959 = vmatprep.subr.bf16.mxu0 0
    %960 = vmatpush1.bf16.msra.mxu0 %v916
    %961 = vmatprep.subr.bf16.mxu0 0
    %962 = vmatpush1.bf16.msra.mxu0 %v917
    %963 = vmatprep.subr.bf16.mxu0 0
    %964 = vmatpush1.bf16.msra.mxu0 %v918
    %965 = vmatprep.subr.bf16.mxu0 0
    %966 = vmatpush1.bf16.msra.mxu0 %v919
    %967 = vmatprep.subr.bf16.mxu0 0
    %968 = vmatpush1.bf16.msra.mxu0 %v920
    %969 = vmatprep.mubr.bf16.mxu0 %v801
    %970 = vmatmul.mubr.bf16.gmra.mrb[0].mxu0 %v800
    %v971 = vpop.f32.mrb[0].mxu0
    %v972 = vadd.f32 %v839, %v971
    %v973 = vpop.f32.mrb[0].mxu0
    %v974 = vpop.f32.mrb[0].mxu0
    %v975 = vpop.f32.mrb[0].mxu0
    %976 = vdwg.mxu0
    %v977 = vld [vmem:[%s7] sm:$0xf]
    %v978 = vld [vmem:[%s7 + $0x4] sm:$0xf]
    %v979 = vld [vmem:[%s7 + $0x8] sm:$0xf]
    %v980 = vld [vmem:[%s7 + $0xc] sm:$0xf]
    %v981 = vld [vmem:[%s7 + $0x10] sm:$0xf]
    %v982 = vld [vmem:[%s7 + $0x14] sm:$0xf]
    %v983 = vld [vmem:[%s7 + $0x18] sm:$0xf]
    %v984 = vld [vmem:[%s7 + $0x1c] sm:$0xf]
    %v985 = vld [vmem:[%s7 + $0x20] sm:$0xf]
    %v986 = vld [vmem:[%s7 + $0x24] sm:$0xf]
    %v987 = vld [vmem:[%s7 + $0x28] sm:$0xf]
    %v988 = vld [vmem:[%s7 + $0x2c] sm:$0xf]
    %v989 = vld [vmem:[%s7 + $0x30] sm:$0xf]
    %v990 = vld [vmem:[%s7 + $0x34] sm:$0xf]
    %v991 = vld [vmem:[%s7 + $0x38] sm:$0xf]
    %v992 = vld [vmem:[%s7 + $0x3c] sm:$0xf]
    %v993 = vld [vmem:[%s7 + $0x40] sm:$0xf]
    %v994 = vld [vmem:[%s7 + $0x44] sm:$0xf]
    %v995 = vld [vmem:[%s7 + $0x48] sm:$0xf]
    %v996 = vld [vmem:[%s7 + $0x4c] sm:$0xf]
    %v997 = vld [vmem:[%s7 + $0x50] sm:$0xf]
    %v998 = vld [vmem:[%s7 + $0x54] sm:$0xf]
    %v999 = vld [vmem:[%s7 + $0x58] sm:$0xf]
    %v1000 = vld [vmem:[%s7 + $0x5c] sm:$0xf]
    %v1001 = vld [vmem:[%s7 + $0x60] sm:$0xf]
    %v1002 = vld [vmem:[%s7 + $0x64] sm:$0xf]
    %v1003 = vld [vmem:[%s7 + $0x68] sm:$0xf]
    %v1004 = vld [vmem:[%s7 + $0x6c] sm:$0xf]
    %v1005 = vld [vmem:[%s7 + $0x70] sm:$0xf]
    %v1006 = vld [vmem:[%s7 + $0x74] sm:$0xf]
    %v1007 = vld [vmem:[%s7 + $0x78] sm:$0xf]
    %v1008 = vld [vmem:[%s7 + $0x7c] sm:$0xf]
    %v1009 = vld [vmem:[%s8] sm:$0x1]
    %v1011 = vlaneseq
    %v1012 = vshrl.u32 %v1011, 7
    %v1013 = vsub.s32 0, %v1012
    %v1014 = vrot.slane %v1009, %v1013
    %v1048 = vunpack.c.l.b16 %v977
    %v1049 = vunpack.c.l.b16 %v978
    %v1050 = vunpack.c.l.b16 %v979
    %v1051 = vunpack.c.l.b16 %v980
    %v1052 = vunpack.c.l.b16 %v981
    %v1053 = vunpack.c.l.b16 %v982
    %v1054 = vunpack.c.l.b16 %v983
    %v1055 = vunpack.c.l.b16 %v984
    %v1056 = vunpack.c.l.b16 %v985
    %v1057 = vunpack.c.l.b16 %v986
    %v1058 = vunpack.c.l.b16 %v987
    %v1059 = vunpack.c.l.b16 %v988
    %v1060 = vunpack.c.l.b16 %v989
    %v1061 = vunpack.c.l.b16 %v990
    %v1062 = vunpack.c.l.b16 %v991
    %v1063 = vunpack.c.l.b16 %v992
    %v1064 = vunpack.c.l.b16 %v993
    %v1065 = vunpack.c.l.b16 %v994
    %v1066 = vunpack.c.l.b16 %v995
    %v1067 = vunpack.c.l.b16 %v996
    %v1068 = vunpack.c.l.b16 %v997
    %v1069 = vunpack.c.l.b16 %v998
    %v1070 = vunpack.c.l.b16 %v999
    %v1071 = vunpack.c.l.b16 %v1000
    %v1072 = vunpack.c.l.b16 %v1001
    %v1073 = vunpack.c.l.b16 %v1002
    %v1074 = vunpack.c.l.b16 %v1003
    %v1075 = vunpack.c.l.b16 %v1004
    %v1076 = vunpack.c.l.b16 %v1005
    %v1077 = vunpack.c.l.b16 %v1006
    %v1078 = vunpack.c.l.b16 %v1007
    %v1079 = vunpack.c.l.b16 %v1008
    %v1080 = vpack.c.b16 %v1049, %v1048
    %v1081 = vpack.c.b16 %v1051, %v1050
    %v1082 = vpack.c.b16 %v1053, %v1052
    %v1083 = vpack.c.b16 %v1055, %v1054
    %v1084 = vpack.c.b16 %v1057, %v1056
    %v1085 = vpack.c.b16 %v1059, %v1058
    %v1086 = vpack.c.b16 %v1061, %v1060
    %v1087 = vpack.c.b16 %v1063, %v1062
    %v1088 = vpack.c.b16 %v1065, %v1064
    %v1089 = vpack.c.b16 %v1067, %v1066
    %v1090 = vpack.c.b16 %v1069, %v1068
    %v1091 = vpack.c.b16 %v1071, %v1070
    %v1092 = vpack.c.b16 %v1073, %v1072
    %v1093 = vpack.c.b16 %v1075, %v1074
    %v1094 = vpack.c.b16 %v1077, %v1076
    %v1095 = vpack.c.b16 %v1079, %v1078
    %1112 = vmatprep.subr.bf16.mxu0 0
    %1113 = vmatpush1.bf16.msra.mxu0 %v1080
    %1114 = vmatprep.subr.bf16.mxu0 0
    %1115 = vmatpush1.bf16.msra.mxu0 %v1081
    %1116 = vmatprep.subr.bf16.mxu0 0
    %1117 = vmatpush1.bf16.msra.mxu0 %v1082
    %1118 = vmatprep.subr.bf16.mxu0 0
    %1119 = vmatpush1.bf16.msra.mxu0 %v1083
    %1120 = vmatprep.subr.bf16.mxu0 0
    %1121 = vmatpush1.bf16.msra.mxu0 %v1084
    %1122 = vmatprep.subr.bf16.mxu0 0
    %1123 = vmatpush1.bf16.msra.mxu0 %v1085
    %1124 = vmatprep.subr.bf16.mxu0 0
    %1125 = vmatpush1.bf16.msra.mxu0 %v1086
    %1126 = vmatprep.subr.bf16.mxu0 0
    %1127 = vmatpush1.bf16.msra.mxu0 %v1087
    %1128 = vmatprep.subr.bf16.mxu0 0
    %1129 = vmatpush1.bf16.msra.mxu0 %v1088
    %1130 = vmatprep.subr.bf16.mxu0 0
    %1131 = vmatpush1.bf16.msra.mxu0 %v1089
    %1132 = vmatprep.subr.bf16.mxu0 0
    %1133 = vmatpush1.bf16.msra.mxu0 %v1090
    %1134 = vmatprep.subr.bf16.mxu0 0
    %1135 = vmatpush1.bf16.msra.mxu0 %v1091
    %1136 = vmatprep.subr.bf16.mxu0 0
    %1137 = vmatpush1.bf16.msra.mxu0 %v1092
    %1138 = vmatprep.subr.bf16.mxu0 0
    %1139 = vmatpush1.bf16.msra.mxu0 %v1093
    %1140 = vmatprep.subr.bf16.mxu0 0
    %1141 = vmatpush1.bf16.msra.mxu0 %v1094
    %1142 = vmatprep.subr.bf16.mxu0 0
    %1143 = vmatpush1.bf16.msra.mxu0 %v1095
    %1144 = vmatprep.mubr.bf16.mxu0 %v801
    %1145 = vmatmul.mubr.bf16.gmra.mrb[0].mxu0 %v800
    %v1146 = vpop.f32.mrb[0].mxu0
    %v1147 = vadd.f32 %v1014, %v1146
    %v1148 = vpop.f32.mrb[0].mxu0
    %v1149 = vpop.f32.mrb[0].mxu0
    %v1150 = vpop.f32.mrb[0].mxu0
    %1151 = vdwg.mxu0
    %v1152 = vmul.f32 %v1147, 0.5
    %v1153 = vmul.f32 %v1152, 1.442695
    %v1154 = vpow.pop %v1153
    %vm1155 = vcmask 74752
    %1156 = vst.msk [vmem:[#allocation2] sm:$0x3] %vm1155, %v972
    %1157 = vst.msk [vmem:[#allocation4] sm:$0x3] %vm1155, %v1147
    %v1158 = vld [vmem:[%s9] sm:$0x3]
    %v1159 = vmul.f32 %v1154, %v1158
    %v1160 = vadd.f32 %v972, %v1159
    %1161 = vst.msk [vmem:[%s12] sm:$0x3] %vm1155, %v1160
    // Predicated region
    $region42: #{vae_forward.11} parent=1 // pred_check
      _
    $region43: #{vae_forward.11} parent=1 // pred_check_branch
      %1163 = sbr.rel (0) target = $region45
    $region44: #{vae_forward.11} parent=1 // pred_region
      %s1165 = ssub.s32 32, 32
      %1166 = vsyncadd [#allocation3], %s1165
      %s1168 = sshll.u32 [#allocation2], 4
      %s1169 = int_to_ptr.vmem [resolvable:$true] %s1168
      %1171 = dma.vmem_to_hbm [thread:$0]  %s1169, 32, %s10, [#allocation3]
    $region45: #{vae_forward.11} parent=1 // pred_fallthru
      _
    // Predicated region
    $region46: #{vae_forward.11} parent=1 // pred_check
      _
    $region47: #{vae_forward.11} parent=1 // pred_check_branch
      %1173 = sbr.rel (0) target = $region49
    $region48: #{vae_forward.11} parent=1 // pred_region
      %s1175 = ssub.s32 32, 32
      %1176 = vsyncadd [#allocation5], %s1175
      %s1178 = sshll.u32 [#allocation4], 4
      %s1179 = int_to_ptr.vmem [resolvable:$true] %s1178
      %1181 = dma.vmem_to_hbm [thread:$0]  %s1179, 32, %s11, [#allocation5]
    $region49: #{vae_forward.11} parent=1 // pred_fallthru
      _
    // Predicated region
    $region50: #{vae_forward.11} parent=1 // pred_check
      _
    $region51: #{vae_forward.11} parent=1 // pred_check_branch
      %1183 = sbr.rel (0) target = $region53
    $region52: #{vae_forward.11} parent=1 // pred_region
      _
    $region53: #{vae_forward.11} parent=1 // pred_fallthru
      _
    // Predicated region
    $region54: #{vae_forward.11} parent=1 // pred_check
      _
    $region55: #{vae_forward.11} parent=1 // pred_check_branch
      %1185 = sbr.rel (0) target = $region57
    $region56: #{vae_forward.11} parent=1 // pred_region
      %1186 = dma.done [#allocation3], 32
    $region57: #{vae_forward.11} parent=1 // pred_fallthru
      _
    // Predicated region
    $region58: #{vae_forward.11} parent=1 // pred_check
      _
    $region59: #{vae_forward.11} parent=1 // pred_check_branch
      %1188 = sbr.rel (0) target = $region61
    $region60: #{vae_forward.11} parent=1 // pred_region
      %1189 = dma.done [#allocation5], 32
    $region61: #{vae_forward.11} parent=1 // pred_fallthru
      _
    // Predicated region
    $region62: #{vae_forward.11} parent=1 // pred_check
      _
    $region63: #{vae_forward.11} parent=1 // pred_check_branch
      %1191 = sbr.rel (0) target = $region65
    $region64: #{vae_forward.11} parent=1 // pred_region
      _
    $region65: #{vae_forward.11} parent=1 // pred_fallthru
      _
    %1192 = vsyncpa [#allocation3], 1
    %1193 = vsyncpa [#allocation5], 1

// kernel: vae_forward.13
$region0: #{vae_forward.13}
  #allocation0 [shape = 'u32[]', space=smem, size = 0x4, offset = 0x4, fixed_abs, tag = 'smem constant byte address 0x4 - core index']
  #allocation1 [shape = 'u32[144,128]{1,0:T(1,128)}', space=vmem, size = 0x12000, scoped, tag = 'internal scratch']
  %s0 = inlined_call_operand.vmem [shape: bf16[4,32,128], index: 0, kind: input, shape index: {}]
  %s1 = inlined_call_operand.vmem [shape: bf16[4,128,32], index: 1, kind: input, shape index: {}]
  %s2 = inlined_call_operand.vmem [shape: f32[1,32], index: 2, kind: input, shape index: {}]
  %s3 = inlined_call_operand.vmem [shape: bf16[4,32,32], index: 3, kind: output, shape index: {}]
  %s4 = sld [smem:[#allocation0]]
  $region22: #{vae_forward.13} parent=0
    _
  %s6 = ssub.s32 1, %s4
  %s7 = scalar_select 0, %s6, %s4
  // Predicated region
  $region2: #{vae_forward.13} parent=0 // pred_check
    _
  $region3: #{vae_forward.13} parent=0 // pred_check_branch
    %9 = sbr.rel (0) target = $region5
  $region4: #{vae_forward.13} parent=0 // pred_region
    _
  $region5: #{vae_forward.13} parent=0 // pred_fallthru
    _
  // Predicated region
  $region6: #{vae_forward.13} parent=0 // pred_check
    _
  $region7: #{vae_forward.13} parent=0 // pred_check_branch
    %11 = sbr.rel (0) target = $region9
  $region8: #{vae_forward.13} parent=0 // pred_region
    _
  $region9: #{vae_forward.13} parent=0 // pred_fallthru
    _
  // Predicated region
  $region10: #{vae_forward.13} parent=0 // pred_check
    _
  $region11: #{vae_forward.13} parent=0 // pred_check_branch
    %13 = sbr.rel (0) target = $region13
  $region12: #{vae_forward.13} parent=0 // pred_region
    _
  $region13: #{vae_forward.13} parent=0 // pred_fallthru
    _
  %v15 = vld [vmem:[%s0] sm:$0xf]
  %v16 = vld [vmem:[%s0 + $0x4] sm:$0xf]
  %v17 = vld [vmem:[%s0 + $0x8] sm:$0xf]
  %v18 = vld [vmem:[%s0 + $0xc] sm:$0xf]
  %v19 = vld [vmem:[%s1] sm:$0xf]
  %v20 = vld [vmem:[%s1 + $0x4] sm:$0xf]
  %v21 = vld [vmem:[%s1 + $0x8] sm:$0xf]
  %v22 = vld [vmem:[%s1 + $0xc] sm:$0xf]
  %v23 = vld [vmem:[%s1 + $0x10] sm:$0xf]
  %v24 = vld [vmem:[%s1 + $0x14] sm:$0xf]
  %v25 = vld [vmem:[%s1 + $0x18] sm:$0xf]
  %v26 = vld [vmem:[%s1 + $0x1c] sm:$0xf]
  %v27 = vld [vmem:[%s1 + $0x20] sm:$0xf]
  %v28 = vld [vmem:[%s1 + $0x24] sm:$0xf]
  %v29 = vld [vmem:[%s1 + $0x28] sm:$0xf]
  %v30 = vld [vmem:[%s1 + $0x2c] sm:$0xf]
  %v31 = vld [vmem:[%s1 + $0x30] sm:$0xf]
  %v32 = vld [vmem:[%s1 + $0x34] sm:$0xf]
  %v33 = vld [vmem:[%s1 + $0x38] sm:$0xf]
  %v34 = vld [vmem:[%s1 + $0x3c] sm:$0xf]
  %v35 = vld [vmem:[%s2] sm:$0x1]
  %v37 = vlaneseq
  %v38 = vshrl.u32 %v37, 7
  %v39 = vsub.s32 0, %v38
  %v40 = vrot.slane %v35, %v39
  %v46 = vunpack.c.l.b16 %v15
  %v47 = vunpack.c.l.b16 %v16
  %v48 = vunpack.c.l.b16 %v17
  %v49 = vunpack.c.l.b16 %v18
  %v50 = vpack.c.b16 %v47, %v46
  %v51 = vpack.c.b16 %v49, %v48
  %v70 = vunpack.c.l.b16 %v19
  %v71 = vunpack.c.l.b16 %v20
  %v72 = vunpack.c.l.b16 %v21
  %v73 = vunpack.c.l.b16 %v22
  %v74 = vunpack.c.l.b16 %v23
  %v75 = vunpack.c.l.b16 %v24
  %v76 = vunpack.c.l.b16 %v25
  %v77 = vunpack.c.l.b16 %v26
  %v78 = vunpack.c.l.b16 %v27
  %v79 = vunpack.c.l.b16 %v28
  %v80 = vunpack.c.l.b16 %v29
  %v81 = vunpack.c.l.b16 %v30
  %v82 = vunpack.c.l.b16 %v31
  %v83 = vunpack.c.l.b16 %v32
  %v84 = vunpack.c.l.b16 %v33
  %v85 = vunpack.c.l.b16 %v34
  %v86 = vpack.c.b16 %v71, %v70
  %v87 = vpack.c.b16 %v73, %v72
  %v88 = vpack.c.b16 %v75, %v74
  %v89 = vpack.c.b16 %v77, %v76
  %v90 = vpack.c.b16 %v79, %v78
  %v91 = vpack.c.b16 %v81, %v80
  %v92 = vpack.c.b16 %v83, %v82
  %v93 = vpack.c.b16 %v85, %v84
  %102 = vmatprep.subr.bf16.mxu0 0
  %103 = vmatpush1.bf16.msra.mxu0 %v86
  %104 = vmatprep.subr.bf16.mxu0 0
  %105 = vmatpush1.bf16.msra.mxu0 %v87
  %106 = vmatprep.subr.bf16.mxu0 0
  %107 = vmatpush1.bf16.msra.mxu0 %v88
  %108 = vmatprep.subr.bf16.mxu0 0
  %109 = vmatpush1.bf16.msra.mxu0 %v89
  %110 = vmatprep.subr.bf16.mxu0 0
  %111 = vmatpush1.bf16.msra.mxu0 %v90
  %112 = vmatprep.subr.bf16.mxu0 0
  %113 = vmatpush1.bf16.msra.mxu0 %v91
  %114 = vmatprep.subr.bf16.mxu0 0
  %115 = vmatpush1.bf16.msra.mxu0 %v92
  %116 = vmatprep.subr.bf16.mxu0 0
  %117 = vmatpush1.bf16.msra.mxu0 %v93
  %118 = vmatprep.subr.bf16.mxu0 0
  %119 = vmatpush1.bf16.msra.mxu0 0
  %120 = vmatprep.subr.bf16.mxu0 0
  %121 = vmatpush1.bf16.msra.mxu0 0
  %122 = vmatprep.subr.bf16.mxu0 0
  %123 = vmatpush1.bf16.msra.mxu0 0
  %124 = vmatprep.subr.bf16.mxu0 0
  %125 = vmatpush1.bf16.msra.mxu0 0
  %126 = vmatprep.subr.bf16.mxu0 0
  %127 = vmatpush1.bf16.msra.mxu0 0
  %128 = vmatprep.subr.bf16.mxu0 0
  %129 = vmatpush1.bf16.msra.mxu0 0
  %130 = vmatprep.subr.bf16.mxu0 0
  %131 = vmatpush1.bf16.msra.mxu0 0
  %132 = vmatprep.subr.bf16.mxu0 0
  %133 = vmatpush1.bf16.msra.mxu0 0
  %134 = vmatprep.mubr.bf16.mxu0 0
  %135 = vmatmul.mubr.bf16.gmra.mrb[0].mxu0 %v50
  %v136 = vpop.f32.mrb[0].mxu0
  %v137 = vadd.f32 %v40, %v136
  %v138 = vpop.f32.mrb[0].mxu0
  %v139 = vpop.f32.mrb[0].mxu0
  %v140 = vadd.f32 %v40, %v139
  %v141 = vpop.f32.mrb[0].mxu0
  %142 = vmatprep.mubr.bf16.mxu0 0
  %143 = vmatmul.mubr.bf16.gmra.mrb[0].mxu0 %v51
  %v144 = vpop.f32.mrb[0].mxu0
  %v145 = vadd.f32 %v40, %v144
  %v146 = vpop.f32.mrb[0].mxu0
  %v147 = vpop.f32.mrb[0].mxu0
  %v148 = vadd.f32 %v40, %v147
  %v149 = vpop.f32.mrb[0].mxu0
  %150 = vdwg.mxu0
  %v151 = vmax.f32 %v137, 0.0
  %v152 = vmax.f32 %v140, 0.0
  %v153 = vmax.f32 %v145, 0.0
  %v154 = vmax.f32 %v148, 0.0
  %v155 = vpack.c.bf16 %v152, %v151
  %v156 = vpack.c.bf16 %v154, %v153
  %v159 = vunpack.c.l.b16 %v155
  %v160 = vunpack.c.h.b16 %v155
  %v161 = vunpack.c.l.b16 %v156
  %v162 = vunpack.c.h.b16 %v156
  %v163 = vpack.c.b16 %v159, %v159
  %v164 = vpack.c.b16 %v160, %v160
  %v165 = vpack.c.b16 %v161, %v161
  %v166 = vpack.c.b16 %v162, %v162
  %vm171 = vcmask 257024
  %172 = vst.msk [vmem:[%s3] sm:$0xf] %vm171, %v163
  %173 = vst.msk [vmem:[%s3 + $0x4] sm:$0xf] %vm171, %v164
  %174 = vst.msk [vmem:[%s3 + $0x8] sm:$0xf] %vm171, %v165
  %175 = vst.msk [vmem:[%s3 + $0xc] sm:$0xf] %vm171, %v166
  %s176 = scalar_lea.vmem %s0, 16
  %v177 = vld [vmem:[%s176] sm:$0xf]
  %v178 = vld [vmem:[%s176 + $0x4] sm:$0xf]
  %v179 = vld [vmem:[%s176 + $0x8] sm:$0xf]
  %v180 = vld [vmem:[%s176 + $0xc] sm:$0xf]
  %s181 = scalar_lea.vmem %s1, 64
  %v182 = vld [vmem:[%s181] sm:$0xf]
  %v183 = vld [vmem:[%s181 + $0x4] sm:$0xf]
  %v184 = vld [vmem:[%s181 + $0x8] sm:$0xf]
  %v185 = vld [vmem:[%s181 + $0xc] sm:$0xf]
  %v186 = vld [vmem:[%s181 + $0x10] sm:$0xf]
  %v187 = vld [vmem:[%s181 + $0x14] sm:$0xf]
  %v188 = vld [vmem:[%s181 + $0x18] sm:$0xf]
  %v189 = vld [vmem:[%s181 + $0x1c] sm:$0xf]
  %v190 = vld [vmem:[%s181 + $0x20] sm:$0xf]
  %v191 = vld [vmem:[%s181 + $0x24] sm:$0xf]
  %v192 = vld [vmem:[%s181 + $0x28] sm:$0xf]
  %v193 = vld [vmem:[%s181 + $0x2c] sm:$0xf]
  %v194 = vld [vmem:[%s181 + $0x30] sm:$0xf]
  %v195 = vld [vmem:[%s181 + $0x34] sm:$0xf]
  %v196 = vld [vmem:[%s181 + $0x38] sm:$0xf]
  %v197 = vld [vmem:[%s181 + $0x3c] sm:$0xf]
  %v198 = vld [vmem:[%s2] sm:$0x1]
  %v200 = vlaneseq
  %v201 = vshrl.u32 %v200, 7
  %v202 = vsub.s32 0, %v201
  %v203 = vrot.slane %v198, %v202
  %v209 = vunpack.c.l.b16 %v177
  %v210 = vunpack.c.l.b16 %v178
  %v211 = vunpack.c.l.b16 %v179
  %v212 = vunpack.c.l.b16 %v180
  %v213 = vpack.c.b16 %v210, %v209
  %v214 = vpack.c.b16 %v212, %v211
  %v233 = vunpack.c.l.b16 %v182
  %v234 = vunpack.c.l.b16 %v183
  %v235 = vunpack.c.l.b16 %v184
  %v236 = vunpack.c.l.b16 %v185
  %v237 = vunpack.c.l.b16 %v186
  %v238 = vunpack.c.l.b16 %v187
  %v239 = vunpack.c.l.b16 %v188
  %v240 = vunpack.c.l.b16 %v189
  %v241 = vunpack.c.l.b16 %v190
  %v242 = vunpack.c.l.b16 %v191
  %v243 = vunpack.c.l.b16 %v192
  %v244 = vunpack.c.l.b16 %v193
  %v245 = vunpack.c.l.b16 %v194
  %v246 = vunpack.c.l.b16 %v195
  %v247 = vunpack.c.l.b16 %v196
  %v248 = vunpack.c.l.b16 %v197
  %v249 = vpack.c.b16 %v234, %v233
  %v250 = vpack.c.b16 %v236, %v235
  %v251 = vpack.c.b16 %v238, %v237
  %v252 = vpack.c.b16 %v240, %v239
  %v253 = vpack.c.b16 %v242, %v241
  %v254 = vpack.c.b16 %v244, %v243
  %v255 = vpack.c.b16 %v246, %v245
  %v256 = vpack.c.b16 %v248, %v247
  %265 = vmatprep.subr.bf16.mxu0 0
  %266 = vmatpush1.bf16.msra.mxu0 %v249
  %267 = vmatprep.subr.bf16.mxu0 0
  %268 = vmatpush1.bf16.msra.mxu0 %v250
  %269 = vmatprep.subr.bf16.mxu0 0
  %270 = vmatpush1.bf16.msra.mxu0 %v251
  %271 = vmatprep.subr.bf16.mxu0 0
  %272 = vmatpush1.bf16.msra.mxu0 %v252
  %273 = vmatprep.subr.bf16.mxu0 0
  %274 = vmatpush1.bf16.msra.mxu0 %v253
  %275 = vmatprep.subr.bf16.mxu0 0
  %276 = vmatpush1.bf16.msra.mxu0 %v254
  %277 = vmatprep.subr.bf16.mxu0 0
  %278 = vmatpush1.bf16.msra.mxu0 %v255
  %279 = vmatprep.subr.bf16.mxu0 0
  %280 = vmatpush1.bf16.msra.mxu0 %v256
  %281 = vmatprep.subr.bf16.mxu0 0
  %282 = vmatpush1.bf16.msra.mxu0 0
  %283 = vmatprep.subr.bf16.mxu0 0
  %284 = vmatpush1.bf16.msra.mxu0 0
  %285 = vmatprep.subr.bf16.mxu0 0
  %286 = vmatpush1.bf16.msra.mxu0 0
  %287 = vmatprep.subr.bf16.mxu0 0
  %288 = vmatpush1.bf16.msra.mxu0 0
  %289 = vmatprep.subr.bf16.mxu0 0
  %290 = vmatpush1.bf16.msra.mxu0 0
  %291 = vmatprep.subr.bf16.mxu0 0
  %292 = vmatpush1.bf16.msra.mxu0 0
  %293 = vmatprep.subr.bf16.mxu0 0
  %294 = vmatpush1.bf16.msra.mxu0 0
  %295 = vmatprep.subr.bf16.mxu0 0
  %296 = vmatpush1.bf16.msra.mxu0 0
  %297 = vmatprep.mubr.bf16.mxu0 0
  %298 = vmatmul.mubr.bf16.gmra.mrb[0].mxu0 %v213
  %v299 = vpop.f32.mrb[0].mxu0
  %v300 = vadd.f32 %v203, %v299
  %v301 = vpop.f32.mrb[0].mxu0
  %v302 = vpop.f32.mrb[0].mxu0
  %v303 = vadd.f32 %v203, %v302
  %v304 = vpop.f32.mrb[0].mxu0
  %305 = vmatprep.mubr.bf16.mxu0 0
  %306 = vmatmul.mubr.bf16.gmra.mrb[0].mxu0 %v214
  %v307 = vpop.f32.mrb[0].mxu0
  %v308 = vadd.f32 %v203, %v307
  %v309 = vpop.f32.mrb[0].mxu0
  %v310 = vpop.f32.mrb[0].mxu0
  %v311 = vadd.f32 %v203, %v310
  %v312 = vpop.f32.mrb[0].mxu0
  %313 = vdwg.mxu0
  %v314 = vmax.f32 %v300, 0.0
  %v315 = vmax.f32 %v303, 0.0
  %v316 = vmax.f32 %v308, 0.0
  %v317 = vmax.f32 %v311, 0.0
  %v318 = vpack.c.bf16 %v315, %v314
  %v319 = vpack.c.bf16 %v317, %v316
  %v322 = vunpack.c.l.b16 %v318
  %v323 = vunpack.c.h.b16 %v318
  %v324 = vunpack.c.l.b16 %v319
  %v325 = vunpack.c.h.b16 %v319
  %v326 = vpack.c.b16 %v322, %v322
  %v327 = vpack.c.b16 %v323, %v323
  %v328 = vpack.c.b16 %v324, %v324
  %v329 = vpack.c.b16 %v325, %v325
  %s334 = scalar_lea.vmem %s3, 16
  %335 = vst.msk [vmem:[%s334] sm:$0xf] %vm171, %v326
  %336 = vst.msk [vmem:[%s334 + $0x4] sm:$0xf] %vm171, %v327
  %337 = vst.msk [vmem:[%s334 + $0x8] sm:$0xf] %vm171, %v328
  %338 = vst.msk [vmem:[%s334 + $0xc] sm:$0xf] %vm171, %v329
  %s339 = scalar_lea.vmem %s0, 32
  %v340 = vld [vmem:[%s339] sm:$0xf]
  %v341 = vld [vmem:[%s339 + $0x4] sm:$0xf]
  %v342 = vld [vmem:[%s339 + $0x8] sm:$0xf]
  %v343 = vld [vmem:[%s339 + $0xc] sm:$0xf]
  %s344 = scalar_lea.vmem %s1, 128
  %v345 = vld [vmem:[%s344] sm:$0xf]
  %v346 = vld [vmem:[%s344 + $0x4] sm:$0xf]
  %v347 = vld [vmem:[%s344 + $0x8] sm:$0xf]
  %v348 = vld [vmem:[%s344 + $0xc] sm:$0xf]
  %v349 = vld [vmem:[%s344 + $0x10] sm:$0xf]
  %v350 = vld [vmem:[%s344 + $0x14] sm:$0xf]
  %v351 = vld [vmem:[%s344 + $0x18] sm:$0xf]
  %v352 = vld [vmem:[%s344 + $0x1c] sm:$0xf]
  %v353 = vld [vmem:[%s344 + $0x20] sm:$0xf]
  %v354 = vld [vmem:[%s344 + $0x24] sm:$0xf]
  %v355 = vld [vmem:[%s344 + $0x28] sm:$0xf]
  %v356 = vld [vmem:[%s344 + $0x2c] sm:$0xf]
  %v357 = vld [vmem:[%s344 + $0x30] sm:$0xf]
  %v358 = vld [vmem:[%s344 + $0x34] sm:$0xf]
  %v359 = vld [vmem:[%s344 + $0x38] sm:$0xf]
  %v360 = vld [vmem:[%s344 + $0x3c] sm:$0xf]
  %v361 = vld [vmem:[%s2] sm:$0x1]
  %v363 = vlaneseq
  %v364 = vshrl.u32 %v363, 7
  %v365 = vsub.s32 0, %v364
  %v366 = vrot.slane %v361, %v365
  %v372 = vunpack.c.l.b16 %v340
  %v373 = vunpack.c.l.b16 %v341
  %v374 = vunpack.c.l.b16 %v342
  %v375 = vunpack.c.l.b16 %v343
  %v376 = vpack.c.b16 %v373, %v372
  %v377 = vpack.c.b16 %v375, %v374
  %v396 = vunpack.c.l.b16 %v345
  %v397 = vunpack.c.l.b16 %v346
  %v398 = vunpack.c.l.b16 %v347
  %v399 = vunpack.c.l.b16 %v348
  %v400 = vunpack.c.l.b16 %v349
  %v401 = vunpack.c.l.b16 %v350
  %v402 = vunpack.c.l.b16 %v351
  %v403 = vunpack.c.l.b16 %v352
  %v404 = vunpack.c.l.b16 %v353
  %v405 = vunpack.c.l.b16 %v354
  %v406 = vunpack.c.l.b16 %v355
  %v407 = vunpack.c.l.b16 %v356
  %v408 = vunpack.c.l.b16 %v357
  %v409 = vunpack.c.l.b16 %v358
  %v410 = vunpack.c.l.b16 %v359
  %v411 = vunpack.c.l.b16 %v360
  %v412 = vpack.c.b16 %v397, %v396
  %v413 = vpack.c.b16 %v399, %v398
  %v414 = vpack.c.b16 %v401, %v400
  %v415 = vpack.c.b16 %v403, %v402
  %v416 = vpack.c.b16 %v405, %v404
  %v417 = vpack.c.b16 %v407, %v406
  %v418 = vpack.c.b16 %v409, %v408
  %v419 = vpack.c.b16 %v411, %v410
  %428 = vmatprep.subr.bf16.mxu0 0
  %429 = vmatpush1.bf16.msra.mxu0 %v412
  %430 = vmatprep.subr.bf16.mxu0 0
  %431 = vmatpush1.bf16.msra.mxu0 %v413
  %432 = vmatprep.subr.bf16.mxu0 0
  %433 = vmatpush1.bf16.msra.mxu0 %v414
  %434 = vmatprep.subr.bf16.mxu0 0
  %435 = vmatpush1.bf16.msra.mxu0 %v415
  %436 = vmatprep.subr.bf16.mxu0 0
  %437 = vmatpush1.bf16.msra.mxu0 %v416
  %438 = vmatprep.subr.bf16.mxu0 0
  %439 = vmatpush1.bf16.msra.mxu0 %v417
  %440 = vmatprep.subr.bf16.mxu0 0
  %441 = vmatpush1.bf16.msra.mxu0 %v418
  %442 = vmatprep.subr.bf16.mxu0 0
  %443 = vmatpush1.bf16.msra.mxu0 %v419
  %444 = vmatprep.subr.bf16.mxu0 0
  %445 = vmatpush1.bf16.msra.mxu0 0
  %446 = vmatprep.subr.bf16.mxu0 0
  %447 = vmatpush1.bf16.msra.mxu0 0
  %448 = vmatprep.subr.bf16.mxu0 0
  %449 = vmatpush1.bf16.msra.mxu0 0
  %450 = vmatprep.subr.bf16.mxu0 0
  %451 = vmatpush1.bf16.msra.mxu0 0
  %452 = vmatprep.subr.bf16.mxu0 0
  %453 = vmatpush1.bf16.msra.mxu0 0
  %454 = vmatprep.subr.bf16.mxu0 0
  %455 = vmatpush1.bf16.msra.mxu0 0
  %456 = vmatprep.subr.bf16.mxu0 0
  %457 = vmatpush1.bf16.msra.mxu0 0
  %458 = vmatprep.subr.bf16.mxu0 0
  %459 = vmatpush1.bf16.msra.mxu0 0
  %460 = vmatprep.mubr.bf16.mxu0 0
  %461 = vmatmul.mubr.bf16.gmra.mrb[0].mxu0 %v376
  %v462 = vpop.f32.mrb[0].mxu0
  %v463 = vadd.f32 %v366, %v462
  %v464 = vpop.f32.mrb[0].mxu0
  %v465 = vpop.f32.mrb[0].mxu0
  %v466 = vadd.f32 %v366, %v465
  %v467 = vpop.f32.mrb[0].mxu0
  %468 = vmatprep.mubr.bf16.mxu0 0
  %469 = vmatmul.mubr.bf16.gmra.mrb[0].mxu0 %v377
  %v470 = vpop.f32.mrb[0].mxu0
  %v471 = vadd.f32 %v366, %v470
  %v472 = vpop.f32.mrb[0].mxu0
  %v473 = vpop.f32.mrb[0].mxu0
  %v474 = vadd.f32 %v366, %v473
  %v475 = vpop.f32.mrb[0].mxu0
  %476 = vdwg.mxu0
  %v477 = vmax.f32 %v463, 0.0
  %v478 = vmax.f32 %v466, 0.0
  %v479 = vmax.f32 %v471, 0.0
  %v480 = vmax.f32 %v474, 0.0
  %v481 = vpack.c.bf16 %v478, %v477
  %v482 = vpack.c.bf16 %v480, %v479
  %v485 = vunpack.c.l.b16 %v481
  %v486 = vunpack.c.h.b16 %v481
  %v487 = vunpack.c.l.b16 %v482
  %v488 = vunpack.c.h.b16 %v482
  %v489 = vpack.c.b16 %v485, %v485
  %v490 = vpack.c.b16 %v486, %v486
  %v491 = vpack.c.b16 %v487, %v487
  %v492 = vpack.c.b16 %v488, %v488
  %s497 = scalar_lea.vmem %s3, 32
  %498 = vst.msk [vmem:[%s497] sm:$0xf] %vm171, %v489
  %499 = vst.msk [vmem:[%s497 + $0x4] sm:$0xf] %vm171, %v490
  %500 = vst.msk [vmem:[%s497 + $0x8] sm:$0xf] %vm171, %v491
  %501 = vst.msk [vmem:[%s497 + $0xc] sm:$0xf] %vm171, %v492
  %s502 = scalar_lea.vmem %s0, 48
  %v503 = vld [vmem:[%s502] sm:$0xf]
  %v504 = vld [vmem:[%s502 + $0x4] sm:$0xf]
  %v505 = vld [vmem:[%s502 + $0x8] sm:$0xf]
  %v506 = vld [vmem:[%s502 + $0xc] sm:$0xf]
  %s507 = scalar_lea.vmem %s1, 192
  %v508 = vld [vmem:[%s507] sm:$0xf]
  %v509 = vld [vmem:[%s507 + $0x4] sm:$0xf]
  %v510 = vld [vmem:[%s507 + $0x8] sm:$0xf]
  %v511 = vld [vmem:[%s507 + $0xc] sm:$0xf]
  %v512 = vld [vmem:[%s507 + $0x10] sm:$0xf]
  %v513 = vld [vmem:[%s507 + $0x14] sm:$0xf]
  %v514 = vld [vmem:[%s507 + $0x18] sm:$0xf]
  %v515 = vld [vmem:[%s507 + $0x1c] sm:$0xf]
  %v516 = vld [vmem:[%s507 + $0x20] sm:$0xf]
  %v517 = vld [vmem:[%s507 + $0x24] sm:$0xf]
  %v518 = vld [vmem:[%s507 + $0x28] sm:$0xf]
  %v519 = vld [vmem:[%s507 + $0x2c] sm:$0xf]
  %v520 = vld [vmem:[%s507 + $0x30] sm:$0xf]
  %v521 = vld [vmem:[%s507 + $0x34] sm:$0xf]
  %v522 = vld [vmem:[%s507 + $0x38] sm:$0xf]
  %v523 = vld [vmem:[%s507 + $0x3c] sm:$0xf]
  %v524 = vld [vmem:[%s2] sm:$0x1]
  %v526 = vlaneseq
  %v527 = vshrl.u32 %v526, 7
  %v528 = vsub.s32 0, %v527
  %v529 = vrot.slane %v524, %v528
  %v535 = vunpack.c.l.b16 %v503
  %v536 = vunpack.c.l.b16 %v504
  %v537 = vunpack.c.l.b16 %v505
  %v538 = vunpack.c.l.b16 %v506
  %v539 = vpack.c.b16 %v536, %v535
  %v540 = vpack.c.b16 %v538, %v537
  %v559 = vunpack.c.l.b16 %v508
  %v560 = vunpack.c.l.b16 %v509
  %v561 = vunpack.c.l.b16 %v510
  %v562 = vunpack.c.l.b16 %v511
  %v563 = vunpack.c.l.b16 %v512
  %v564 = vunpack.c.l.b16 %v513
  %v565 = vunpack.c.l.b16 %v514
  %v566 = vunpack.c.l.b16 %v515
  %v567 = vunpack.c.l.b16 %v516
  %v568 = vunpack.c.l.b16 %v517
  %v569 = vunpack.c.l.b16 %v518
  %v570 = vunpack.c.l.b16 %v519
  %v571 = vunpack.c.l.b16 %v520
  %v572 = vunpack.c.l.b16 %v521
  %v573 = vunpack.c.l.b16 %v522
  %v574 = vunpack.c.l.b16 %v523
  %v575 = vpack.c.b16 %v560, %v559
  %v576 = vpack.c.b16 %v562, %v561
  %v577 = vpack.c.b16 %v564, %v563
  %v578 = vpack.c.b16 %v566, %v565
  %v579 = vpack.c.b16 %v568, %v567
  %v580 = vpack.c.b16 %v570, %v569
  %v581 = vpack.c.b16 %v572, %v571
  %v582 = vpack.c.b16 %v574, %v573
  %591 = vmatprep.subr.bf16.mxu0 0
  %592 = vmatpush1.bf16.msra.mxu0 %v575
  %593 = vmatprep.subr.bf16.mxu0 0
  %594 = vmatpush1.bf16.msra.mxu0 %v576
  %595 = vmatprep.subr.bf16.mxu0 0
  %596 = vmatpush1.bf16.msra.mxu0 %v577
  %597 = vmatprep.subr.bf16.mxu0 0
  %598 = vmatpush1.bf16.msra.mxu0 %v578
  %599 = vmatprep.subr.bf16.mxu0 0
  %600 = vmatpush1.bf16.msra.mxu0 %v579
  %601 = vmatprep.subr.bf16.mxu0 0
  %602 = vmatpush1.bf16.msra.mxu0 %v580
  %603 = vmatprep.subr.bf16.mxu0 0
  %604 = vmatpush1.bf16.msra.mxu0 %v581
  %605 = vmatprep.subr.bf16.mxu0 0
  %606 = vmatpush1.bf16.msra.mxu0 %v582
  %607 = vmatprep.subr.bf16.mxu0 0
  %608 = vmatpush1.bf16.msra.mxu0 0
  %609 = vmatprep.subr.bf16.mxu0 0
  %610 = vmatpush1.bf16.msra.mxu0 0
  %611 = vmatprep.subr.bf16.mxu0 0
  %612 = vmatpush1.bf16.msra.mxu0 0
  %613 = vmatprep.subr.bf16.mxu0 0
  %614 = vmatpush1.bf16.msra.mxu0 0
  %615 = vmatprep.subr.bf16.mxu0 0
  %616 = vmatpush1.bf16.msra.mxu0 0
  %617 = vmatprep.subr.bf16.mxu0 0
  %618 = vmatpush1.bf16.msra.mxu0 0
  %619 = vmatprep.subr.bf16.mxu0 0
  %620 = vmatpush1.bf16.msra.mxu0 0
  %621 = vmatprep.subr.bf16.mxu0 0
  %622 = vmatpush1.bf16.msra.mxu0 0
  %623 = vmatprep.mubr.bf16.mxu0 0
  %624 = vmatmul.mubr.bf16.gmra.mrb[0].mxu0 %v539
  %v625 = vpop.f32.mrb[0].mxu0
  %v626 = vadd.f32 %v529, %v625
  %v627 = vpop.f32.mrb[0].mxu0
  %v628 = vpop.f32.mrb[0].mxu0
  %v629 = vadd.f32 %v529, %v628
  %v630 = vpop.f32.mrb[0].mxu0
  %631 = vmatprep.mubr.bf16.mxu0 0
  %632 = vmatmul.mubr.bf16.gmra.mrb[0].mxu0 %v540
  %v633 = vpop.f32.mrb[0].mxu0
  %v634 = vadd.f32 %v529, %v633
  %v635 = vpop.f32.mrb[0].mxu0
  %v636 = vpop.f32.mrb[0].mxu0
  %v637 = vadd.f32 %v529, %v636
  %v638 = vpop.f32.mrb[0].mxu0
  %639 = vdwg.mxu0
  %v640 = vmax.f32 %v626, 0.0
  %v641 = vmax.f32 %v629, 0.0
  %v642 = vmax.f32 %v634, 0.0
  %v643 = vmax.f32 %v637, 0.0
  %v644 = vpack.c.bf16 %v641, %v640
  %v645 = vpack.c.bf16 %v643, %v642
  %v648 = vunpack.c.l.b16 %v644
  %v649 = vunpack.c.h.b16 %v644
  %v650 = vunpack.c.l.b16 %v645
  %v651 = vunpack.c.h.b16 %v645
  %v652 = vpack.c.b16 %v648, %v648
  %v653 = vpack.c.b16 %v649, %v649
  %v654 = vpack.c.b16 %v650, %v650
  %v655 = vpack.c.b16 %v651, %v651
  %s660 = scalar_lea.vmem %s3, 48
  %661 = vst.msk [vmem:[%s660] sm:$0xf] %vm171, %v652
  %662 = vst.msk [vmem:[%s660 + $0x4] sm:$0xf] %vm171, %v653
  %663 = vst.msk [vmem:[%s660 + $0x8] sm:$0xf] %vm171, %v654
  %664 = vst.msk [vmem:[%s660 + $0xc] sm:$0xf] %vm171, %v655
  // Predicated region
  $region14: #{vae_forward.13} parent=0 // pred_check
    _
  $region15: #{vae_forward.13} parent=0 // pred_check_branch
    %666 = sbr.rel (0) target = $region17
  $region16: #{vae_forward.13} parent=0 // pred_region
    _
  $region17: #{vae_forward.13} parent=0 // pred_fallthru
    _
  // Predicated region
  $region18: #{vae_forward.13} parent=0 // pred_check
    _
  $region19: #{vae_forward.13} parent=0 // pred_check_branch
    %668 = sbr.rel (0) target = $region21
  $region20: #{vae_forward.13} parent=0 // pred_region
    _
  $region21: #{vae_forward.13} parent=0 // pred_fallthru
    _

// kernel: vae_forward.14
$region0: #{vae_forward.14}
  #allocation0 [shape = 'u32[]', space=smem, size = 0x4, offset = 0x4, fixed_abs, tag = 'smem constant byte address 0x4 - core index']
  #allocation1 [shape = 'u32[144,128]{1,0:T(1,128)}', space=vmem, size = 0x12000, scoped, tag = 'internal scratch']
  %s0 = inlined_call_operand.vmem [shape: bf16[4,128,128], index: 0, kind: input, shape index: {}]
  %s1 = inlined_call_operand.vmem [shape: bf16[4,128,32], index: 1, kind: input, shape index: {}]
  %s2 = inlined_call_operand.vmem [shape: f32[1,32], index: 2, kind: input, shape index: {}]
  %s3 = inlined_call_operand.vmem [shape: bf16[4,128,32], index: 3, kind: output, shape index: {}]
  %s4 = sld [smem:[#allocation0]]
  $region22: #{vae_forward.14} parent=0
    _
  %s6 = ssub.s32 1, %s4
  %s7 = scalar_select 0, %s6, %s4
  // Predicated region
  $region2: #{vae_forward.14} parent=0 // pred_check
    _
  $region3: #{vae_forward.14} parent=0 // pred_check_branch
    %9 = sbr.rel (0) target = $region5
  $region4: #{vae_forward.14} parent=0 // pred_region
    _
  $region5: #{vae_forward.14} parent=0 // pred_fallthru
    _
  // Predicated region
  $region6: #{vae_forward.14} parent=0 // pred_check
    _
  $region7: #{vae_forward.14} parent=0 // pred_check_branch
    %11 = sbr.rel (0) target = $region9
  $region8: #{vae_forward.14} parent=0 // pred_region
    _
  $region9: #{vae_forward.14} parent=0 // pred_fallthru
    _
  // Predicated region
  $region10: #{vae_forward.14} parent=0 // pred_check
    _
  $region11: #{vae_forward.14} parent=0 // pred_check_branch
    %13 = sbr.rel (0) target = $region13
  $region12: #{vae_forward.14} parent=0 // pred_region
    _
  $region13: #{vae_forward.14} parent=0 // pred_fallthru
    _
  %v15 = vld [vmem:[%s0] sm:$0xf]
  %v16 = vld [vmem:[%s0 + $0x4] sm:$0xf]
  %v17 = vld [vmem:[%s0 + $0x8] sm:$0xf]
  %v18 = vld [vmem:[%s0 + $0xc] sm:$0xf]
  %v19 = vld [vmem:[%s0 + $0x10] sm:$0xf]
  %v20 = vld [vmem:[%s0 + $0x14] sm:$0xf]
  %v21 = vld [vmem:[%s0 + $0x18] sm:$0xf]
  %v22 = vld [vmem:[%s0 + $0x1c] sm:$0xf]
  %v23 = vld [vmem:[%s0 + $0x20] sm:$0xf]
  %v24 = vld [vmem:[%s0 + $0x24] sm:$0xf]
  %v25 = vld [vmem:[%s0 + $0x28] sm:$0xf]
  %v26 = vld [vmem:[%s0 + $0x2c] sm:$0xf]
  %v27 = vld [vmem:[%s0 + $0x30] sm:$0xf]
  %v28 = vld [vmem:[%s0 + $0x34] sm:$0xf]
  %v29 = vld [vmem:[%s0 + $0x38] sm:$0xf]
  %v30 = vld [vmem:[%s0 + $0x3c] sm:$0xf]
  %v31 = vld [vmem:[%s1] sm:$0xf]
  %v32 = vld [vmem:[%s1 + $0x4] sm:$0xf]
  %v33 = vld [vmem:[%s1 + $0x8] sm:$0xf]
  %v34 = vld [vmem:[%s1 + $0xc] sm:$0xf]
  %v35 = vld [vmem:[%s1 + $0x10] sm:$0xf]
  %v36 = vld [vmem:[%s1 + $0x14] sm:$0xf]
  %v37 = vld [vmem:[%s1 + $0x18] sm:$0xf]
  %v38 = vld [vmem:[%s1 + $0x1c] sm:$0xf]
  %v39 = vld [vmem:[%s1 + $0x20] sm:$0xf]
  %v40 = vld [vmem:[%s1 + $0x24] sm:$0xf]
  %v41 = vld [vmem:[%s1 + $0x28] sm:$0xf]
  %v42 = vld [vmem:[%s1 + $0x2c] sm:$0xf]
  %v43 = vld [vmem:[%s1 + $0x30] sm:$0xf]
  %v44 = vld [vmem:[%s1 + $0x34] sm:$0xf]
  %v45 = vld [vmem:[%s1 + $0x38] sm:$0xf]
  %v46 = vld [vmem:[%s1 + $0x3c] sm:$0xf]
  %v47 = vld [vmem:[%s2] sm:$0x1]
  %v49 = vlaneseq
  %v50 = vshrl.u32 %v49, 7
  %v51 = vsub.s32 0, %v50
  %v52 = vrot.slane %v47, %v51
  %v70 = vunpack.c.l.b16 %v15
  %v71 = vunpack.c.l.b16 %v16
  %v72 = vunpack.c.l.b16 %v17
  %v73 = vunpack.c.l.b16 %v18
  %v74 = vunpack.c.l.b16 %v19
  %v75 = vunpack.c.l.b16 %v20
  %v76 = vunpack.c.l.b16 %v21
  %v77 = vunpack.c.l.b16 %v22
  %v78 = vunpack.c.l.b16 %v23
  %v79 = vunpack.c.l.b16 %v24
  %v80 = vunpack.c.l.b16 %v25
  %v81 = vunpack.c.l.b16 %v26
  %v82 = vunpack.c.l.b16 %v27
  %v83 = vunpack.c.l.b16 %v28
  %v84 = vunpack.c.l.b16 %v29
  %v85 = vunpack.c.l.b16 %v30
  %v86 = vpack.c.b16 %v71, %v70
  %v87 = vpack.c.b16 %v73, %v72
  %v88 = vpack.c.b16 %v75, %v74
  %v89 = vpack.c.b16 %v77, %v76
  %v90 = vpack.c.b16 %v79, %v78
  %v91 = vpack.c.b16 %v81, %v80
  %v92 = vpack.c.b16 %v83, %v82
  %v93 = vpack.c.b16 %v85, %v84
  %v118 = vunpack.c.l.b16 %v31
  %v119 = vunpack.c.l.b16 %v32
  %v120 = vunpack.c.l.b16 %v33
  %v121 = vunpack.c.l.b16 %v34
  %v122 = vunpack.c.l.b16 %v35
  %v123 = vunpack.c.l.b16 %v36
  %v124 = vunpack.c.l.b16 %v37
  %v125 = vunpack.c.l.b16 %v38
  %v126 = vunpack.c.l.b16 %v39
  %v127 = vunpack.c.l.b16 %v40
  %v128 = vunpack.c.l.b16 %v41
  %v129 = vunpack.c.l.b16 %v42
  %v130 = vunpack.c.l.b16 %v43
  %v131 = vunpack.c.l.b16 %v44
  %v132 = vunpack.c.l.b16 %v45
  %v133 = vunpack.c.l.b16 %v46
  %v134 = vpack.c.b16 %v119, %v118
  %v135 = vpack.c.b16 %v121, %v120
  %v136 = vpack.c.b16 %v123, %v122
  %v137 = vpack.c.b16 %v125, %v124
  %v138 = vpack.c.b16 %v127, %v126
  %v139 = vpack.c.b16 %v129, %v128
  %v140 = vpack.c.b16 %v131, %v130
  %v141 = vpack.c.b16 %v133, %v132
  %150 = vmatprep.subr.bf16.mxu0 0
  %151 = vmatpush1.bf16.msra.mxu0 %v134
  %152 = vmatprep.subr.bf16.mxu0 0
  %153 = vmatpush1.bf16.msra.mxu0 %v135
  %154 = vmatprep.subr.bf16.mxu0 0
  %155 = vmatpush1.bf16.msra.mxu0 %v136
  %156 = vmatprep.subr.bf16.mxu0 0
  %157 = vmatpush1.bf16.msra.mxu0 %v137
  %158 = vmatprep.subr.bf16.mxu0 0
  %159 = vmatpush1.bf16.msra.mxu0 %v138
  %160 = vmatprep.subr.bf16.mxu0 0
  %161 = vmatpush1.bf16.msra.mxu0 %v139
  %162 = vmatprep.subr.bf16.mxu0 0
  %163 = vmatpush1.bf16.msra.mxu0 %v140
  %164 = vmatprep.subr.bf16.mxu0 0
  %165 = vmatpush1.bf16.msra.mxu0 %v141
  %166 = vmatprep.subr.bf16.mxu0 0
  %167 = vmatpush1.bf16.msra.mxu0 0
  %168 = vmatprep.subr.bf16.mxu0 0
  %169 = vmatpush1.bf16.msra.mxu0 0
  %170 = vmatprep.subr.bf16.mxu0 0
  %171 = vmatpush1.bf16.msra.mxu0 0
  %172 = vmatprep.subr.bf16.mxu0 0
  %173 = vmatpush1.bf16.msra.mxu0 0
  %174 = vmatprep.subr.bf16.mxu0 0
  %175 = vmatpush1.bf16.msra.mxu0 0
  %176 = vmatprep.subr.bf16.mxu0 0
  %177 = vmatpush1.bf16.msra.mxu0 0
  %178 = vmatprep.subr.bf16.mxu0 0
  %179 = vmatpush1.bf16.msra.mxu0 0
  %180 = vmatprep.subr.bf16.mxu0 0
  %181 = vmatpush1.bf16.msra.mxu0 0
  %182 = vmatprep.mubr.bf16.mxu0 0
  %183 = vmatmul.mubr.bf16.gmra.mrb[0].mxu0 %v86
  %v184 = vpop.f32.mrb[0].mxu0
  %v185 = vadd.f32 %v52, %v184
  %v186 = vpop.f32.mrb[0].mxu0
  %v187 = vpop.f32.mrb[0].mxu0
  %v188 = vadd.f32 %v52, %v187
  %v189 = vpop.f32.mrb[0].mxu0
  %190 = vmatprep.mubr.bf16.mxu0 0
  %191 = vmatmul.mubr.bf16.gmra.mrb[0].mxu0 %v87
  %v192 = vpop.f32.mrb[0].mxu0
  %v193 = vadd.f32 %v52, %v192
  %v194 = vpop.f32.mrb[0].mxu0
  %v195 = vpop.f32.mrb[0].mxu0
  %v196 = vadd.f32 %v52, %v195
  %v197 = vpop.f32.mrb[0].mxu0
  %198 = vmatprep.mubr.bf16.mxu0 0
  %199 = vmatmul.mubr.bf16.gmra.mrb[0].mxu0 %v88
  %v200 = vpop.f32.mrb[0].mxu0
  %v201 = vadd.f32 %v52, %v200
  %v202 = vpop.f32.mrb[0].mxu0
  %v203 = vpop.f32.mrb[0].mxu0
  %v204 = vadd.f32 %v52, %v203
  %v205 = vpop.f32.mrb[0].mxu0
  %206 = vmatprep.mubr.bf16.mxu0 0
  %207 = vmatmul.mubr.bf16.gmra.mrb[0].mxu0 %v89
  %v208 = vpop.f32.mrb[0].mxu0
  %v209 = vadd.f32 %v52, %v208
  %v210 = vpop.f32.mrb[0].mxu0
  %v211 = vpop.f32.mrb[0].mxu0
  %v212 = vadd.f32 %v52, %v211
  %v213 = vpop.f32.mrb[0].mxu0
  %214 = vmatprep.mubr.bf16.mxu0 0
  %215 = vmatmul.mubr.bf16.gmra.mrb[0].mxu0 %v90
  %v216 = vpop.f32.mrb[0].mxu0
  %v217 = vadd.f32 %v52, %v216
  %v218 = vpop.f32.mrb[0].mxu0
  %v219 = vpop.f32.mrb[0].mxu0
  %v220 = vadd.f32 %v52, %v219
  %v221 = vpop.f32.mrb[0].mxu0
  %222 = vmatprep.mubr.bf16.mxu0 0
  %223 = vmatmul.mubr.bf16.gmra.mrb[0].mxu0 %v91
  %v224 = vpop.f32.mrb[0].mxu0
  %v225 = vadd.f32 %v52, %v224
  %v226 = vpop.f32.mrb[0].mxu0
  %v227 = vpop.f32.mrb[0].mxu0
  %v228 = vadd.f32 %v52, %v227
  %v229 = vpop.f32.mrb[0].mxu0
  %230 = vmatprep.mubr.bf16.mxu0 0
  %231 = vmatmul.mubr.bf16.gmra.mrb[0].mxu0 %v92
  %v232 = vpop.f32.mrb[0].mxu0
  %v233 = vadd.f32 %v52, %v232
  %v234 = vpop.f32.mrb[0].mxu0
  %v235 = vpop.f32.mrb[0].mxu0
  %v236 = vadd.f32 %v52, %v235
  %v237 = vpop.f32.mrb[0].mxu0
  %238 = vmatprep.mubr.bf16.mxu0 0
  %239 = vmatmul.mubr.bf16.gmra.mrb[0].mxu0 %v93
  %v240 = vpop.f32.mrb[0].mxu0
  %v241 = vadd.f32 %v52, %v240
  %v242 = vpop.f32.mrb[0].mxu0
  %v243 = vpop.f32.mrb[0].mxu0
  %v244 = vadd.f32 %v52, %v243
  %v245 = vpop.f32.mrb[0].mxu0
  %246 = vdwg.mxu0
  %v247 = vmax.f32 %v185, 0.0
  %v248 = vmax.f32 %v188, 0.0
  %v249 = vmax.f32 %v193, 0.0
  %v250 = vmax.f32 %v196, 0.0
  %v251 = vmax.f32 %v201, 0.0
  %v252 = vmax.f32 %v204, 0.0
  %v253 = vmax.f32 %v209, 0.0
  %v254 = vmax.f32 %v212, 0.0
  %v255 = vmax.f32 %v217, 0.0
  %v256 = vmax.f32 %v220, 0.0
  %v257 = vmax.f32 %v225, 0.0
  %v258 = vmax.f32 %v228, 0.0
  %v259 = vmax.f32 %v233, 0.0
  %v260 = vmax.f32 %v236, 0.0
  %v261 = vmax.f32 %v241, 0.0
  %v262 = vmax.f32 %v244, 0.0
  %v263 = vpack.c.bf16 %v248, %v247
  %v264 = vpack.c.bf16 %v250, %v249
  %v265 = vpack.c.bf16 %v252, %v251
  %v266 = vpack.c.bf16 %v254, %v253
  %v267 = vpack.c.bf16 %v256, %v255
  %v268 = vpack.c.bf16 %v258, %v257
  %v269 = vpack.c.bf16 %v260, %v259
  %v270 = vpack.c.bf16 %v262, %v261
  %v279 = vunpack.c.l.b16 %v263
  %v280 = vunpack.c.h.b16 %v263
  %v281 = vunpack.c.l.b16 %v264
  %v282 = vunpack.c.h.b16 %v264
  %v283 = vunpack.c.l.b16 %v265
  %v284 = vunpack.c.h.b16 %v265
  %v285 = vunpack.c.l.b16 %v266
  %v286 = vunpack.c.h.b16 %v266
  %v287 = vunpack.c.l.b16 %v267
  %v288 = vunpack.c.h.b16 %v267
  %v289 = vunpack.c.l.b16 %v268
  %v290 = vunpack.c.h.b16 %v268
  %v291 = vunpack.c.l.b16 %v269
  %v292 = vunpack.c.h.b16 %v269
  %v293 = vunpack.c.l.b16 %v270
  %v294 = vunpack.c.h.b16 %v270
  %v295 = vpack.c.b16 %v279, %v279
  %v296 = vpack.c.b16 %v280, %v280
  %v297 = vpack.c.b16 %v281, %v281
  %v298 = vpack.c.b16 %v282, %v282
  %v299 = vpack.c.b16 %v283, %v283
  %v300 = vpack.c.b16 %v284, %v284
  %v301 = vpack.c.b16 %v285, %v285
  %v302 = vpack.c.b16 %v286, %v286
  %v303 = vpack.c.b16 %v287, %v287
  %v304 = vpack.c.b16 %v288, %v288
  %v305 = vpack.c.b16 %v289, %v289
  %v306 = vpack.c.b16 %v290, %v290
  %v307 = vpack.c.b16 %v291, %v291
  %v308 = vpack.c.b16 %v292, %v292
  %v309 = vpack.c.b16 %v293, %v293
  %v310 = vpack.c.b16 %v294, %v294
  %vm327 = vcmask 257024
  %328 = vst.msk [vmem:[%s3] sm:$0xf] %vm327, %v295
  %329 = vst.msk [vmem:[%s3 + $0x4] sm:$0xf] %vm327, %v296
  %330 = vst.msk [vmem:[%s3 + $0x8] sm:$0xf] %vm327, %v297
  %331 = vst.msk [vmem:[%s3 + $0xc] sm:$0xf] %vm327, %v298
  %332 = vst.msk [vmem:[%s3 + $0x10] sm:$0xf] %vm327, %v299
  %333 = vst.msk [vmem:[%s3 + $0x14] sm:$0xf] %vm327, %v300
  %334 = vst.msk [vmem:[%s3 + $0x18] sm:$0xf] %vm327, %v301
  %335 = vst.msk [vmem:[%s3 + $0x1c] sm:$0xf] %vm327, %v302
  %336 = vst.msk [vmem:[%s3 + $0x20] sm:$0xf] %vm327, %v303
  %337 = vst.msk [vmem:[%s3 + $0x24] sm:$0xf] %vm327, %v304
  %338 = vst.msk [vmem:[%s3 + $0x28] sm:$0xf] %vm327, %v305
  %339 = vst.msk [vmem:[%s3 + $0x2c] sm:$0xf] %vm327, %v306
  %340 = vst.msk [vmem:[%s3 + $0x30] sm:$0xf] %vm327, %v307
  %341 = vst.msk [vmem:[%s3 + $0x34] sm:$0xf] %vm327, %v308
  %342 = vst.msk [vmem:[%s3 + $0x38] sm:$0xf] %vm327, %v309
  %343 = vst.msk [vmem:[%s3 + $0x3c] sm:$0xf] %vm327, %v310
  %s344 = scalar_lea.vmem %s0, 64
  %v345 = vld [vmem:[%s344] sm:$0xf]
  %v346 = vld [vmem:[%s344 + $0x4] sm:$0xf]
  %v347 = vld [vmem:[%s344 + $0x8] sm:$0xf]
  %v348 = vld [vmem:[%s344 + $0xc] sm:$0xf]
  %v349 = vld [vmem:[%s344 + $0x10] sm:$0xf]
  %v350 = vld [vmem:[%s344 + $0x14] sm:$0xf]
  %v351 = vld [vmem:[%s344 + $0x18] sm:$0xf]
  %v352 = vld [vmem:[%s344 + $0x1c] sm:$0xf]
  %v353 = vld [vmem:[%s344 + $0x20] sm:$0xf]
  %v354 = vld [vmem:[%s344 + $0x24] sm:$0xf]
  %v355 = vld [vmem:[%s344 + $0x28] sm:$0xf]
  %v356 = vld [vmem:[%s344 + $0x2c] sm:$0xf]
  %v357 = vld [vmem:[%s344 + $0x30] sm:$0xf]
  %v358 = vld [vmem:[%s344 + $0x34] sm:$0xf]
  %v359 = vld [vmem:[%s344 + $0x38] sm:$0xf]
  %v360 = vld [vmem:[%s344 + $0x3c] sm:$0xf]
  %s361 = scalar_lea.vmem %s1, 64
  %v362 = vld [vmem:[%s361] sm:$0xf]
  %v363 = vld [vmem:[%s361 + $0x4] sm:$0xf]
  %v364 = vld [vmem:[%s361 + $0x8] sm:$0xf]
  %v365 = vld [vmem:[%s361 + $0xc] sm:$0xf]
  %v366 = vld [vmem:[%s361 + $0x10] sm:$0xf]
  %v367 = vld [vmem:[%s361 + $0x14] sm:$0xf]
  %v368 = vld [vmem:[%s361 + $0x18] sm:$0xf]
  %v369 = vld [vmem:[%s361 + $0x1c] sm:$0xf]
  %v370 = vld [vmem:[%s361 + $0x20] sm:$0xf]
  %v371 = vld [vmem:[%s361 + $0x24] sm:$0xf]
  %v372 = vld [vmem:[%s361 + $0x28] sm:$0xf]
  %v373 = vld [vmem:[%s361 + $0x2c] sm:$0xf]
  %v374 = vld [vmem:[%s361 + $0x30] sm:$0xf]
  %v375 = vld [vmem:[%s361 + $0x34] sm:$0xf]
  %v376 = vld [vmem:[%s361 + $0x38] sm:$0xf]
  %v377 = vld [vmem:[%s361 + $0x3c] sm:$0xf]
  %v378 = vld [vmem:[%s2] sm:$0x1]
  %v380 = vlaneseq
  %v381 = vshrl.u32 %v380, 7
  %v382 = vsub.s32 0, %v381
  %v383 = vrot.slane %v378, %v382
  %v401 = vunpack.c.l.b16 %v345
  %v402 = vunpack.c.l.b16 %v346
  %v403 = vunpack.c.l.b16 %v347
  %v404 = vunpack.c.l.b16 %v348
  %v405 = vunpack.c.l.b16 %v349
  %v406 = vunpack.c.l.b16 %v350
  %v407 = vunpack.c.l.b16 %v351
  %v408 = vunpack.c.l.b16 %v352
  %v409 = vunpack.c.l.b16 %v353
  %v410 = vunpack.c.l.b16 %v354
  %v411 = vunpack.c.l.b16 %v355
  %v412 = vunpack.c.l.b16 %v356
  %v413 = vunpack.c.l.b16 %v357
  %v414 = vunpack.c.l.b16 %v358
  %v415 = vunpack.c.l.b16 %v359
  %v416 = vunpack.c.l.b16 %v360
  %v417 = vpack.c.b16 %v402, %v401
  %v418 = vpack.c.b16 %v404, %v403
  %v419 = vpack.c.b16 %v406, %v405
  %v420 = vpack.c.b16 %v408, %v407
  %v421 = vpack.c.b16 %v410, %v409
  %v422 = vpack.c.b16 %v412, %v411
  %v423 = vpack.c.b16 %v414, %v413
  %v424 = vpack.c.b16 %v416, %v415
  %v449 = vunpack.c.l.b16 %v362
  %v450 = vunpack.c.l.b16 %v363
  %v451 = vunpack.c.l.b16 %v364
  %v452 = vunpack.c.l.b16 %v365
  %v453 = vunpack.c.l.b16 %v366
  %v454 = vunpack.c.l.b16 %v367
  %v455 = vunpack.c.l.b16 %v368
  %v456 = vunpack.c.l.b16 %v369
  %v457 = vunpack.c.l.b16 %v370
  %v458 = vunpack.c.l.b16 %v371
  %v459 = vunpack.c.l.b16 %v372
  %v460 = vunpack.c.l.b16 %v373
  %v461 = vunpack.c.l.b16 %v374
  %v462 = vunpack.c.l.b16 %v375
  %v463 = vunpack.c.l.b16 %v376
  %v464 = vunpack.c.l.b16 %v377
  %v465 = vpack.c.b16 %v450, %v449
  %v466 = vpack.c.b16 %v452, %v451
  %v467 = vpack.c.b16 %v454, %v453
  %v468 = vpack.c.b16 %v456, %v455
  %v469 = vpack.c.b16 %v458, %v457
  %v470 = vpack.c.b16 %v460, %v459
  %v471 = vpack.c.b16 %v462, %v461
  %v472 = vpack.c.b16 %v464, %v463
  %481 = vmatprep.subr.bf16.mxu0 0
  %482 = vmatpush1.bf16.msra.mxu0 %v465
  %483 = vmatprep.subr.bf16.mxu0 0
  %484 = vmatpush1.bf16.msra.mxu0 %v466
  %485 = vmatprep.subr.bf16.mxu0 0
  %486 = vmatpush1.bf16.msra.mxu0 %v467
  %487 = vmatprep.subr.bf16.mxu0 0
  %488 = vmatpush1.bf16.msra.mxu0 %v468
  %489 = vmatprep.subr.bf16.mxu0 0
  %490 = vmatpush1.bf16.msra.mxu0 %v469
  %491 = vmatprep.subr.bf16.mxu0 0
  %492 = vmatpush1.bf16.msra.mxu0 %v470
  %493 = vmatprep.subr.bf16.mxu0 0
  %494 = vmatpush1.bf16.msra.mxu0 %v471
  %495 = vmatprep.subr.bf16.mxu0 0
  %496 = vmatpush1.bf16.msra.mxu0 %v472
  %497 = vmatprep.subr.bf16.mxu0 0
  %498 = vmatpush1.bf16.msra.mxu0 0
  %499 = vmatprep.subr.bf16.mxu0 0
  %500 = vmatpush1.bf16.msra.mxu0 0
  %501 = vmatprep.subr.bf16.mxu0 0
  %502 = vmatpush1.bf16.msra.mxu0 0
  %503 = vmatprep.subr.bf16.mxu0 0
  %504 = vmatpush1.bf16.msra.mxu0 0
  %505 = vmatprep.subr.bf16.mxu0 0
  %506 = vmatpush1.bf16.msra.mxu0 0
  %507 = vmatprep.subr.bf16.mxu0 0
  %508 = vmatpush1.bf16.msra.mxu0 0
  %509 = vmatprep.subr.bf16.mxu0 0
  %510 = vmatpush1.bf16.msra.mxu0 0
  %511 = vmatprep.subr.bf16.mxu0 0
  %512 = vmatpush1.bf16.msra.mxu0 0
  %513 = vmatprep.mubr.bf16.mxu0 0
  %514 = vmatmul.mubr.bf16.gmra.mrb[0].mxu0 %v417
  %v515 = vpop.f32.mrb[0].mxu0
  %v516 = vadd.f32 %v383, %v515
  %v517 = vpop.f32.mrb[0].mxu0
  %v518 = vpop.f32.mrb[0].mxu0
  %v519 = vadd.f32 %v383, %v518
  %v520 = vpop.f32.mrb[0].mxu0
  %521 = vmatprep.mubr.bf16.mxu0 0
  %522 = vmatmul.mubr.bf16.gmra.mrb[0].mxu0 %v418
  %v523 = vpop.f32.mrb[0].mxu0
  %v524 = vadd.f32 %v383, %v523
  %v525 = vpop.f32.mrb[0].mxu0
  %v526 = vpop.f32.mrb[0].mxu0
  %v527 = vadd.f32 %v383, %v526
  %v528 = vpop.f32.mrb[0].mxu0
  %529 = vmatprep.mubr.bf16.mxu0 0
  %530 = vmatmul.mubr.bf16.gmra.mrb[0].mxu0 %v419
  %v531 = vpop.f32.mrb[0].mxu0
  %v532 = vadd.f32 %v383, %v531
  %v533 = vpop.f32.mrb[0].mxu0
  %v534 = vpop.f32.mrb[0].mxu0
  %v535 = vadd.f32 %v383, %v534
  %v536 = vpop.f32.mrb[0].mxu0
  %537 = vmatprep.mubr.bf16.mxu0 0
  %538 = vmatmul.mubr.bf16.gmra.mrb[0].mxu0 %v420
  %v539 = vpop.f32.mrb[0].mxu0
  %v540 = vadd.f32 %v383, %v539
  %v541 = vpop.f32.mrb[0].mxu0
  %v542 = vpop.f32.mrb[0].mxu0
  %v543 = vadd.f32 %v383, %v542
  %v544 = vpop.f32.mrb[0].mxu0
  %545 = vmatprep.mubr.bf16.mxu0 0
  %546 = vmatmul.mubr.bf16.gmra.mrb[0].mxu0 %v421
  %v547 = vpop.f32.mrb[0].mxu0
  %v548 = vadd.f32 %v383, %v547
  %v549 = vpop.f32.mrb[0].mxu0
  %v550 = vpop.f32.mrb[0].mxu0
  %v551 = vadd.f32 %v383, %v550
  %v552 = vpop.f32.mrb[0].mxu0
  %553 = vmatprep.mubr.bf16.mxu0 0
  %554 = vmatmul.mubr.bf16.gmra.mrb[0].mxu0 %v422
  %v555 = vpop.f32.mrb[0].mxu0
  %v556 = vadd.f32 %v383, %v555
  %v557 = vpop.f32.mrb[0].mxu0
  %v558 = vpop.f32.mrb[0].mxu0
  %v559 = vadd.f32 %v383, %v558
  %v560 = vpop.f32.mrb[0].mxu0
  %561 = vmatprep.mubr.bf16.mxu0 0
  %562 = vmatmul.mubr.bf16.gmra.mrb[0].mxu0 %v423
  %v563 = vpop.f32.mrb[0].mxu0
  %v564 = vadd.f32 %v383, %v563
  %v565 = vpop.f32.mrb[0].mxu0
  %v566 = vpop.f32.mrb[0].mxu0
  %v567 = vadd.f32 %v383, %v566
  %v568 = vpop.f32.mrb[0].mxu0
  %569 = vmatprep.mubr.bf16.mxu0 0
  %570 = vmatmul.mubr.bf16.gmra.mrb[0].mxu0 %v424
  %v571 = vpop.f32.mrb[0].mxu0
  %v572 = vadd.f32 %v383, %v571
  %v573 = vpop.f32.mrb[0].mxu0
  %v574 = vpop.f32.mrb[0].mxu0
  %v575 = vadd.f32 %v383, %v574
  %v576 = vpop.f32.mrb[0].mxu0
  %577 = vdwg.mxu0
  %v578 = vmax.f32 %v516, 0.0
  %v579 = vmax.f32 %v519, 0.0
  %v580 = vmax.f32 %v524, 0.0
  %v581 = vmax.f32 %v527, 0.0
  %v582 = vmax.f32 %v532, 0.0
  %v583 = vmax.f32 %v535, 0.0
  %v584 = vmax.f32 %v540, 0.0
  %v585 = vmax.f32 %v543, 0.0
  %v586 = vmax.f32 %v548, 0.0
  %v587 = vmax.f32 %v551, 0.0
  %v588 = vmax.f32 %v556, 0.0
  %v589 = vmax.f32 %v559, 0.0
  %v590 = vmax.f32 %v564, 0.0
  %v591 = vmax.f32 %v567, 0.0
  %v592 = vmax.f32 %v572, 0.0
  %v593 = vmax.f32 %v575, 0.0
  %v594 = vpack.c.bf16 %v579, %v578
  %v595 = vpack.c.bf16 %v581, %v580
  %v596 = vpack.c.bf16 %v583, %v582
  %v597 = vpack.c.bf16 %v585, %v584
  %v598 = vpack.c.bf16 %v587, %v586
  %v599 = vpack.c.bf16 %v589, %v588
  %v600 = vpack.c.bf16 %v591, %v590
  %v601 = vpack.c.bf16 %v593, %v592
  %v610 = vunpack.c.l.b16 %v594
  %v611 = vunpack.c.h.b16 %v594
  %v612 = vunpack.c.l.b16 %v595
  %v613 = vunpack.c.h.b16 %v595
  %v614 = vunpack.c.l.b16 %v596
  %v615 = vunpack.c.h.b16 %v596
  %v616 = vunpack.c.l.b16 %v597
  %v617 = vunpack.c.h.b16 %v597
  %v618 = vunpack.c.l.b16 %v598
  %v619 = vunpack.c.h.b16 %v598
  %v620 = vunpack.c.l.b16 %v599
  %v621 = vunpack.c.h.b16 %v599
  %v622 = vunpack.c.l.b16 %v600
  %v623 = vunpack.c.h.b16 %v600
  %v624 = vunpack.c.l.b16 %v601
  %v625 = vunpack.c.h.b16 %v601
  %v626 = vpack.c.b16 %v610, %v610
  %v627 = vpack.c.b16 %v611, %v611
  %v628 = vpack.c.b16 %v612, %v612
  %v629 = vpack.c.b16 %v613, %v613
  %v630 = vpack.c.b16 %v614, %v614
  %v631 = vpack.c.b16 %v615, %v615
  %v632 = vpack.c.b16 %v616, %v616
  %v633 = vpack.c.b16 %v617, %v617
  %v634 = vpack.c.b16 %v618, %v618
  %v635 = vpack.c.b16 %v619, %v619
  %v636 = vpack.c.b16 %v620, %v620
  %v637 = vpack.c.b16 %v621, %v621
  %v638 = vpack.c.b16 %v622, %v622
  %v639 = vpack.c.b16 %v623, %v623
  %v640 = vpack.c.b16 %v624, %v624
  %v641 = vpack.c.b16 %v625, %v625
  %s658 = scalar_lea.vmem %s3, 64
  %659 = vst.msk [vmem:[%s658] sm:$0xf] %vm327, %v626
  %660 = vst.msk [vmem:[%s658 + $0x4] sm:$0xf] %vm327, %v627
  %661 = vst.msk [vmem:[%s658 + $0x8] sm:$0xf] %vm327, %v628
  %662 = vst.msk [vmem:[%s658 + $0xc] sm:$0xf] %vm327, %v629
  %663 = vst.msk [vmem:[%s658 + $0x10] sm:$0xf] %vm327, %v630
  %664 = vst.msk [vmem:[%s658 + $0x14] sm:$0xf] %vm327, %v631
  %665 = vst.msk [vmem:[%s658 + $0x18] sm:$0xf] %vm327, %v632
  %666 = vst.msk [vmem:[%s658 + $0x1c] sm:$0xf] %vm327, %v633
  %667 = vst.msk [vmem:[%s658 + $0x20] sm:$0xf] %vm327, %v634
  %668 = vst.msk [vmem:[%s658 + $0x24] sm:$0xf] %vm327, %v635
  %669 = vst.msk [vmem:[%s658 + $0x28] sm:$0xf] %vm327, %v636
  %670 = vst.msk [vmem:[%s658 + $0x2c] sm:$0xf] %vm327, %v637
  %671 = vst.msk [vmem:[%s658 + $0x30] sm:$0xf] %vm327, %v638
  %672 = vst.msk [vmem:[%s658 + $0x34] sm:$0xf] %vm327, %v639
  %673 = vst.msk [vmem:[%s658 + $0x38] sm:$0xf] %vm327, %v640
  %674 = vst.msk [vmem:[%s658 + $0x3c] sm:$0xf] %vm327, %v641
  %s675 = scalar_lea.vmem %s0, 128
  %v676 = vld [vmem:[%s675] sm:$0xf]
  %v677 = vld [vmem:[%s675 + $0x4] sm:$0xf]
  %v678 = vld [vmem:[%s675 + $0x8] sm:$0xf]
  %v679 = vld [vmem:[%s675 + $0xc] sm:$0xf]
  %v680 = vld [vmem:[%s675 + $0x10] sm:$0xf]
  %v681 = vld [vmem:[%s675 + $0x14] sm:$0xf]
  %v682 = vld [vmem:[%s675 + $0x18] sm:$0xf]
  %v683 = vld [vmem:[%s675 + $0x1c] sm:$0xf]
  %v684 = vld [vmem:[%s675 + $0x20] sm:$0xf]
  %v685 = vld [vmem:[%s675 + $0x24] sm:$0xf]
  %v686 = vld [vmem:[%s675 + $0x28] sm:$0xf]
  %v687 = vld [vmem:[%s675 + $0x2c] sm:$0xf]
  %v688 = vld [vmem:[%s675 + $0x30] sm:$0xf]
  %v689 = vld [vmem:[%s675 + $0x34] sm:$0xf]
  %v690 = vld [vmem:[%s675 + $0x38] sm:$0xf]
  %v691 = vld [vmem:[%s675 + $0x3c] sm:$0xf]
  %s692 = scalar_lea.vmem %s1, 128
  %v693 = vld [vmem:[%s692] sm:$0xf]
  %v694 = vld [vmem:[%s692 + $0x4] sm:$0xf]
  %v695 = vld [vmem:[%s692 + $0x8] sm:$0xf]
  %v696 = vld [vmem:[%s692 + $0xc] sm:$0xf]
  %v697 = vld [vmem:[%s692 + $0x10] sm:$0xf]
  %v698 = vld [vmem:[%s692 + $0x14] sm:$0xf]
  %v699 = vld [vmem:[%s692 + $0x18] sm:$0xf]
  %v700 = vld [vmem:[%s692 + $0x1c] sm:$0xf]
  %v701 = vld [vmem:[%s692 + $0x20] sm:$0xf]
  %v702 = vld [vmem:[%s692 + $0x24] sm:$0xf]
  %v703 = vld [vmem:[%s692 + $0x28] sm:$0xf]
  %v704 = vld [vmem:[%s692 + $0x2c] sm:$0xf]
  %v705 = vld [vmem:[%s692 + $0x30] sm:$0xf]
  %v706 = vld [vmem:[%s692 + $0x34] sm:$0xf]
  %v707 = vld [vmem:[%s692 + $0x38] sm:$0xf]
  %v708 = vld [vmem:[%s692 + $0x3c] sm:$0xf]
  %v709 = vld [vmem:[%s2] sm:$0x1]
  %v711 = vlaneseq
  %v712 = vshrl.u32 %v711, 7
  %v713 = vsub.s32 0, %v712
  %v714 = vrot.slane %v709, %v713
  %v732 = vunpack.c.l.b16 %v676
  %v733 = vunpack.c.l.b16 %v677
  %v734 = vunpack.c.l.b16 %v678
  %v735 = vunpack.c.l.b16 %v679
  %v736 = vunpack.c.l.b16 %v680
  %v737 = vunpack.c.l.b16 %v681
  %v738 = vunpack.c.l.b16 %v682
  %v739 = vunpack.c.l.b16 %v683
  %v740 = vunpack.c.l.b16 %v684
  %v741 = vunpack.c.l.b16 %v685
  %v742 = vunpack.c.l.b16 %v686
  %v743 = vunpack.c.l.b16 %v687
  %v744 = vunpack.c.l.b16 %v688
  %v745 = vunpack.c.l.b16 %v689
  %v746 = vunpack.c.l.b16 %v690
  %v747 = vunpack.c.l.b16 %v691
  %v748 = vpack.c.b16 %v733, %v732
  %v749 = vpack.c.b16 %v735, %v734
  %v750 = vpack.c.b16 %v737, %v736
  %v751 = vpack.c.b16 %v739, %v738
  %v752 = vpack.c.b16 %v741, %v740
  %v753 = vpack.c.b16 %v743, %v742
  %v754 = vpack.c.b16 %v745, %v744
  %v755 = vpack.c.b16 %v747, %v746
  %v780 = vunpack.c.l.b16 %v693
  %v781 = vunpack.c.l.b16 %v694
  %v782 = vunpack.c.l.b16 %v695
  %v783 = vunpack.c.l.b16 %v696
  %v784 = vunpack.c.l.b16 %v697
  %v785 = vunpack.c.l.b16 %v698
  %v786 = vunpack.c.l.b16 %v699
  %v787 = vunpack.c.l.b16 %v700
  %v788 = vunpack.c.l.b16 %v701
  %v789 = vunpack.c.l.b16 %v702
  %v790 = vunpack.c.l.b16 %v703
  %v791 = vunpack.c.l.b16 %v704
  %v792 = vunpack.c.l.b16 %v705
  %v793 = vunpack.c.l.b16 %v706
  %v794 = vunpack.c.l.b16 %v707
  %v795 = vunpack.c.l.b16 %v708
  %v796 = vpack.c.b16 %v781, %v780
  %v797 = vpack.c.b16 %v783, %v782
  %v798 = vpack.c.b16 %v785, %v784
  %v799 = vpack.c.b16 %v787, %v786
  %v800 = vpack.c.b16 %v789, %v788
  %v801 = vpack.c.b16 %v791, %v790
  %v802 = vpack.c.b16 %v793, %v792
  %v803 = vpack.c.b16 %v795, %v794
  %812 = vmatprep.subr.bf16.mxu0 0
  %813 = vmatpush1.bf16.msra.mxu0 %v796
  %814 = vmatprep.subr.bf16.mxu0 0
  %815 = vmatpush1.bf16.msra.mxu0 %v797
  %816 = vmatprep.subr.bf16.mxu0 0
  %817 = vmatpush1.bf16.msra.mxu0 %v798
  %818 = vmatprep.subr.bf16.mxu0 0
  %819 = vmatpush1.bf16.msra.mxu0 %v799
  %820 = vmatprep.subr.bf16.mxu0 0
  %821 = vmatpush1.bf16.msra.mxu0 %v800
  %822 = vmatprep.subr.bf16.mxu0 0
  %823 = vmatpush1.bf16.msra.mxu0 %v801
  %824 = vmatprep.subr.bf16.mxu0 0
  %825 = vmatpush1.bf16.msra.mxu0 %v802
  %826 = vmatprep.subr.bf16.mxu0 0
  %827 = vmatpush1.bf16.msra.mxu0 %v803
  %828 = vmatprep.subr.bf16.mxu0 0
  %829 = vmatpush1.bf16.msra.mxu0 0
  %830 = vmatprep.subr.bf16.mxu0 0
  %831 = vmatpush1.bf16.msra.mxu0 0
  %832 = vmatprep.subr.bf16.mxu0 0
  %833 = vmatpush1.bf16.msra.mxu0 0
  %834 = vmatprep.subr.bf16.mxu0 0
  %835 = vmatpush1.bf16.msra.mxu0 0
  %836 = vmatprep.subr.bf16.mxu0 0
  %837 = vmatpush1.bf16.msra.mxu0 0
  %838 = vmatprep.subr.bf16.mxu0 0
  %839 = vmatpush1.bf16.msra.mxu0 0
  %840 = vmatprep.subr.bf16.mxu0 0
  %841 = vmatpush1.bf16.msra.mxu0 0
  %842 = vmatprep.subr.bf16.mxu0 0
  %843 = vmatpush1.bf16.msra.mxu0 0
  %844 = vmatprep.mubr.bf16.mxu0 0
  %845 = vmatmul.mubr.bf16.gmra.mrb[0].mxu0 %v748
  %v846 = vpop.f32.mrb[0].mxu0
  %v847 = vadd.f32 %v714, %v846
  %v848 = vpop.f32.mrb[0].mxu0
  %v849 = vpop.f32.mrb[0].mxu0
  %v850 = vadd.f32 %v714, %v849
  %v851 = vpop.f32.mrb[0].mxu0
  %852 = vmatprep.mubr.bf16.mxu0 0
  %853 = vmatmul.mubr.bf16.gmra.mrb[0].mxu0 %v749
  %v854 = vpop.f32.mrb[0].mxu0
  %v855 = vadd.f32 %v714, %v854
  %v856 = vpop.f32.mrb[0].mxu0
  %v857 = vpop.f32.mrb[0].mxu0
  %v858 = vadd.f32 %v714, %v857
  %v859 = vpop.f32.mrb[0].mxu0
  %860 = vmatprep.mubr.bf16.mxu0 0
  %861 = vmatmul.mubr.bf16.gmra.mrb[0].mxu0 %v750
  %v862 = vpop.f32.mrb[0].mxu0
  %v863 = vadd.f32 %v714, %v862
  %v864 = vpop.f32.mrb[0].mxu0
  %v865 = vpop.f32.mrb[0].mxu0
  %v866 = vadd.f32 %v714, %v865
  %v867 = vpop.f32.mrb[0].mxu0
  %868 = vmatprep.mubr.bf16.mxu0 0
  %869 = vmatmul.mubr.bf16.gmra.mrb[0].mxu0 %v751
  %v870 = vpop.f32.mrb[0].mxu0
  %v871 = vadd.f32 %v714, %v870
  %v872 = vpop.f32.mrb[0].mxu0
  %v873 = vpop.f32.mrb[0].mxu0
  %v874 = vadd.f32 %v714, %v873
  %v875 = vpop.f32.mrb[0].mxu0
  %876 = vmatprep.mubr.bf16.mxu0 0
  %877 = vmatmul.mubr.bf16.gmra.mrb[0].mxu0 %v752
  %v878 = vpop.f32.mrb[0].mxu0
  %v879 = vadd.f32 %v714, %v878
  %v880 = vpop.f32.mrb[0].mxu0
  %v881 = vpop.f32.mrb[0].mxu0
  %v882 = vadd.f32 %v714, %v881
  %v883 = vpop.f32.mrb[0].mxu0
  %884 = vmatprep.mubr.bf16.mxu0 0
  %885 = vmatmul.mubr.bf16.gmra.mrb[0].mxu0 %v753
  %v886 = vpop.f32.mrb[0].mxu0
  %v887 = vadd.f32 %v714, %v886
  %v888 = vpop.f32.mrb[0].mxu0
  %v889 = vpop.f32.mrb[0].mxu0
  %v890 = vadd.f32 %v714, %v889
  %v891 = vpop.f32.mrb[0].mxu0
  %892 = vmatprep.mubr.bf16.mxu0 0
  %893 = vmatmul.mubr.bf16.gmra.mrb[0].mxu0 %v754
  %v894 = vpop.f32.mrb[0].mxu0
  %v895 = vadd.f32 %v714, %v894
  %v896 = vpop.f32.mrb[0].mxu0
  %v897 = vpop.f32.mrb[0].mxu0
  %v898 = vadd.f32 %v714, %v897
  %v899 = vpop.f32.mrb[0].mxu0
  %900 = vmatprep.mubr.bf16.mxu0 0
  %901 = vmatmul.mubr.bf16.gmra.mrb[0].mxu0 %v755
  %v902 = vpop.f32.mrb[0].mxu0
  %v903 = vadd.f32 %v714, %v902
  %v904 = vpop.f32.mrb[0].mxu0
  %v905 = vpop.f32.mrb[0].mxu0
  %v906 = vadd.f32 %v714, %v905
  %v907 = vpop.f32.mrb[0].mxu0
  %908 = vdwg.mxu0
  %v909 = vmax.f32 %v847, 0.0
  %v910 = vmax.f32 %v850, 0.0
  %v911 = vmax.f32 %v855, 0.0
  %v912 = vmax.f32 %v858, 0.0
  %v913 = vmax.f32 %v863, 0.0
  %v914 = vmax.f32 %v866, 0.0
  %v915 = vmax.f32 %v871, 0.0
  %v916 = vmax.f32 %v874, 0.0
  %v917 = vmax.f32 %v879, 0.0
  %v918 = vmax.f32 %v882, 0.0
  %v919 = vmax.f32 %v887, 0.0
  %v920 = vmax.f32 %v890, 0.0
  %v921 = vmax.f32 %v895, 0.0
  %v922 = vmax.f32 %v898, 0.0
  %v923 = vmax.f32 %v903, 0.0
  %v924 = vmax.f32 %v906, 0.0
  %v925 = vpack.c.bf16 %v910, %v909
  %v926 = vpack.c.bf16 %v912, %v911
  %v927 = vpack.c.bf16 %v914, %v913
  %v928 = vpack.c.bf16 %v916, %v915
  %v929 = vpack.c.bf16 %v918, %v917
  %v930 = vpack.c.bf16 %v920, %v919
  %v931 = vpack.c.bf16 %v922, %v921
  %v932 = vpack.c.bf16 %v924, %v923
  %v941 = vunpack.c.l.b16 %v925
  %v942 = vunpack.c.h.b16 %v925
  %v943 = vunpack.c.l.b16 %v926
  %v944 = vunpack.c.h.b16 %v926
  %v945 = vunpack.c.l.b16 %v927
  %v946 = vunpack.c.h.b16 %v927
  %v947 = vunpack.c.l.b16 %v928
  %v948 = vunpack.c.h.b16 %v928
  %v949 = vunpack.c.l.b16 %v929
  %v950 = vunpack.c.h.b16 %v929
  %v951 = vunpack.c.l.b16 %v930
  %v952 = vunpack.c.h.b16 %v930
  %v953 = vunpack.c.l.b16 %v931
  %v954 = vunpack.c.h.b16 %v931
  %v955 = vunpack.c.l.b16 %v932
  %v956 = vunpack.c.h.b16 %v932
  %v957 = vpack.c.b16 %v941, %v941
  %v958 = vpack.c.b16 %v942, %v942
  %v959 = vpack.c.b16 %v943, %v943
  %v960 = vpack.c.b16 %v944, %v944
  %v961 = vpack.c.b16 %v945, %v945
  %v962 = vpack.c.b16 %v946, %v946
  %v963 = vpack.c.b16 %v947, %v947
  %v964 = vpack.c.b16 %v948, %v948
  %v965 = vpack.c.b16 %v949, %v949
  %v966 = vpack.c.b16 %v950, %v950
  %v967 = vpack.c.b16 %v951, %v951
  %v968 = vpack.c.b16 %v952, %v952
  %v969 = vpack.c.b16 %v953, %v953
  %v970 = vpack.c.b16 %v954, %v954
  %v971 = vpack.c.b16 %v955, %v955
  %v972 = vpack.c.b16 %v956, %v956
  %s989 = scalar_lea.vmem %s3, 128
  %990 = vst.msk [vmem:[%s989] sm:$0xf] %vm327, %v957
  %991 = vst.msk [vmem:[%s989 + $0x4] sm:$0xf] %vm327, %v958
  %992 = vst.msk [vmem:[%s989 + $0x8] sm:$0xf] %vm327, %v959
  %993 = vst.msk [vmem:[%s989 + $0xc] sm:$0xf] %vm327, %v960
  %994 = vst.msk [vmem:[%s989 + $0x10] sm:$0xf] %vm327, %v961
  %995 = vst.msk [vmem:[%s989 + $0x14] sm:$0xf] %vm327, %v962
  %996 = vst.msk [vmem:[%s989 + $0x18] sm:$0xf] %vm327, %v963
  %997 = vst.msk [vmem:[%s989 + $0x1c] sm:$0xf] %vm327, %v964
  %998 = vst.msk [vmem:[%s989 + $0x20] sm:$0xf] %vm327, %v965
  %999 = vst.msk [vmem:[%s989 + $0x24] sm:$0xf] %vm327, %v966
  %1000 = vst.msk [vmem:[%s989 + $0x28] sm:$0xf] %vm327, %v967
  %1001 = vst.msk [vmem:[%s989 + $0x2c] sm:$0xf] %vm327, %v968
  %1002 = vst.msk [vmem:[%s989 + $0x30] sm:$0xf] %vm327, %v969
  %1003 = vst.msk [vmem:[%s989 + $0x34] sm:$0xf] %vm327, %v970
  %1004 = vst.msk [vmem:[%s989 + $0x38] sm:$0xf] %vm327, %v971
  %1005 = vst.msk [vmem:[%s989 + $0x3c] sm:$0xf] %vm327, %v972
  %s1006 = scalar_lea.vmem %s0, 192
  %v1007 = vld [vmem:[%s1006] sm:$0xf]
  %v1008 = vld [vmem:[%s1006 + $0x4] sm:$0xf]
  %v1009 = vld [vmem:[%s1006 + $0x8] sm:$0xf]
  %v1010 = vld [vmem:[%s1006 + $0xc] sm:$0xf]
  %v1011 = vld [vmem:[%s1006 + $0x10] sm:$0xf]
  %v1012 = vld [vmem:[%s1006 + $0x14] sm:$0xf]
  %v1013 = vld [vmem:[%s1006 + $0x18] sm:$0xf]
  %v1014 = vld [vmem:[%s1006 + $0x1c] sm:$0xf]
  %v1015 = vld [vmem:[%s1006 + $0x20] sm:$0xf]
  %v1016 = vld [vmem:[%s1006 + $0x24] sm:$0xf]
  %v1017 = vld [vmem:[%s1006 + $0x28] sm:$0xf]
  %v1018 = vld [vmem:[%s1006 + $0x2c] sm:$0xf]
  %v1019 = vld [vmem:[%s1006 + $0x30] sm:$0xf]
  %v1020 = vld [vmem:[%s1006 + $0x34] sm:$0xf]
  %v1021 = vld [vmem:[%s1006 + $0x38] sm:$0xf]
  %v1022 = vld [vmem:[%s1006 + $0x3c] sm:$0xf]
  %s1023 = scalar_lea.vmem %s1, 192
  %v1024 = vld [vmem:[%s1023] sm:$0xf]
  %v1025 = vld [vmem:[%s1023 + $0x4] sm:$0xf]
  %v1026 = vld [vmem:[%s1023 + $0x8] sm:$0xf]
  %v1027 = vld [vmem:[%s1023 + $0xc] sm:$0xf]
  %v1028 = vld [vmem:[%s1023 + $0x10] sm:$0xf]
  %v1029 = vld [vmem:[%s1023 + $0x14] sm:$0xf]
  %v1030 = vld [vmem:[%s1023 + $0x18] sm:$0xf]
  %v1031 = vld [vmem:[%s1023 + $0x1c] sm:$0xf]
  %v1032 = vld [vmem:[%s1023 + $0x20] sm:$0xf]
  %v1033 = vld [vmem:[%s1023 + $0x24] sm:$0xf]
  %v1034 = vld [vmem:[%s1023 + $0x28] sm:$0xf]
  %v1035 = vld [vmem:[%s1023 + $0x2c] sm:$0xf]
  %v1036 = vld [vmem:[%s1023 + $0x30] sm:$0xf]
  %v1037 = vld [vmem:[%s1023 + $0x34] sm:$0xf]
  %v1038 = vld [vmem:[%s1023 + $0x38] sm:$0xf]
  %v1039 = vld [vmem:[%s1023 + $0x3c] sm:$0xf]
  %v1040 = vld [vmem:[%s2] sm:$0x1]
  %v1042 = vlaneseq
  %v1043 = vshrl.u32 %v1042, 7
  %v1044 = vsub.s32 0, %v1043
  %v1045 = vrot.slane %v1040, %v1044
  %v1063 = vunpack.c.l.b16 %v1007
  %v1064 = vunpack.c.l.b16 %v1008
  %v1065 = vunpack.c.l.b16 %v1009
  %v1066 = vunpack.c.l.b16 %v1010
  %v1067 = vunpack.c.l.b16 %v1011
  %v1068 = vunpack.c.l.b16 %v1012
  %v1069 = vunpack.c.l.b16 %v1013
  %v1070 = vunpack.c.l.b16 %v1014
  %v1071 = vunpack.c.l.b16 %v1015
  %v1072 = vunpack.c.l.b16 %v1016
  %v1073 = vunpack.c.l.b16 %v1017
  %v1074 = vunpack.c.l.b16 %v1018
  %v1075 = vunpack.c.l.b16 %v1019
  %v1076 = vunpack.c.l.b16 %v1020
  %v1077 = vunpack.c.l.b16 %v1021
  %v1078 = vunpack.c.l.b16 %v1022
  %v1079 = vpack.c.b16 %v1064, %v1063
  %v1080 = vpack.c.b16 %v1066, %v1065
  %v1081 = vpack.c.b16 %v1068, %v1067
  %v1082 = vpack.c.b16 %v1070, %v1069
  %v1083 = vpack.c.b16 %v1072, %v1071
  %v1084 = vpack.c.b16 %v1074, %v1073
  %v1085 = vpack.c.b16 %v1076, %v1075
  %v1086 = vpack.c.b16 %v1078, %v1077
  %v1111 = vunpack.c.l.b16 %v1024
  %v1112 = vunpack.c.l.b16 %v1025
  %v1113 = vunpack.c.l.b16 %v1026
  %v1114 = vunpack.c.l.b16 %v1027
  %v1115 = vunpack.c.l.b16 %v1028
  %v1116 = vunpack.c.l.b16 %v1029
  %v1117 = vunpack.c.l.b16 %v1030
  %v1118 = vunpack.c.l.b16 %v1031
  %v1119 = vunpack.c.l.b16 %v1032
  %v1120 = vunpack.c.l.b16 %v1033
  %v1121 = vunpack.c.l.b16 %v1034
  %v1122 = vunpack.c.l.b16 %v1035
  %v1123 = vunpack.c.l.b16 %v1036
  %v1124 = vunpack.c.l.b16 %v1037
  %v1125 = vunpack.c.l.b16 %v1038
  %v1126 = vunpack.c.l.b16 %v1039
  %v1127 = vpack.c.b16 %v1112, %v1111
  %v1128 = vpack.c.b16 %v1114, %v1113
  %v1129 = vpack.c.b16 %v1116, %v1115
  %v1130 = vpack.c.b16 %v1118, %v1117
  %v1131 = vpack.c.b16 %v1120, %v1119
  %v1132 = vpack.c.b16 %v1122, %v1121
  %v1133 = vpack.c.b16 %v1124, %v1123
  %v1134 = vpack.c.b16 %v1126, %v1125
  %1143 = vmatprep.subr.bf16.mxu0 0
  %1144 = vmatpush1.bf16.msra.mxu0 %v1127
  %1145 = vmatprep.subr.bf16.mxu0 0
  %1146 = vmatpush1.bf16.msra.mxu0 %v1128
  %1147 = vmatprep.subr.bf16.mxu0 0
  %1148 = vmatpush1.bf16.msra.mxu0 %v1129
  %1149 = vmatprep.subr.bf16.mxu0 0
  %1150 = vmatpush1.bf16.msra.mxu0 %v1130
  %1151 = vmatprep.subr.bf16.mxu0 0
  %1152 = vmatpush1.bf16.msra.mxu0 %v1131
  %1153 = vmatprep.subr.bf16.mxu0 0
  %1154 = vmatpush1.bf16.msra.mxu0 %v1132
  %1155 = vmatprep.subr.bf16.mxu0 0
  %1156 = vmatpush1.bf16.msra.mxu0 %v1133
  %1157 = vmatprep.subr.bf16.mxu0 0
  %1158 = vmatpush1.bf16.msra.mxu0 %v1134
  %1159 = vmatprep.subr.bf16.mxu0 0
  %1160 = vmatpush1.bf16.msra.mxu0 0
  %1161 = vmatprep.subr.bf16.mxu0 0
  %1162 = vmatpush1.bf16.msra.mxu0 0
  %1163 = vmatprep.subr.bf16.mxu0 0
  %1164 = vmatpush1.bf16.msra.mxu0 0
  %1165 = vmatprep.subr.bf16.mxu0 0
  %1166 = vmatpush1.bf16.msra.mxu0 0
  %1167 = vmatprep.subr.bf16.mxu0 0
  %1168 = vmatpush1.bf16.msra.mxu0 0
  %1169 = vmatprep.subr.bf16.mxu0 0
  %1170 = vmatpush1.bf16.msra.mxu0 0
  %1171 = vmatprep.subr.bf16.mxu0 0
  %1172 = vmatpush1.bf16.msra.mxu0 0
  %1173 = vmatprep.subr.bf16.mxu0 0
  %1174 = vmatpush1.bf16.msra.mxu0 0
  %1175 = vmatprep.mubr.bf16.mxu0 0
  %1176 = vmatmul.mubr.bf16.gmra.mrb[0].mxu0 %v1079
  %v1177 = vpop.f32.mrb[0].mxu0
  %v1178 = vadd.f32 %v1045, %v1177
  %v1179 = vpop.f32.mrb[0].mxu0
  %v1180 = vpop.f32.mrb[0].mxu0
  %v1181 = vadd.f32 %v1045, %v1180
  %v1182 = vpop.f32.mrb[0].mxu0
  %1183 = vmatprep.mubr.bf16.mxu0 0
  %1184 = vmatmul.mubr.bf16.gmra.mrb[0].mxu0 %v1080
  %v1185 = vpop.f32.mrb[0].mxu0
  %v1186 = vadd.f32 %v1045, %v1185
  %v1187 = vpop.f32.mrb[0].mxu0
  %v1188 = vpop.f32.mrb[0].mxu0
  %v1189 = vadd.f32 %v1045, %v1188
  %v1190 = vpop.f32.mrb[0].mxu0
  %1191 = vmatprep.mubr.bf16.mxu0 0
  %1192 = vmatmul.mubr.bf16.gmra.mrb[0].mxu0 %v1081
  %v1193 = vpop.f32.mrb[0].mxu0
  %v1194 = vadd.f32 %v1045, %v1193
  %v1195 = vpop.f32.mrb[0].mxu0
  %v1196 = vpop.f32.mrb[0].mxu0
  %v1197 = vadd.f32 %v1045, %v1196
  %v1198 = vpop.f32.mrb[0].mxu0
  %1199 = vmatprep.mubr.bf16.mxu0 0
  %1200 = vmatmul.mubr.bf16.gmra.mrb[0].mxu0 %v1082
  %v1201 = vpop.f32.mrb[0].mxu0
  %v1202 = vadd.f32 %v1045, %v1201
  %v1203 = vpop.f32.mrb[0].mxu0
  %v1204 = vpop.f32.mrb[0].mxu0
  %v1205 = vadd.f32 %v1045, %v1204
  %v1206 = vpop.f32.mrb[0].mxu0
  %1207 = vmatprep.mubr.bf16.mxu0 0
  %1208 = vmatmul.mubr.bf16.gmra.mrb[0].mxu0 %v1083
  %v1209 = vpop.f32.mrb[0].mxu0
  %v1210 = vadd.f32 %v1045, %v1209
  %v1211 = vpop.f32.mrb[0].mxu0
  %v1212 = vpop.f32.mrb[0].mxu0
  %v1213 = vadd.f32 %v1045, %v1212
  %v1214 = vpop.f32.mrb[0].mxu0
  %1215 = vmatprep.mubr.bf16.mxu0 0
  %1216 = vmatmul.mubr.bf16.gmra.mrb[0].mxu0 %v1084
  %v1217 = vpop.f32.mrb[0].mxu0
  %v1218 = vadd.f32 %v1045, %v1217
  %v1219 = vpop.f32.mrb[0].mxu0
  %v1220 = vpop.f32.mrb[0].mxu0
  %v1221 = vadd.f32 %v1045, %v1220
  %v1222 = vpop.f32.mrb[0].mxu0
  %1223 = vmatprep.mubr.bf16.mxu0 0
  %1224 = vmatmul.mubr.bf16.gmra.mrb[0].mxu0 %v1085
  %v1225 = vpop.f32.mrb[0].mxu0
  %v1226 = vadd.f32 %v1045, %v1225
  %v1227 = vpop.f32.mrb[0].mxu0
  %v1228 = vpop.f32.mrb[0].mxu0
  %v1229 = vadd.f32 %v1045, %v1228
  %v1230 = vpop.f32.mrb[0].mxu0
  %1231 = vmatprep.mubr.bf16.mxu0 0
  %1232 = vmatmul.mubr.bf16.gmra.mrb[0].mxu0 %v1086
  %v1233 = vpop.f32.mrb[0].mxu0
  %v1234 = vadd.f32 %v1045, %v1233
  %v1235 = vpop.f32.mrb[0].mxu0
  %v1236 = vpop.f32.mrb[0].mxu0
  %v1237 = vadd.f32 %v1045, %v1236
  %v1238 = vpop.f32.mrb[0].mxu0
  %1239 = vdwg.mxu0
  %v1240 = vmax.f32 %v1178, 0.0
  %v1241 = vmax.f32 %v1181, 0.0
  %v1242 = vmax.f32 %v1186, 0.0
  %v1243 = vmax.f32 %v1189, 0.0
  %v1244 = vmax.f32 %v1194, 0.0
  %v1245 = vmax.f32 %v1197, 0.0
  %v1246 = vmax.f32 %v1202, 0.0
  %v1247 = vmax.f32 %v1205, 0.0
  %v1248 = vmax.f32 %v1210, 0.0
  %v1249 = vmax.f32 %v1213, 0.0
  %v1250 = vmax.f32 %v1218, 0.0
  %v1251 = vmax.f32 %v1221, 0.0
  %v1252 = vmax.f32 %v1226, 0.0
  %v1253 = vmax.f32 %v1229, 0.0
  %v1254 = vmax.f32 %v1234, 0.0
  %v1255 = vmax.f32 %v1237, 0.0
  %v1256 = vpack.c.bf16 %v1241, %v1240
  %v1257 = vpack.c.bf16 %v1243, %v1242
  %v1258 = vpack.c.bf16 %v1245, %v1244
  %v1259 = vpack.c.bf16 %v1247, %v1246
  %v1260 = vpack.c.bf16 %v1249, %v1248
  %v1261 = vpack.c.bf16 %v1251, %v1250
  %v1262 = vpack.c.bf16 %v1253, %v1252
  %v1263 = vpack.c.bf16 %v1255, %v1254
  %v1272 = vunpack.c.l.b16 %v1256
  %v1273 = vunpack.c.h.b16 %v1256
  %v1274 = vunpack.c.l.b16 %v1257
  %v1275 = vunpack.c.h.b16 %v1257
  %v1276 = vunpack.c.l.b16 %v1258
  %v1277 = vunpack.c.h.b16 %v1258
  %v1278 = vunpack.c.l.b16 %v1259
  %v1279 = vunpack.c.h.b16 %v1259
  %v1280 = vunpack.c.l.b16 %v1260
  %v1281 = vunpack.c.h.b16 %v1260
  %v1282 = vunpack.c.l.b16 %v1261
  %v1283 = vunpack.c.h.b16 %v1261
  %v1284 = vunpack.c.l.b16 %v1262
  %v1285 = vunpack.c.h.b16 %v1262
  %v1286 = vunpack.c.l.b16 %v1263
  %v1287 = vunpack.c.h.b16 %v1263
  %v1288 = vpack.c.b16 %v1272, %v1272
  %v1289 = vpack.c.b16 %v1273, %v1273
  %v1290 = vpack.c.b16 %v1274, %v1274
  %v1291 = vpack.c.b16 %v1275, %v1275
  %v1292 = vpack.c.b16 %v1276, %v1276
  %v1293 = vpack.c.b16 %v1277, %v1277
  %v1294 = vpack.c.b16 %v1278, %v1278
  %v1295 = vpack.c.b16 %v1279, %v1279
  %v1296 = vpack.c.b16 %v1280, %v1280
  %v1297 = vpack.c.b16 %v1281, %v1281
  %v1298 = vpack.c.b16 %v1282, %v1282
  %v1299 = vpack.c.b16 %v1283, %v1283
  %v1300 = vpack.c.b16 %v1284, %v1284
  %v1301 = vpack.c.b16 %v1285, %v1285
  %v1302 = vpack.c.b16 %v1286, %v1286
  %v1303 = vpack.c.b16 %v1287, %v1287
  %s1320 = scalar_lea.vmem %s3, 192
  %1321 = vst.msk [vmem:[%s1320] sm:$0xf] %vm327, %v1288
  %1322 = vst.msk [vmem:[%s1320 + $0x4] sm:$0xf] %vm327, %v1289
  %1323 = vst.msk [vmem:[%s1320 + $0x8] sm:$0xf] %vm327, %v1290
  %1324 = vst.msk [vmem:[%s1320 + $0xc] sm:$0xf] %vm327, %v1291
  %1325 = vst.msk [vmem:[%s1320 + $0x10] sm:$0xf] %vm327, %v1292
  %1326 = vst.msk [vmem:[%s1320 + $0x14] sm:$0xf] %vm327, %v1293
  %1327 = vst.msk [vmem:[%s1320 + $0x18] sm:$0xf] %vm327, %v1294
  %1328 = vst.msk [vmem:[%s1320 + $0x1c] sm:$0xf] %vm327, %v1295
  %1329 = vst.msk [vmem:[%s1320 + $0x20] sm:$0xf] %vm327, %v1296
  %1330 = vst.msk [vmem:[%s1320 + $0x24] sm:$0xf] %vm327, %v1297
  %1331 = vst.msk [vmem:[%s1320 + $0x28] sm:$0xf] %vm327, %v1298
  %1332 = vst.msk [vmem:[%s1320 + $0x2c] sm:$0xf] %vm327, %v1299
  %1333 = vst.msk [vmem:[%s1320 + $0x30] sm:$0xf] %vm327, %v1300
  %1334 = vst.msk [vmem:[%s1320 + $0x34] sm:$0xf] %vm327, %v1301
  %1335 = vst.msk [vmem:[%s1320 + $0x38] sm:$0xf] %vm327, %v1302
  %1336 = vst.msk [vmem:[%s1320 + $0x3c] sm:$0xf] %vm327, %v1303
  // Predicated region
  $region14: #{vae_forward.14} parent=0 // pred_check
    _
  $region15: #{vae_forward.14} parent=0 // pred_check_branch
    %1338 = sbr.rel (0) target = $region17
  $region16: #{vae_forward.14} parent=0 // pred_region
    _
  $region17: #{vae_forward.14} parent=0 // pred_fallthru
    _
  // Predicated region
  $region18: #{vae_forward.14} parent=0 // pred_check
    _
  $region19: #{vae_forward.14} parent=0 // pred_check_branch
    %1340 = sbr.rel (0) target = $region21
  $region20: #{vae_forward.14} parent=0 // pred_region
    _
  $region21: #{vae_forward.14} parent=0 // pred_fallthru
    _

// kernel: vae_forward.15
$region0: #{vae_forward.15}
  #allocation0 [shape = 'u32[]', space=smem, size = 0x4, offset = 0x4, fixed_abs, tag = 'smem constant byte address 0x4 - core index']
  #allocation1 [shape = 'u32[144,128]{1,0:T(1,128)}', space=vmem, size = 0x12000, scoped, tag = 'internal scratch']
  #allocation2 [shape = 'f32[1,1]{1,0:T(1,128)S(1)}', space=vmem, size = 0x200, scoped, tag = 'scoped memory for vae_forward.15']
  %s0 = inlined_call_operand.vmem [shape: bf16[4,512,128], index: 0, kind: input, shape index: {}]
  %s1 = inlined_call_operand.vmem [shape: bf16[4,128,1], index: 1, kind: input, shape index: {}]
  %s2 = inlined_call_operand.<no memory space> [shape: f32[1,1], index: 2, kind: input, shape index: {}]
  %s3 = inlined_call_operand.vmem [shape: f32[4,512,1], index: 3, kind: output, shape index: {}]
  %s4 = sld [smem:[#allocation0]]
  $region22: #{vae_forward.15} parent=0
    _
  %s6 = ssub.s32 1, %s4
  %s7 = scalar_select 0, %s6, %s4
  %v8 = vstv %s2
  %9 = vst [vmem:[#allocation2] sm:$0x1] %v8
  // Predicated region
  $region2: #{vae_forward.15} parent=0 // pred_check
    _
  $region3: #{vae_forward.15} parent=0 // pred_check_branch
    %11 = sbr.rel (0) target = $region5
  $region4: #{vae_forward.15} parent=0 // pred_region
    _
  $region5: #{vae_forward.15} parent=0 // pred_fallthru
    _
  // Predicated region
  $region6: #{vae_forward.15} parent=0 // pred_check
    _
  $region7: #{vae_forward.15} parent=0 // pred_check_branch
    %13 = sbr.rel (0) target = $region9
  $region8: #{vae_forward.15} parent=0 // pred_region
    _
  $region9: #{vae_forward.15} parent=0 // pred_fallthru
    _
  // Predicated region
  $region10: #{vae_forward.15} parent=0 // pred_check
    _
  $region11: #{vae_forward.15} parent=0 // pred_check_branch
    %15 = sbr.rel (0) target = $region13
  $region12: #{vae_forward.15} parent=0 // pred_region
    _
  $region13: #{vae_forward.15} parent=0 // pred_fallthru
    _
  %v17 = vld [vmem:[%s0] sm:$0xf]
  %v18 = vld [vmem:[%s0 + $0x4] sm:$0xf]
  %v19 = vld [vmem:[%s0 + $0x8] sm:$0xf]
  %v20 = vld [vmem:[%s0 + $0xc] sm:$0xf]
  %v21 = vld [vmem:[%s0 + $0x10] sm:$0xf]
  %v22 = vld [vmem:[%s0 + $0x14] sm:$0xf]
  %v23 = vld [vmem:[%s0 + $0x18] sm:$0xf]
  %v24 = vld [vmem:[%s0 + $0x1c] sm:$0xf]
  %v25 = vld [vmem:[%s0 + $0x20] sm:$0xf]
  %v26 = vld [vmem:[%s0 + $0x24] sm:$0xf]
  %v27 = vld [vmem:[%s0 + $0x28] sm:$0xf]
  %v28 = vld [vmem:[%s0 + $0x2c] sm:$0xf]
  %v29 = vld [vmem:[%s0 + $0x30] sm:$0xf]
  %v30 = vld [vmem:[%s0 + $0x34] sm:$0xf]
  %v31 = vld [vmem:[%s0 + $0x38] sm:$0xf]
  %v32 = vld [vmem:[%s0 + $0x3c] sm:$0xf]
  %v33 = vld [vmem:[%s0 + $0x40] sm:$0xf]
  %v34 = vld [vmem:[%s0 + $0x44] sm:$0xf]
  %v35 = vld [vmem:[%s0 + $0x48] sm:$0xf]
  %v36 = vld [vmem:[%s0 + $0x4c] sm:$0xf]
  %v37 = vld [vmem:[%s0 + $0x50] sm:$0xf]
  %v38 = vld [vmem:[%s0 + $0x54] sm:$0xf]
  %v39 = vld [vmem:[%s0 + $0x58] sm:$0xf]
  %v40 = vld [vmem:[%s0 + $0x5c] sm:$0xf]
  %v41 = vld [vmem:[%s0 + $0x60] sm:$0xf]
  %v42 = vld [vmem:[%s0 + $0x64] sm:$0xf]
  %v43 = vld [vmem:[%s0 + $0x68] sm:$0xf]
  %v44 = vld [vmem:[%s0 + $0x6c] sm:$0xf]
  %v45 = vld [vmem:[%s0 + $0x70] sm:$0xf]
  %v46 = vld [vmem:[%s0 + $0x74] sm:$0xf]
  %v47 = vld [vmem:[%s0 + $0x78] sm:$0xf]
  %v48 = vld [vmem:[%s0 + $0x7c] sm:$0xf]
  %v49 = vld [vmem:[%s0 + $0x80] sm:$0xf]
  %v50 = vld [vmem:[%s0 + $0x84] sm:$0xf]
  %v51 = vld [vmem:[%s0 + $0x88] sm:$0xf]
  %v52 = vld [vmem:[%s0 + $0x8c] sm:$0xf]
  %v53 = vld [vmem:[%s0 + $0x90] sm:$0xf]
  %v54 = vld [vmem:[%s0 + $0x94] sm:$0xf]
  %v55 = vld [vmem:[%s0 + $0x98] sm:$0xf]
  %v56 = vld [vmem:[%s0 + $0x9c] sm:$0xf]
  %v57 = vld [vmem:[%s0 + $0xa0] sm:$0xf]
  %v58 = vld [vmem:[%s0 + $0xa4] sm:$0xf]
  %v59 = vld [vmem:[%s0 + $0xa8] sm:$0xf]
  %v60 = vld [vmem:[%s0 + $0xac] sm:$0xf]
  %v61 = vld [vmem:[%s0 + $0xb0] sm:$0xf]
  %v62 = vld [vmem:[%s0 + $0xb4] sm:$0xf]
  %v63 = vld [vmem:[%s0 + $0xb8] sm:$0xf]
  %v64 = vld [vmem:[%s0 + $0xbc] sm:$0xf]
  %v65 = vld [vmem:[%s0 + $0xc0] sm:$0xf]
  %v66 = vld [vmem:[%s0 + $0xc4] sm:$0xf]
  %v67 = vld [vmem:[%s0 + $0xc8] sm:$0xf]
  %v68 = vld [vmem:[%s0 + $0xcc] sm:$0xf]
  %v69 = vld [vmem:[%s0 + $0xd0] sm:$0xf]
  %v70 = vld [vmem:[%s0 + $0xd4] sm:$0xf]
  %v71 = vld [vmem:[%s0 + $0xd8] sm:$0xf]
  %v72 = vld [vmem:[%s0 + $0xdc] sm:$0xf]
  %v73 = vld [vmem:[%s0 + $0xe0] sm:$0xf]
  %v74 = vld [vmem:[%s0 + $0xe4] sm:$0xf]
  %v75 = vld [vmem:[%s0 + $0xe8] sm:$0xf]
  %v76 = vld [vmem:[%s0 + $0xec] sm:$0xf]
  %v77 = vld [vmem:[%s0 + $0xf0] sm:$0xf]
  %v78 = vld [vmem:[%s0 + $0xf4] sm:$0xf]
  %v79 = vld [vmem:[%s0 + $0xf8] sm:$0xf]
  %v80 = vld [vmem:[%s0 + $0xfc] sm:$0xf]
  %v81 = vld [vmem:[%s1] sm:$0xf]
  %v82 = vld [vmem:[%s1 + $0x4] sm:$0xf]
  %v83 = vld [vmem:[%s1 + $0x8] sm:$0xf]
  %v84 = vld [vmem:[%s1 + $0xc] sm:$0xf]
  %v85 = vld [vmem:[%s1 + $0x10] sm:$0xf]
  %v86 = vld [vmem:[%s1 + $0x14] sm:$0xf]
  %v87 = vld [vmem:[%s1 + $0x18] sm:$0xf]
  %v88 = vld [vmem:[%s1 + $0x1c] sm:$0xf]
  %v89 = vld [vmem:[%s1 + $0x20] sm:$0xf]
  %v90 = vld [vmem:[%s1 + $0x24] sm:$0xf]
  %v91 = vld [vmem:[%s1 + $0x28] sm:$0xf]
  %v92 = vld [vmem:[%s1 + $0x2c] sm:$0xf]
  %v93 = vld [vmem:[%s1 + $0x30] sm:$0xf]
  %v94 = vld [vmem:[%s1 + $0x34] sm:$0xf]
  %v95 = vld [vmem:[%s1 + $0x38] sm:$0xf]
  %v96 = vld [vmem:[%s1 + $0x3c] sm:$0xf]
  %v97 = vld [vmem:[#allocation2] sm:$0x1]
  %v99 = vlaneseq
  %v100 = vshrl.u32 %v99, 7
  %v101 = vsub.s32 0, %v100
  %v102 = vrot.slane %v97, %v101
  %v168 = vunpack.c.l.b16 %v17
  %v169 = vunpack.c.l.b16 %v18
  %v170 = vunpack.c.l.b16 %v19
  %v171 = vunpack.c.l.b16 %v20
  %v172 = vunpack.c.l.b16 %v21
  %v173 = vunpack.c.l.b16 %v22
  %v174 = vunpack.c.l.b16 %v23
  %v175 = vunpack.c.l.b16 %v24
  %v176 = vunpack.c.l.b16 %v25
  %v177 = vunpack.c.l.b16 %v26
  %v178 = vunpack.c.l.b16 %v27
  %v179 = vunpack.c.l.b16 %v28
  %v180 = vunpack.c.l.b16 %v29
  %v181 = vunpack.c.l.b16 %v30
  %v182 = vunpack.c.l.b16 %v31
  %v183 = vunpack.c.l.b16 %v32
  %v184 = vunpack.c.l.b16 %v33
  %v185 = vunpack.c.l.b16 %v34
  %v186 = vunpack.c.l.b16 %v35
  %v187 = vunpack.c.l.b16 %v36
  %v188 = vunpack.c.l.b16 %v37
  %v189 = vunpack.c.l.b16 %v38
  %v190 = vunpack.c.l.b16 %v39
  %v191 = vunpack.c.l.b16 %v40
  %v192 = vunpack.c.l.b16 %v41
  %v193 = vunpack.c.l.b16 %v42
  %v194 = vunpack.c.l.b16 %v43
  %v195 = vunpack.c.l.b16 %v44
  %v196 = vunpack.c.l.b16 %v45
  %v197 = vunpack.c.l.b16 %v46
  %v198 = vunpack.c.l.b16 %v47
  %v199 = vunpack.c.l.b16 %v48
  %v200 = vunpack.c.l.b16 %v49
  %v201 = vunpack.c.l.b16 %v50
  %v202 = vunpack.c.l.b16 %v51
  %v203 = vunpack.c.l.b16 %v52
  %v204 = vunpack.c.l.b16 %v53
  %v205 = vunpack.c.l.b16 %v54
  %v206 = vunpack.c.l.b16 %v55
  %v207 = vunpack.c.l.b16 %v56
  %v208 = vunpack.c.l.b16 %v57
  %v209 = vunpack.c.l.b16 %v58
  %v210 = vunpack.c.l.b16 %v59
  %v211 = vunpack.c.l.b16 %v60
  %v212 = vunpack.c.l.b16 %v61
  %v213 = vunpack.c.l.b16 %v62
  %v214 = vunpack.c.l.b16 %v63
  %v215 = vunpack.c.l.b16 %v64
  %v216 = vunpack.c.l.b16 %v65
  %v217 = vunpack.c.l.b16 %v66
  %v218 = vunpack.c.l.b16 %v67
  %v219 = vunpack.c.l.b16 %v68
  %v220 = vunpack.c.l.b16 %v69
  %v221 = vunpack.c.l.b16 %v70
  %v222 = vunpack.c.l.b16 %v71
  %v223 = vunpack.c.l.b16 %v72
  %v224 = vunpack.c.l.b16 %v73
  %v225 = vunpack.c.l.b16 %v74
  %v226 = vunpack.c.l.b16 %v75
  %v227 = vunpack.c.l.b16 %v76
  %v228 = vunpack.c.l.b16 %v77
  %v229 = vunpack.c.l.b16 %v78
  %v230 = vunpack.c.l.b16 %v79
  %v231 = vunpack.c.l.b16 %v80
  %v232 = vpack.c.b16 %v169, %v168
  %v233 = vpack.c.b16 %v171, %v170
  %v234 = vpack.c.b16 %v173, %v172
  %v235 = vpack.c.b16 %v175, %v174
  %v236 = vpack.c.b16 %v177, %v176
  %v237 = vpack.c.b16 %v179, %v178
  %v238 = vpack.c.b16 %v181, %v180
  %v239 = vpack.c.b16 %v183, %v182
  %v240 = vpack.c.b16 %v185, %v184
  %v241 = vpack.c.b16 %v187, %v186
  %v242 = vpack.c.b16 %v189, %v188
  %v243 = vpack.c.b16 %v191, %v190
  %v244 = vpack.c.b16 %v193, %v192
  %v245 = vpack.c.b16 %v195, %v194
  %v246 = vpack.c.b16 %v197, %v196
  %v247 = vpack.c.b16 %v199, %v198
  %v248 = vpack.c.b16 %v201, %v200
  %v249 = vpack.c.b16 %v203, %v202
  %v250 = vpack.c.b16 %v205, %v204
  %v251 = vpack.c.b16 %v207, %v206
  %v252 = vpack.c.b16 %v209, %v208
  %v253 = vpack.c.b16 %v211, %v210
  %v254 = vpack.c.b16 %v213, %v212
  %v255 = vpack.c.b16 %v215, %v214
  %v256 = vpack.c.b16 %v217, %v216
  %v257 = vpack.c.b16 %v219, %v218
  %v258 = vpack.c.b16 %v221, %v220
  %v259 = vpack.c.b16 %v223, %v222
  %v260 = vpack.c.b16 %v225, %v224
  %v261 = vpack.c.b16 %v227, %v226
  %v262 = vpack.c.b16 %v229, %v228
  %v263 = vpack.c.b16 %v231, %v230
  %v312 = vunpack.c.l.b16 %v81
  %v313 = vunpack.c.l.b16 %v82
  %v314 = vunpack.c.l.b16 %v83
  %v315 = vunpack.c.l.b16 %v84
  %v316 = vunpack.c.l.b16 %v85
  %v317 = vunpack.c.l.b16 %v86
  %v318 = vunpack.c.l.b16 %v87
  %v319 = vunpack.c.l.b16 %v88
  %v320 = vunpack.c.l.b16 %v89
  %v321 = vunpack.c.l.b16 %v90
  %v322 = vunpack.c.l.b16 %v91
  %v323 = vunpack.c.l.b16 %v92
  %v324 = vunpack.c.l.b16 %v93
  %v325 = vunpack.c.l.b16 %v94
  %v326 = vunpack.c.l.b16 %v95
  %v327 = vunpack.c.l.b16 %v96
  %v328 = vpack.c.b16 %v313, %v312
  %v329 = vpack.c.b16 %v315, %v314
  %v330 = vpack.c.b16 %v317, %v316
  %v331 = vpack.c.b16 %v319, %v318
  %v332 = vpack.c.b16 %v321, %v320
  %v333 = vpack.c.b16 %v323, %v322
  %v334 = vpack.c.b16 %v325, %v324
  %v335 = vpack.c.b16 %v327, %v326
  %344 = vmatprep.subr.bf16.mxu0 0
  %345 = vmatpush1.bf16.msra.mxu0 %v328
  %346 = vmatprep.subr.bf16.mxu0 0
  %347 = vmatpush1.bf16.msra.mxu0 %v329
  %348 = vmatprep.subr.bf16.mxu0 0
  %349 = vmatpush1.bf16.msra.mxu0 %v330
  %350 = vmatprep.subr.bf16.mxu0 0
  %351 = vmatpush1.bf16.msra.mxu0 %v331
  %352 = vmatprep.subr.bf16.mxu0 0
  %353 = vmatpush1.bf16.msra.mxu0 %v332
  %354 = vmatprep.subr.bf16.mxu0 0
  %355 = vmatpush1.bf16.msra.mxu0 %v333
  %356 = vmatprep.subr.bf16.mxu0 0
  %357 = vmatpush1.bf16.msra.mxu0 %v334
  %358 = vmatprep.subr.bf16.mxu0 0
  %359 = vmatpush1.bf16.msra.mxu0 %v335
  %360 = vmatprep.subr.bf16.mxu0 0
  %361 = vmatpush1.bf16.msra.mxu0 0
  %362 = vmatprep.subr.bf16.mxu0 0
  %363 = vmatpush1.bf16.msra.mxu0 0
  %364 = vmatprep.subr.bf16.mxu0 0
  %365 = vmatpush1.bf16.msra.mxu0 0
  %366 = vmatprep.subr.bf16.mxu0 0
  %367 = vmatpush1.bf16.msra.mxu0 0
  %368 = vmatprep.subr.bf16.mxu0 0
  %369 = vmatpush1.bf16.msra.mxu0 0
  %370 = vmatprep.subr.bf16.mxu0 0
  %371 = vmatpush1.bf16.msra.mxu0 0
  %372 = vmatprep.subr.bf16.mxu0 0
  %373 = vmatpush1.bf16.msra.mxu0 0
  %374 = vmatprep.subr.bf16.mxu0 0
  %375 = vmatpush1.bf16.msra.mxu0 0
  %376 = vmatprep.mubr.bf16.mxu0 0
  %377 = vmatmul.mubr.bf16.gmra.mrb[0].mxu0 %v232
  %v378 = vpop.f32.mrb[0].mxu0
  %v379 = vadd.f32 %v102, %v378
  %v380 = vpop.f32.mrb[0].mxu0
  %v381 = vpop.f32.mrb[0].mxu0
  %v382 = vadd.f32 %v102, %v381
  %v383 = vpop.f32.mrb[0].mxu0
  %384 = vmatprep.mubr.bf16.mxu0 0
  %385 = vmatmul.mubr.bf16.gmra.mrb[0].mxu0 %v233
  %v386 = vpop.f32.mrb[0].mxu0
  %v387 = vadd.f32 %v102, %v386
  %v388 = vpop.f32.mrb[0].mxu0
  %v389 = vpop.f32.mrb[0].mxu0
  %v390 = vadd.f32 %v102, %v389
  %v391 = vpop.f32.mrb[0].mxu0
  %392 = vmatprep.mubr.bf16.mxu0 0
  %393 = vmatmul.mubr.bf16.gmra.mrb[0].mxu0 %v234
  %v394 = vpop.f32.mrb[0].mxu0
  %v395 = vadd.f32 %v102, %v394
  %v396 = vpop.f32.mrb[0].mxu0
  %v397 = vpop.f32.mrb[0].mxu0
  %v398 = vadd.f32 %v102, %v397
  %v399 = vpop.f32.mrb[0].mxu0
  %400 = vmatprep.mubr.bf16.mxu0 0
  %401 = vmatmul.mubr.bf16.gmra.mrb[0].mxu0 %v235
  %v402 = vpop.f32.mrb[0].mxu0
  %v403 = vadd.f32 %v102, %v402
  %v404 = vpop.f32.mrb[0].mxu0
  %v405 = vpop.f32.mrb[0].mxu0
  %v406 = vadd.f32 %v102, %v405
  %v407 = vpop.f32.mrb[0].mxu0
  %408 = vmatprep.mubr.bf16.mxu0 0
  %409 = vmatmul.mubr.bf16.gmra.mrb[0].mxu0 %v236
  %v410 = vpop.f32.mrb[0].mxu0
  %v411 = vadd.f32 %v102, %v410
  %v412 = vpop.f32.mrb[0].mxu0
  %v413 = vpop.f32.mrb[0].mxu0
  %v414 = vadd.f32 %v102, %v413
  %v415 = vpop.f32.mrb[0].mxu0
  %416 = vmatprep.mubr.bf16.mxu0 0
  %417 = vmatmul.mubr.bf16.gmra.mrb[0].mxu0 %v237
  %v418 = vpop.f32.mrb[0].mxu0
  %v419 = vadd.f32 %v102, %v418
  %v420 = vpop.f32.mrb[0].mxu0
  %v421 = vpop.f32.mrb[0].mxu0
  %v422 = vadd.f32 %v102, %v421
  %v423 = vpop.f32.mrb[0].mxu0
  %424 = vmatprep.mubr.bf16.mxu0 0
  %425 = vmatmul.mubr.bf16.gmra.mrb[0].mxu0 %v238
  %v426 = vpop.f32.mrb[0].mxu0
  %v427 = vadd.f32 %v102, %v426
  %v428 = vpop.f32.mrb[0].mxu0
  %v429 = vpop.f32.mrb[0].mxu0
  %v430 = vadd.f32 %v102, %v429
  %v431 = vpop.f32.mrb[0].mxu0
  %432 = vmatprep.mubr.bf16.mxu0 0
  %433 = vmatmul.mubr.bf16.gmra.mrb[0].mxu0 %v239
  %v434 = vpop.f32.mrb[0].mxu0
  %v435 = vadd.f32 %v102, %v434
  %v436 = vpop.f32.mrb[0].mxu0
  %v437 = vpop.f32.mrb[0].mxu0
  %v438 = vadd.f32 %v102, %v437
  %v439 = vpop.f32.mrb[0].mxu0
  %440 = vmatprep.mubr.bf16.mxu0 0
  %441 = vmatmul.mubr.bf16.gmra.mrb[0].mxu0 %v240
  %v442 = vpop.f32.mrb[0].mxu0
  %v443 = vadd.f32 %v102, %v442
  %v444 = vpop.f32.mrb[0].mxu0
  %v445 = vpop.f32.mrb[0].mxu0
  %v446 = vadd.f32 %v102, %v445
  %v447 = vpop.f32.mrb[0].mxu0
  %448 = vmatprep.mubr.bf16.mxu0 0
  %449 = vmatmul.mubr.bf16.gmra.mrb[0].mxu0 %v241
  %v450 = vpop.f32.mrb[0].mxu0
  %v451 = vadd.f32 %v102, %v450
  %v452 = vpop.f32.mrb[0].mxu0
  %v453 = vpop.f32.mrb[0].mxu0
  %v454 = vadd.f32 %v102, %v453
  %v455 = vpop.f32.mrb[0].mxu0
  %456 = vmatprep.mubr.bf16.mxu0 0
  %457 = vmatmul.mubr.bf16.gmra.mrb[0].mxu0 %v242
  %v458 = vpop.f32.mrb[0].mxu0
  %v459 = vadd.f32 %v102, %v458
  %v460 = vpop.f32.mrb[0].mxu0
  %v461 = vpop.f32.mrb[0].mxu0
  %v462 = vadd.f32 %v102, %v461
  %v463 = vpop.f32.mrb[0].mxu0
  %464 = vmatprep.mubr.bf16.mxu0 0
  %465 = vmatmul.mubr.bf16.gmra.mrb[0].mxu0 %v243
  %v466 = vpop.f32.mrb[0].mxu0
  %v467 = vadd.f32 %v102, %v466
  %v468 = vpop.f32.mrb[0].mxu0
  %v469 = vpop.f32.mrb[0].mxu0
  %v470 = vadd.f32 %v102, %v469
  %v471 = vpop.f32.mrb[0].mxu0
  %472 = vmatprep.mubr.bf16.mxu0 0
  %473 = vmatmul.mubr.bf16.gmra.mrb[0].mxu0 %v244
  %v474 = vpop.f32.mrb[0].mxu0
  %v475 = vadd.f32 %v102, %v474
  %v476 = vpop.f32.mrb[0].mxu0
  %v477 = vpop.f32.mrb[0].mxu0
  %v478 = vadd.f32 %v102, %v477
  %v479 = vpop.f32.mrb[0].mxu0
  %480 = vmatprep.mubr.bf16.mxu0 0
  %481 = vmatmul.mubr.bf16.gmra.mrb[0].mxu0 %v245
  %v482 = vpop.f32.mrb[0].mxu0
  %v483 = vadd.f32 %v102, %v482
  %v484 = vpop.f32.mrb[0].mxu0
  %v485 = vpop.f32.mrb[0].mxu0
  %v486 = vadd.f32 %v102, %v485
  %v487 = vpop.f32.mrb[0].mxu0
  %488 = vmatprep.mubr.bf16.mxu0 0
  %489 = vmatmul.mubr.bf16.gmra.mrb[0].mxu0 %v246
  %v490 = vpop.f32.mrb[0].mxu0
  %v491 = vadd.f32 %v102, %v490
  %v492 = vpop.f32.mrb[0].mxu0
  %v493 = vpop.f32.mrb[0].mxu0
  %v494 = vadd.f32 %v102, %v493
  %v495 = vpop.f32.mrb[0].mxu0
  %496 = vmatprep.mubr.bf16.mxu0 0
  %497 = vmatmul.mubr.bf16.gmra.mrb[0].mxu0 %v247
  %v498 = vpop.f32.mrb[0].mxu0
  %v499 = vadd.f32 %v102, %v498
  %v500 = vpop.f32.mrb[0].mxu0
  %v501 = vpop.f32.mrb[0].mxu0
  %v502 = vadd.f32 %v102, %v501
  %v503 = vpop.f32.mrb[0].mxu0
  %504 = vmatprep.mubr.bf16.mxu0 0
  %505 = vmatmul.mubr.bf16.gmra.mrb[0].mxu0 %v248
  %v506 = vpop.f32.mrb[0].mxu0
  %v507 = vadd.f32 %v102, %v506
  %v508 = vpop.f32.mrb[0].mxu0
  %v509 = vpop.f32.mrb[0].mxu0
  %v510 = vadd.f32 %v102, %v509
  %v511 = vpop.f32.mrb[0].mxu0
  %512 = vmatprep.mubr.bf16.mxu0 0
  %513 = vmatmul.mubr.bf16.gmra.mrb[0].mxu0 %v249
  %v514 = vpop.f32.mrb[0].mxu0
  %v515 = vadd.f32 %v102, %v514
  %v516 = vpop.f32.mrb[0].mxu0
  %v517 = vpop.f32.mrb[0].mxu0
  %v518 = vadd.f32 %v102, %v517
  %v519 = vpop.f32.mrb[0].mxu0
  %520 = vmatprep.mubr.bf16.mxu0 0
  %521 = vmatmul.mubr.bf16.gmra.mrb[0].mxu0 %v250
  %v522 = vpop.f32.mrb[0].mxu0
  %v523 = vadd.f32 %v102, %v522
  %v524 = vpop.f32.mrb[0].mxu0
  %v525 = vpop.f32.mrb[0].mxu0
  %v526 = vadd.f32 %v102, %v525
  %v527 = vpop.f32.mrb[0].mxu0
  %528 = vmatprep.mubr.bf16.mxu0 0
  %529 = vmatmul.mubr.bf16.gmra.mrb[0].mxu0 %v251
  %v530 = vpop.f32.mrb[0].mxu0
  %v531 = vadd.f32 %v102, %v530
  %v532 = vpop.f32.mrb[0].mxu0
  %v533 = vpop.f32.mrb[0].mxu0
  %v534 = vadd.f32 %v102, %v533
  %v535 = vpop.f32.mrb[0].mxu0
  %536 = vmatprep.mubr.bf16.mxu0 0
  %537 = vmatmul.mubr.bf16.gmra.mrb[0].mxu0 %v252
  %v538 = vpop.f32.mrb[0].mxu0
  %v539 = vadd.f32 %v102, %v538
  %v540 = vpop.f32.mrb[0].mxu0
  %v541 = vpop.f32.mrb[0].mxu0
  %v542 = vadd.f32 %v102, %v541
  %v543 = vpop.f32.mrb[0].mxu0
  %544 = vmatprep.mubr.bf16.mxu0 0
  %545 = vmatmul.mubr.bf16.gmra.mrb[0].mxu0 %v253
  %v546 = vpop.f32.mrb[0].mxu0
  %v547 = vadd.f32 %v102, %v546
  %v548 = vpop.f32.mrb[0].mxu0
  %v549 = vpop.f32.mrb[0].mxu0
  %v550 = vadd.f32 %v102, %v549
  %v551 = vpop.f32.mrb[0].mxu0
  %552 = vmatprep.mubr.bf16.mxu0 0
  %553 = vmatmul.mubr.bf16.gmra.mrb[0].mxu0 %v254
  %v554 = vpop.f32.mrb[0].mxu0
  %v555 = vadd.f32 %v102, %v554
  %v556 = vpop.f32.mrb[0].mxu0
  %v557 = vpop.f32.mrb[0].mxu0
  %v558 = vadd.f32 %v102, %v557
  %v559 = vpop.f32.mrb[0].mxu0
  %560 = vmatprep.mubr.bf16.mxu0 0
  %561 = vmatmul.mubr.bf16.gmra.mrb[0].mxu0 %v255
  %v562 = vpop.f32.mrb[0].mxu0
  %v563 = vadd.f32 %v102, %v562
  %v564 = vpop.f32.mrb[0].mxu0
  %v565 = vpop.f32.mrb[0].mxu0
  %v566 = vadd.f32 %v102, %v565
  %v567 = vpop.f32.mrb[0].mxu0
  %568 = vmatprep.mubr.bf16.mxu0 0
  %569 = vmatmul.mubr.bf16.gmra.mrb[0].mxu0 %v256
  %v570 = vpop.f32.mrb[0].mxu0
  %v571 = vadd.f32 %v102, %v570
  %v572 = vpop.f32.mrb[0].mxu0
  %v573 = vpop.f32.mrb[0].mxu0
  %v574 = vadd.f32 %v102, %v573
  %v575 = vpop.f32.mrb[0].mxu0
  %576 = vmatprep.mubr.bf16.mxu0 0
  %577 = vmatmul.mubr.bf16.gmra.mrb[0].mxu0 %v257
  %v578 = vpop.f32.mrb[0].mxu0
  %v579 = vadd.f32 %v102, %v578
  %v580 = vpop.f32.mrb[0].mxu0
  %v581 = vpop.f32.mrb[0].mxu0
  %v582 = vadd.f32 %v102, %v581
  %v583 = vpop.f32.mrb[0].mxu0
  %584 = vmatprep.mubr.bf16.mxu0 0
  %585 = vmatmul.mubr.bf16.gmra.mrb[0].mxu0 %v258
  %v586 = vpop.f32.mrb[0].mxu0
  %v587 = vadd.f32 %v102, %v586
  %v588 = vpop.f32.mrb[0].mxu0
  %v589 = vpop.f32.mrb[0].mxu0
  %v590 = vadd.f32 %v102, %v589
  %v591 = vpop.f32.mrb[0].mxu0
  %592 = vmatprep.mubr.bf16.mxu0 0
  %593 = vmatmul.mubr.bf16.gmra.mrb[0].mxu0 %v259
  %v594 = vpop.f32.mrb[0].mxu0
  %v595 = vadd.f32 %v102, %v594
  %v596 = vpop.f32.mrb[0].mxu0
  %v597 = vpop.f32.mrb[0].mxu0
  %v598 = vadd.f32 %v102, %v597
  %v599 = vpop.f32.mrb[0].mxu0
  %600 = vmatprep.mubr.bf16.mxu0 0
  %601 = vmatmul.mubr.bf16.gmra.mrb[0].mxu0 %v260
  %v602 = vpop.f32.mrb[0].mxu0
  %v603 = vadd.f32 %v102, %v602
  %v604 = vpop.f32.mrb[0].mxu0
  %v605 = vpop.f32.mrb[0].mxu0
  %v606 = vadd.f32 %v102, %v605
  %v607 = vpop.f32.mrb[0].mxu0
  %608 = vmatprep.mubr.bf16.mxu0 0
  %609 = vmatmul.mubr.bf16.gmra.mrb[0].mxu0 %v261
  %v610 = vpop.f32.mrb[0].mxu0
  %v611 = vadd.f32 %v102, %v610
  %v612 = vpop.f32.mrb[0].mxu0
  %v613 = vpop.f32.mrb[0].mxu0
  %v614 = vadd.f32 %v102, %v613
  %v615 = vpop.f32.mrb[0].mxu0
  %616 = vmatprep.mubr.bf16.mxu0 0
  %617 = vmatmul.mubr.bf16.gmra.mrb[0].mxu0 %v262
  %v618 = vpop.f32.mrb[0].mxu0
  %v619 = vadd.f32 %v102, %v618
  %v620 = vpop.f32.mrb[0].mxu0
  %v621 = vpop.f32.mrb[0].mxu0
  %v622 = vadd.f32 %v102, %v621
  %v623 = vpop.f32.mrb[0].mxu0
  %624 = vmatprep.mubr.bf16.mxu0 0
  %625 = vmatmul.mubr.bf16.gmra.mrb[0].mxu0 %v263
  %v626 = vpop.f32.mrb[0].mxu0
  %v627 = vadd.f32 %v102, %v626
  %v628 = vpop.f32.mrb[0].mxu0
  %v629 = vpop.f32.mrb[0].mxu0
  %v630 = vadd.f32 %v102, %v629
  %v631 = vpop.f32.mrb[0].mxu0
  %632 = vdwg.mxu0
  %v633 = vxor.u32 %v379, 2147483648
  %v634 = vxor.u32 %v382, 2147483648
  %v635 = vxor.u32 %v387, 2147483648
  %v636 = vxor.u32 %v390, 2147483648
  %v637 = vxor.u32 %v395, 2147483648
  %v638 = vxor.u32 %v398, 2147483648
  %v639 = vxor.u32 %v403, 2147483648
  %v640 = vxor.u32 %v406, 2147483648
  %v641 = vxor.u32 %v411, 2147483648
  %v642 = vxor.u32 %v414, 2147483648
  %v643 = vxor.u32 %v419, 2147483648
  %v644 = vxor.u32 %v422, 2147483648
  %v645 = vxor.u32 %v427, 2147483648
  %v646 = vxor.u32 %v430, 2147483648
  %v647 = vxor.u32 %v435, 2147483648
  %v648 = vxor.u32 %v438, 2147483648
  %v649 = vxor.u32 %v443, 2147483648
  %v650 = vxor.u32 %v446, 2147483648
  %v651 = vxor.u32 %v451, 2147483648
  %v652 = vxor.u32 %v454, 2147483648
  %v653 = vxor.u32 %v459, 2147483648
  %v654 = vxor.u32 %v462, 2147483648
  %v655 = vxor.u32 %v467, 2147483648
  %v656 = vxor.u32 %v470, 2147483648
  %v657 = vxor.u32 %v475, 2147483648
  %v658 = vxor.u32 %v478, 2147483648
  %v659 = vxor.u32 %v483, 2147483648
  %v660 = vxor.u32 %v486, 2147483648
  %v661 = vxor.u32 %v491, 2147483648
  %v662 = vxor.u32 %v494, 2147483648
  %v663 = vxor.u32 %v499, 2147483648
  %v664 = vxor.u32 %v502, 2147483648
  %v665 = vxor.u32 %v507, 2147483648
  %v666 = vxor.u32 %v510, 2147483648
  %v667 = vxor.u32 %v515, 2147483648
  %v668 = vxor.u32 %v518, 2147483648
  %v669 = vxor.u32 %v523, 2147483648
  %v670 = vxor.u32 %v526, 2147483648
  %v671 = vxor.u32 %v531, 2147483648
  %v672 = vxor.u32 %v534, 2147483648
  %v673 = vxor.u32 %v539, 2147483648
  %v674 = vxor.u32 %v542, 2147483648
  %v675 = vxor.u32 %v547, 2147483648
  %v676 = vxor.u32 %v550, 2147483648
  %v677 = vxor.u32 %v555, 2147483648
  %v678 = vxor.u32 %v558, 2147483648
  %v679 = vxor.u32 %v563, 2147483648
  %v680 = vxor.u32 %v566, 2147483648
  %v681 = vxor.u32 %v571, 2147483648
  %v682 = vxor.u32 %v574, 2147483648
  %v683 = vxor.u32 %v579, 2147483648
  %v684 = vxor.u32 %v582, 2147483648
  %v685 = vxor.u32 %v587, 2147483648
  %v686 = vxor.u32 %v590, 2147483648
  %v687 = vxor.u32 %v595, 2147483648
  %v688 = vxor.u32 %v598, 2147483648
  %v689 = vxor.u32 %v603, 2147483648
  %v690 = vxor.u32 %v606, 2147483648
  %v691 = vxor.u32 %v611, 2147483648
  %v692 = vxor.u32 %v614, 2147483648
  %v693 = vxor.u32 %v619, 2147483648
  %v694 = vxor.u32 %v622, 2147483648
  %v695 = vxor.u32 %v627, 2147483648
  %v696 = vxor.u32 %v630, 2147483648
  %v697 = vmul.f32 %v633, 1.442695
  %v698 = vpow.pop %v697
  %v699 = vmul.f32 %v634, 1.442695
  %v700 = vpow.pop %v699
  %v701 = vmul.f32 %v635, 1.442695
  %v702 = vpow.pop %v701
  %v703 = vmul.f32 %v636, 1.442695
  %v704 = vpow.pop %v703
  %v705 = vmul.f32 %v637, 1.442695
  %v706 = vpow.pop %v705
  %v707 = vmul.f32 %v638, 1.442695
  %v708 = vpow.pop %v707
  %v709 = vmul.f32 %v639, 1.442695
  %v710 = vpow.pop %v709
  %v711 = vmul.f32 %v640, 1.442695
  %v712 = vpow.pop %v711
  %v713 = vmul.f32 %v641, 1.442695
  %v714 = vpow.pop %v713
  %v715 = vmul.f32 %v642, 1.442695
  %v716 = vpow.pop %v715
  %v717 = vmul.f32 %v643, 1.442695
  %v718 = vpow.pop %v717
  %v719 = vmul.f32 %v644, 1.442695
  %v720 = vpow.pop %v719
  %v721 = vmul.f32 %v645, 1.442695
  %v722 = vpow.pop %v721
  %v723 = vmul.f32 %v646, 1.442695
  %v724 = vpow.pop %v723
  %v725 = vmul.f32 %v647, 1.442695
  %v726 = vpow.pop %v725
  %v727 = vmul.f32 %v648, 1.442695
  %v728 = vpow.pop %v727
  %v729 = vmul.f32 %v649, 1.442695
  %v730 = vpow.pop %v729
  %v731 = vmul.f32 %v650, 1.442695
  %v732 = vpow.pop %v731
  %v733 = vmul.f32 %v651, 1.442695
  %v734 = vpow.pop %v733
  %v735 = vmul.f32 %v652, 1.442695
  %v736 = vpow.pop %v735
  %v737 = vmul.f32 %v653, 1.442695
  %v738 = vpow.pop %v737
  %v739 = vmul.f32 %v654, 1.442695
  %v740 = vpow.pop %v739
  %v741 = vmul.f32 %v655, 1.442695
  %v742 = vpow.pop %v741
  %v743 = vmul.f32 %v656, 1.442695
  %v744 = vpow.pop %v743
  %v745 = vmul.f32 %v657, 1.442695
  %v746 = vpow.pop %v745
  %v747 = vmul.f32 %v658, 1.442695
  %v748 = vpow.pop %v747
  %v749 = vmul.f32 %v659, 1.442695
  %v750 = vpow.pop %v749
  %v751 = vmul.f32 %v660, 1.442695
  %v752 = vpow.pop %v751
  %v753 = vmul.f32 %v661, 1.442695
  %v754 = vpow.pop %v753
  %v755 = vmul.f32 %v662, 1.442695
  %v756 = vpow.pop %v755
  %v757 = vmul.f32 %v663, 1.442695
  %v758 = vpow.pop %v757
  %v759 = vmul.f32 %v664, 1.442695
  %v760 = vpow.pop %v759
  %v761 = vmul.f32 %v665, 1.442695
  %v762 = vpow.pop %v761
  %v763 = vmul.f32 %v666, 1.442695
  %v764 = vpow.pop %v763
  %v765 = vmul.f32 %v667, 1.442695
  %v766 = vpow.pop %v765
  %v767 = vmul.f32 %v668, 1.442695
  %v768 = vpow.pop %v767
  %v769 = vmul.f32 %v669, 1.442695
  %v770 = vpow.pop %v769
  %v771 = vmul.f32 %v670, 1.442695
  %v772 = vpow.pop %v771
  %v773 = vmul.f32 %v671, 1.442695
  %v774 = vpow.pop %v773
  %v775 = vmul.f32 %v672, 1.442695
  %v776 = vpow.pop %v775
  %v777 = vmul.f32 %v673, 1.442695
  %v778 = vpow.pop %v777
  %v779 = vmul.f32 %v674, 1.442695
  %v780 = vpow.pop %v779
  %v781 = vmul.f32 %v675, 1.442695
  %v782 = vpow.pop %v781
  %v783 = vmul.f32 %v676, 1.442695
  %v784 = vpow.pop %v783
  %v785 = vmul.f32 %v677, 1.442695
  %v786 = vpow.pop %v785
  %v787 = vmul.f32 %v678, 1.442695
  %v788 = vpow.pop %v787
  %v789 = vmul.f32 %v679, 1.442695
  %v790 = vpow.pop %v789
  %v791 = vmul.f32 %v680, 1.442695
  %v792 = vpow.pop %v791
  %v793 = vmul.f32 %v681, 1.442695
  %v794 = vpow.pop %v793
  %v795 = vmul.f32 %v682, 1.442695
  %v796 = vpow.pop %v795
  %v797 = vmul.f32 %v683, 1.442695
  %v798 = vpow.pop %v797
  %v799 = vmul.f32 %v684, 1.442695
  %v800 = vpow.pop %v799
  %v801 = vmul.f32 %v685, 1.442695
  %v802 = vpow.pop %v801
  %v803 = vmul.f32 %v686, 1.442695
  %v804 = vpow.pop %v803
  %v805 = vmul.f32 %v687, 1.442695
  %v806 = vpow.pop %v805
  %v807 = vmul.f32 %v688, 1.442695
  %v808 = vpow.pop %v807
  %v809 = vmul.f32 %v689, 1.442695
  %v810 = vpow.pop %v809
  %v811 = vmul.f32 %v690, 1.442695
  %v812 = vpow.pop %v811
  %v813 = vmul.f32 %v691, 1.442695
  %v814 = vpow.pop %v813
  %v815 = vmul.f32 %v692, 1.442695
  %v816 = vpow.pop %v815
  %v817 = vmul.f32 %v693, 1.442695
  %v818 = vpow.pop %v817
  %v819 = vmul.f32 %v694, 1.442695
  %v820 = vpow.pop %v819
  %v821 = vmul.f32 %v695, 1.442695
  %v822 = vpow.pop %v821
  %v823 = vmul.f32 %v696, 1.442695
  %v824 = vpow.pop %v823
  %v825 = vadd.f32 %v698, 1.0
  %v826 = vadd.f32 %v700, 1.0
  %v827 = vadd.f32 %v702, 1.0
  %v828 = vadd.f32 %v704, 1.0
  %v829 = vadd.f32 %v706, 1.0
  %v830 = vadd.f32 %v708, 1.0
  %v831 = vadd.f32 %v710, 1.0
  %v832 = vadd.f32 %v712, 1.0
  %v833 = vadd.f32 %v714, 1.0
  %v834 = vadd.f32 %v716, 1.0
  %v835 = vadd.f32 %v718, 1.0
  %v836 = vadd.f32 %v720, 1.0
  %v837 = vadd.f32 %v722, 1.0
  %v838 = vadd.f32 %v724, 1.0
  %v839 = vadd.f32 %v726, 1.0
  %v840 = vadd.f32 %v728, 1.0
  %v841 = vadd.f32 %v730, 1.0
  %v842 = vadd.f32 %v732, 1.0
  %v843 = vadd.f32 %v734, 1.0
  %v844 = vadd.f32 %v736, 1.0
  %v845 = vadd.f32 %v738, 1.0
  %v846 = vadd.f32 %v740, 1.0
  %v847 = vadd.f32 %v742, 1.0
  %v848 = vadd.f32 %v744, 1.0
  %v849 = vadd.f32 %v746, 1.0
  %v850 = vadd.f32 %v748, 1.0
  %v851 = vadd.f32 %v750, 1.0
  %v852 = vadd.f32 %v752, 1.0
  %v853 = vadd.f32 %v754, 1.0
  %v854 = vadd.f32 %v756, 1.0
  %v855 = vadd.f32 %v758, 1.0
  %v856 = vadd.f32 %v760, 1.0
  %v857 = vadd.f32 %v762, 1.0
  %v858 = vadd.f32 %v764, 1.0
  %v859 = vadd.f32 %v766, 1.0
  %v860 = vadd.f32 %v768, 1.0
  %v861 = vadd.f32 %v770, 1.0
  %v862 = vadd.f32 %v772, 1.0
  %v863 = vadd.f32 %v774, 1.0
  %v864 = vadd.f32 %v776, 1.0
  %v865 = vadd.f32 %v778, 1.0
  %v866 = vadd.f32 %v780, 1.0
  %v867 = vadd.f32 %v782, 1.0
  %v868 = vadd.f32 %v784, 1.0
  %v869 = vadd.f32 %v786, 1.0
  %v870 = vadd.f32 %v788, 1.0
  %v871 = vadd.f32 %v790, 1.0
  %v872 = vadd.f32 %v792, 1.0
  %v873 = vadd.f32 %v794, 1.0
  %v874 = vadd.f32 %v796, 1.0
  %v875 = vadd.f32 %v798, 1.0
  %v876 = vadd.f32 %v800, 1.0
  %v877 = vadd.f32 %v802, 1.0
  %v878 = vadd.f32 %v804, 1.0
  %v879 = vadd.f32 %v806, 1.0
  %v880 = vadd.f32 %v808, 1.0
  %v881 = vadd.f32 %v810, 1.0
  %v882 = vadd.f32 %v812, 1.0
  %v883 = vadd.f32 %v814, 1.0
  %v884 = vadd.f32 %v816, 1.0
  %v885 = vadd.f32 %v818, 1.0
  %v886 = vadd.f32 %v820, 1.0
  %v887 = vadd.f32 %v822, 1.0
  %v888 = vadd.f32 %v824, 1.0
  %v889 = vrcp.pop %v825
  %v890 = vmul.f32 1.0, %v889
  %v891 = vrcp.pop %v826
  %v892 = vmul.f32 1.0, %v891
  %v893 = vrcp.pop %v827
  %v894 = vmul.f32 1.0, %v893
  %v895 = vrcp.pop %v828
  %v896 = vmul.f32 1.0, %v895
  %v897 = vrcp.pop %v829
  %v898 = vmul.f32 1.0, %v897
  %v899 = vrcp.pop %v830
  %v900 = vmul.f32 1.0, %v899
  %v901 = vrcp.pop %v831
  %v902 = vmul.f32 1.0, %v901
  %v903 = vrcp.pop %v832
  %v904 = vmul.f32 1.0, %v903
  %v905 = vrcp.pop %v833
  %v906 = vmul.f32 1.0, %v905
  %v907 = vrcp.pop %v834
  %v908 = vmul.f32 1.0, %v907
  %v909 = vrcp.pop %v835
  %v910 = vmul.f32 1.0, %v909
  %v911 = vrcp.pop %v836
  %v912 = vmul.f32 1.0, %v911
  %v913 = vrcp.pop %v837
  %v914 = vmul.f32 1.0, %v913
  %v915 = vrcp.pop %v838
  %v916 = vmul.f32 1.0, %v915
  %v917 = vrcp.pop %v839
  %v918 = vmul.f32 1.0, %v917
  %v919 = vrcp.pop %v840
  %v920 = vmul.f32 1.0, %v919
  %v921 = vrcp.pop %v841
  %v922 = vmul.f32 1.0, %v921
  %v923 = vrcp.pop %v842
  %v924 = vmul.f32 1.0, %v923
  %v925 = vrcp.pop %v843
  %v926 = vmul.f32 1.0, %v925
  %v927 = vrcp.pop %v844
  %v928 = vmul.f32 1.0, %v927
  %v929 = vrcp.pop %v845
  %v930 = vmul.f32 1.0, %v929
  %v931 = vrcp.pop %v846
  %v932 = vmul.f32 1.0, %v931
  %v933 = vrcp.pop %v847
  %v934 = vmul.f32 1.0, %v933
  %v935 = vrcp.pop %v848
  %v936 = vmul.f32 1.0, %v935
  %v937 = vrcp.pop %v849
  %v938 = vmul.f32 1.0, %v937
  %v939 = vrcp.pop %v850
  %v940 = vmul.f32 1.0, %v939
  %v941 = vrcp.pop %v851
  %v942 = vmul.f32 1.0, %v941
  %v943 = vrcp.pop %v852
  %v944 = vmul.f32 1.0, %v943
  %v945 = vrcp.pop %v853
  %v946 = vmul.f32 1.0, %v945
  %v947 = vrcp.pop %v854
  %v948 = vmul.f32 1.0, %v947
  %v949 = vrcp.pop %v855
  %v950 = vmul.f32 1.0, %v949
  %v951 = vrcp.pop %v856
  %v952 = vmul.f32 1.0, %v951
  %v953 = vrcp.pop %v857
  %v954 = vmul.f32 1.0, %v953
  %v955 = vrcp.pop %v858
  %v956 = vmul.f32 1.0, %v955
  %v957 = vrcp.pop %v859
  %v958 = vmul.f32 1.0, %v957
  %v959 = vrcp.pop %v860
  %v960 = vmul.f32 1.0, %v959
  %v961 = vrcp.pop %v861
  %v962 = vmul.f32 1.0, %v961
  %v963 = vrcp.pop %v862
  %v964 = vmul.f32 1.0, %v963
  %v965 = vrcp.pop %v863
  %v966 = vmul.f32 1.0, %v965
  %v967 = vrcp.pop %v864
  %v968 = vmul.f32 1.0, %v967
  %v969 = vrcp.pop %v865
  %v970 = vmul.f32 1.0, %v969
  %v971 = vrcp.pop %v866
  %v972 = vmul.f32 1.0, %v971
  %v973 = vrcp.pop %v867
  %v974 = vmul.f32 1.0, %v973
  %v975 = vrcp.pop %v868
  %v976 = vmul.f32 1.0, %v975
  %v977 = vrcp.pop %v869
  %v978 = vmul.f32 1.0, %v977
  %v979 = vrcp.pop %v870
  %v980 = vmul.f32 1.0, %v979
  %v981 = vrcp.pop %v871
  %v982 = vmul.f32 1.0, %v981
  %v983 = vrcp.pop %v872
  %v984 = vmul.f32 1.0, %v983
  %v985 = vrcp.pop %v873
  %v986 = vmul.f32 1.0, %v985
  %v987 = vrcp.pop %v874
  %v988 = vmul.f32 1.0, %v987
  %v989 = vrcp.pop %v875
  %v990 = vmul.f32 1.0, %v989
  %v991 = vrcp.pop %v876
  %v992 = vmul.f32 1.0, %v991
  %v993 = vrcp.pop %v877
  %v994 = vmul.f32 1.0, %v993
  %v995 = vrcp.pop %v878
  %v996 = vmul.f32 1.0, %v995
  %v997 = vrcp.pop %v879
  %v998 = vmul.f32 1.0, %v997
  %v999 = vrcp.pop %v880
  %v1000 = vmul.f32 1.0, %v999
  %v1001 = vrcp.pop %v881
  %v1002 = vmul.f32 1.0, %v1001
  %v1003 = vrcp.pop %v882
  %v1004 = vmul.f32 1.0, %v1003
  %v1005 = vrcp.pop %v883
  %v1006 = vmul.f32 1.0, %v1005
  %v1007 = vrcp.pop %v884
  %v1008 = vmul.f32 1.0, %v1007
  %v1009 = vrcp.pop %v885
  %v1010 = vmul.f32 1.0, %v1009
  %v1011 = vrcp.pop %v886
  %v1012 = vmul.f32 1.0, %v1011
  %v1013 = vrcp.pop %v887
  %v1014 = vmul.f32 1.0, %v1013
  %v1015 = vrcp.pop %v888
  %v1016 = vmul.f32 1.0, %v1015
  %vm1017 = vcmask 7168
  %1018 = vst.msk [vmem:[%s3] sm:$0xff] %vm1017, %v890
  %1019 = vst.msk [vmem:[%s3 + $0x8] sm:$0xff] %vm1017, %v892
  %1020 = vst.msk [vmem:[%s3 + $0x10] sm:$0xff] %vm1017, %v894
  %1021 = vst.msk [vmem:[%s3 + $0x18] sm:$0xff] %vm1017, %v896
  %1022 = vst.msk [vmem:[%s3 + $0x20] sm:$0xff] %vm1017, %v898
  %1023 = vst.msk [vmem:[%s3 + $0x28] sm:$0xff] %vm1017, %v900
  %1024 = vst.msk [vmem:[%s3 + $0x30] sm:$0xff] %vm1017, %v902
  %1025 = vst.msk [vmem:[%s3 + $0x38] sm:$0xff] %vm1017, %v904
  %1026 = vst.msk [vmem:[%s3 + $0x40] sm:$0xff] %vm1017, %v906
  %1027 = vst.msk [vmem:[%s3 + $0x48] sm:$0xff] %vm1017, %v908
  %1028 = vst.msk [vmem:[%s3 + $0x50] sm:$0xff] %vm1017, %v910
  %1029 = vst.msk [vmem:[%s3 + $0x58] sm:$0xff] %vm1017, %v912
  %1030 = vst.msk [vmem:[%s3 + $0x60] sm:$0xff] %vm1017, %v914
  %1031 = vst.msk [vmem:[%s3 + $0x68] sm:$0xff] %vm1017, %v916
  %1032 = vst.msk [vmem:[%s3 + $0x70] sm:$0xff] %vm1017, %v918
  %1033 = vst.msk [vmem:[%s3 + $0x78] sm:$0xff] %vm1017, %v920
  %1034 = vst.msk [vmem:[%s3 + $0x80] sm:$0xff] %vm1017, %v922
  %1035 = vst.msk [vmem:[%s3 + $0x88] sm:$0xff] %vm1017, %v924
  %1036 = vst.msk [vmem:[%s3 + $0x90] sm:$0xff] %vm1017, %v926
  %1037 = vst.msk [vmem:[%s3 + $0x98] sm:$0xff] %vm1017, %v928
  %1038 = vst.msk [vmem:[%s3 + $0xa0] sm:$0xff] %vm1017, %v930
  %1039 = vst.msk [vmem:[%s3 + $0xa8] sm:$0xff] %vm1017, %v932
  %1040 = vst.msk [vmem:[%s3 + $0xb0] sm:$0xff] %vm1017, %v934
  %1041 = vst.msk [vmem:[%s3 + $0xb8] sm:$0xff] %vm1017, %v936
  %1042 = vst.msk [vmem:[%s3 + $0xc0] sm:$0xff] %vm1017, %v938
  %1043 = vst.msk [vmem:[%s3 + $0xc8] sm:$0xff] %vm1017, %v940
  %1044 = vst.msk [vmem:[%s3 + $0xd0] sm:$0xff] %vm1017, %v942
  %1045 = vst.msk [vmem:[%s3 + $0xd8] sm:$0xff] %vm1017, %v944
  %1046 = vst.msk [vmem:[%s3 + $0xe0] sm:$0xff] %vm1017, %v946
  %1047 = vst.msk [vmem:[%s3 + $0xe8] sm:$0xff] %vm1017, %v948
  %1048 = vst.msk [vmem:[%s3 + $0xf0] sm:$0xff] %vm1017, %v950
  %1049 = vst.msk [vmem:[%s3 + $0xf8] sm:$0xff] %vm1017, %v952
  %1050 = vst.msk [vmem:[%s3 + $0x100] sm:$0xff] %vm1017, %v954
  %1051 = vst.msk [vmem:[%s3 + $0x108] sm:$0xff] %vm1017, %v956
  %1052 = vst.msk [vmem:[%s3 + $0x110] sm:$0xff] %vm1017, %v958
  %1053 = vst.msk [vmem:[%s3 + $0x118] sm:$0xff] %vm1017, %v960
  %1054 = vst.msk [vmem:[%s3 + $0x120] sm:$0xff] %vm1017, %v962
  %1055 = vst.msk [vmem:[%s3 + $0x128] sm:$0xff] %vm1017, %v964
  %1056 = vst.msk [vmem:[%s3 + $0x130] sm:$0xff] %vm1017, %v966
  %1057 = vst.msk [vmem:[%s3 + $0x138] sm:$0xff] %vm1017, %v968
  %1058 = vst.msk [vmem:[%s3 + $0x140] sm:$0xff] %vm1017, %v970
  %1059 = vst.msk [vmem:[%s3 + $0x148] sm:$0xff] %vm1017, %v972
  %1060 = vst.msk [vmem:[%s3 + $0x150] sm:$0xff] %vm1017, %v974
  %1061 = vst.msk [vmem:[%s3 + $0x158] sm:$0xff] %vm1017, %v976
  %1062 = vst.msk [vmem:[%s3 + $0x160] sm:$0xff] %vm1017, %v978
  %1063 = vst.msk [vmem:[%s3 + $0x168] sm:$0xff] %vm1017, %v980
  %1064 = vst.msk [vmem:[%s3 + $0x170] sm:$0xff] %vm1017, %v982
  %1065 = vst.msk [vmem:[%s3 + $0x178] sm:$0xff] %vm1017, %v984
  %1066 = vst.msk [vmem:[%s3 + $0x180] sm:$0xff] %vm1017, %v986
  %1067 = vst.msk [vmem:[%s3 + $0x188] sm:$0xff] %vm1017, %v988
  %1068 = vst.msk [vmem:[%s3 + $0x190] sm:$0xff] %vm1017, %v990
  %1069 = vst.msk [vmem:[%s3 + $0x198] sm:$0xff] %vm1017, %v992
  %1070 = vst.msk [vmem:[%s3 + $0x1a0] sm:$0xff] %vm1017, %v994
  %1071 = vst.msk [vmem:[%s3 + $0x1a8] sm:$0xff] %vm1017, %v996
  %1072 = vst.msk [vmem:[%s3 + $0x1b0] sm:$0xff] %vm1017, %v998
  %1073 = vst.msk [vmem:[%s3 + $0x1b8] sm:$0xff] %vm1017, %v1000
  %1074 = vst.msk [vmem:[%s3 + $0x1c0] sm:$0xff] %vm1017, %v1002
  %1075 = vst.msk [vmem:[%s3 + $0x1c8] sm:$0xff] %vm1017, %v1004
  %1076 = vst.msk [vmem:[%s3 + $0x1d0] sm:$0xff] %vm1017, %v1006
  %1077 = vst.msk [vmem:[%s3 + $0x1d8] sm:$0xff] %vm1017, %v1008
  %1078 = vst.msk [vmem:[%s3 + $0x1e0] sm:$0xff] %vm1017, %v1010
  %1079 = vst.msk [vmem:[%s3 + $0x1e8] sm:$0xff] %vm1017, %v1012
  %1080 = vst.msk [vmem:[%s3 + $0x1f0] sm:$0xff] %vm1017, %v1014
  %1081 = vst.msk [vmem:[%s3 + $0x1f8] sm:$0xff] %vm1017, %v1016
  %s1082 = scalar_lea.vmem %s0, 256
  %v1083 = vld [vmem:[%s1082] sm:$0xf]
  %v1084 = vld [vmem:[%s1082 + $0x4] sm:$0xf]
  %v1085 = vld [vmem:[%s1082 + $0x8] sm:$0xf]
  %v1086 = vld [vmem:[%s1082 + $0xc] sm:$0xf]
  %v1087 = vld [vmem:[%s1082 + $0x10] sm:$0xf]
  %v1088 = vld [vmem:[%s1082 + $0x14] sm:$0xf]
  %v1089 = vld [vmem:[%s1082 + $0x18] sm:$0xf]
  %v1090 = vld [vmem:[%s1082 + $0x1c] sm:$0xf]
  %v1091 = vld [vmem:[%s1082 + $0x20] sm:$0xf]
  %v1092 = vld [vmem:[%s1082 + $0x24] sm:$0xf]
  %v1093 = vld [vmem:[%s1082 + $0x28] sm:$0xf]
  %v1094 = vld [vmem:[%s1082 + $0x2c] sm:$0xf]
  %v1095 = vld [vmem:[%s1082 + $0x30] sm:$0xf]
  %v1096 = vld [vmem:[%s1082 + $0x34] sm:$0xf]
  %v1097 = vld [vmem:[%s1082 + $0x38] sm:$0xf]
  %v1098 = vld [vmem:[%s1082 + $0x3c] sm:$0xf]
  %v1099 = vld [vmem:[%s1082 + $0x40] sm:$0xf]
  %v1100 = vld [vmem:[%s1082 + $0x44] sm:$0xf]
  %v1101 = vld [vmem:[%s1082 + $0x48] sm:$0xf]
  %v1102 = vld [vmem:[%s1082 + $0x4c] sm:$0xf]
  %v1103 = vld [vmem:[%s1082 + $0x50] sm:$0xf]
  %v1104 = vld [vmem:[%s1082 + $0x54] sm:$0xf]
  %v1105 = vld [vmem:[%s1082 + $0x58] sm:$0xf]
  %v1106 = vld [vmem:[%s1082 + $0x5c] sm:$0xf]
  %v1107 = vld [vmem:[%s1082 + $0x60] sm:$0xf]
  %v1108 = vld [vmem:[%s1082 + $0x64] sm:$0xf]
  %v1109 = vld [vmem:[%s1082 + $0x68] sm:$0xf]
  %v1110 = vld [vmem:[%s1082 + $0x6c] sm:$0xf]
  %v1111 = vld [vmem:[%s1082 + $0x70] sm:$0xf]
  %v1112 = vld [vmem:[%s1082 + $0x74] sm:$0xf]
  %v1113 = vld [vmem:[%s1082 + $0x78] sm:$0xf]
  %v1114 = vld [vmem:[%s1082 + $0x7c] sm:$0xf]
  %v1115 = vld [vmem:[%s1082 + $0x80] sm:$0xf]
  %v1116 = vld [vmem:[%s1082 + $0x84] sm:$0xf]
  %v1117 = vld [vmem:[%s1082 + $0x88] sm:$0xf]
  %v1118 = vld [vmem:[%s1082 + $0x8c] sm:$0xf]
  %v1119 = vld [vmem:[%s1082 + $0x90] sm:$0xf]
  %v1120 = vld [vmem:[%s1082 + $0x94] sm:$0xf]
  %v1121 = vld [vmem:[%s1082 + $0x98] sm:$0xf]
  %v1122 = vld [vmem:[%s1082 + $0x9c] sm:$0xf]
  %v1123 = vld [vmem:[%s1082 + $0xa0] sm:$0xf]
  %v1124 = vld [vmem:[%s1082 + $0xa4] sm:$0xf]
  %v1125 = vld [vmem:[%s1082 + $0xa8] sm:$0xf]
  %v1126 = vld [vmem:[%s1082 + $0xac] sm:$0xf]
  %v1127 = vld [vmem:[%s1082 + $0xb0] sm:$0xf]
  %v1128 = vld [vmem:[%s1082 + $0xb4] sm:$0xf]
  %v1129 = vld [vmem:[%s1082 + $0xb8] sm:$0xf]
  %v1130 = vld [vmem:[%s1082 + $0xbc] sm:$0xf]
  %v1131 = vld [vmem:[%s1082 + $0xc0] sm:$0xf]
  %v1132 = vld [vmem:[%s1082 + $0xc4] sm:$0xf]
  %v1133 = vld [vmem:[%s1082 + $0xc8] sm:$0xf]
  %v1134 = vld [vmem:[%s1082 + $0xcc] sm:$0xf]
  %v1135 = vld [vmem:[%s1082 + $0xd0] sm:$0xf]
  %v1136 = vld [vmem:[%s1082 + $0xd4] sm:$0xf]
  %v1137 = vld [vmem:[%s1082 + $0xd8] sm:$0xf]
  %v1138 = vld [vmem:[%s1082 + $0xdc] sm:$0xf]
  %v1139 = vld [vmem:[%s1082 + $0xe0] sm:$0xf]
  %v1140 = vld [vmem:[%s1082 + $0xe4] sm:$0xf]
  %v1141 = vld [vmem:[%s1082 + $0xe8] sm:$0xf]
  %v1142 = vld [vmem:[%s1082 + $0xec] sm:$0xf]
  %v1143 = vld [vmem:[%s1082 + $0xf0] sm:$0xf]
  %v1144 = vld [vmem:[%s1082 + $0xf4] sm:$0xf]
  %v1145 = vld [vmem:[%s1082 + $0xf8] sm:$0xf]
  %v1146 = vld [vmem:[%s1082 + $0xfc] sm:$0xf]
  %s1147 = scalar_lea.vmem %s1, 64
  %v1148 = vld [vmem:[%s1147] sm:$0xf]
  %v1149 = vld [vmem:[%s1147 + $0x4] sm:$0xf]
  %v1150 = vld [vmem:[%s1147 + $0x8] sm:$0xf]
  %v1151 = vld [vmem:[%s1147 + $0xc] sm:$0xf]
  %v1152 = vld [vmem:[%s1147 + $0x10] sm:$0xf]
  %v1153 = vld [vmem:[%s1147 + $0x14] sm:$0xf]
  %v1154 = vld [vmem:[%s1147 + $0x18] sm:$0xf]
  %v1155 = vld [vmem:[%s1147 + $0x1c] sm:$0xf]
  %v1156 = vld [vmem:[%s1147 + $0x20] sm:$0xf]
  %v1157 = vld [vmem:[%s1147 + $0x24] sm:$0xf]
  %v1158 = vld [vmem:[%s1147 + $0x28] sm:$0xf]
  %v1159 = vld [vmem:[%s1147 + $0x2c] sm:$0xf]
  %v1160 = vld [vmem:[%s1147 + $0x30] sm:$0xf]
  %v1161 = vld [vmem:[%s1147 + $0x34] sm:$0xf]
  %v1162 = vld [vmem:[%s1147 + $0x38] sm:$0xf]
  %v1163 = vld [vmem:[%s1147 + $0x3c] sm:$0xf]
  %v1164 = vld [vmem:[#allocation2] sm:$0x1]
  %v1166 = vlaneseq
  %v1167 = vshrl.u32 %v1166, 7
  %v1168 = vsub.s32 0, %v1167
  %v1169 = vrot.slane %v1164, %v1168
  %v1235 = vunpack.c.l.b16 %v1083
  %v1236 = vunpack.c.l.b16 %v1084
  %v1237 = vunpack.c.l.b16 %v1085
  %v1238 = vunpack.c.l.b16 %v1086
  %v1239 = vunpack.c.l.b16 %v1087
  %v1240 = vunpack.c.l.b16 %v1088
  %v1241 = vunpack.c.l.b16 %v1089
  %v1242 = vunpack.c.l.b16 %v1090
  %v1243 = vunpack.c.l.b16 %v1091
  %v1244 = vunpack.c.l.b16 %v1092
  %v1245 = vunpack.c.l.b16 %v1093
  %v1246 = vunpack.c.l.b16 %v1094
  %v1247 = vunpack.c.l.b16 %v1095
  %v1248 = vunpack.c.l.b16 %v1096
  %v1249 = vunpack.c.l.b16 %v1097
  %v1250 = vunpack.c.l.b16 %v1098
  %v1251 = vunpack.c.l.b16 %v1099
  %v1252 = vunpack.c.l.b16 %v1100
  %v1253 = vunpack.c.l.b16 %v1101
  %v1254 = vunpack.c.l.b16 %v1102
  %v1255 = vunpack.c.l.b16 %v1103
  %v1256 = vunpack.c.l.b16 %v1104
  %v1257 = vunpack.c.l.b16 %v1105
  %v1258 = vunpack.c.l.b16 %v1106
  %v1259 = vunpack.c.l.b16 %v1107
  %v1260 = vunpack.c.l.b16 %v1108
  %v1261 = vunpack.c.l.b16 %v1109
  %v1262 = vunpack.c.l.b16 %v1110
  %v1263 = vunpack.c.l.b16 %v1111
  %v1264 = vunpack.c.l.b16 %v1112
  %v1265 = vunpack.c.l.b16 %v1113
  %v1266 = vunpack.c.l.b16 %v1114
  %v1267 = vunpack.c.l.b16 %v1115
  %v1268 = vunpack.c.l.b16 %v1116
  %v1269 = vunpack.c.l.b16 %v1117
  %v1270 = vunpack.c.l.b16 %v1118
  %v1271 = vunpack.c.l.b16 %v1119
  %v1272 = vunpack.c.l.b16 %v1120
  %v1273 = vunpack.c.l.b16 %v1121
  %v1274 = vunpack.c.l.b16 %v1122
  %v1275 = vunpack.c.l.b16 %v1123
  %v1276 = vunpack.c.l.b16 %v1124
  %v1277 = vunpack.c.l.b16 %v1125
  %v1278 = vunpack.c.l.b16 %v1126
  %v1279 = vunpack.c.l.b16 %v1127
  %v1280 = vunpack.c.l.b16 %v1128
  %v1281 = vunpack.c.l.b16 %v1129
  %v1282 = vunpack.c.l.b16 %v1130
  %v1283 = vunpack.c.l.b16 %v1131
  %v1284 = vunpack.c.l.b16 %v1132
  %v1285 = vunpack.c.l.b16 %v1133
  %v1286 = vunpack.c.l.b16 %v1134
  %v1287 = vunpack.c.l.b16 %v1135
  %v1288 = vunpack.c.l.b16 %v1136
  %v1289 = vunpack.c.l.b16 %v1137
  %v1290 = vunpack.c.l.b16 %v1138
  %v1291 = vunpack.c.l.b16 %v1139
  %v1292 = vunpack.c.l.b16 %v1140
  %v1293 = vunpack.c.l.b16 %v1141
  %v1294 = vunpack.c.l.b16 %v1142
  %v1295 = vunpack.c.l.b16 %v1143
  %v1296 = vunpack.c.l.b16 %v1144
  %v1297 = vunpack.c.l.b16 %v1145
  %v1298 = vunpack.c.l.b16 %v1146
  %v1299 = vpack.c.b16 %v1236, %v1235
  %v1300 = vpack.c.b16 %v1238, %v1237
  %v1301 = vpack.c.b16 %v1240, %v1239
  %v1302 = vpack.c.b16 %v1242, %v1241
  %v1303 = vpack.c.b16 %v1244, %v1243
  %v1304 = vpack.c.b16 %v1246, %v1245
  %v1305 = vpack.c.b16 %v1248, %v1247
  %v1306 = vpack.c.b16 %v1250, %v1249
  %v1307 = vpack.c.b16 %v1252, %v1251
  %v1308 = vpack.c.b16 %v1254, %v1253
  %v1309 = vpack.c.b16 %v1256, %v1255
  %v1310 = vpack.c.b16 %v1258, %v1257
  %v1311 = vpack.c.b16 %v1260, %v1259
  %v1312 = vpack.c.b16 %v1262, %v1261
  %v1313 = vpack.c.b16 %v1264, %v1263
  %v1314 = vpack.c.b16 %v1266, %v1265
  %v1315 = vpack.c.b16 %v1268, %v1267
  %v1316 = vpack.c.b16 %v1270, %v1269
  %v1317 = vpack.c.b16 %v1272, %v1271
  %v1318 = vpack.c.b16 %v1274, %v1273
  %v1319 = vpack.c.b16 %v1276, %v1275
  %v1320 = vpack.c.b16 %v1278, %v1277
  %v1321 = vpack.c.b16 %v1280, %v1279
  %v1322 = vpack.c.b16 %v1282, %v1281
  %v1323 = vpack.c.b16 %v1284, %v1283
  %v1324 = vpack.c.b16 %v1286, %v1285
  %v1325 = vpack.c.b16 %v1288, %v1287
  %v1326 = vpack.c.b16 %v1290, %v1289
  %v1327 = vpack.c.b16 %v1292, %v1291
  %v1328 = vpack.c.b16 %v1294, %v1293
  %v1329 = vpack.c.b16 %v1296, %v1295
  %v1330 = vpack.c.b16 %v1298, %v1297
  %v1379 = vunpack.c.l.b16 %v1148
  %v1380 = vunpack.c.l.b16 %v1149
  %v1381 = vunpack.c.l.b16 %v1150
  %v1382 = vunpack.c.l.b16 %v1151
  %v1383 = vunpack.c.l.b16 %v1152
  %v1384 = vunpack.c.l.b16 %v1153
  %v1385 = vunpack.c.l.b16 %v1154
  %v1386 = vunpack.c.l.b16 %v1155
  %v1387 = vunpack.c.l.b16 %v1156
  %v1388 = vunpack.c.l.b16 %v1157
  %v1389 = vunpack.c.l.b16 %v1158
  %v1390 = vunpack.c.l.b16 %v1159
  %v1391 = vunpack.c.l.b16 %v1160
  %v1392 = vunpack.c.l.b16 %v1161
  %v1393 = vunpack.c.l.b16 %v1162
  %v1394 = vunpack.c.l.b16 %v1163
  %v1395 = vpack.c.b16 %v1380, %v1379
  %v1396 = vpack.c.b16 %v1382, %v1381
  %v1397 = vpack.c.b16 %v1384, %v1383
  %v1398 = vpack.c.b16 %v1386, %v1385
  %v1399 = vpack.c.b16 %v1388, %v1387
  %v1400 = vpack.c.b16 %v1390, %v1389
  %v1401 = vpack.c.b16 %v1392, %v1391
  %v1402 = vpack.c.b16 %v1394, %v1393
  %1411 = vmatprep.subr.bf16.mxu0 0
  %1412 = vmatpush1.bf16.msra.mxu0 %v1395
  %1413 = vmatprep.subr.bf16.mxu0 0
  %1414 = vmatpush1.bf16.msra.mxu0 %v1396
  %1415 = vmatprep.subr.bf16.mxu0 0
  %1416 = vmatpush1.bf16.msra.mxu0 %v1397
  %1417 = vmatprep.subr.bf16.mxu0 0
  %1418 = vmatpush1.bf16.msra.mxu0 %v1398
  %1419 = vmatprep.subr.bf16.mxu0 0
  %1420 = vmatpush1.bf16.msra.mxu0 %v1399
  %1421 = vmatprep.subr.bf16.mxu0 0
  %1422 = vmatpush1.bf16.msra.mxu0 %v1400
  %1423 = vmatprep.subr.bf16.mxu0 0
  %1424 = vmatpush1.bf16.msra.mxu0 %v1401
  %1425 = vmatprep.subr.bf16.mxu0 0
  %1426 = vmatpush1.bf16.msra.mxu0 %v1402
  %1427 = vmatprep.subr.bf16.mxu0 0
  %1428 = vmatpush1.bf16.msra.mxu0 0
  %1429 = vmatprep.subr.bf16.mxu0 0
  %1430 = vmatpush1.bf16.msra.mxu0 0
  %1431 = vmatprep.subr.bf16.mxu0 0
  %1432 = vmatpush1.bf16.msra.mxu0 0
  %1433 = vmatprep.subr.bf16.mxu0 0
  %1434 = vmatpush1.bf16.msra.mxu0 0
  %1435 = vmatprep.subr.bf16.mxu0 0
  %1436 = vmatpush1.bf16.msra.mxu0 0
  %1437 = vmatprep.subr.bf16.mxu0 0
  %1438 = vmatpush1.bf16.msra.mxu0 0
  %1439 = vmatprep.subr.bf16.mxu0 0
  %1440 = vmatpush1.bf16.msra.mxu0 0
  %1441 = vmatprep.subr.bf16.mxu0 0
  %1442 = vmatpush1.bf16.msra.mxu0 0
  %1443 = vmatprep.mubr.bf16.mxu0 0
  %1444 = vmatmul.mubr.bf16.gmra.mrb[0].mxu0 %v1299
  %v1445 = vpop.f32.mrb[0].mxu0
  %v1446 = vadd.f32 %v1169, %v1445
  %v1447 = vpop.f32.mrb[0].mxu0
  %v1448 = vpop.f32.mrb[0].mxu0
  %v1449 = vadd.f32 %v1169, %v1448
  %v1450 = vpop.f32.mrb[0].mxu0
  %1451 = vmatprep.mubr.bf16.mxu0 0
  %1452 = vmatmul.mubr.bf16.gmra.mrb[0].mxu0 %v1300
  %v1453 = vpop.f32.mrb[0].mxu0
  %v1454 = vadd.f32 %v1169, %v1453
  %v1455 = vpop.f32.mrb[0].mxu0
  %v1456 = vpop.f32.mrb[0].mxu0
  %v1457 = vadd.f32 %v1169, %v1456
  %v1458 = vpop.f32.mrb[0].mxu0
  %1459 = vmatprep.mubr.bf16.mxu0 0
  %1460 = vmatmul.mubr.bf16.gmra.mrb[0].mxu0 %v1301
  %v1461 = vpop.f32.mrb[0].mxu0
  %v1462 = vadd.f32 %v1169, %v1461
  %v1463 = vpop.f32.mrb[0].mxu0
  %v1464 = vpop.f32.mrb[0].mxu0
  %v1465 = vadd.f32 %v1169, %v1464
  %v1466 = vpop.f32.mrb[0].mxu0
  %1467 = vmatprep.mubr.bf16.mxu0 0
  %1468 = vmatmul.mubr.bf16.gmra.mrb[0].mxu0 %v1302
  %v1469 = vpop.f32.mrb[0].mxu0
  %v1470 = vadd.f32 %v1169, %v1469
  %v1471 = vpop.f32.mrb[0].mxu0
  %v1472 = vpop.f32.mrb[0].mxu0
  %v1473 = vadd.f32 %v1169, %v1472
  %v1474 = vpop.f32.mrb[0].mxu0
  %1475 = vmatprep.mubr.bf16.mxu0 0
  %1476 = vmatmul.mubr.bf16.gmra.mrb[0].mxu0 %v1303
  %v1477 = vpop.f32.mrb[0].mxu0
  %v1478 = vadd.f32 %v1169, %v1477
  %v1479 = vpop.f32.mrb[0].mxu0
  %v1480 = vpop.f32.mrb[0].mxu0
  %v1481 = vadd.f32 %v1169, %v1480
  %v1482 = vpop.f32.mrb[0].mxu0
  %1483 = vmatprep.mubr.bf16.mxu0 0
  %1484 = vmatmul.mubr.bf16.gmra.mrb[0].mxu0 %v1304
  %v1485 = vpop.f32.mrb[0].mxu0
  %v1486 = vadd.f32 %v1169, %v1485
  %v1487 = vpop.f32.mrb[0].mxu0
  %v1488 = vpop.f32.mrb[0].mxu0
  %v1489 = vadd.f32 %v1169, %v1488
  %v1490 = vpop.f32.mrb[0].mxu0
  %1491 = vmatprep.mubr.bf16.mxu0 0
  %1492 = vmatmul.mubr.bf16.gmra.mrb[0].mxu0 %v1305
  %v1493 = vpop.f32.mrb[0].mxu0
  %v1494 = vadd.f32 %v1169, %v1493
  %v1495 = vpop.f32.mrb[0].mxu0
  %v1496 = vpop.f32.mrb[0].mxu0
  %v1497 = vadd.f32 %v1169, %v1496
  %v1498 = vpop.f32.mrb[0].mxu0
  %1499 = vmatprep.mubr.bf16.mxu0 0
  %1500 = vmatmul.mubr.bf16.gmra.mrb[0].mxu0 %v1306
  %v1501 = vpop.f32.mrb[0].mxu0
  %v1502 = vadd.f32 %v1169, %v1501
  %v1503 = vpop.f32.mrb[0].mxu0
  %v1504 = vpop.f32.mrb[0].mxu0
  %v1505 = vadd.f32 %v1169, %v1504
  %v1506 = vpop.f32.mrb[0].mxu0
  %1507 = vmatprep.mubr.bf16.mxu0 0
  %1508 = vmatmul.mubr.bf16.gmra.mrb[0].mxu0 %v1307
  %v1509 = vpop.f32.mrb[0].mxu0
  %v1510 = vadd.f32 %v1169, %v1509
  %v1511 = vpop.f32.mrb[0].mxu0
  %v1512 = vpop.f32.mrb[0].mxu0
  %v1513 = vadd.f32 %v1169, %v1512
  %v1514 = vpop.f32.mrb[0].mxu0
  %1515 = vmatprep.mubr.bf16.mxu0 0
  %1516 = vmatmul.mubr.bf16.gmra.mrb[0].mxu0 %v1308
  %v1517 = vpop.f32.mrb[0].mxu0
  %v1518 = vadd.f32 %v1169, %v1517
  %v1519 = vpop.f32.mrb[0].mxu0
  %v1520 = vpop.f32.mrb[0].mxu0
  %v1521 = vadd.f32 %v1169, %v1520
  %v1522 = vpop.f32.mrb[0].mxu0
  %1523 = vmatprep.mubr.bf16.mxu0 0
  %1524 = vmatmul.mubr.bf16.gmra.mrb[0].mxu0 %v1309
  %v1525 = vpop.f32.mrb[0].mxu0
  %v1526 = vadd.f32 %v1169, %v1525
  %v1527 = vpop.f32.mrb[0].mxu0
  %v1528 = vpop.f32.mrb[0].mxu0
  %v1529 = vadd.f32 %v1169, %v1528
  %v1530 = vpop.f32.mrb[0].mxu0
  %1531 = vmatprep.mubr.bf16.mxu0 0
  %1532 = vmatmul.mubr.bf16.gmra.mrb[0].mxu0 %v1310
  %v1533 = vpop.f32.mrb[0].mxu0
  %v1534 = vadd.f32 %v1169, %v1533
  %v1535 = vpop.f32.mrb[0].mxu0
  %v1536 = vpop.f32.mrb[0].mxu0
  %v1537 = vadd.f32 %v1169, %v1536
  %v1538 = vpop.f32.mrb[0].mxu0
  %1539 = vmatprep.mubr.bf16.mxu0 0
  %1540 = vmatmul.mubr.bf16.gmra.mrb[0].mxu0 %v1311
  %v1541 = vpop.f32.mrb[0].mxu0
  %v1542 = vadd.f32 %v1169, %v1541
  %v1543 = vpop.f32.mrb[0].mxu0
  %v1544 = vpop.f32.mrb[0].mxu0
  %v1545 = vadd.f32 %v1169, %v1544
  %v1546 = vpop.f32.mrb[0].mxu0
  %1547 = vmatprep.mubr.bf16.mxu0 0
  %1548 = vmatmul.mubr.bf16.gmra.mrb[0].mxu0 %v1312
  %v1549 = vpop.f32.mrb[0].mxu0
  %v1550 = vadd.f32 %v1169, %v1549
  %v1551 = vpop.f32.mrb[0].mxu0
  %v1552 = vpop.f32.mrb[0].mxu0
  %v1553 = vadd.f32 %v1169, %v1552
  %v1554 = vpop.f32.mrb[0].mxu0
  %1555 = vmatprep.mubr.bf16.mxu0 0
  %1556 = vmatmul.mubr.bf16.gmra.mrb[0].mxu0 %v1313
  %v1557 = vpop.f32.mrb[0].mxu0
  %v1558 = vadd.f32 %v1169, %v1557
  %v1559 = vpop.f32.mrb[0].mxu0
  %v1560 = vpop.f32.mrb[0].mxu0
  %v1561 = vadd.f32 %v1169, %v1560
  %v1562 = vpop.f32.mrb[0].mxu0
  %1563 = vmatprep.mubr.bf16.mxu0 0
  %1564 = vmatmul.mubr.bf16.gmra.mrb[0].mxu0 %v1314
  %v1565 = vpop.f32.mrb[0].mxu0
  %v1566 = vadd.f32 %v1169, %v1565
  %v1567 = vpop.f32.mrb[0].mxu0
  %v1568 = vpop.f32.mrb[0].mxu0
  %v1569 = vadd.f32 %v1169, %v1568
  %v1570 = vpop.f32.mrb[0].mxu0
  %1571 = vmatprep.mubr.bf16.mxu0 0
  %1572 = vmatmul.mubr.bf16.gmra.mrb[0].mxu0 %v1315
  %v1573 = vpop.f32.mrb[0].mxu0
  %v1574 = vadd.f32 %v1169, %v1573
  %v1575 = vpop.f32.mrb[0].mxu0
  %v1576 = vpop.f32.mrb[0].mxu0
  %v1577 = vadd.f32 %v1169, %v1576
  %v1578 = vpop.f32.mrb[0].mxu0
  %1579 = vmatprep.mubr.bf16.mxu0 0
  %1580 = vmatmul.mubr.bf16.gmra.mrb[0].mxu0 %v1316
  %v1581 = vpop.f32.mrb[0].mxu0
  %v1582 = vadd.f32 %v1169, %v1581
  %v1583 = vpop.f32.mrb[0].mxu0
  %v1584 = vpop.f32.mrb[0].mxu0
  %v1585 = vadd.f32 %v1169, %v1584
  %v1586 = vpop.f32.mrb[0].mxu0
  %1587 = vmatprep.mubr.bf16.mxu0 0
  %1588 = vmatmul.mubr.bf16.gmra.mrb[0].mxu0 %v1317
  %v1589 = vpop.f32.mrb[0].mxu0
  %v1590 = vadd.f32 %v1169, %v1589
  %v1591 = vpop.f32.mrb[0].mxu0
  %v1592 = vpop.f32.mrb[0].mxu0
  %v1593 = vadd.f32 %v1169, %v1592
  %v1594 = vpop.f32.mrb[0].mxu0
  %1595 = vmatprep.mubr.bf16.mxu0 0
  %1596 = vmatmul.mubr.bf16.gmra.mrb[0].mxu0 %v1318
  %v1597 = vpop.f32.mrb[0].mxu0
  %v1598 = vadd.f32 %v1169, %v1597
  %v1599 = vpop.f32.mrb[0].mxu0
  %v1600 = vpop.f32.mrb[0].mxu0
  %v1601 = vadd.f32 %v1169, %v1600
  %v1602 = vpop.f32.mrb[0].mxu0
  %1603 = vmatprep.mubr.bf16.mxu0 0
  %1604 = vmatmul.mubr.bf16.gmra.mrb[0].mxu0 %v1319
  %v1605 = vpop.f32.mrb[0].mxu0
  %v1606 = vadd.f32 %v1169, %v1605
  %v1607 = vpop.f32.mrb[0].mxu0
  %v1608 = vpop.f32.mrb[0].mxu0
  %v1609 = vadd.f32 %v1169, %v1608
  %v1610 = vpop.f32.mrb[0].mxu0
  %1611 = vmatprep.mubr.bf16.mxu0 0
  %1612 = vmatmul.mubr.bf16.gmra.mrb[0].mxu0 %v1320
  %v1613 = vpop.f32.mrb[0].mxu0
  %v1614 = vadd.f32 %v1169, %v1613
  %v1615 = vpop.f32.mrb[0].mxu0
  %v1616 = vpop.f32.mrb[0].mxu0
  %v1617 = vadd.f32 %v1169, %v1616
  %v1618 = vpop.f32.mrb[0].mxu0
  %1619 = vmatprep.mubr.bf16.mxu0 0
  %1620 = vmatmul.mubr.bf16.gmra.mrb[0].mxu0 %v1321
  %v1621 = vpop.f32.mrb[0].mxu0
  %v1622 = vadd.f32 %v1169, %v1621
  %v1623 = vpop.f32.mrb[0].mxu0
  %v1624 = vpop.f32.mrb[0].mxu0
  %v1625 = vadd.f32 %v1169, %v1624
  %v1626 = vpop.f32.mrb[0].mxu0
  %1627 = vmatprep.mubr.bf16.mxu0 0
  %1628 = vmatmul.mubr.bf16.gmra.mrb[0].mxu0 %v1322
  %v1629 = vpop.f32.mrb[0].mxu0
  %v1630 = vadd.f32 %v1169, %v1629
  %v1631 = vpop.f32.mrb[0].mxu0
  %v1632 = vpop.f32.mrb[0].mxu0
  %v1633 = vadd.f32 %v1169, %v1632
  %v1634 = vpop.f32.mrb[0].mxu0
  %1635 = vmatprep.mubr.bf16.mxu0 0
  %1636 = vmatmul.mubr.bf16.gmra.mrb[0].mxu0 %v1323
  %v1637 = vpop.f32.mrb[0].mxu0
  %v1638 = vadd.f32 %v1169, %v1637
  %v1639 = vpop.f32.mrb[0].mxu0
  %v1640 = vpop.f32.mrb[0].mxu0
  %v1641 = vadd.f32 %v1169, %v1640
  %v1642 = vpop.f32.mrb[0].mxu0
  %1643 = vmatprep.mubr.bf16.mxu0 0
  %1644 = vmatmul.mubr.bf16.gmra.mrb[0].mxu0 %v1324
  %v1645 = vpop.f32.mrb[0].mxu0
  %v1646 = vadd.f32 %v1169, %v1645
  %v1647 = vpop.f32.mrb[0].mxu0
  %v1648 = vpop.f32.mrb[0].mxu0
  %v1649 = vadd.f32 %v1169, %v1648
  %v1650 = vpop.f32.mrb[0].mxu0
  %1651 = vmatprep.mubr.bf16.mxu0 0
  %1652 = vmatmul.mubr.bf16.gmra.mrb[0].mxu0 %v1325
  %v1653 = vpop.f32.mrb[0].mxu0
  %v1654 = vadd.f32 %v1169, %v1653
  %v1655 = vpop.f32.mrb[0].mxu0
  %v1656 = vpop.f32.mrb[0].mxu0
  %v1657 = vadd.f32 %v1169, %v1656
  %v1658 = vpop.f32.mrb[0].mxu0
  %1659 = vmatprep.mubr.bf16.mxu0 0
  %1660 = vmatmul.mubr.bf16.gmra.mrb[0].mxu0 %v1326
  %v1661 = vpop.f32.mrb[0].mxu0
  %v1662 = vadd.f32 %v1169, %v1661
  %v1663 = vpop.f32.mrb[0].mxu0
  %v1664 = vpop.f32.mrb[0].mxu0
  %v1665 = vadd.f32 %v1169, %v1664
  %v1666 = vpop.f32.mrb[0].mxu0
  %1667 = vmatprep.mubr.bf16.mxu0 0
  %1668 = vmatmul.mubr.bf16.gmra.mrb[0].mxu0 %v1327
  %v1669 = vpop.f32.mrb[0].mxu0
  %v1670 = vadd.f32 %v1169, %v1669
  %v1671 = vpop.f32.mrb[0].mxu0
  %v1672 = vpop.f32.mrb[0].mxu0
  %v1673 = vadd.f32 %v1169, %v1672
  %v1674 = vpop.f32.mrb[0].mxu0
  %1675 = vmatprep.mubr.bf16.mxu0 0
  %1676 = vmatmul.mubr.bf16.gmra.mrb[0].mxu0 %v1328
  %v1677 = vpop.f32.mrb[0].mxu0
  %v1678 = vadd.f32 %v1169, %v1677
  %v1679 = vpop.f32.mrb[0].mxu0
  %v1680 = vpop.f32.mrb[0].mxu0
  %v1681 = vadd.f32 %v1169, %v1680
  %v1682 = vpop.f32.mrb[0].mxu0
  %1683 = vmatprep.mubr.bf16.mxu0 0
  %1684 = vmatmul.mubr.bf16.gmra.mrb[0].mxu0 %v1329
  %v1685 = vpop.f32.mrb[0].mxu0
  %v1686 = vadd.f32 %v1169, %v1685
  %v1687 = vpop.f32.mrb[0].mxu0
  %v1688 = vpop.f32.mrb[0].mxu0
  %v1689 = vadd.f32 %v1169, %v1688
  %v1690 = vpop.f32.mrb[0].mxu0
  %1691 = vmatprep.mubr.bf16.mxu0 0
  %1692 = vmatmul.mubr.bf16.gmra.mrb[0].mxu0 %v1330
  %v1693 = vpop.f32.mrb[0].mxu0
  %v1694 = vadd.f32 %v1169, %v1693
  %v1695 = vpop.f32.mrb[0].mxu0
  %v1696 = vpop.f32.mrb[0].mxu0
  %v1697 = vadd.f32 %v1169, %v1696
  %v1698 = vpop.f32.mrb[0].mxu0
  %1699 = vdwg.mxu0
  %v1700 = vxor.u32 %v1446, 2147483648
  %v1701 = vxor.u32 %v1449, 2147483648
  %v1702 = vxor.u32 %v1454, 2147483648
  %v1703 = vxor.u32 %v1457, 2147483648
  %v1704 = vxor.u32 %v1462, 2147483648
  %v1705 = vxor.u32 %v1465, 2147483648
  %v1706 = vxor.u32 %v1470, 2147483648
  %v1707 = vxor.u32 %v1473, 2147483648
  %v1708 = vxor.u32 %v1478, 2147483648
  %v1709 = vxor.u32 %v1481, 2147483648
  %v1710 = vxor.u32 %v1486, 2147483648
  %v1711 = vxor.u32 %v1489, 2147483648
  %v1712 = vxor.u32 %v1494, 2147483648
  %v1713 = vxor.u32 %v1497, 2147483648
  %v1714 = vxor.u32 %v1502, 2147483648
  %v1715 = vxor.u32 %v1505, 2147483648
  %v1716 = vxor.u32 %v1510, 2147483648
  %v1717 = vxor.u32 %v1513, 2147483648
  %v1718 = vxor.u32 %v1518, 2147483648
  %v1719 = vxor.u32 %v1521, 2147483648
  %v1720 = vxor.u32 %v1526, 2147483648
  %v1721 = vxor.u32 %v1529, 2147483648
  %v1722 = vxor.u32 %v1534, 2147483648
  %v1723 = vxor.u32 %v1537, 2147483648
  %v1724 = vxor.u32 %v1542, 2147483648
  %v1725 = vxor.u32 %v1545, 2147483648
  %v1726 = vxor.u32 %v1550, 2147483648
  %v1727 = vxor.u32 %v1553, 2147483648
  %v1728 = vxor.u32 %v1558, 2147483648
  %v1729 = vxor.u32 %v1561, 2147483648
  %v1730 = vxor.u32 %v1566, 2147483648
  %v1731 = vxor.u32 %v1569, 2147483648
  %v1732 = vxor.u32 %v1574, 2147483648
  %v1733 = vxor.u32 %v1577, 2147483648
  %v1734 = vxor.u32 %v1582, 2147483648
  %v1735 = vxor.u32 %v1585, 2147483648
  %v1736 = vxor.u32 %v1590, 2147483648
  %v1737 = vxor.u32 %v1593, 2147483648
  %v1738 = vxor.u32 %v1598, 2147483648
  %v1739 = vxor.u32 %v1601, 2147483648
  %v1740 = vxor.u32 %v1606, 2147483648
  %v1741 = vxor.u32 %v1609, 2147483648
  %v1742 = vxor.u32 %v1614, 2147483648
  %v1743 = vxor.u32 %v1617, 2147483648
  %v1744 = vxor.u32 %v1622, 2147483648
  %v1745 = vxor.u32 %v1625, 2147483648
  %v1746 = vxor.u32 %v1630, 2147483648
  %v1747 = vxor.u32 %v1633, 2147483648
  %v1748 = vxor.u32 %v1638, 2147483648
  %v1749 = vxor.u32 %v1641, 2147483648
  %v1750 = vxor.u32 %v1646, 2147483648
  %v1751 = vxor.u32 %v1649, 2147483648
  %v1752 = vxor.u32 %v1654, 2147483648
  %v1753 = vxor.u32 %v1657, 2147483648
  %v1754 = vxor.u32 %v1662, 2147483648
  %v1755 = vxor.u32 %v1665, 2147483648
  %v1756 = vxor.u32 %v1670, 2147483648
  %v1757 = vxor.u32 %v1673, 2147483648
  %v1758 = vxor.u32 %v1678, 2147483648
  %v1759 = vxor.u32 %v1681, 2147483648
  %v1760 = vxor.u32 %v1686, 2147483648
  %v1761 = vxor.u32 %v1689, 2147483648
  %v1762 = vxor.u32 %v1694, 2147483648
  %v1763 = vxor.u32 %v1697, 2147483648
  %v1764 = vmul.f32 %v1700, 1.442695
  %v1765 = vpow.pop %v1764
  %v1766 = vmul.f32 %v1701, 1.442695
  %v1767 = vpow.pop %v1766
  %v1768 = vmul.f32 %v1702, 1.442695
  %v1769 = vpow.pop %v1768
  %v1770 = vmul.f32 %v1703, 1.442695
  %v1771 = vpow.pop %v1770
  %v1772 = vmul.f32 %v1704, 1.442695
  %v1773 = vpow.pop %v1772
  %v1774 = vmul.f32 %v1705, 1.442695
  %v1775 = vpow.pop %v1774
  %v1776 = vmul.f32 %v1706, 1.442695
  %v1777 = vpow.pop %v1776
  %v1778 = vmul.f32 %v1707, 1.442695
  %v1779 = vpow.pop %v1778
  %v1780 = vmul.f32 %v1708, 1.442695
  %v1781 = vpow.pop %v1780
  %v1782 = vmul.f32 %v1709, 1.442695
  %v1783 = vpow.pop %v1782
  %v1784 = vmul.f32 %v1710, 1.442695
  %v1785 = vpow.pop %v1784
  %v1786 = vmul.f32 %v1711, 1.442695
  %v1787 = vpow.pop %v1786
  %v1788 = vmul.f32 %v1712, 1.442695
  %v1789 = vpow.pop %v1788
  %v1790 = vmul.f32 %v1713, 1.442695
  %v1791 = vpow.pop %v1790
  %v1792 = vmul.f32 %v1714, 1.442695
  %v1793 = vpow.pop %v1792
  %v1794 = vmul.f32 %v1715, 1.442695
  %v1795 = vpow.pop %v1794
  %v1796 = vmul.f32 %v1716, 1.442695
  %v1797 = vpow.pop %v1796
  %v1798 = vmul.f32 %v1717, 1.442695
  %v1799 = vpow.pop %v1798
  %v1800 = vmul.f32 %v1718, 1.442695
  %v1801 = vpow.pop %v1800
  %v1802 = vmul.f32 %v1719, 1.442695
  %v1803 = vpow.pop %v1802
  %v1804 = vmul.f32 %v1720, 1.442695
  %v1805 = vpow.pop %v1804
  %v1806 = vmul.f32 %v1721, 1.442695
  %v1807 = vpow.pop %v1806
  %v1808 = vmul.f32 %v1722, 1.442695
  %v1809 = vpow.pop %v1808
  %v1810 = vmul.f32 %v1723, 1.442695
  %v1811 = vpow.pop %v1810
  %v1812 = vmul.f32 %v1724, 1.442695
  %v1813 = vpow.pop %v1812
  %v1814 = vmul.f32 %v1725, 1.442695
  %v1815 = vpow.pop %v1814
  %v1816 = vmul.f32 %v1726, 1.442695
  %v1817 = vpow.pop %v1816
  %v1818 = vmul.f32 %v1727, 1.442695
  %v1819 = vpow.pop %v1818
  %v1820 = vmul.f32 %v1728, 1.442695
  %v1821 = vpow.pop %v1820
  %v1822 = vmul.f32 %v1729, 1.442695
  %v1823 = vpow.pop %v1822
  %v1824 = vmul.f32 %v1730, 1.442695
  %v1825 = vpow.pop %v1824
  %v1826 = vmul.f32 %v1731, 1.442695
  %v1827 = vpow.pop %v1826
  %v1828 = vmul.f32 %v1732, 1.442695
  %v1829 = vpow.pop %v1828
  %v1830 = vmul.f32 %v1733, 1.442695
  %v1831 = vpow.pop %v1830
  %v1832 = vmul.f32 %v1734, 1.442695
  %v1833 = vpow.pop %v1832
  %v1834 = vmul.f32 %v1735, 1.442695
  %v1835 = vpow.pop %v1834
  %v1836 = vmul.f32 %v1736, 1.442695
  %v1837 = vpow.pop %v1836
  %v1838 = vmul.f32 %v1737, 1.442695
  %v1839 = vpow.pop %v1838
  %v1840 = vmul.f32 %v1738, 1.442695
  %v1841 = vpow.pop %v1840
  %v1842 = vmul.f32 %v1739, 1.442695
  %v1843 = vpow.pop %v1842
  %v1844 = vmul.f32 %v1740, 1.442695
  %v1845 = vpow.pop %v1844
  %v1846 = vmul.f32 %v1741, 1.442695
  %v1847 = vpow.pop %v1846
  %v1848 = vmul.f32 %v1742, 1.442695
  %v1849 = vpow.pop %v1848
  %v1850 = vmul.f32 %v1743, 1.442695
  %v1851 = vpow.pop %v1850
  %v1852 = vmul.f32 %v1744, 1.442695
  %v1853 = vpow.pop %v1852
  %v1854 = vmul.f32 %v1745, 1.442695
  %v1855 = vpow.pop %v1854
  %v1856 = vmul.f32 %v1746, 1.442695
  %v1857 = vpow.pop %v1856
  %v1858 = vmul.f32 %v1747, 1.442695
  %v1859 = vpow.pop %v1858
  %v1860 = vmul.f32 %v1748, 1.442695
  %v1861 = vpow.pop %v1860
  %v1862 = vmul.f32 %v1749, 1.442695
  %v1863 = vpow.pop %v1862
  %v1864 = vmul.f32 %v1750, 1.442695
  %v1865 = vpow.pop %v1864
  %v1866 = vmul.f32 %v1751, 1.442695
  %v1867 = vpow.pop %v1866
  %v1868 = vmul.f32 %v1752, 1.442695
  %v1869 = vpow.pop %v1868
  %v1870 = vmul.f32 %v1753, 1.442695
  %v1871 = vpow.pop %v1870
  %v1872 = vmul.f32 %v1754, 1.442695
  %v1873 = vpow.pop %v1872
  %v1874 = vmul.f32 %v1755, 1.442695
  %v1875 = vpow.pop %v1874
  %v1876 = vmul.f32 %v1756, 1.442695
  %v1877 = vpow.pop %v1876
  %v1878 = vmul.f32 %v1757, 1.442695
  %v1879 = vpow.pop %v1878
  %v1880 = vmul.f32 %v1758, 1.442695
  %v1881 = vpow.pop %v1880
  %v1882 = vmul.f32 %v1759, 1.442695
  %v1883 = vpow.pop %v1882
  %v1884 = vmul.f32 %v1760, 1.442695
  %v1885 = vpow.pop %v1884
  %v1886 = vmul.f32 %v1761, 1.442695
  %v1887 = vpow.pop %v1886
  %v1888 = vmul.f32 %v1762, 1.442695
  %v1889 = vpow.pop %v1888
  %v1890 = vmul.f32 %v1763, 1.442695
  %v1891 = vpow.pop %v1890
  %v1892 = vadd.f32 %v1765, 1.0
  %v1893 = vadd.f32 %v1767, 1.0
  %v1894 = vadd.f32 %v1769, 1.0
  %v1895 = vadd.f32 %v1771, 1.0
  %v1896 = vadd.f32 %v1773, 1.0
  %v1897 = vadd.f32 %v1775, 1.0
  %v1898 = vadd.f32 %v1777, 1.0
  %v1899 = vadd.f32 %v1779, 1.0
  %v1900 = vadd.f32 %v1781, 1.0
  %v1901 = vadd.f32 %v1783, 1.0
  %v1902 = vadd.f32 %v1785, 1.0
  %v1903 = vadd.f32 %v1787, 1.0
  %v1904 = vadd.f32 %v1789, 1.0
  %v1905 = vadd.f32 %v1791, 1.0
  %v1906 = vadd.f32 %v1793, 1.0
  %v1907 = vadd.f32 %v1795, 1.0
  %v1908 = vadd.f32 %v1797, 1.0
  %v1909 = vadd.f32 %v1799, 1.0
  %v1910 = vadd.f32 %v1801, 1.0
  %v1911 = vadd.f32 %v1803, 1.0
  %v1912 = vadd.f32 %v1805, 1.0
  %v1913 = vadd.f32 %v1807, 1.0
  %v1914 = vadd.f32 %v1809, 1.0
  %v1915 = vadd.f32 %v1811, 1.0
  %v1916 = vadd.f32 %v1813, 1.0
  %v1917 = vadd.f32 %v1815, 1.0
  %v1918 = vadd.f32 %v1817, 1.0
  %v1919 = vadd.f32 %v1819, 1.0
  %v1920 = vadd.f32 %v1821, 1.0
  %v1921 = vadd.f32 %v1823, 1.0
  %v1922 = vadd.f32 %v1825, 1.0
  %v1923 = vadd.f32 %v1827, 1.0
  %v1924 = vadd.f32 %v1829, 1.0
  %v1925 = vadd.f32 %v1831, 1.0
  %v1926 = vadd.f32 %v1833, 1.0
  %v1927 = vadd.f32 %v1835, 1.0
  %v1928 = vadd.f32 %v1837, 1.0
  %v1929 = vadd.f32 %v1839, 1.0
  %v1930 = vadd.f32 %v1841, 1.0
  %v1931 = vadd.f32 %v1843, 1.0
  %v1932 = vadd.f32 %v1845, 1.0
  %v1933 = vadd.f32 %v1847, 1.0
  %v1934 = vadd.f32 %v1849, 1.0
  %v1935 = vadd.f32 %v1851, 1.0
  %v1936 = vadd.f32 %v1853, 1.0
  %v1937 = vadd.f32 %v1855, 1.0
  %v1938 = vadd.f32 %v1857, 1.0
  %v1939 = vadd.f32 %v1859, 1.0
  %v1940 = vadd.f32 %v1861, 1.0
  %v1941 = vadd.f32 %v1863, 1.0
  %v1942 = vadd.f32 %v1865, 1.0
  %v1943 = vadd.f32 %v1867, 1.0
  %v1944 = vadd.f32 %v1869, 1.0
  %v1945 = vadd.f32 %v1871, 1.0
  %v1946 = vadd.f32 %v1873, 1.0
  %v1947 = vadd.f32 %v1875, 1.0
  %v1948 = vadd.f32 %v1877, 1.0
  %v1949 = vadd.f32 %v1879, 1.0
  %v1950 = vadd.f32 %v1881, 1.0
  %v1951 = vadd.f32 %v1883, 1.0
  %v1952 = vadd.f32 %v1885, 1.0
  %v1953 = vadd.f32 %v1887, 1.0
  %v1954 = vadd.f32 %v1889, 1.0
  %v1955 = vadd.f32 %v1891, 1.0
  %v1956 = vrcp.pop %v1892
  %v1957 = vmul.f32 1.0, %v1956
  %v1958 = vrcp.pop %v1893
  %v1959 = vmul.f32 1.0, %v1958
  %v1960 = vrcp.pop %v1894
  %v1961 = vmul.f32 1.0, %v1960
  %v1962 = vrcp.pop %v1895
  %v1963 = vmul.f32 1.0, %v1962
  %v1964 = vrcp.pop %v1896
  %v1965 = vmul.f32 1.0, %v1964
  %v1966 = vrcp.pop %v1897
  %v1967 = vmul.f32 1.0, %v1966
  %v1968 = vrcp.pop %v1898
  %v1969 = vmul.f32 1.0, %v1968
  %v1970 = vrcp.pop %v1899
  %v1971 = vmul.f32 1.0, %v1970
  %v1972 = vrcp.pop %v1900
  %v1973 = vmul.f32 1.0, %v1972
  %v1974 = vrcp.pop %v1901
  %v1975 = vmul.f32 1.0, %v1974
  %v1976 = vrcp.pop %v1902
  %v1977 = vmul.f32 1.0, %v1976
  %v1978 = vrcp.pop %v1903
  %v1979 = vmul.f32 1.0, %v1978
  %v1980 = vrcp.pop %v1904
  %v1981 = vmul.f32 1.0, %v1980
  %v1982 = vrcp.pop %v1905
  %v1983 = vmul.f32 1.0, %v1982
  %v1984 = vrcp.pop %v1906
  %v1985 = vmul.f32 1.0, %v1984
  %v1986 = vrcp.pop %v1907
  %v1987 = vmul.f32 1.0, %v1986
  %v1988 = vrcp.pop %v1908
  %v1989 = vmul.f32 1.0, %v1988
  %v1990 = vrcp.pop %v1909
  %v1991 = vmul.f32 1.0, %v1990
  %v1992 = vrcp.pop %v1910
  %v1993 = vmul.f32 1.0, %v1992
  %v1994 = vrcp.pop %v1911
  %v1995 = vmul.f32 1.0, %v1994
  %v1996 = vrcp.pop %v1912
  %v1997 = vmul.f32 1.0, %v1996
  %v1998 = vrcp.pop %v1913
  %v1999 = vmul.f32 1.0, %v1998
  %v2000 = vrcp.pop %v1914
  %v2001 = vmul.f32 1.0, %v2000
  %v2002 = vrcp.pop %v1915
  %v2003 = vmul.f32 1.0, %v2002
  %v2004 = vrcp.pop %v1916
  %v2005 = vmul.f32 1.0, %v2004
  %v2006 = vrcp.pop %v1917
  %v2007 = vmul.f32 1.0, %v2006
  %v2008 = vrcp.pop %v1918
  %v2009 = vmul.f32 1.0, %v2008
  %v2010 = vrcp.pop %v1919
  %v2011 = vmul.f32 1.0, %v2010
  %v2012 = vrcp.pop %v1920
  %v2013 = vmul.f32 1.0, %v2012
  %v2014 = vrcp.pop %v1921
  %v2015 = vmul.f32 1.0, %v2014
  %v2016 = vrcp.pop %v1922
  %v2017 = vmul.f32 1.0, %v2016
  %v2018 = vrcp.pop %v1923
  %v2019 = vmul.f32 1.0, %v2018
  %v2020 = vrcp.pop %v1924
  %v2021 = vmul.f32 1.0, %v2020
  %v2022 = vrcp.pop %v1925
  %v2023 = vmul.f32 1.0, %v2022
  %v2024 = vrcp.pop %v1926
  %v2025 = vmul.f32 1.0, %v2024
  %v2026 = vrcp.pop %v1927
  %v2027 = vmul.f32 1.0, %v2026
  %v2028 = vrcp.pop %v1928
  %v2029 = vmul.f32 1.0, %v2028
  %v2030 = vrcp.pop %v1929
  %v2031 = vmul.f32 1.0, %v2030
  %v2032 = vrcp.pop %v1930
  %v2033 = vmul.f32 1.0, %v2032
  %v2034 = vrcp.pop %v1931
  %v2035 = vmul.f32 1.0, %v2034
  %v2036 = vrcp.pop %v1932
  %v2037 = vmul.f32 1.0, %v2036
  %v2038 = vrcp.pop %v1933
  %v2039 = vmul.f32 1.0, %v2038
  %v2040 = vrcp.pop %v1934
  %v2041 = vmul.f32 1.0, %v2040
  %v2042 = vrcp.pop %v1935
  %v2043 = vmul.f32 1.0, %v2042
  %v2044 = vrcp.pop %v1936
  %v2045 = vmul.f32 1.0, %v2044
  %v2046 = vrcp.pop %v1937
  %v2047 = vmul.f32 1.0, %v2046
  %v2048 = vrcp.pop %v1938
  %v2049 = vmul.f32 1.0, %v2048
  %v2050 = vrcp.pop %v1939
  %v2051 = vmul.f32 1.0, %v2050
  %v2052 = vrcp.pop %v1940
  %v2053 = vmul.f32 1.0, %v2052
  %v2054 = vrcp.pop %v1941
  %v2055 = vmul.f32 1.0, %v2054
  %v2056 = vrcp.pop %v1942
  %v2057 = vmul.f32 1.0, %v2056
  %v2058 = vrcp.pop %v1943
  %v2059 = vmul.f32 1.0, %v2058
  %v2060 = vrcp.pop %v1944
  %v2061 = vmul.f32 1.0, %v2060
  %v2062 = vrcp.pop %v1945
  %v2063 = vmul.f32 1.0, %v2062
  %v2064 = vrcp.pop %v1946
  %v2065 = vmul.f32 1.0, %v2064
  %v2066 = vrcp.pop %v1947
  %v2067 = vmul.f32 1.0, %v2066
  %v2068 = vrcp.pop %v1948
  %v2069 = vmul.f32 1.0, %v2068
  %v2070 = vrcp.pop %v1949
  %v2071 = vmul.f32 1.0, %v2070
  %v2072 = vrcp.pop %v1950
  %v2073 = vmul.f32 1.0, %v2072
  %v2074 = vrcp.pop %v1951
  %v2075 = vmul.f32 1.0, %v2074
  %v2076 = vrcp.pop %v1952
  %v2077 = vmul.f32 1.0, %v2076
  %v2078 = vrcp.pop %v1953
  %v2079 = vmul.f32 1.0, %v2078
  %v2080 = vrcp.pop %v1954
  %v2081 = vmul.f32 1.0, %v2080
  %v2082 = vrcp.pop %v1955
  %v2083 = vmul.f32 1.0, %v2082
  %s2084 = scalar_lea.vmem %s3, 512
  %2085 = vst.msk [vmem:[%s2084] sm:$0xff] %vm1017, %v1957
  %2086 = vst.msk [vmem:[%s2084 + $0x8] sm:$0xff] %vm1017, %v1959
  %2087 = vst.msk [vmem:[%s2084 + $0x10] sm:$0xff] %vm1017, %v1961
  %2088 = vst.msk [vmem:[%s2084 + $0x18] sm:$0xff] %vm1017, %v1963
  %2089 = vst.msk [vmem:[%s2084 + $0x20] sm:$0xff] %vm1017, %v1965
  %2090 = vst.msk [vmem:[%s2084 + $0x28] sm:$0xff] %vm1017, %v1967
  %2091 = vst.msk [vmem:[%s2084 + $0x30] sm:$0xff] %vm1017, %v1969
  %2092 = vst.msk [vmem:[%s2084 + $0x38] sm:$0xff] %vm1017, %v1971
  %2093 = vst.msk [vmem:[%s2084 + $0x40] sm:$0xff] %vm1017, %v1973
  %2094 = vst.msk [vmem:[%s2084 + $0x48] sm:$0xff] %vm1017, %v1975
  %2095 = vst.msk [vmem:[%s2084 + $0x50] sm:$0xff] %vm1017, %v1977
  %2096 = vst.msk [vmem:[%s2084 + $0x58] sm:$0xff] %vm1017, %v1979
  %2097 = vst.msk [vmem:[%s2084 + $0x60] sm:$0xff] %vm1017, %v1981
  %2098 = vst.msk [vmem:[%s2084 + $0x68] sm:$0xff] %vm1017, %v1983
  %2099 = vst.msk [vmem:[%s2084 + $0x70] sm:$0xff] %vm1017, %v1985
  %2100 = vst.msk [vmem:[%s2084 + $0x78] sm:$0xff] %vm1017, %v1987
  %2101 = vst.msk [vmem:[%s2084 + $0x80] sm:$0xff] %vm1017, %v1989
  %2102 = vst.msk [vmem:[%s2084 + $0x88] sm:$0xff] %vm1017, %v1991
  %2103 = vst.msk [vmem:[%s2084 + $0x90] sm:$0xff] %vm1017, %v1993
  %2104 = vst.msk [vmem:[%s2084 + $0x98] sm:$0xff] %vm1017, %v1995
  %2105 = vst.msk [vmem:[%s2084 + $0xa0] sm:$0xff] %vm1017, %v1997
  %2106 = vst.msk [vmem:[%s2084 + $0xa8] sm:$0xff] %vm1017, %v1999
  %2107 = vst.msk [vmem:[%s2084 + $0xb0] sm:$0xff] %vm1017, %v2001
  %2108 = vst.msk [vmem:[%s2084 + $0xb8] sm:$0xff] %vm1017, %v2003
  %2109 = vst.msk [vmem:[%s2084 + $0xc0] sm:$0xff] %vm1017, %v2005
  %2110 = vst.msk [vmem:[%s2084 + $0xc8] sm:$0xff] %vm1017, %v2007
  %2111 = vst.msk [vmem:[%s2084 + $0xd0] sm:$0xff] %vm1017, %v2009
  %2112 = vst.msk [vmem:[%s2084 + $0xd8] sm:$0xff] %vm1017, %v2011
  %2113 = vst.msk [vmem:[%s2084 + $0xe0] sm:$0xff] %vm1017, %v2013
  %2114 = vst.msk [vmem:[%s2084 + $0xe8] sm:$0xff] %vm1017, %v2015
  %2115 = vst.msk [vmem:[%s2084 + $0xf0] sm:$0xff] %vm1017, %v2017
  %2116 = vst.msk [vmem:[%s2084 + $0xf8] sm:$0xff] %vm1017, %v2019
  %2117 = vst.msk [vmem:[%s2084 + $0x100] sm:$0xff] %vm1017, %v2021
  %2118 = vst.msk [vmem:[%s2084 + $0x108] sm:$0xff] %vm1017, %v2023
  %2119 = vst.msk [vmem:[%s2084 + $0x110] sm:$0xff] %vm1017, %v2025
  %2120 = vst.msk [vmem:[%s2084 + $0x118] sm:$0xff] %vm1017, %v2027
  %2121 = vst.msk [vmem:[%s2084 + $0x120] sm:$0xff] %vm1017, %v2029
  %2122 = vst.msk [vmem:[%s2084 + $0x128] sm:$0xff] %vm1017, %v2031
  %2123 = vst.msk [vmem:[%s2084 + $0x130] sm:$0xff] %vm1017, %v2033
  %2124 = vst.msk [vmem:[%s2084 + $0x138] sm:$0xff] %vm1017, %v2035
  %2125 = vst.msk [vmem:[%s2084 + $0x140] sm:$0xff] %vm1017, %v2037
  %2126 = vst.msk [vmem:[%s2084 + $0x148] sm:$0xff] %vm1017, %v2039
  %2127 = vst.msk [vmem:[%s2084 + $0x150] sm:$0xff] %vm1017, %v2041
  %2128 = vst.msk [vmem:[%s2084 + $0x158] sm:$0xff] %vm1017, %v2043
  %2129 = vst.msk [vmem:[%s2084 + $0x160] sm:$0xff] %vm1017, %v2045
  %2130 = vst.msk [vmem:[%s2084 + $0x168] sm:$0xff] %vm1017, %v2047
  %2131 = vst.msk [vmem:[%s2084 + $0x170] sm:$0xff] %vm1017, %v2049
  %2132 = vst.msk [vmem:[%s2084 + $0x178] sm:$0xff] %vm1017, %v2051
  %2133 = vst.msk [vmem:[%s2084 + $0x180] sm:$0xff] %vm1017, %v2053
  %2134 = vst.msk [vmem:[%s2084 + $0x188] sm:$0xff] %vm1017, %v2055
  %2135 = vst.msk [vmem:[%s2084 + $0x190] sm:$0xff] %vm1017, %v2057
  %2136 = vst.msk [vmem:[%s2084 + $0x198] sm:$0xff] %vm1017, %v2059
  %2137 = vst.msk [vmem:[%s2084 + $0x1a0] sm:$0xff] %vm1017, %v2061
  %2138 = vst.msk [vmem:[%s2084 + $0x1a8] sm:$0xff] %vm1017, %v2063
  %2139 = vst.msk [vmem:[%s2084 + $0x1b0] sm:$0xff] %vm1017, %v2065
  %2140 = vst.msk [vmem:[%s2084 + $0x1b8] sm:$0xff] %vm1017, %v2067
  %2141 = vst.msk [vmem:[%s2084 + $0x1c0] sm:$0xff] %vm1017, %v2069
  %2142 = vst.msk [vmem:[%s2084 + $0x1c8] sm:$0xff] %vm1017, %v2071
  %2143 = vst.msk [vmem:[%s2084 + $0x1d0] sm:$0xff] %vm1017, %v2073
  %2144 = vst.msk [vmem:[%s2084 + $0x1d8] sm:$0xff] %vm1017, %v2075
  %2145 = vst.msk [vmem:[%s2084 + $0x1e0] sm:$0xff] %vm1017, %v2077
  %2146 = vst.msk [vmem:[%s2084 + $0x1e8] sm:$0xff] %vm1017, %v2079
  %2147 = vst.msk [vmem:[%s2084 + $0x1f0] sm:$0xff] %vm1017, %v2081
  %2148 = vst.msk [vmem:[%s2084 + $0x1f8] sm:$0xff] %vm1017, %v2083
  %s2149 = scalar_lea.vmem %s0, 512
  %v2150 = vld [vmem:[%s2149] sm:$0xf]
  %v2151 = vld [vmem:[%s2149 + $0x4] sm:$0xf]
  %v2152 = vld [vmem:[%s2149 + $0x8] sm:$0xf]
  %v2153 = vld [vmem:[%s2149 + $0xc] sm:$0xf]
  %v2154 = vld [vmem:[%s2149 + $0x10] sm:$0xf]
  %v2155 = vld [vmem:[%s2149 + $0x14] sm:$0xf]
  %v2156 = vld [vmem:[%s2149 + $0x18] sm:$0xf]
  %v2157 = vld [vmem:[%s2149 + $0x1c] sm:$0xf]
  %v2158 = vld [vmem:[%s2149 + $0x20] sm:$0xf]
  %v2159 = vld [vmem:[%s2149 + $0x24] sm:$0xf]
  %v2160 = vld [vmem:[%s2149 + $0x28] sm:$0xf]
  %v2161 = vld [vmem:[%s2149 + $0x2c] sm:$0xf]
  %v2162 = vld [vmem:[%s2149 + $0x30] sm:$0xf]
  %v2163 = vld [vmem:[%s2149 + $0x34] sm:$0xf]
  %v2164 = vld [vmem:[%s2149 + $0x38] sm:$0xf]
  %v2165 = vld [vmem:[%s2149 + $0x3c] sm:$0xf]
  %v2166 = vld [vmem:[%s2149 + $0x40] sm:$0xf]
  %v2167 = vld [vmem:[%s2149 + $0x44] sm:$0xf]
  %v2168 = vld [vmem:[%s2149 + $0x48] sm:$0xf]
  %v2169 = vld [vmem:[%s2149 + $0x4c] sm:$0xf]
  %v2170 = vld [vmem:[%s2149 + $0x50] sm:$0xf]
  %v2171 = vld [vmem:[%s2149 + $0x54] sm:$0xf]
  %v2172 = vld [vmem:[%s2149 + $0x58] sm:$0xf]
  %v2173 = vld [vmem:[%s2149 + $0x5c] sm:$0xf]
  %v2174 = vld [vmem:[%s2149 + $0x60] sm:$0xf]
  %v2175 = vld [vmem:[%s2149 + $0x64] sm:$0xf]
  %v2176 = vld [vmem:[%s2149 + $0x68] sm:$0xf]
  %v2177 = vld [vmem:[%s2149 + $0x6c] sm:$0xf]
  %v2178 = vld [vmem:[%s2149 + $0x70] sm:$0xf]
  %v2179 = vld [vmem:[%s2149 + $0x74] sm:$0xf]
  %v2180 = vld [vmem:[%s2149 + $0x78] sm:$0xf]
  %v2181 = vld [vmem:[%s2149 + $0x7c] sm:$0xf]
  %v2182 = vld [vmem:[%s2149 + $0x80] sm:$0xf]
  %v2183 = vld [vmem:[%s2149 + $0x84] sm:$0xf]
  %v2184 = vld [vmem:[%s2149 + $0x88] sm:$0xf]
  %v2185 = vld [vmem:[%s2149 + $0x8c] sm:$0xf]
  %v2186 = vld [vmem:[%s2149 + $0x90] sm:$0xf]
  %v2187 = vld [vmem:[%s2149 + $0x94] sm:$0xf]
  %v2188 = vld [vmem:[%s2149 + $0x98] sm:$0xf]
  %v2189 = vld [vmem:[%s2149 + $0x9c] sm:$0xf]
  %v2190 = vld [vmem:[%s2149 + $0xa0] sm:$0xf]
  %v2191 = vld [vmem:[%s2149 + $0xa4] sm:$0xf]
  %v2192 = vld [vmem:[%s2149 + $0xa8] sm:$0xf]
  %v2193 = vld [vmem:[%s2149 + $0xac] sm:$0xf]
  %v2194 = vld [vmem:[%s2149 + $0xb0] sm:$0xf]
  %v2195 = vld [vmem:[%s2149 + $0xb4] sm:$0xf]
  %v2196 = vld [vmem:[%s2149 + $0xb8] sm:$0xf]
  %v2197 = vld [vmem:[%s2149 + $0xbc] sm:$0xf]
  %v2198 = vld [vmem:[%s2149 + $0xc0] sm:$0xf]
  %v2199 = vld [vmem:[%s2149 + $0xc4] sm:$0xf]
  %v2200 = vld [vmem:[%s2149 + $0xc8] sm:$0xf]
  %v2201 = vld [vmem:[%s2149 + $0xcc] sm:$0xf]
  %v2202 = vld [vmem:[%s2149 + $0xd0] sm:$0xf]
  %v2203 = vld [vmem:[%s2149 + $0xd4] sm:$0xf]
  %v2204 = vld [vmem:[%s2149 + $0xd8] sm:$0xf]
  %v2205 = vld [vmem:[%s2149 + $0xdc] sm:$0xf]
  %v2206 = vld [vmem:[%s2149 + $0xe0] sm:$0xf]
  %v2207 = vld [vmem:[%s2149 + $0xe4] sm:$0xf]
  %v2208 = vld [vmem:[%s2149 + $0xe8] sm:$0xf]
  %v2209 = vld [vmem:[%s2149 + $0xec] sm:$0xf]
  %v2210 = vld [vmem:[%s2149 + $0xf0] sm:$0xf]
  %v2211 = vld [vmem:[%s2149 + $0xf4] sm:$0xf]
  %v2212 = vld [vmem:[%s2149 + $0xf8] sm:$0xf]
  %v2213 = vld [vmem:[%s2149 + $0xfc] sm:$0xf]
  %s2214 = scalar_lea.vmem %s1, 128
  %v2215 = vld [vmem:[%s2214] sm:$0xf]
  %v2216 = vld [vmem:[%s2214 + $0x4] sm:$0xf]
  %v2217 = vld [vmem:[%s2214 + $0x8] sm:$0xf]
  %v2218 = vld [vmem:[%s2214 + $0xc] sm:$0xf]
  %v2219 = vld [vmem:[%s2214 + $0x10] sm:$0xf]
  %v2220 = vld [vmem:[%s2214 + $0x14] sm:$0xf]
  %v2221 = vld [vmem:[%s2214 + $0x18] sm:$0xf]
  %v2222 = vld [vmem:[%s2214 + $0x1c] sm:$0xf]
  %v2223 = vld [vmem:[%s2214 + $0x20] sm:$0xf]
  %v2224 = vld [vmem:[%s2214 + $0x24] sm:$0xf]
  %v2225 = vld [vmem:[%s2214 + $0x28] sm:$0xf]
  %v2226 = vld [vmem:[%s2214 + $0x2c] sm:$0xf]
  %v2227 = vld [vmem:[%s2214 + $0x30] sm:$0xf]
  %v2228 = vld [vmem:[%s2214 + $0x34] sm:$0xf]
  %v2229 = vld [vmem:[%s2214 + $0x38] sm:$0xf]
  %v2230 = vld [vmem:[%s2214 + $0x3c] sm:$0xf]
  %v2231 = vld [vmem:[#allocation2] sm:$0x1]
  %v2233 = vlaneseq
  %v2234 = vshrl.u32 %v2233, 7
  %v2235 = vsub.s32 0, %v2234
  %v2236 = vrot.slane %v2231, %v2235
  %v2302 = vunpack.c.l.b16 %v2150
  %v2303 = vunpack.c.l.b16 %v2151
  %v2304 = vunpack.c.l.b16 %v2152
  %v2305 = vunpack.c.l.b16 %v2153
  %v2306 = vunpack.c.l.b16 %v2154
  %v2307 = vunpack.c.l.b16 %v2155
  %v2308 = vunpack.c.l.b16 %v2156
  %v2309 = vunpack.c.l.b16 %v2157
  %v2310 = vunpack.c.l.b16 %v2158
  %v2311 = vunpack.c.l.b16 %v2159
  %v2312 = vunpack.c.l.b16 %v2160
  %v2313 = vunpack.c.l.b16 %v2161
  %v2314 = vunpack.c.l.b16 %v2162
  %v2315 = vunpack.c.l.b16 %v2163
  %v2316 = vunpack.c.l.b16 %v2164
  %v2317 = vunpack.c.l.b16 %v2165
  %v2318 = vunpack.c.l.b16 %v2166
  %v2319 = vunpack.c.l.b16 %v2167
  %v2320 = vunpack.c.l.b16 %v2168
  %v2321 = vunpack.c.l.b16 %v2169
  %v2322 = vunpack.c.l.b16 %v2170
  %v2323 = vunpack.c.l.b16 %v2171
  %v2324 = vunpack.c.l.b16 %v2172
  %v2325 = vunpack.c.l.b16 %v2173
  %v2326 = vunpack.c.l.b16 %v2174
  %v2327 = vunpack.c.l.b16 %v2175
  %v2328 = vunpack.c.l.b16 %v2176
  %v2329 = vunpack.c.l.b16 %v2177
  %v2330 = vunpack.c.l.b16 %v2178
  %v2331 = vunpack.c.l.b16 %v2179
  %v2332 = vunpack.c.l.b16 %v2180
  %v2333 = vunpack.c.l.b16 %v2181
  %v2334 = vunpack.c.l.b16 %v2182
  %v2335 = vunpack.c.l.b16 %v2183
  %v2336 = vunpack.c.l.b16 %v2184
  %v2337 = vunpack.c.l.b16 %v2185
  %v2338 = vunpack.c.l.b16 %v2186
  %v2339 = vunpack.c.l.b16 %v2187
  %v2340 = vunpack.c.l.b16 %v2188
  %v2341 = vunpack.c.l.b16 %v2189
  %v2342 = vunpack.c.l.b16 %v2190
  %v2343 = vunpack.c.l.b16 %v2191
  %v2344 = vunpack.c.l.b16 %v2192
  %v2345 = vunpack.c.l.b16 %v2193
  %v2346 = vunpack.c.l.b16 %v2194
  %v2347 = vunpack.c.l.b16 %v2195
  %v2348 = vunpack.c.l.b16 %v2196
  %v2349 = vunpack.c.l.b16 %v2197
  %v2350 = vunpack.c.l.b16 %v2198
  %v2351 = vunpack.c.l.b16 %v2199
  %v2352 = vunpack.c.l.b16 %v2200
  %v2353 = vunpack.c.l.b16 %v2201
  %v2354 = vunpack.c.l.b16 %v2202
  %v2355 = vunpack.c.l.b16 %v2203
  %v2356 = vunpack.c.l.b16 %v2204
  %v2357 = vunpack.c.l.b16 %v2205
  %v2358 = vunpack.c.l.b16 %v2206
  %v2359 = vunpack.c.l.b16 %v2207
  %v2360 = vunpack.c.l.b16 %v2208
  %v2361 = vunpack.c.l.b16 %v2209
  %v2362 = vunpack.c.l.b16 %v2210
  %v2363 = vunpack.c.l.b16 %v2211
  %v2364 = vunpack.c.l.b16 %v2212
  %v2365 = vunpack.c.l.b16 %v2213
  %v2366 = vpack.c.b16 %v2303, %v2302
  %v2367 = vpack.c.b16 %v2305, %v2304
  %v2368 = vpack.c.b16 %v2307, %v2306
  %v2369 = vpack.c.b16 %v2309, %v2308
  %v2370 = vpack.c.b16 %v2311, %v2310
  %v2371 = vpack.c.b16 %v2313, %v2312
  %v2372 = vpack.c.b16 %v2315, %v2314
  %v2373 = vpack.c.b16 %v2317, %v2316
  %v2374 = vpack.c.b16 %v2319, %v2318
  %v2375 = vpack.c.b16 %v2321, %v2320
  %v2376 = vpack.c.b16 %v2323, %v2322
  %v2377 = vpack.c.b16 %v2325, %v2324
  %v2378 = vpack.c.b16 %v2327, %v2326
  %v2379 = vpack.c.b16 %v2329, %v2328
  %v2380 = vpack.c.b16 %v2331, %v2330
  %v2381 = vpack.c.b16 %v2333, %v2332
  %v2382 = vpack.c.b16 %v2335, %v2334
  %v2383 = vpack.c.b16 %v2337, %v2336
  %v2384 = vpack.c.b16 %v2339, %v2338
  %v2385 = vpack.c.b16 %v2341, %v2340
  %v2386 = vpack.c.b16 %v2343, %v2342
  %v2387 = vpack.c.b16 %v2345, %v2344
  %v2388 = vpack.c.b16 %v2347, %v2346
  %v2389 = vpack.c.b16 %v2349, %v2348
  %v2390 = vpack.c.b16 %v2351, %v2350
  %v2391 = vpack.c.b16 %v2353, %v2352
  %v2392 = vpack.c.b16 %v2355, %v2354
  %v2393 = vpack.c.b16 %v2357, %v2356
  %v2394 = vpack.c.b16 %v2359, %v2358
  %v2395 = vpack.c.b16 %v2361, %v2360
  %v2396 = vpack.c.b16 %v2363, %v2362
  %v2397 = vpack.c.b16 %v2365, %v2364
  %v2446 = vunpack.c.l.b16 %v2215
  %v2447 = vunpack.c.l.b16 %v2216
  %v2448 = vunpack.c.l.b16 %v2217
  %v2449 = vunpack.c.l.b16 %v2218
  %v2450 = vunpack.c.l.b16 %v2219
  %v2451 = vunpack.c.l.b16 %v2220
  %v2452 = vunpack.c.l.b16 %v2221
  %v2453 = vunpack.c.l.b16 %v2222
  %v2454 = vunpack.c.l.b16 %v2223
  %v2455 = vunpack.c.l.b16 %v2224
  %v2456 = vunpack.c.l.b16 %v2225
  %v2457 = vunpack.c.l.b16 %v2226
  %v2458 = vunpack.c.l.b16 %v2227
  %v2459 = vunpack.c.l.b16 %v2228
  %v2460 = vunpack.c.l.b16 %v2229
  %v2461 = vunpack.c.l.b16 %v2230
  %v2462 = vpack.c.b16 %v2447, %v2446
  %v2463 = vpack.c.b16 %v2449, %v2448
  %v2464 = vpack.c.b16 %v2451, %v2450
  %v2465 = vpack.c.b16 %v2453, %v2452
  %v2466 = vpack.c.b16 %v2455, %v2454
  %v2467 = vpack.c.b16 %v2457, %v2456
  %v2468 = vpack.c.b16 %v2459, %v2458
  %v2469 = vpack.c.b16 %v2461, %v2460
  %2478 = vmatprep.subr.bf16.mxu0 0
  %2479 = vmatpush1.bf16.msra.mxu0 %v2462
  %2480 = vmatprep.subr.bf16.mxu0 0
  %2481 = vmatpush1.bf16.msra.mxu0 %v2463
  %2482 = vmatprep.subr.bf16.mxu0 0
  %2483 = vmatpush1.bf16.msra.mxu0 %v2464
  %2484 = vmatprep.subr.bf16.mxu0 0
  %2485 = vmatpush1.bf16.msra.mxu0 %v2465
  %2486 = vmatprep.subr.bf16.mxu0 0
  %2487 = vmatpush1.bf16.msra.mxu0 %v2466
  %2488 = vmatprep.subr.bf16.mxu0 0
  %2489 = vmatpush1.bf16.msra.mxu0 %v2467
  %2490 = vmatprep.subr.bf16.mxu0 0
  %2491 = vmatpush1.bf16.msra.mxu0 %v2468
  %2492 = vmatprep.subr.bf16.mxu0 0
  %2493 = vmatpush1.bf16.msra.mxu0 %v2469
  %2494 = vmatprep.subr.bf16.mxu0 0
  %2495 = vmatpush1.bf16.msra.mxu0 0
  %2496 = vmatprep.subr.bf16.mxu0 0
  %2497 = vmatpush1.bf16.msra.mxu0 0
  %2498 = vmatprep.subr.bf16.mxu0 0
  %2499 = vmatpush1.bf16.msra.mxu0 0
  %2500 = vmatprep.subr.bf16.mxu0 0
  %2501 = vmatpush1.bf16.msra.mxu0 0
  %2502 = vmatprep.subr.bf16.mxu0 0
  %2503 = vmatpush1.bf16.msra.mxu0 0
  %2504 = vmatprep.subr.bf16.mxu0 0
  %2505 = vmatpush1.bf16.msra.mxu0 0
  %2506 = vmatprep.subr.bf16.mxu0 0
  %2507 = vmatpush1.bf16.msra.mxu0 0
  %2508 = vmatprep.subr.bf16.mxu0 0
  %2509 = vmatpush1.bf16.msra.mxu0 0
  %2510 = vmatprep.mubr.bf16.mxu0 0
  %2511 = vmatmul.mubr.bf16.gmra.mrb[0].mxu0 %v2366
  %v2512 = vpop.f32.mrb[0].mxu0
  %v2513 = vadd.f32 %v2236, %v2512
  %v2514 = vpop.f32.mrb[0].mxu0
  %v2515 = vpop.f32.mrb[0].mxu0
  %v2516 = vadd.f32 %v2236, %v2515
  %v2517 = vpop.f32.mrb[0].mxu0
  %2518 = vmatprep.mubr.bf16.mxu0 0
  %2519 = vmatmul.mubr.bf16.gmra.mrb[0].mxu0 %v2367
  %v2520 = vpop.f32.mrb[0].mxu0
  %v2521 = vadd.f32 %v2236, %v2520
  %v2522 = vpop.f32.mrb[0].mxu0
  %v2523 = vpop.f32.mrb[0].mxu0
  %v2524 = vadd.f32 %v2236, %v2523
  %v2525 = vpop.f32.mrb[0].mxu0
  %2526 = vmatprep.mubr.bf16.mxu0 0
  %2527 = vmatmul.mubr.bf16.gmra.mrb[0].mxu0 %v2368
  %v2528 = vpop.f32.mrb[0].mxu0
  %v2529 = vadd.f32 %v2236, %v2528
  %v2530 = vpop.f32.mrb[0].mxu0
  %v2531 = vpop.f32.mrb[0].mxu0
  %v2532 = vadd.f32 %v2236, %v2531
  %v2533 = vpop.f32.mrb[0].mxu0
  %2534 = vmatprep.mubr.bf16.mxu0 0
  %2535 = vmatmul.mubr.bf16.gmra.mrb[0].mxu0 %v2369
  %v2536 = vpop.f32.mrb[0].mxu0
  %v2537 = vadd.f32 %v2236, %v2536
  %v2538 = vpop.f32.mrb[0].mxu0
  %v2539 = vpop.f32.mrb[0].mxu0
  %v2540 = vadd.f32 %v2236, %v2539
  %v2541 = vpop.f32.mrb[0].mxu0
  %2542 = vmatprep.mubr.bf16.mxu0 0
  %2543 = vmatmul.mubr.bf16.gmra.mrb[0].mxu0 %v2370
  %v2544 = vpop.f32.mrb[0].mxu0
  %v2545 = vadd.f32 %v2236, %v2544
  %v2546 = vpop.f32.mrb[0].mxu0
  %v2547 = vpop.f32.mrb[0].mxu0
  %v2548 = vadd.f32 %v2236, %v2547
  %v2549 = vpop.f32.mrb[0].mxu0
  %2550 = vmatprep.mubr.bf16.mxu0 0
  %2551 = vmatmul.mubr.bf16.gmra.mrb[0].mxu0 %v2371
  %v2552 = vpop.f32.mrb[0].mxu0
  %v2553 = vadd.f32 %v2236, %v2552
  %v2554 = vpop.f32.mrb[0].mxu0
  %v2555 = vpop.f32.mrb[0].mxu0
  %v2556 = vadd.f32 %v2236, %v2555
  %v2557 = vpop.f32.mrb[0].mxu0
  %2558 = vmatprep.mubr.bf16.mxu0 0
  %2559 = vmatmul.mubr.bf16.gmra.mrb[0].mxu0 %v2372
  %v2560 = vpop.f32.mrb[0].mxu0
  %v2561 = vadd.f32 %v2236, %v2560
  %v2562 = vpop.f32.mrb[0].mxu0
  %v2563 = vpop.f32.mrb[0].mxu0
  %v2564 = vadd.f32 %v2236, %v2563
  %v2565 = vpop.f32.mrb[0].mxu0
  %2566 = vmatprep.mubr.bf16.mxu0 0
  %2567 = vmatmul.mubr.bf16.gmra.mrb[0].mxu0 %v2373
  %v2568 = vpop.f32.mrb[0].mxu0
  %v2569 = vadd.f32 %v2236, %v2568
  %v2570 = vpop.f32.mrb[0].mxu0
  %v2571 = vpop.f32.mrb[0].mxu0
  %v2572 = vadd.f32 %v2236, %v2571
  %v2573 = vpop.f32.mrb[0].mxu0
  %2574 = vmatprep.mubr.bf16.mxu0 0
  %2575 = vmatmul.mubr.bf16.gmra.mrb[0].mxu0 %v2374
  %v2576 = vpop.f32.mrb[0].mxu0
  %v2577 = vadd.f32 %v2236, %v2576
  %v2578 = vpop.f32.mrb[0].mxu0
  %v2579 = vpop.f32.mrb[0].mxu0
  %v2580 = vadd.f32 %v2236, %v2579
  %v2581 = vpop.f32.mrb[0].mxu0
  %2582 = vmatprep.mubr.bf16.mxu0 0
  %2583 = vmatmul.mubr.bf16.gmra.mrb[0].mxu0 %v2375
  %v2584 = vpop.f32.mrb[0].mxu0
  %v2585 = vadd.f32 %v2236, %v2584
  %v2586 = vpop.f32.mrb[0].mxu0
  %v2587 = vpop.f32.mrb[0].mxu0
  %v2588 = vadd.f32 %v2236, %v2587
  %v2589 = vpop.f32.mrb[0].mxu0
  %2590 = vmatprep.mubr.bf16.mxu0 0
  %2591 = vmatmul.mubr.bf16.gmra.mrb[0].mxu0 %v2376
  %v2592 = vpop.f32.mrb[0].mxu0
  %v2593 = vadd.f32 %v2236, %v2592
  %v2594 = vpop.f32.mrb[0].mxu0
  %v2595 = vpop.f32.mrb[0].mxu0
  %v2596 = vadd.f32 %v2236, %v2595
  %v2597 = vpop.f32.mrb[0].mxu0
  %2598 = vmatprep.mubr.bf16.mxu0 0
  %2599 = vmatmul.mubr.bf16.gmra.mrb[0].mxu0 %v2377
  %v2600 = vpop.f32.mrb[0].mxu0
  %v2601 = vadd.f32 %v2236, %v2600
  %v2602 = vpop.f32.mrb[0].mxu0
  %v2603 = vpop.f32.mrb[0].mxu0
  %v2604 = vadd.f32 %v2236, %v2603
  %v2605 = vpop.f32.mrb[0].mxu0
  %2606 = vmatprep.mubr.bf16.mxu0 0
  %2607 = vmatmul.mubr.bf16.gmra.mrb[0].mxu0 %v2378
  %v2608 = vpop.f32.mrb[0].mxu0
  %v2609 = vadd.f32 %v2236, %v2608
  %v2610 = vpop.f32.mrb[0].mxu0
  %v2611 = vpop.f32.mrb[0].mxu0
  %v2612 = vadd.f32 %v2236, %v2611
  %v2613 = vpop.f32.mrb[0].mxu0
  %2614 = vmatprep.mubr.bf16.mxu0 0
  %2615 = vmatmul.mubr.bf16.gmra.mrb[0].mxu0 %v2379
  %v2616 = vpop.f32.mrb[0].mxu0
  %v2617 = vadd.f32 %v2236, %v2616
  %v2618 = vpop.f32.mrb[0].mxu0
  %v2619 = vpop.f32.mrb[0].mxu0
  %v2620 = vadd.f32 %v2236, %v2619
  %v2621 = vpop.f32.mrb[0].mxu0
  %2622 = vmatprep.mubr.bf16.mxu0 0
  %2623 = vmatmul.mubr.bf16.gmra.mrb[0].mxu0 %v2380
  %v2624 = vpop.f32.mrb[0].mxu0
  %v2625 = vadd.f32 %v2236, %v2624
  %v2626 = vpop.f32.mrb[0].mxu0
  %v2627 = vpop.f32.mrb[0].mxu0
  %v2628 = vadd.f32 %v2236, %v2627
  %v2629 = vpop.f32.mrb[0].mxu0
  %2630 = vmatprep.mubr.bf16.mxu0 0
  %2631 = vmatmul.mubr.bf16.gmra.mrb[0].mxu0 %v2381
  %v2632 = vpop.f32.mrb[0].mxu0
  %v2633 = vadd.f32 %v2236, %v2632
  %v2634 = vpop.f32.mrb[0].mxu0
  %v2635 = vpop.f32.mrb[0].mxu0
  %v2636 = vadd.f32 %v2236, %v2635
  %v2637 = vpop.f32.mrb[0].mxu0
  %2638 = vmatprep.mubr.bf16.mxu0 0
  %2639 = vmatmul.mubr.bf16.gmra.mrb[0].mxu0 %v2382
  %v2640 = vpop.f32.mrb[0].mxu0
  %v2641 = vadd.f32 %v2236, %v2640
  %v2642 = vpop.f32.mrb[0].mxu0
  %v2643 = vpop.f32.mrb[0].mxu0
  %v2644 = vadd.f32 %v2236, %v2643
  %v2645 = vpop.f32.mrb[0].mxu0
  %2646 = vmatprep.mubr.bf16.mxu0 0
  %2647 = vmatmul.mubr.bf16.gmra.mrb[0].mxu0 %v2383
  %v2648 = vpop.f32.mrb[0].mxu0
  %v2649 = vadd.f32 %v2236, %v2648
  %v2650 = vpop.f32.mrb[0].mxu0
  %v2651 = vpop.f32.mrb[0].mxu0
  %v2652 = vadd.f32 %v2236, %v2651
  %v2653 = vpop.f32.mrb[0].mxu0
  %2654 = vmatprep.mubr.bf16.mxu0 0
  %2655 = vmatmul.mubr.bf16.gmra.mrb[0].mxu0 %v2384
  %v2656 = vpop.f32.mrb[0].mxu0
  %v2657 = vadd.f32 %v2236, %v2656
  %v2658 = vpop.f32.mrb[0].mxu0
  %v2659 = vpop.f32.mrb[0].mxu0
  %v2660 = vadd.f32 %v2236, %v2659
  %v2661 = vpop.f32.mrb[0].mxu0
  %2662 = vmatprep.mubr.bf16.mxu0 0
  %2663 = vmatmul.mubr.bf16.gmra.mrb[0].mxu0 %v2385
  %v2664 = vpop.f32.mrb[0].mxu0
  %v2665 = vadd.f32 %v2236, %v2664
  %v2666 = vpop.f32.mrb[0].mxu0
  %v2667 = vpop.f32.mrb[0].mxu0
  %v2668 = vadd.f32 %v2236, %v2667
  %v2669 = vpop.f32.mrb[0].mxu0
  %2670 = vmatprep.mubr.bf16.mxu0 0
  %2671 = vmatmul.mubr.bf16.gmra.mrb[0].mxu0 %v2386
  %v2672 = vpop.f32.mrb[0].mxu0
  %v2673 = vadd.f32 %v2236, %v2672
  %v2674 = vpop.f32.mrb[0].mxu0
  %v2675 = vpop.f32.mrb[0].mxu0
  %v2676 = vadd.f32 %v2236, %v2675
  %v2677 = vpop.f32.mrb[0].mxu0
  %2678 = vmatprep.mubr.bf16.mxu0 0
  %2679 = vmatmul.mubr.bf16.gmra.mrb[0].mxu0 %v2387
  %v2680 = vpop.f32.mrb[0].mxu0
  %v2681 = vadd.f32 %v2236, %v2680
  %v2682 = vpop.f32.mrb[0].mxu0
  %v2683 = vpop.f32.mrb[0].mxu0
  %v2684 = vadd.f32 %v2236, %v2683
  %v2685 = vpop.f32.mrb[0].mxu0
  %2686 = vmatprep.mubr.bf16.mxu0 0
  %2687 = vmatmul.mubr.bf16.gmra.mrb[0].mxu0 %v2388
  %v2688 = vpop.f32.mrb[0].mxu0
  %v2689 = vadd.f32 %v2236, %v2688
  %v2690 = vpop.f32.mrb[0].mxu0
  %v2691 = vpop.f32.mrb[0].mxu0
  %v2692 = vadd.f32 %v2236, %v2691
  %v2693 = vpop.f32.mrb[0].mxu0
  %2694 = vmatprep.mubr.bf16.mxu0 0
  %2695 = vmatmul.mubr.bf16.gmra.mrb[0].mxu0 %v2389
  %v2696 = vpop.f32.mrb[0].mxu0
  %v2697 = vadd.f32 %v2236, %v2696
  %v2698 = vpop.f32.mrb[0].mxu0
  %v2699 = vpop.f32.mrb[0].mxu0
  %v2700 = vadd.f32 %v2236, %v2699
  %v2701 = vpop.f32.mrb[0].mxu0
  %2702 = vmatprep.mubr.bf16.mxu0 0
  %2703 = vmatmul.mubr.bf16.gmra.mrb[0].mxu0 %v2390
  %v2704 = vpop.f32.mrb[0].mxu0
  %v2705 = vadd.f32 %v2236, %v2704
  %v2706 = vpop.f32.mrb[0].mxu0
  %v2707 = vpop.f32.mrb[0].mxu0
  %v2708 = vadd.f32 %v2236, %v2707
  %v2709 = vpop.f32.mrb[0].mxu0
  %2710 = vmatprep.mubr.bf16.mxu0 0
  %2711 = vmatmul.mubr.bf16.gmra.mrb[0].mxu0 %v2391
  %v2712 = vpop.f32.mrb[0].mxu0
  %v2713 = vadd.f32 %v2236, %v2712
  %v2714 = vpop.f32.mrb[0].mxu0
  %v2715 = vpop.f32.mrb[0].mxu0
  %v2716 = vadd.f32 %v2236, %v2715
  %v2717 = vpop.f32.mrb[0].mxu0
  %2718 = vmatprep.mubr.bf16.mxu0 0
  %2719 = vmatmul.mubr.bf16.gmra.mrb[0].mxu0 %v2392
  %v2720 = vpop.f32.mrb[0].mxu0
  %v2721 = vadd.f32 %v2236, %v2720
  %v2722 = vpop.f32.mrb[0].mxu0
  %v2723 = vpop.f32.mrb[0].mxu0
  %v2724 = vadd.f32 %v2236, %v2723
  %v2725 = vpop.f32.mrb[0].mxu0
  %2726 = vmatprep.mubr.bf16.mxu0 0
  %2727 = vmatmul.mubr.bf16.gmra.mrb[0].mxu0 %v2393
  %v2728 = vpop.f32.mrb[0].mxu0
  %v2729 = vadd.f32 %v2236, %v2728
  %v2730 = vpop.f32.mrb[0].mxu0
  %v2731 = vpop.f32.mrb[0].mxu0
  %v2732 = vadd.f32 %v2236, %v2731
  %v2733 = vpop.f32.mrb[0].mxu0
  %2734 = vmatprep.mubr.bf16.mxu0 0
  %2735 = vmatmul.mubr.bf16.gmra.mrb[0].mxu0 %v2394
  %v2736 = vpop.f32.mrb[0].mxu0
  %v2737 = vadd.f32 %v2236, %v2736
  %v2738 = vpop.f32.mrb[0].mxu0
  %v2739 = vpop.f32.mrb[0].mxu0
  %v2740 = vadd.f32 %v2236, %v2739
  %v2741 = vpop.f32.mrb[0].mxu0
  %2742 = vmatprep.mubr.bf16.mxu0 0
  %2743 = vmatmul.mubr.bf16.gmra.mrb[0].mxu0 %v2395
  %v2744 = vpop.f32.mrb[0].mxu0
  %v2745 = vadd.f32 %v2236, %v2744
  %v2746 = vpop.f32.mrb[0].mxu0
  %v2747 = vpop.f32.mrb[0].mxu0
  %v2748 = vadd.f32 %v2236, %v2747
  %v2749 = vpop.f32.mrb[0].mxu0
  %2750 = vmatprep.mubr.bf16.mxu0 0
  %2751 = vmatmul.mubr.bf16.gmra.mrb[0].mxu0 %v2396
  %v2752 = vpop.f32.mrb[0].mxu0
  %v2753 = vadd.f32 %v2236, %v2752
  %v2754 = vpop.f32.mrb[0].mxu0
  %v2755 = vpop.f32.mrb[0].mxu0
  %v2756 = vadd.f32 %v2236, %v2755
  %v2757 = vpop.f32.mrb[0].mxu0
  %2758 = vmatprep.mubr.bf16.mxu0 0
  %2759 = vmatmul.mubr.bf16.gmra.mrb[0].mxu0 %v2397
  %v2760 = vpop.f32.mrb[0].mxu0
  %v2761 = vadd.f32 %v2236, %v2760
  %v2762 = vpop.f32.mrb[0].mxu0
  %v2763 = vpop.f32.mrb[0].mxu0
  %v2764 = vadd.f32 %v2236, %v2763
  %v2765 = vpop.f32.mrb[0].mxu0
  %2766 = vdwg.mxu0
  %v2767 = vxor.u32 %v2513, 2147483648
  %v2768 = vxor.u32 %v2516, 2147483648
  %v2769 = vxor.u32 %v2521, 2147483648
  %v2770 = vxor.u32 %v2524, 2147483648
  %v2771 = vxor.u32 %v2529, 2147483648
  %v2772 = vxor.u32 %v2532, 2147483648
  %v2773 = vxor.u32 %v2537, 2147483648
  %v2774 = vxor.u32 %v2540, 2147483648
  %v2775 = vxor.u32 %v2545, 2147483648
  %v2776 = vxor.u32 %v2548, 2147483648
  %v2777 = vxor.u32 %v2553, 2147483648
  %v2778 = vxor.u32 %v2556, 2147483648
  %v2779 = vxor.u32 %v2561, 2147483648
  %v2780 = vxor.u32 %v2564, 2147483648
  %v2781 = vxor.u32 %v2569, 2147483648
  %v2782 = vxor.u32 %v2572, 2147483648
  %v2783 = vxor.u32 %v2577, 2147483648
  %v2784 = vxor.u32 %v2580, 2147483648
  %v2785 = vxor.u32 %v2585, 2147483648
  %v2786 = vxor.u32 %v2588, 2147483648
  %v2787 = vxor.u32 %v2593, 2147483648
  %v2788 = vxor.u32 %v2596, 2147483648
  %v2789 = vxor.u32 %v2601, 2147483648
  %v2790 = vxor.u32 %v2604, 2147483648
  %v2791 = vxor.u32 %v2609, 2147483648
  %v2792 = vxor.u32 %v2612, 2147483648
  %v2793 = vxor.u32 %v2617, 2147483648
  %v2794 = vxor.u32 %v2620, 2147483648
  %v2795 = vxor.u32 %v2625, 2147483648
  %v2796 = vxor.u32 %v2628, 2147483648
  %v2797 = vxor.u32 %v2633, 2147483648
  %v2798 = vxor.u32 %v2636, 2147483648
  %v2799 = vxor.u32 %v2641, 2147483648
  %v2800 = vxor.u32 %v2644, 2147483648
  %v2801 = vxor.u32 %v2649, 2147483648
  %v2802 = vxor.u32 %v2652, 2147483648
  %v2803 = vxor.u32 %v2657, 2147483648
  %v2804 = vxor.u32 %v2660, 2147483648
  %v2805 = vxor.u32 %v2665, 2147483648
  %v2806 = vxor.u32 %v2668, 2147483648
  %v2807 = vxor.u32 %v2673, 2147483648
  %v2808 = vxor.u32 %v2676, 2147483648
  %v2809 = vxor.u32 %v2681, 2147483648
  %v2810 = vxor.u32 %v2684, 2147483648
  %v2811 = vxor.u32 %v2689, 2147483648
  %v2812 = vxor.u32 %v2692, 2147483648
  %v2813 = vxor.u32 %v2697, 2147483648
  %v2814 = vxor.u32 %v2700, 2147483648
  %v2815 = vxor.u32 %v2705, 2147483648
  %v2816 = vxor.u32 %v2708, 2147483648
  %v2817 = vxor.u32 %v2713, 2147483648
  %v2818 = vxor.u32 %v2716, 2147483648
  %v2819 = vxor.u32 %v2721, 2147483648
  %v2820 = vxor.u32 %v2724, 2147483648
  %v2821 = vxor.u32 %v2729, 2147483648
  %v2822 = vxor.u32 %v2732, 2147483648
  %v2823 = vxor.u32 %v2737, 2147483648
  %v2824 = vxor.u32 %v2740, 2147483648
  %v2825 = vxor.u32 %v2745, 2147483648
  %v2826 = vxor.u32 %v2748, 2147483648
  %v2827 = vxor.u32 %v2753, 2147483648
  %v2828 = vxor.u32 %v2756, 2147483648
  %v2829 = vxor.u32 %v2761, 2147483648
  %v2830 = vxor.u32 %v2764, 2147483648
  %v2831 = vmul.f32 %v2767, 1.442695
  %v2832 = vpow.pop %v2831
  %v2833 = vmul.f32 %v2768, 1.442695
  %v2834 = vpow.pop %v2833
  %v2835 = vmul.f32 %v2769, 1.442695
  %v2836 = vpow.pop %v2835
  %v2837 = vmul.f32 %v2770, 1.442695
  %v2838 = vpow.pop %v2837
  %v2839 = vmul.f32 %v2771, 1.442695
  %v2840 = vpow.pop %v2839
  %v2841 = vmul.f32 %v2772, 1.442695
  %v2842 = vpow.pop %v2841
  %v2843 = vmul.f32 %v2773, 1.442695
  %v2844 = vpow.pop %v2843
  %v2845 = vmul.f32 %v2774, 1.442695
  %v2846 = vpow.pop %v2845
  %v2847 = vmul.f32 %v2775, 1.442695
  %v2848 = vpow.pop %v2847
  %v2849 = vmul.f32 %v2776, 1.442695
  %v2850 = vpow.pop %v2849
  %v2851 = vmul.f32 %v2777, 1.442695
  %v2852 = vpow.pop %v2851
  %v2853 = vmul.f32 %v2778, 1.442695
  %v2854 = vpow.pop %v2853
  %v2855 = vmul.f32 %v2779, 1.442695
  %v2856 = vpow.pop %v2855
  %v2857 = vmul.f32 %v2780, 1.442695
  %v2858 = vpow.pop %v2857
  %v2859 = vmul.f32 %v2781, 1.442695
  %v2860 = vpow.pop %v2859
  %v2861 = vmul.f32 %v2782, 1.442695
  %v2862 = vpow.pop %v2861
  %v2863 = vmul.f32 %v2783, 1.442695
  %v2864 = vpow.pop %v2863
  %v2865 = vmul.f32 %v2784, 1.442695
  %v2866 = vpow.pop %v2865
  %v2867 = vmul.f32 %v2785, 1.442695
  %v2868 = vpow.pop %v2867
  %v2869 = vmul.f32 %v2786, 1.442695
  %v2870 = vpow.pop %v2869
  %v2871 = vmul.f32 %v2787, 1.442695
  %v2872 = vpow.pop %v2871
  %v2873 = vmul.f32 %v2788, 1.442695
  %v2874 = vpow.pop %v2873
  %v2875 = vmul.f32 %v2789, 1.442695
  %v2876 = vpow.pop %v2875
  %v2877 = vmul.f32 %v2790, 1.442695
  %v2878 = vpow.pop %v2877
  %v2879 = vmul.f32 %v2791, 1.442695
  %v2880 = vpow.pop %v2879
  %v2881 = vmul.f32 %v2792, 1.442695
  %v2882 = vpow.pop %v2881
  %v2883 = vmul.f32 %v2793, 1.442695
  %v2884 = vpow.pop %v2883
  %v2885 = vmul.f32 %v2794, 1.442695
  %v2886 = vpow.pop %v2885
  %v2887 = vmul.f32 %v2795, 1.442695
  %v2888 = vpow.pop %v2887
  %v2889 = vmul.f32 %v2796, 1.442695
  %v2890 = vpow.pop %v2889
  %v2891 = vmul.f32 %v2797, 1.442695
  %v2892 = vpow.pop %v2891
  %v2893 = vmul.f32 %v2798, 1.442695
  %v2894 = vpow.pop %v2893
  %v2895 = vmul.f32 %v2799, 1.442695
  %v2896 = vpow.pop %v2895
  %v2897 = vmul.f32 %v2800, 1.442695
  %v2898 = vpow.pop %v2897
  %v2899 = vmul.f32 %v2801, 1.442695
  %v2900 = vpow.pop %v2899
  %v2901 = vmul.f32 %v2802, 1.442695
  %v2902 = vpow.pop %v2901
  %v2903 = vmul.f32 %v2803, 1.442695
  %v2904 = vpow.pop %v2903
  %v2905 = vmul.f32 %v2804, 1.442695
  %v2906 = vpow.pop %v2905
  %v2907 = vmul.f32 %v2805, 1.442695
  %v2908 = vpow.pop %v2907
  %v2909 = vmul.f32 %v2806, 1.442695
  %v2910 = vpow.pop %v2909
  %v2911 = vmul.f32 %v2807, 1.442695
  %v2912 = vpow.pop %v2911
  %v2913 = vmul.f32 %v2808, 1.442695
  %v2914 = vpow.pop %v2913
  %v2915 = vmul.f32 %v2809, 1.442695
  %v2916 = vpow.pop %v2915
  %v2917 = vmul.f32 %v2810, 1.442695
  %v2918 = vpow.pop %v2917
  %v2919 = vmul.f32 %v2811, 1.442695
  %v2920 = vpow.pop %v2919
  %v2921 = vmul.f32 %v2812, 1.442695
  %v2922 = vpow.pop %v2921
  %v2923 = vmul.f32 %v2813, 1.442695
  %v2924 = vpow.pop %v2923
  %v2925 = vmul.f32 %v2814, 1.442695
  %v2926 = vpow.pop %v2925
  %v2927 = vmul.f32 %v2815, 1.442695
  %v2928 = vpow.pop %v2927
  %v2929 = vmul.f32 %v2816, 1.442695
  %v2930 = vpow.pop %v2929
  %v2931 = vmul.f32 %v2817, 1.442695
  %v2932 = vpow.pop %v2931
  %v2933 = vmul.f32 %v2818, 1.442695
  %v2934 = vpow.pop %v2933
  %v2935 = vmul.f32 %v2819, 1.442695
  %v2936 = vpow.pop %v2935
  %v2937 = vmul.f32 %v2820, 1.442695
  %v2938 = vpow.pop %v2937
  %v2939 = vmul.f32 %v2821, 1.442695
  %v2940 = vpow.pop %v2939
  %v2941 = vmul.f32 %v2822, 1.442695
  %v2942 = vpow.pop %v2941
  %v2943 = vmul.f32 %v2823, 1.442695
  %v2944 = vpow.pop %v2943
  %v2945 = vmul.f32 %v2824, 1.442695
  %v2946 = vpow.pop %v2945
  %v2947 = vmul.f32 %v2825, 1.442695
  %v2948 = vpow.pop %v2947
  %v2949 = vmul.f32 %v2826, 1.442695
  %v2950 = vpow.pop %v2949
  %v2951 = vmul.f32 %v2827, 1.442695
  %v2952 = vpow.pop %v2951
  %v2953 = vmul.f32 %v2828, 1.442695
  %v2954 = vpow.pop %v2953
  %v2955 = vmul.f32 %v2829, 1.442695
  %v2956 = vpow.pop %v2955
  %v2957 = vmul.f32 %v2830, 1.442695
  %v2958 = vpow.pop %v2957
  %v2959 = vadd.f32 %v2832, 1.0
  %v2960 = vadd.f32 %v2834, 1.0
  %v2961 = vadd.f32 %v2836, 1.0
  %v2962 = vadd.f32 %v2838, 1.0
  %v2963 = vadd.f32 %v2840, 1.0
  %v2964 = vadd.f32 %v2842, 1.0
  %v2965 = vadd.f32 %v2844, 1.0
  %v2966 = vadd.f32 %v2846, 1.0
  %v2967 = vadd.f32 %v2848, 1.0
  %v2968 = vadd.f32 %v2850, 1.0
  %v2969 = vadd.f32 %v2852, 1.0
  %v2970 = vadd.f32 %v2854, 1.0
  %v2971 = vadd.f32 %v2856, 1.0
  %v2972 = vadd.f32 %v2858, 1.0
  %v2973 = vadd.f32 %v2860, 1.0
  %v2974 = vadd.f32 %v2862, 1.0
  %v2975 = vadd.f32 %v2864, 1.0
  %v2976 = vadd.f32 %v2866, 1.0
  %v2977 = vadd.f32 %v2868, 1.0
  %v2978 = vadd.f32 %v2870, 1.0
  %v2979 = vadd.f32 %v2872, 1.0
  %v2980 = vadd.f32 %v2874, 1.0
  %v2981 = vadd.f32 %v2876, 1.0
  %v2982 = vadd.f32 %v2878, 1.0
  %v2983 = vadd.f32 %v2880, 1.0
  %v2984 = vadd.f32 %v2882, 1.0
  %v2985 = vadd.f32 %v2884, 1.0
  %v2986 = vadd.f32 %v2886, 1.0
  %v2987 = vadd.f32 %v2888, 1.0
  %v2988 = vadd.f32 %v2890, 1.0
  %v2989 = vadd.f32 %v2892, 1.0
  %v2990 = vadd.f32 %v2894, 1.0
  %v2991 = vadd.f32 %v2896, 1.0
  %v2992 = vadd.f32 %v2898, 1.0
  %v2993 = vadd.f32 %v2900, 1.0
  %v2994 = vadd.f32 %v2902, 1.0
  %v2995 = vadd.f32 %v2904, 1.0
  %v2996 = vadd.f32 %v2906, 1.0
  %v2997 = vadd.f32 %v2908, 1.0
  %v2998 = vadd.f32 %v2910, 1.0
  %v2999 = vadd.f32 %v2912, 1.0
  %v3000 = vadd.f32 %v2914, 1.0
  %v3001 = vadd.f32 %v2916, 1.0
  %v3002 = vadd.f32 %v2918, 1.0
  %v3003 = vadd.f32 %v2920, 1.0
  %v3004 = vadd.f32 %v2922, 1.0
  %v3005 = vadd.f32 %v2924, 1.0
  %v3006 = vadd.f32 %v2926, 1.0
  %v3007 = vadd.f32 %v2928, 1.0
  %v3008 = vadd.f32 %v2930, 1.0
  %v3009 = vadd.f32 %v2932, 1.0
  %v3010 = vadd.f32 %v2934, 1.0
  %v3011 = vadd.f32 %v2936, 1.0
  %v3012 = vadd.f32 %v2938, 1.0
  %v3013 = vadd.f32 %v2940, 1.0
  %v3014 = vadd.f32 %v2942, 1.0
  %v3015 = vadd.f32 %v2944, 1.0
  %v3016 = vadd.f32 %v2946, 1.0
  %v3017 = vadd.f32 %v2948, 1.0
  %v3018 = vadd.f32 %v2950, 1.0
  %v3019 = vadd.f32 %v2952, 1.0
  %v3020 = vadd.f32 %v2954, 1.0
  %v3021 = vadd.f32 %v2956, 1.0
  %v3022 = vadd.f32 %v2958, 1.0
  %v3023 = vrcp.pop %v2959
  %v3024 = vmul.f32 1.0, %v3023
  %v3025 = vrcp.pop %v2960
  %v3026 = vmul.f32 1.0, %v3025
  %v3027 = vrcp.pop %v2961
  %v3028 = vmul.f32 1.0, %v3027
  %v3029 = vrcp.pop %v2962
  %v3030 = vmul.f32 1.0, %v3029
  %v3031 = vrcp.pop %v2963
  %v3032 = vmul.f32 1.0, %v3031
  %v3033 = vrcp.pop %v2964
  %v3034 = vmul.f32 1.0, %v3033
  %v3035 = vrcp.pop %v2965
  %v3036 = vmul.f32 1.0, %v3035
  %v3037 = vrcp.pop %v2966
  %v3038 = vmul.f32 1.0, %v3037
  %v3039 = vrcp.pop %v2967
  %v3040 = vmul.f32 1.0, %v3039
  %v3041 = vrcp.pop %v2968
  %v3042 = vmul.f32 1.0, %v3041
  %v3043 = vrcp.pop %v2969
  %v3044 = vmul.f32 1.0, %v3043
  %v3045 = vrcp.pop %v2970
  %v3046 = vmul.f32 1.0, %v3045
  %v3047 = vrcp.pop %v2971
  %v3048 = vmul.f32 1.0, %v3047
  %v3049 = vrcp.pop %v2972
  %v3050 = vmul.f32 1.0, %v3049
  %v3051 = vrcp.pop %v2973
  %v3052 = vmul.f32 1.0, %v3051
  %v3053 = vrcp.pop %v2974
  %v3054 = vmul.f32 1.0, %v3053
  %v3055 = vrcp.pop %v2975
  %v3056 = vmul.f32 1.0, %v3055
  %v3057 = vrcp.pop %v2976
  %v3058 = vmul.f32 1.0, %v3057
  %v3059 = vrcp.pop %v2977
  %v3060 = vmul.f32 1.0, %v3059
  %v3061 = vrcp.pop %v2978
  %v3062 = vmul.f32 1.0, %v3061
  %v3063 = vrcp.pop %v2979
  %v3064 = vmul.f32 1.0, %v3063
  %v3065 = vrcp.pop %v2980
  %v3066 = vmul.f32 1.0, %v3065
  %v3067 = vrcp.pop %v2981
  %v3068 = vmul.f32 1.0, %v3067
  %v3069 = vrcp.pop %v2982
  %v3070 = vmul.f32 1.0, %v3069
  %v3071 = vrcp.pop %v2983
  %v3072 = vmul.f32 1.0, %v3071
  %v3073 = vrcp.pop %v2984
  %v3074 = vmul.f32 1.0, %v3073
  %v3075 = vrcp.pop %v2985
  %v3076 = vmul.f32 1.0, %v3075
  %v3077 = vrcp.pop %v2986
  %v3078 = vmul.f32 1.0, %v3077
  %v3079 = vrcp.pop %v2987
  %v3080 = vmul.f32 1.0, %v3079
  %v3081 = vrcp.pop %v2988
  %v3082 = vmul.f32 1.0, %v3081
  %v3083 = vrcp.pop %v2989
  %v3084 = vmul.f32 1.0, %v3083
  %v3085 = vrcp.pop %v2990
  %v3086 = vmul.f32 1.0, %v3085
  %v3087 = vrcp.pop %v2991
  %v3088 = vmul.f32 1.0, %v3087
  %v3089 = vrcp.pop %v2992
  %v3090 = vmul.f32 1.0, %v3089
  %v3091 = vrcp.pop %v2993
  %v3092 = vmul.f32 1.0, %v3091
  %v3093 = vrcp.pop %v2994
  %v3094 = vmul.f32 1.0, %v3093
  %v3095 = vrcp.pop %v2995
  %v3096 = vmul.f32 1.0, %v3095
  %v3097 = vrcp.pop %v2996
  %v3098 = vmul.f32 1.0, %v3097
  %v3099 = vrcp.pop %v2997
  %v3100 = vmul.f32 1.0, %v3099
  %v3101 = vrcp.pop %v2998
  %v3102 = vmul.f32 1.0, %v3101
  %v3103 = vrcp.pop %v2999
  %v3104 = vmul.f32 1.0, %v3103
  %v3105 = vrcp.pop %v3000
  %v3106 = vmul.f32 1.0, %v3105
  %v3107 = vrcp.pop %v3001
  %v3108 = vmul.f32 1.0, %v3107
  %v3109 = vrcp.pop %v3002
  %v3110 = vmul.f32 1.0, %v3109
  %v3111 = vrcp.pop %v3003
  %v3112 = vmul.f32 1.0, %v3111
  %v3113 = vrcp.pop %v3004
  %v3114 = vmul.f32 1.0, %v3113
  %v3115 = vrcp.pop %v3005
  %v3116 = vmul.f32 1.0, %v3115
  %v3117 = vrcp.pop %v3006
  %v3118 = vmul.f32 1.0, %v3117
  %v3119 = vrcp.pop %v3007
  %v3120 = vmul.f32 1.0, %v3119
  %v3121 = vrcp.pop %v3008
  %v3122 = vmul.f32 1.0, %v3121
  %v3123 = vrcp.pop %v3009
  %v3124 = vmul.f32 1.0, %v3123
  %v3125 = vrcp.pop %v3010
  %v3126 = vmul.f32 1.0, %v3125
  %v3127 = vrcp.pop %v3011
  %v3128 = vmul.f32 1.0, %v3127
  %v3129 = vrcp.pop %v3012
  %v3130 = vmul.f32 1.0, %v3129
  %v3131 = vrcp.pop %v3013
  %v3132 = vmul.f32 1.0, %v3131
  %v3133 = vrcp.pop %v3014
  %v3134 = vmul.f32 1.0, %v3133
  %v3135 = vrcp.pop %v3015
  %v3136 = vmul.f32 1.0, %v3135
  %v3137 = vrcp.pop %v3016
  %v3138 = vmul.f32 1.0, %v3137
  %v3139 = vrcp.pop %v3017
  %v3140 = vmul.f32 1.0, %v3139
  %v3141 = vrcp.pop %v3018
  %v3142 = vmul.f32 1.0, %v3141
  %v3143 = vrcp.pop %v3019
  %v3144 = vmul.f32 1.0, %v3143
  %v3145 = vrcp.pop %v3020
  %v3146 = vmul.f32 1.0, %v3145
  %v3147 = vrcp.pop %v3021
  %v3148 = vmul.f32 1.0, %v3147
  %v3149 = vrcp.pop %v3022
  %v3150 = vmul.f32 1.0, %v3149
  %s3151 = scalar_lea.vmem %s3, 1024
  %3152 = vst.msk [vmem:[%s3151] sm:$0xff] %vm1017, %v3024
  %3153 = vst.msk [vmem:[%s3151 + $0x8] sm:$0xff] %vm1017, %v3026
  %3154 = vst.msk [vmem:[%s3151 + $0x10] sm:$0xff] %vm1017, %v3028
  %3155 = vst.msk [vmem:[%s3151 + $0x18] sm:$0xff] %vm1017, %v3030
  %3156 = vst.msk [vmem:[%s3151 + $0x20] sm:$0xff] %vm1017, %v3032
  %3157 = vst.msk [vmem:[%s3151 + $0x28] sm:$0xff] %vm1017, %v3034
  %3158 = vst.msk [vmem:[%s3151 + $0x30] sm:$0xff] %vm1017, %v3036
  %3159 = vst.msk [vmem:[%s3151 + $0x38] sm:$0xff] %vm1017, %v3038
  %3160 = vst.msk [vmem:[%s3151 + $0x40] sm:$0xff] %vm1017, %v3040
  %3161 = vst.msk [vmem:[%s3151 + $0x48] sm:$0xff] %vm1017, %v3042
  %3162 = vst.msk [vmem:[%s3151 + $0x50] sm:$0xff] %vm1017, %v3044
  %3163 = vst.msk [vmem:[%s3151 + $0x58] sm:$0xff] %vm1017, %v3046
  %3164 = vst.msk [vmem:[%s3151 + $0x60] sm:$0xff] %vm1017, %v3048
  %3165 = vst.msk [vmem:[%s3151 + $0x68] sm:$0xff] %vm1017, %v3050
  %3166 = vst.msk [vmem:[%s3151 + $0x70] sm:$0xff] %vm1017, %v3052
  %3167 = vst.msk [vmem:[%s3151 + $0x78] sm:$0xff] %vm1017, %v3054
  %3168 = vst.msk [vmem:[%s3151 + $0x80] sm:$0xff] %vm1017, %v3056
  %3169 = vst.msk [vmem:[%s3151 + $0x88] sm:$0xff] %vm1017, %v3058
  %3170 = vst.msk [vmem:[%s3151 + $0x90] sm:$0xff] %vm1017, %v3060
  %3171 = vst.msk [vmem:[%s3151 + $0x98] sm:$0xff] %vm1017, %v3062
  %3172 = vst.msk [vmem:[%s3151 + $0xa0] sm:$0xff] %vm1017, %v3064
  %3173 = vst.msk [vmem:[%s3151 + $0xa8] sm:$0xff] %vm1017, %v3066
  %3174 = vst.msk [vmem:[%s3151 + $0xb0] sm:$0xff] %vm1017, %v3068
  %3175 = vst.msk [vmem:[%s3151 + $0xb8] sm:$0xff] %vm1017, %v3070
  %3176 = vst.msk [vmem:[%s3151 + $0xc0] sm:$0xff] %vm1017, %v3072
  %3177 = vst.msk [vmem:[%s3151 + $0xc8] sm:$0xff] %vm1017, %v3074
  %3178 = vst.msk [vmem:[%s3151 + $0xd0] sm:$0xff] %vm1017, %v3076
  %3179 = vst.msk [vmem:[%s3151 + $0xd8] sm:$0xff] %vm1017, %v3078
  %3180 = vst.msk [vmem:[%s3151 + $0xe0] sm:$0xff] %vm1017, %v3080
  %3181 = vst.msk [vmem:[%s3151 + $0xe8] sm:$0xff] %vm1017, %v3082
  %3182 = vst.msk [vmem:[%s3151 + $0xf0] sm:$0xff] %vm1017, %v3084
  %3183 = vst.msk [vmem:[%s3151 + $0xf8] sm:$0xff] %vm1017, %v3086
  %3184 = vst.msk [vmem:[%s3151 + $0x100] sm:$0xff] %vm1017, %v3088
  %3185 = vst.msk [vmem:[%s3151 + $0x108] sm:$0xff] %vm1017, %v3090
  %3186 = vst.msk [vmem:[%s3151 + $0x110] sm:$0xff] %vm1017, %v3092
  %3187 = vst.msk [vmem:[%s3151 + $0x118] sm:$0xff] %vm1017, %v3094
  %3188 = vst.msk [vmem:[%s3151 + $0x120] sm:$0xff] %vm1017, %v3096
  %3189 = vst.msk [vmem:[%s3151 + $0x128] sm:$0xff] %vm1017, %v3098
  %3190 = vst.msk [vmem:[%s3151 + $0x130] sm:$0xff] %vm1017, %v3100
  %3191 = vst.msk [vmem:[%s3151 + $0x138] sm:$0xff] %vm1017, %v3102
  %3192 = vst.msk [vmem:[%s3151 + $0x140] sm:$0xff] %vm1017, %v3104
  %3193 = vst.msk [vmem:[%s3151 + $0x148] sm:$0xff] %vm1017, %v3106
  %3194 = vst.msk [vmem:[%s3151 + $0x150] sm:$0xff] %vm1017, %v3108
  %3195 = vst.msk [vmem:[%s3151 + $0x158] sm:$0xff] %vm1017, %v3110
  %3196 = vst.msk [vmem:[%s3151 + $0x160] sm:$0xff] %vm1017, %v3112
  %3197 = vst.msk [vmem:[%s3151 + $0x168] sm:$0xff] %vm1017, %v3114
  %3198 = vst.msk [vmem:[%s3151 + $0x170] sm:$0xff] %vm1017, %v3116
  %3199 = vst.msk [vmem:[%s3151 + $0x178] sm:$0xff] %vm1017, %v3118
  %3200 = vst.msk [vmem:[%s3151 + $0x180] sm:$0xff] %vm1017, %v3120
  %3201 = vst.msk [vmem:[%s3151 + $0x188] sm:$0xff] %vm1017, %v3122
  %3202 = vst.msk [vmem:[%s3151 + $0x190] sm:$0xff] %vm1017, %v3124
  %3203 = vst.msk [vmem:[%s3151 + $0x198] sm:$0xff] %vm1017, %v3126
  %3204 = vst.msk [vmem:[%s3151 + $0x1a0] sm:$0xff] %vm1017, %v3128
  %3205 = vst.msk [vmem:[%s3151 + $0x1a8] sm:$0xff] %vm1017, %v3130
  %3206 = vst.msk [vmem:[%s3151 + $0x1b0] sm:$0xff] %vm1017, %v3132
  %3207 = vst.msk [vmem:[%s3151 + $0x1b8] sm:$0xff] %vm1017, %v3134
  %3208 = vst.msk [vmem:[%s3151 + $0x1c0] sm:$0xff] %vm1017, %v3136
  %3209 = vst.msk [vmem:[%s3151 + $0x1c8] sm:$0xff] %vm1017, %v3138
  %3210 = vst.msk [vmem:[%s3151 + $0x1d0] sm:$0xff] %vm1017, %v3140
  %3211 = vst.msk [vmem:[%s3151 + $0x1d8] sm:$0xff] %vm1017, %v3142
  %3212 = vst.msk [vmem:[%s3151 + $0x1e0] sm:$0xff] %vm1017, %v3144
  %3213 = vst.msk [vmem:[%s3151 + $0x1e8] sm:$0xff] %vm1017, %v3146
  %3214 = vst.msk [vmem:[%s3151 + $0x1f0] sm:$0xff] %vm1017, %v3148
  %3215 = vst.msk [vmem:[%s3151 + $0x1f8] sm:$0xff] %vm1017, %v3150
  %s3216 = scalar_lea.vmem %s0, 768
  %v3217 = vld [vmem:[%s3216] sm:$0xf]
  %v3218 = vld [vmem:[%s3216 + $0x4] sm:$0xf]
  %v3219 = vld [vmem:[%s3216 + $0x8] sm:$0xf]
  %v3220 = vld [vmem:[%s3216 + $0xc] sm:$0xf]
  %v3221 = vld [vmem:[%s3216 + $0x10] sm:$0xf]
  %v3222 = vld [vmem:[%s3216 + $0x14] sm:$0xf]
  %v3223 = vld [vmem:[%s3216 + $0x18] sm:$0xf]
  %v3224 = vld [vmem:[%s3216 + $0x1c] sm:$0xf]
  %v3225 = vld [vmem:[%s3216 + $0x20] sm:$0xf]
  %v3226 = vld [vmem:[%s3216 + $0x24] sm:$0xf]
  %v3227 = vld [vmem:[%s3216 + $0x28] sm:$0xf]
  %v3228 = vld [vmem:[%s3216 + $0x2c] sm:$0xf]
  %v3229 = vld [vmem:[%s3216 + $0x30] sm:$0xf]
  %v3230 = vld [vmem:[%s3216 + $0x34] sm:$0xf]
  %v3231 = vld [vmem:[%s3216 + $0x38] sm:$0xf]
  %v3232 = vld [vmem:[%s3216 + $0x3c] sm:$0xf]
  %v3233 = vld [vmem:[%s3216 + $0x40] sm:$0xf]
  %v3234 = vld [vmem:[%s3216 + $0x44] sm:$0xf]
  %v3235 = vld [vmem:[%s3216 + $0x48] sm:$0xf]
  %v3236 = vld [vmem:[%s3216 + $0x4c] sm:$0xf]
  %v3237 = vld [vmem:[%s3216 + $0x50] sm:$0xf]
  %v3238 = vld [vmem:[%s3216 + $0x54] sm:$0xf]
  %v3239 = vld [vmem:[%s3216 + $0x58] sm:$0xf]
  %v3240 = vld [vmem:[%s3216 + $0x5c] sm:$0xf]
  %v3241 = vld [vmem:[%s3216 + $0x60] sm:$0xf]
  %v3242 = vld [vmem:[%s3216 + $0x64] sm:$0xf]
  %v3243 = vld [vmem:[%s3216 + $0x68] sm:$0xf]
  %v3244 = vld [vmem:[%s3216 + $0x6c] sm:$0xf]
  %v3245 = vld [vmem:[%s3216 + $0x70] sm:$0xf]
  %v3246 = vld [vmem:[%s3216 + $0x74] sm:$0xf]
  %v3247 = vld [vmem:[%s3216 + $0x78] sm:$0xf]
  %v3248 = vld [vmem:[%s3216 + $0x7c] sm:$0xf]
  %v3249 = vld [vmem:[%s3216 + $0x80] sm:$0xf]
  %v3250 = vld [vmem:[%s3216 + $0x84] sm:$0xf]
  %v3251 = vld [vmem:[%s3216 + $0x88] sm:$0xf]
  %v3252 = vld [vmem:[%s3216 + $0x8c] sm:$0xf]
  %v3253 = vld [vmem:[%s3216 + $0x90] sm:$0xf]
  %v3254 = vld [vmem:[%s3216 + $0x94] sm:$0xf]
  %v3255 = vld [vmem:[%s3216 + $0x98] sm:$0xf]
  %v3256 = vld [vmem:[%s3216 + $0x9c] sm:$0xf]
  %v3257 = vld [vmem:[%s3216 + $0xa0] sm:$0xf]
  %v3258 = vld [vmem:[%s3216 + $0xa4] sm:$0xf]
  %v3259 = vld [vmem:[%s3216 + $0xa8] sm:$0xf]
  %v3260 = vld [vmem:[%s3216 + $0xac] sm:$0xf]
  %v3261 = vld [vmem:[%s3216 + $0xb0] sm:$0xf]
  %v3262 = vld [vmem:[%s3216 + $0xb4] sm:$0xf]
  %v3263 = vld [vmem:[%s3216 + $0xb8] sm:$0xf]
  %v3264 = vld [vmem:[%s3216 + $0xbc] sm:$0xf]
  %v3265 = vld [vmem:[%s3216 + $0xc0] sm:$0xf]
  %v3266 = vld [vmem:[%s3216 + $0xc4] sm:$0xf]
  %v3267 = vld [vmem:[%s3216 + $0xc8] sm:$0xf]
  %v3268 = vld [vmem:[%s3216 + $0xcc] sm:$0xf]
  %v3269 = vld [vmem:[%s3216 + $0xd0] sm:$0xf]
  %v3270 = vld [vmem:[%s3216 + $0xd4] sm:$0xf]
  %v3271 = vld [vmem:[%s3216 + $0xd8] sm:$0xf]
  %v3272 = vld [vmem:[%s3216 + $0xdc] sm:$0xf]
  %v3273 = vld [vmem:[%s3216 + $0xe0] sm:$0xf]
  %v3274 = vld [vmem:[%s3216 + $0xe4] sm:$0xf]
  %v3275 = vld [vmem:[%s3216 + $0xe8] sm:$0xf]
  %v3276 = vld [vmem:[%s3216 + $0xec] sm:$0xf]
  %v3277 = vld [vmem:[%s3216 + $0xf0] sm:$0xf]
  %v3278 = vld [vmem:[%s3216 + $0xf4] sm:$0xf]
  %v3279 = vld [vmem:[%s3216 + $0xf8] sm:$0xf]
  %v3280 = vld [vmem:[%s3216 + $0xfc] sm:$0xf]
  %s3281 = scalar_lea.vmem %s1, 192
  %v3282 = vld [vmem:[%s3281] sm:$0xf]
  %v3283 = vld [vmem:[%s3281 + $0x4] sm:$0xf]
  %v3284 = vld [vmem:[%s3281 + $0x8] sm:$0xf]
  %v3285 = vld [vmem:[%s3281 + $0xc] sm:$0xf]
  %v3286 = vld [vmem:[%s3281 + $0x10] sm:$0xf]
  %v3287 = vld [vmem:[%s3281 + $0x14] sm:$0xf]
  %v3288 = vld [vmem:[%s3281 + $0x18] sm:$0xf]
  %v3289 = vld [vmem:[%s3281 + $0x1c] sm:$0xf]
  %v3290 = vld [vmem:[%s3281 + $0x20] sm:$0xf]
  %v3291 = vld [vmem:[%s3281 + $0x24] sm:$0xf]
  %v3292 = vld [vmem:[%s3281 + $0x28] sm:$0xf]
  %v3293 = vld [vmem:[%s3281 + $0x2c] sm:$0xf]
  %v3294 = vld [vmem:[%s3281 + $0x30] sm:$0xf]
  %v3295 = vld [vmem:[%s3281 + $0x34] sm:$0xf]
  %v3296 = vld [vmem:[%s3281 + $0x38] sm:$0xf]
  %v3297 = vld [vmem:[%s3281 + $0x3c] sm:$0xf]
  %v3298 = vld [vmem:[#allocation2] sm:$0x1]
  %v3300 = vlaneseq
  %v3301 = vshrl.u32 %v3300, 7
  %v3302 = vsub.s32 0, %v3301
  %v3303 = vrot.slane %v3298, %v3302
  %v3369 = vunpack.c.l.b16 %v3217
  %v3370 = vunpack.c.l.b16 %v3218
  %v3371 = vunpack.c.l.b16 %v3219
  %v3372 = vunpack.c.l.b16 %v3220
  %v3373 = vunpack.c.l.b16 %v3221
  %v3374 = vunpack.c.l.b16 %v3222
  %v3375 = vunpack.c.l.b16 %v3223
  %v3376 = vunpack.c.l.b16 %v3224
  %v3377 = vunpack.c.l.b16 %v3225
  %v3378 = vunpack.c.l.b16 %v3226
  %v3379 = vunpack.c.l.b16 %v3227
  %v3380 = vunpack.c.l.b16 %v3228
  %v3381 = vunpack.c.l.b16 %v3229
  %v3382 = vunpack.c.l.b16 %v3230
  %v3383 = vunpack.c.l.b16 %v3231
  %v3384 = vunpack.c.l.b16 %v3232
  %v3385 = vunpack.c.l.b16 %v3233
  %v3386 = vunpack.c.l.b16 %v3234
  %v3387 = vunpack.c.l.b16 %v3235
  %v3388 = vunpack.c.l.b16 %v3236
  %v3389 = vunpack.c.l.b16 %v3237
  %v3390 = vunpack.c.l.b16 %v3238
  %v3391 = vunpack.c.l.b16 %v3239
  %v3392 = vunpack.c.l.b16 %v3240
  %v3393 = vunpack.c.l.b16 %v3241
  %v3394 = vunpack.c.l.b16 %v3242
  %v3395 = vunpack.c.l.b16 %v3243
  %v3396 = vunpack.c.l.b16 %v3244
  %v3397 = vunpack.c.l.b16 %v3245
  %v3398 = vunpack.c.l.b16 %v3246
  %v3399 = vunpack.c.l.b16 %v3247
  %v3400 = vunpack.c.l.b16 %v3248
  %v3401 = vunpack.c.l.b16 %v3249
  %v3402 = vunpack.c.l.b16 %v3250
  %v3403 = vunpack.c.l.b16 %v3251
  %v3404 = vunpack.c.l.b16 %v3252
  %v3405 = vunpack.c.l.b16 %v3253
  %v3406 = vunpack.c.l.b16 %v3254
  %v3407 = vunpack.c.l.b16 %v3255
  %v3408 = vunpack.c.l.b16 %v3256
  %v3409 = vunpack.c.l.b16 %v3257
  %v3410 = vunpack.c.l.b16 %v3258
  %v3411 = vunpack.c.l.b16 %v3259
  %v3412 = vunpack.c.l.b16 %v3260
  %v3413 = vunpack.c.l.b16 %v3261
  %v3414 = vunpack.c.l.b16 %v3262
  %v3415 = vunpack.c.l.b16 %v3263
  %v3416 = vunpack.c.l.b16 %v3264
  %v3417 = vunpack.c.l.b16 %v3265
  %v3418 = vunpack.c.l.b16 %v3266
  %v3419 = vunpack.c.l.b16 %v3267
  %v3420 = vunpack.c.l.b16 %v3268
  %v3421 = vunpack.c.l.b16 %v3269
  %v3422 = vunpack.c.l.b16 %v3270
  %v3423 = vunpack.c.l.b16 %v3271
  %v3424 = vunpack.c.l.b16 %v3272
  %v3425 = vunpack.c.l.b16 %v3273
  %v3426 = vunpack.c.l.b16 %v3274
  %v3427 = vunpack.c.l.b16 %v3275
  %v3428 = vunpack.c.l.b16 %v3276
  %v3429 = vunpack.c.l.b16 %v3277
  %v3430 = vunpack.c.l.b16 %v3278
  %v3431 = vunpack.c.l.b16 %v3279
  %v3432 = vunpack.c.l.b16 %v3280
  %v3433 = vpack.c.b16 %v3370, %v3369
  %v3434 = vpack.c.b16 %v3372, %v3371
  %v3435 = vpack.c.b16 %v3374, %v3373
  %v3436 = vpack.c.b16 %v3376, %v3375
  %v3437 = vpack.c.b16 %v3378, %v3377
  %v3438 = vpack.c.b16 %v3380, %v3379
  %v3439 = vpack.c.b16 %v3382, %v3381
  %v3440 = vpack.c.b16 %v3384, %v3383
  %v3441 = vpack.c.b16 %v3386, %v3385
  %v3442 = vpack.c.b16 %v3388, %v3387
  %v3443 = vpack.c.b16 %v3390, %v3389
  %v3444 = vpack.c.b16 %v3392, %v3391
  %v3445 = vpack.c.b16 %v3394, %v3393
  %v3446 = vpack.c.b16 %v3396, %v3395
  %v3447 = vpack.c.b16 %v3398, %v3397
  %v3448 = vpack.c.b16 %v3400, %v3399
  %v3449 = vpack.c.b16 %v3402, %v3401
  %v3450 = vpack.c.b16 %v3404, %v3403
  %v3451 = vpack.c.b16 %v3406, %v3405
  %v3452 = vpack.c.b16 %v3408, %v3407
  %v3453 = vpack.c.b16 %v3410, %v3409
  %v3454 = vpack.c.b16 %v3412, %v3411
  %v3455 = vpack.c.b16 %v3414, %v3413
  %v3456 = vpack.c.b16 %v3416, %v3415
  %v3457 = vpack.c.b16 %v3418, %v3417
  %v3458 = vpack.c.b16 %v3420, %v3419
  %v3459 = vpack.c.b16 %v3422, %v3421
  %v3460 = vpack.c.b16 %v3424, %v3423
  %v3461 = vpack.c.b16 %v3426, %v3425
  %v3462 = vpack.c.b16 %v3428, %v3427
  %v3463 = vpack.c.b16 %v3430, %v3429
  %v3464 = vpack.c.b16 %v3432, %v3431
  %v3513 = vunpack.c.l.b16 %v3282
  %v3514 = vunpack.c.l.b16 %v3283
  %v3515 = vunpack.c.l.b16 %v3284
  %v3516 = vunpack.c.l.b16 %v3285
  %v3517 = vunpack.c.l.b16 %v3286
  %v3518 = vunpack.c.l.b16 %v3287
  %v3519 = vunpack.c.l.b16 %v3288
  %v3520 = vunpack.c.l.b16 %v3289
  %v3521 = vunpack.c.l.b16 %v3290
  %v3522 = vunpack.c.l.b16 %v3291
  %v3523 = vunpack.c.l.b16 %v3292
  %v3524 = vunpack.c.l.b16 %v3293
  %v3525 = vunpack.c.l.b16 %v3294
  %v3526 = vunpack.c.l.b16 %v3295
  %v3527 = vunpack.c.l.b16 %v3296
  %v3528 = vunpack.c.l.b16 %v3297
  %v3529 = vpack.c.b16 %v3514, %v3513
  %v3530 = vpack.c.b16 %v3516, %v3515
  %v3531 = vpack.c.b16 %v3518, %v3517
  %v3532 = vpack.c.b16 %v3520, %v3519
  %v3533 = vpack.c.b16 %v3522, %v3521
  %v3534 = vpack.c.b16 %v3524, %v3523
  %v3535 = vpack.c.b16 %v3526, %v3525
  %v3536 = vpack.c.b16 %v3528, %v3527
  %3545 = vmatprep.subr.bf16.mxu0 0
  %3546 = vmatpush1.bf16.msra.mxu0 %v3529
  %3547 = vmatprep.subr.bf16.mxu0 0
  %3548 = vmatpush1.bf16.msra.mxu0 %v3530
  %3549 = vmatprep.subr.bf16.mxu0 0
  %3550 = vmatpush1.bf16.msra.mxu0 %v3531
  %3551 = vmatprep.subr.bf16.mxu0 0
  %3552 = vmatpush1.bf16.msra.mxu0 %v3532
  %3553 = vmatprep.subr.bf16.mxu0 0
  %3554 = vmatpush1.bf16.msra.mxu0 %v3533
  %3555 = vmatprep.subr.bf16.mxu0 0
  %3556 = vmatpush1.bf16.msra.mxu0 %v3534
  %3557 = vmatprep.subr.bf16.mxu0 0
  %3558 = vmatpush1.bf16.msra.mxu0 %v3535
  %3559 = vmatprep.subr.bf16.mxu0 0
  %3560 = vmatpush1.bf16.msra.mxu0 %v3536
  %3561 = vmatprep.subr.bf16.mxu0 0
  %3562 = vmatpush1.bf16.msra.mxu0 0
  %3563 = vmatprep.subr.bf16.mxu0 0
  %3564 = vmatpush1.bf16.msra.mxu0 0
  %3565 = vmatprep.subr.bf16.mxu0 0
  %3566 = vmatpush1.bf16.msra.mxu0 0
  %3567 = vmatprep.subr.bf16.mxu0 0
  %3568 = vmatpush1.bf16.msra.mxu0 0
  %3569 = vmatprep.subr.bf16.mxu0 0
  %3570 = vmatpush1.bf16.msra.mxu0 0
  %3571 = vmatprep.subr.bf16.mxu0 0
  %3572 = vmatpush1.bf16.msra.mxu0 0
  %3573 = vmatprep.subr.bf16.mxu0 0
  %3574 = vmatpush1.bf16.msra.mxu0 0
  %3575 = vmatprep.subr.bf16.mxu0 0
  %3576 = vmatpush1.bf16.msra.mxu0 0
  %3577 = vmatprep.mubr.bf16.mxu0 0
  %3578 = vmatmul.mubr.bf16.gmra.mrb[0].mxu0 %v3433
  %v3579 = vpop.f32.mrb[0].mxu0
  %v3580 = vadd.f32 %v3303, %v3579
  %v3581 = vpop.f32.mrb[0].mxu0
  %v3582 = vpop.f32.mrb[0].mxu0
  %v3583 = vadd.f32 %v3303, %v3582
  %v3584 = vpop.f32.mrb[0].mxu0
  %3585 = vmatprep.mubr.bf16.mxu0 0
  %3586 = vmatmul.mubr.bf16.gmra.mrb[0].mxu0 %v3434
  %v3587 = vpop.f32.mrb[0].mxu0
  %v3588 = vadd.f32 %v3303, %v3587
  %v3589 = vpop.f32.mrb[0].mxu0
  %v3590 = vpop.f32.mrb[0].mxu0
  %v3591 = vadd.f32 %v3303, %v3590
  %v3592 = vpop.f32.mrb[0].mxu0
  %3593 = vmatprep.mubr.bf16.mxu0 0
  %3594 = vmatmul.mubr.bf16.gmra.mrb[0].mxu0 %v3435
  %v3595 = vpop.f32.mrb[0].mxu0
  %v3596 = vadd.f32 %v3303, %v3595
  %v3597 = vpop.f32.mrb[0].mxu0
  %v3598 = vpop.f32.mrb[0].mxu0
  %v3599 = vadd.f32 %v3303, %v3598
  %v3600 = vpop.f32.mrb[0].mxu0
  %3601 = vmatprep.mubr.bf16.mxu0 0
  %3602 = vmatmul.mubr.bf16.gmra.mrb[0].mxu0 %v3436
  %v3603 = vpop.f32.mrb[0].mxu0
  %v3604 = vadd.f32 %v3303, %v3603
  %v3605 = vpop.f32.mrb[0].mxu0
  %v3606 = vpop.f32.mrb[0].mxu0
  %v3607 = vadd.f32 %v3303, %v3606
  %v3608 = vpop.f32.mrb[0].mxu0
  %3609 = vmatprep.mubr.bf16.mxu0 0
  %3610 = vmatmul.mubr.bf16.gmra.mrb[0].mxu0 %v3437
  %v3611 = vpop.f32.mrb[0].mxu0
  %v3612 = vadd.f32 %v3303, %v3611
  %v3613 = vpop.f32.mrb[0].mxu0
  %v3614 = vpop.f32.mrb[0].mxu0
  %v3615 = vadd.f32 %v3303, %v3614
  %v3616 = vpop.f32.mrb[0].mxu0
  %3617 = vmatprep.mubr.bf16.mxu0 0
  %3618 = vmatmul.mubr.bf16.gmra.mrb[0].mxu0 %v3438
  %v3619 = vpop.f32.mrb[0].mxu0
  %v3620 = vadd.f32 %v3303, %v3619
  %v3621 = vpop.f32.mrb[0].mxu0
  %v3622 = vpop.f32.mrb[0].mxu0
  %v3623 = vadd.f32 %v3303, %v3622
  %v3624 = vpop.f32.mrb[0].mxu0
  %3625 = vmatprep.mubr.bf16.mxu0 0
  %3626 = vmatmul.mubr.bf16.gmra.mrb[0].mxu0 %v3439
  %v3627 = vpop.f32.mrb[0].mxu0
  %v3628 = vadd.f32 %v3303, %v3627
  %v3629 = vpop.f32.mrb[0].mxu0
  %v3630 = vpop.f32.mrb[0].mxu0
  %v3631 = vadd.f32 %v3303, %v3630
  %v3632 = vpop.f32.mrb[0].mxu0
  %3633 = vmatprep.mubr.bf16.mxu0 0
  %3634 = vmatmul.mubr.bf16.gmra.mrb[0].mxu0 %v3440
  %v3635 = vpop.f32.mrb[0].mxu0
  %v3636 = vadd.f32 %v3303, %v3635
  %v3637 = vpop.f32.mrb[0].mxu0
  %v3638 = vpop.f32.mrb[0].mxu0
  %v3639 = vadd.f32 %v3303, %v3638
  %v3640 = vpop.f32.mrb[0].mxu0
  %3641 = vmatprep.mubr.bf16.mxu0 0
  %3642 = vmatmul.mubr.bf16.gmra.mrb[0].mxu0 %v3441
  %v3643 = vpop.f32.mrb[0].mxu0
  %v3644 = vadd.f32 %v3303, %v3643
  %v3645 = vpop.f32.mrb[0].mxu0
  %v3646 = vpop.f32.mrb[0].mxu0
  %v3647 = vadd.f32 %v3303, %v3646
  %v3648 = vpop.f32.mrb[0].mxu0
  %3649 = vmatprep.mubr.bf16.mxu0 0
  %3650 = vmatmul.mubr.bf16.gmra.mrb[0].mxu0 %v3442
  %v3651 = vpop.f32.mrb[0].mxu0
  %v3652 = vadd.f32 %v3303, %v3651
  %v3653 = vpop.f32.mrb[0].mxu0
  %v3654 = vpop.f32.mrb[0].mxu0
  %v3655 = vadd.f32 %v3303, %v3654
  %v3656 = vpop.f32.mrb[0].mxu0
  %3657 = vmatprep.mubr.bf16.mxu0 0
  %3658 = vmatmul.mubr.bf16.gmra.mrb[0].mxu0 %v3443
  %v3659 = vpop.f32.mrb[0].mxu0
  %v3660 = vadd.f32 %v3303, %v3659
  %v3661 = vpop.f32.mrb[0].mxu0
  %v3662 = vpop.f32.mrb[0].mxu0
  %v3663 = vadd.f32 %v3303, %v3662
  %v3664 = vpop.f32.mrb[0].mxu0
  %3665 = vmatprep.mubr.bf16.mxu0 0
  %3666 = vmatmul.mubr.bf16.gmra.mrb[0].mxu0 %v3444
  %v3667 = vpop.f32.mrb[0].mxu0
  %v3668 = vadd.f32 %v3303, %v3667
  %v3669 = vpop.f32.mrb[0].mxu0
  %v3670 = vpop.f32.mrb[0].mxu0
  %v3671 = vadd.f32 %v3303, %v3670
  %v3672 = vpop.f32.mrb[0].mxu0
  %3673 = vmatprep.mubr.bf16.mxu0 0
  %3674 = vmatmul.mubr.bf16.gmra.mrb[0].mxu0 %v3445
  %v3675 = vpop.f32.mrb[0].mxu0
  %v3676 = vadd.f32 %v3303, %v3675
  %v3677 = vpop.f32.mrb[0].mxu0
  %v3678 = vpop.f32.mrb[0].mxu0
  %v3679 = vadd.f32 %v3303, %v3678
  %v3680 = vpop.f32.mrb[0].mxu0
  %3681 = vmatprep.mubr.bf16.mxu0 0
  %3682 = vmatmul.mubr.bf16.gmra.mrb[0].mxu0 %v3446
  %v3683 = vpop.f32.mrb[0].mxu0
  %v3684 = vadd.f32 %v3303, %v3683
  %v3685 = vpop.f32.mrb[0].mxu0
  %v3686 = vpop.f32.mrb[0].mxu0
  %v3687 = vadd.f32 %v3303, %v3686
  %v3688 = vpop.f32.mrb[0].mxu0
  %3689 = vmatprep.mubr.bf16.mxu0 0
  %3690 = vmatmul.mubr.bf16.gmra.mrb[0].mxu0 %v3447
  %v3691 = vpop.f32.mrb[0].mxu0
  %v3692 = vadd.f32 %v3303, %v3691
  %v3693 = vpop.f32.mrb[0].mxu0
  %v3694 = vpop.f32.mrb[0].mxu0
  %v3695 = vadd.f32 %v3303, %v3694
  %v3696 = vpop.f32.mrb[0].mxu0
  %3697 = vmatprep.mubr.bf16.mxu0 0
  %3698 = vmatmul.mubr.bf16.gmra.mrb[0].mxu0 %v3448
  %v3699 = vpop.f32.mrb[0].mxu0
  %v3700 = vadd.f32 %v3303, %v3699
  %v3701 = vpop.f32.mrb[0].mxu0
  %v3702 = vpop.f32.mrb[0].mxu0
  %v3703 = vadd.f32 %v3303, %v3702
  %v3704 = vpop.f32.mrb[0].mxu0
  %3705 = vmatprep.mubr.bf16.mxu0 0
  %3706 = vmatmul.mubr.bf16.gmra.mrb[0].mxu0 %v3449
  %v3707 = vpop.f32.mrb[0].mxu0
  %v3708 = vadd.f32 %v3303, %v3707
  %v3709 = vpop.f32.mrb[0].mxu0
  %v3710 = vpop.f32.mrb[0].mxu0
  %v3711 = vadd.f32 %v3303, %v3710
  %v3712 = vpop.f32.mrb[0].mxu0
  %3713 = vmatprep.mubr.bf16.mxu0 0
  %3714 = vmatmul.mubr.bf16.gmra.mrb[0].mxu0 %v3450
  %v3715 = vpop.f32.mrb[0].mxu0
  %v3716 = vadd.f32 %v3303, %v3715
  %v3717 = vpop.f32.mrb[0].mxu0
  %v3718 = vpop.f32.mrb[0].mxu0
  %v3719 = vadd.f32 %v3303, %v3718
  %v3720 = vpop.f32.mrb[0].mxu0
  %3721 = vmatprep.mubr.bf16.mxu0 0
  %3722 = vmatmul.mubr.bf16.gmra.mrb[0].mxu0 %v3451
  %v3723 = vpop.f32.mrb[0].mxu0
  %v3724 = vadd.f32 %v3303, %v3723
  %v3725 = vpop.f32.mrb[0].mxu0
  %v3726 = vpop.f32.mrb[0].mxu0
  %v3727 = vadd.f32 %v3303, %v3726
  %v3728 = vpop.f32.mrb[0].mxu0
  %3729 = vmatprep.mubr.bf16.mxu0 0
  %3730 = vmatmul.mubr.bf16.gmra.mrb[0].mxu0 %v3452
  %v3731 = vpop.f32.mrb[0].mxu0
  %v3732 = vadd.f32 %v3303, %v3731
  %v3733 = vpop.f32.mrb[0].mxu0
  %v3734 = vpop.f32.mrb[0].mxu0
  %v3735 = vadd.f32 %v3303, %v3734
  %v3736 = vpop.f32.mrb[0].mxu0
  %3737 = vmatprep.mubr.bf16.mxu0 0
  %3738 = vmatmul.mubr.bf16.gmra.mrb[0].mxu0 %v3453
  %v3739 = vpop.f32.mrb[0].mxu0
  %v3740 = vadd.f32 %v3303, %v3739
  %v3741 = vpop.f32.mrb[0].mxu0
  %v3742 = vpop.f32.mrb[0].mxu0
  %v3743 = vadd.f32 %v3303, %v3742
  %v3744 = vpop.f32.mrb[0].mxu0
  %3745 = vmatprep.mubr.bf16.mxu0 0
  %3746 = vmatmul.mubr.bf16.gmra.mrb[0].mxu0 %v3454
  %v3747 = vpop.f32.mrb[0].mxu0
  %v3748 = vadd.f32 %v3303, %v3747
  %v3749 = vpop.f32.mrb[0].mxu0
  %v3750 = vpop.f32.mrb[0].mxu0
  %v3751 = vadd.f32 %v3303, %v3750
  %v3752 = vpop.f32.mrb[0].mxu0
  %3753 = vmatprep.mubr.bf16.mxu0 0
  %3754 = vmatmul.mubr.bf16.gmra.mrb[0].mxu0 %v3455
  %v3755 = vpop.f32.mrb[0].mxu0
  %v3756 = vadd.f32 %v3303, %v3755
  %v3757 = vpop.f32.mrb[0].mxu0
  %v3758 = vpop.f32.mrb[0].mxu0
  %v3759 = vadd.f32 %v3303, %v3758
  %v3760 = vpop.f32.mrb[0].mxu0
  %3761 = vmatprep.mubr.bf16.mxu0 0
  %3762 = vmatmul.mubr.bf16.gmra.mrb[0].mxu0 %v3456
  %v3763 = vpop.f32.mrb[0].mxu0
  %v3764 = vadd.f32 %v3303, %v3763
  %v3765 = vpop.f32.mrb[0].mxu0
  %v3766 = vpop.f32.mrb[0].mxu0
  %v3767 = vadd.f32 %v3303, %v3766
  %v3768 = vpop.f32.mrb[0].mxu0
  %3769 = vmatprep.mubr.bf16.mxu0 0
  %3770 = vmatmul.mubr.bf16.gmra.mrb[0].mxu0 %v3457
  %v3771 = vpop.f32.mrb[0].mxu0
  %v3772 = vadd.f32 %v3303, %v3771
  %v3773 = vpop.f32.mrb[0].mxu0
  %v3774 = vpop.f32.mrb[0].mxu0
  %v3775 = vadd.f32 %v3303, %v3774
  %v3776 = vpop.f32.mrb[0].mxu0
  %3777 = vmatprep.mubr.bf16.mxu0 0
  %3778 = vmatmul.mubr.bf16.gmra.mrb[0].mxu0 %v3458
  %v3779 = vpop.f32.mrb[0].mxu0
  %v3780 = vadd.f32 %v3303, %v3779
  %v3781 = vpop.f32.mrb[0].mxu0
  %v3782 = vpop.f32.mrb[0].mxu0
  %v3783 = vadd.f32 %v3303, %v3782
  %v3784 = vpop.f32.mrb[0].mxu0
  %3785 = vmatprep.mubr.bf16.mxu0 0
  %3786 = vmatmul.mubr.bf16.gmra.mrb[0].mxu0 %v3459
  %v3787 = vpop.f32.mrb[0].mxu0
  %v3788 = vadd.f32 %v3303, %v3787
  %v3789 = vpop.f32.mrb[0].mxu0
  %v3790 = vpop.f32.mrb[0].mxu0
  %v3791 = vadd.f32 %v3303, %v3790
  %v3792 = vpop.f32.mrb[0].mxu0
  %3793 = vmatprep.mubr.bf16.mxu0 0
  %3794 = vmatmul.mubr.bf16.gmra.mrb[0].mxu0 %v3460
  %v3795 = vpop.f32.mrb[0].mxu0
  %v3796 = vadd.f32 %v3303, %v3795
  %v3797 = vpop.f32.mrb[0].mxu0
  %v3798 = vpop.f32.mrb[0].mxu0
  %v3799 = vadd.f32 %v3303, %v3798
  %v3800 = vpop.f32.mrb[0].mxu0
  %3801 = vmatprep.mubr.bf16.mxu0 0
  %3802 = vmatmul.mubr.bf16.gmra.mrb[0].mxu0 %v3461
  %v3803 = vpop.f32.mrb[0].mxu0
  %v3804 = vadd.f32 %v3303, %v3803
  %v3805 = vpop.f32.mrb[0].mxu0
  %v3806 = vpop.f32.mrb[0].mxu0
  %v3807 = vadd.f32 %v3303, %v3806
  %v3808 = vpop.f32.mrb[0].mxu0
  %3809 = vmatprep.mubr.bf16.mxu0 0
  %3810 = vmatmul.mubr.bf16.gmra.mrb[0].mxu0 %v3462
  %v3811 = vpop.f32.mrb[0].mxu0
  %v3812 = vadd.f32 %v3303, %v3811
  %v3813 = vpop.f32.mrb[0].mxu0
  %v3814 = vpop.f32.mrb[0].mxu0
  %v3815 = vadd.f32 %v3303, %v3814
  %v3816 = vpop.f32.mrb[0].mxu0
  %3817 = vmatprep.mubr.bf16.mxu0 0
  %3818 = vmatmul.mubr.bf16.gmra.mrb[0].mxu0 %v3463
  %v3819 = vpop.f32.mrb[0].mxu0
  %v3820 = vadd.f32 %v3303, %v3819
  %v3821 = vpop.f32.mrb[0].mxu0
  %v3822 = vpop.f32.mrb[0].mxu0
  %v3823 = vadd.f32 %v3303, %v3822
  %v3824 = vpop.f32.mrb[0].mxu0
  %3825 = vmatprep.mubr.bf16.mxu0 0
  %3826 = vmatmul.mubr.bf16.gmra.mrb[0].mxu0 %v3464
  %v3827 = vpop.f32.mrb[0].mxu0
  %v3828 = vadd.f32 %v3303, %v3827
  %v3829 = vpop.f32.mrb[0].mxu0
  %v3830 = vpop.f32.mrb[0].mxu0
  %v3831 = vadd.f32 %v3303, %v3830
  %v3832 = vpop.f32.mrb[0].mxu0
  %3833 = vdwg.mxu0
  %v3834 = vxor.u32 %v3580, 2147483648
  %v3835 = vxor.u32 %v3583, 2147483648
  %v3836 = vxor.u32 %v3588, 2147483648
  %v3837 = vxor.u32 %v3591, 2147483648
  %v3838 = vxor.u32 %v3596, 2147483648
  %v3839 = vxor.u32 %v3599, 2147483648
  %v3840 = vxor.u32 %v3604, 2147483648
  %v3841 = vxor.u32 %v3607, 2147483648
  %v3842 = vxor.u32 %v3612, 2147483648
  %v3843 = vxor.u32 %v3615, 2147483648
  %v3844 = vxor.u32 %v3620, 2147483648
  %v3845 = vxor.u32 %v3623, 2147483648
  %v3846 = vxor.u32 %v3628, 2147483648
  %v3847 = vxor.u32 %v3631, 2147483648
  %v3848 = vxor.u32 %v3636, 2147483648
  %v3849 = vxor.u32 %v3639, 2147483648
  %v3850 = vxor.u32 %v3644, 2147483648
  %v3851 = vxor.u32 %v3647, 2147483648
  %v3852 = vxor.u32 %v3652, 2147483648
  %v3853 = vxor.u32 %v3655, 2147483648
  %v3854 = vxor.u32 %v3660, 2147483648
  %v3855 = vxor.u32 %v3663, 2147483648
  %v3856 = vxor.u32 %v3668, 2147483648
  %v3857 = vxor.u32 %v3671, 2147483648
  %v3858 = vxor.u32 %v3676, 2147483648
  %v3859 = vxor.u32 %v3679, 2147483648
  %v3860 = vxor.u32 %v3684, 2147483648
  %v3861 = vxor.u32 %v3687, 2147483648
  %v3862 = vxor.u32 %v3692, 2147483648
  %v3863 = vxor.u32 %v3695, 2147483648
  %v3864 = vxor.u32 %v3700, 2147483648
  %v3865 = vxor.u32 %v3703, 2147483648
  %v3866 = vxor.u32 %v3708, 2147483648
  %v3867 = vxor.u32 %v3711, 2147483648
  %v3868 = vxor.u32 %v3716, 2147483648
  %v3869 = vxor.u32 %v3719, 2147483648
  %v3870 = vxor.u32 %v3724, 2147483648
  %v3871 = vxor.u32 %v3727, 2147483648
  %v3872 = vxor.u32 %v3732, 2147483648
  %v3873 = vxor.u32 %v3735, 2147483648
  %v3874 = vxor.u32 %v3740, 2147483648
  %v3875 = vxor.u32 %v3743, 2147483648
  %v3876 = vxor.u32 %v3748, 2147483648
  %v3877 = vxor.u32 %v3751, 2147483648
  %v3878 = vxor.u32 %v3756, 2147483648
  %v3879 = vxor.u32 %v3759, 2147483648
  %v3880 = vxor.u32 %v3764, 2147483648
  %v3881 = vxor.u32 %v3767, 2147483648
  %v3882 = vxor.u32 %v3772, 2147483648
  %v3883 = vxor.u32 %v3775, 2147483648
  %v3884 = vxor.u32 %v3780, 2147483648
  %v3885 = vxor.u32 %v3783, 2147483648
  %v3886 = vxor.u32 %v3788, 2147483648
  %v3887 = vxor.u32 %v3791, 2147483648
  %v3888 = vxor.u32 %v3796, 2147483648
  %v3889 = vxor.u32 %v3799, 2147483648
  %v3890 = vxor.u32 %v3804, 2147483648
  %v3891 = vxor.u32 %v3807, 2147483648
  %v3892 = vxor.u32 %v3812, 2147483648
  %v3893 = vxor.u32 %v3815, 2147483648
  %v3894 = vxor.u32 %v3820, 2147483648
  %v3895 = vxor.u32 %v3823, 2147483648
  %v3896 = vxor.u32 %v3828, 2147483648
  %v3897 = vxor.u32 %v3831, 2147483648
  %v3898 = vmul.f32 %v3834, 1.442695
  %v3899 = vpow.pop %v3898
  %v3900 = vmul.f32 %v3835, 1.442695
  %v3901 = vpow.pop %v3900
  %v3902 = vmul.f32 %v3836, 1.442695
  %v3903 = vpow.pop %v3902
  %v3904 = vmul.f32 %v3837, 1.442695
  %v3905 = vpow.pop %v3904
  %v3906 = vmul.f32 %v3838, 1.442695
  %v3907 = vpow.pop %v3906
  %v3908 = vmul.f32 %v3839, 1.442695
  %v3909 = vpow.pop %v3908
  %v3910 = vmul.f32 %v3840, 1.442695
  %v3911 = vpow.pop %v3910
  %v3912 = vmul.f32 %v3841, 1.442695
  %v3913 = vpow.pop %v3912
  %v3914 = vmul.f32 %v3842, 1.442695
  %v3915 = vpow.pop %v3914
  %v3916 = vmul.f32 %v3843, 1.442695
  %v3917 = vpow.pop %v3916
  %v3918 = vmul.f32 %v3844, 1.442695
  %v3919 = vpow.pop %v3918
  %v3920 = vmul.f32 %v3845, 1.442695
  %v3921 = vpow.pop %v3920
  %v3922 = vmul.f32 %v3846, 1.442695
  %v3923 = vpow.pop %v3922
  %v3924 = vmul.f32 %v3847, 1.442695
  %v3925 = vpow.pop %v3924
  %v3926 = vmul.f32 %v3848, 1.442695
  %v3927 = vpow.pop %v3926
  %v3928 = vmul.f32 %v3849, 1.442695
  %v3929 = vpow.pop %v3928
  %v3930 = vmul.f32 %v3850, 1.442695
  %v3931 = vpow.pop %v3930
  %v3932 = vmul.f32 %v3851, 1.442695
  %v3933 = vpow.pop %v3932
  %v3934 = vmul.f32 %v3852, 1.442695
  %v3935 = vpow.pop %v3934
  %v3936 = vmul.f32 %v3853, 1.442695
  %v3937 = vpow.pop %v3936
  %v3938 = vmul.f32 %v3854, 1.442695
  %v3939 = vpow.pop %v3938
  %v3940 = vmul.f32 %v3855, 1.442695
  %v3941 = vpow.pop %v3940
  %v3942 = vmul.f32 %v3856, 1.442695
  %v3943 = vpow.pop %v3942
  %v3944 = vmul.f32 %v3857, 1.442695
  %v3945 = vpow.pop %v3944
  %v3946 = vmul.f32 %v3858, 1.442695
  %v3947 = vpow.pop %v3946
  %v3948 = vmul.f32 %v3859, 1.442695
  %v3949 = vpow.pop %v3948
  %v3950 = vmul.f32 %v3860, 1.442695
  %v3951 = vpow.pop %v3950
  %v3952 = vmul.f32 %v3861, 1.442695
  %v3953 = vpow.pop %v3952
  %v3954 = vmul.f32 %v3862, 1.442695
  %v3955 = vpow.pop %v3954
  %v3956 = vmul.f32 %v3863, 1.442695
  %v3957 = vpow.pop %v3956
  %v3958 = vmul.f32 %v3864, 1.442695
  %v3959 = vpow.pop %v3958
  %v3960 = vmul.f32 %v3865, 1.442695
  %v3961 = vpow.pop %v3960
  %v3962 = vmul.f32 %v3866, 1.442695
  %v3963 = vpow.pop %v3962
  %v3964 = vmul.f32 %v3867, 1.442695
  %v3965 = vpow.pop %v3964
  %v3966 = vmul.f32 %v3868, 1.442695
  %v3967 = vpow.pop %v3966
  %v3968 = vmul.f32 %v3869, 1.442695
  %v3969 = vpow.pop %v3968
  %v3970 = vmul.f32 %v3870, 1.442695
  %v3971 = vpow.pop %v3970
  %v3972 = vmul.f32 %v3871, 1.442695
  %v3973 = vpow.pop %v3972
  %v3974 = vmul.f32 %v3872, 1.442695
  %v3975 = vpow.pop %v3974
  %v3976 = vmul.f32 %v3873, 1.442695
  %v3977 = vpow.pop %v3976
  %v3978 = vmul.f32 %v3874, 1.442695
  %v3979 = vpow.pop %v3978
  %v3980 = vmul.f32 %v3875, 1.442695
  %v3981 = vpow.pop %v3980
  %v3982 = vmul.f32 %v3876, 1.442695
  %v3983 = vpow.pop %v3982
  %v3984 = vmul.f32 %v3877, 1.442695
  %v3985 = vpow.pop %v3984
  %v3986 = vmul.f32 %v3878, 1.442695
  %v3987 = vpow.pop %v3986
  %v3988 = vmul.f32 %v3879, 1.442695
  %v3989 = vpow.pop %v3988
  %v3990 = vmul.f32 %v3880, 1.442695
  %v3991 = vpow.pop %v3990
  %v3992 = vmul.f32 %v3881, 1.442695
  %v3993 = vpow.pop %v3992
  %v3994 = vmul.f32 %v3882, 1.442695
  %v3995 = vpow.pop %v3994
  %v3996 = vmul.f32 %v3883, 1.442695
  %v3997 = vpow.pop %v3996
  %v3998 = vmul.f32 %v3884, 1.442695
  %v3999 = vpow.pop %v3998
  %v4000 = vmul.f32 %v3885, 1.442695
  %v4001 = vpow.pop %v4000
  %v4002 = vmul.f32 %v3886, 1.442695
  %v4003 = vpow.pop %v4002
  %v4004 = vmul.f32 %v3887, 1.442695
  %v4005 = vpow.pop %v4004
  %v4006 = vmul.f32 %v3888, 1.442695
  %v4007 = vpow.pop %v4006
  %v4008 = vmul.f32 %v3889, 1.442695
  %v4009 = vpow.pop %v4008
  %v4010 = vmul.f32 %v3890, 1.442695
  %v4011 = vpow.pop %v4010
  %v4012 = vmul.f32 %v3891, 1.442695
  %v4013 = vpow.pop %v4012
  %v4014 = vmul.f32 %v3892, 1.442695
  %v4015 = vpow.pop %v4014
  %v4016 = vmul.f32 %v3893, 1.442695
  %v4017 = vpow.pop %v4016
  %v4018 = vmul.f32 %v3894, 1.442695
  %v4019 = vpow.pop %v4018
  %v4020 = vmul.f32 %v3895, 1.442695
  %v4021 = vpow.pop %v4020
  %v4022 = vmul.f32 %v3896, 1.442695
  %v4023 = vpow.pop %v4022
  %v4024 = vmul.f32 %v3897, 1.442695
  %v4025 = vpow.pop %v4024
  %v4026 = vadd.f32 %v3899, 1.0
  %v4027 = vadd.f32 %v3901, 1.0
  %v4028 = vadd.f32 %v3903, 1.0
  %v4029 = vadd.f32 %v3905, 1.0
  %v4030 = vadd.f32 %v3907, 1.0
  %v4031 = vadd.f32 %v3909, 1.0
  %v4032 = vadd.f32 %v3911, 1.0
  %v4033 = vadd.f32 %v3913, 1.0
  %v4034 = vadd.f32 %v3915, 1.0
  %v4035 = vadd.f32 %v3917, 1.0
  %v4036 = vadd.f32 %v3919, 1.0
  %v4037 = vadd.f32 %v3921, 1.0
  %v4038 = vadd.f32 %v3923, 1.0
  %v4039 = vadd.f32 %v3925, 1.0
  %v4040 = vadd.f32 %v3927, 1.0
  %v4041 = vadd.f32 %v3929, 1.0
  %v4042 = vadd.f32 %v3931, 1.0
  %v4043 = vadd.f32 %v3933, 1.0
  %v4044 = vadd.f32 %v3935, 1.0
  %v4045 = vadd.f32 %v3937, 1.0
  %v4046 = vadd.f32 %v3939, 1.0
  %v4047 = vadd.f32 %v3941, 1.0
  %v4048 = vadd.f32 %v3943, 1.0
  %v4049 = vadd.f32 %v3945, 1.0
  %v4050 = vadd.f32 %v3947, 1.0
  %v4051 = vadd.f32 %v3949, 1.0
  %v4052 = vadd.f32 %v3951, 1.0
  %v4053 = vadd.f32 %v3953, 1.0
  %v4054 = vadd.f32 %v3955, 1.0
  %v4055 = vadd.f32 %v3957, 1.0
  %v4056 = vadd.f32 %v3959, 1.0
  %v4057 = vadd.f32 %v3961, 1.0
  %v4058 = vadd.f32 %v3963, 1.0
  %v4059 = vadd.f32 %v3965, 1.0
  %v4060 = vadd.f32 %v3967, 1.0
  %v4061 = vadd.f32 %v3969, 1.0
  %v4062 = vadd.f32 %v3971, 1.0
  %v4063 = vadd.f32 %v3973, 1.0
  %v4064 = vadd.f32 %v3975, 1.0
  %v4065 = vadd.f32 %v3977, 1.0
  %v4066 = vadd.f32 %v3979, 1.0
  %v4067 = vadd.f32 %v3981, 1.0
  %v4068 = vadd.f32 %v3983, 1.0
  %v4069 = vadd.f32 %v3985, 1.0
  %v4070 = vadd.f32 %v3987, 1.0
  %v4071 = vadd.f32 %v3989, 1.0
  %v4072 = vadd.f32 %v3991, 1.0
  %v4073 = vadd.f32 %v3993, 1.0
  %v4074 = vadd.f32 %v3995, 1.0
  %v4075 = vadd.f32 %v3997, 1.0
  %v4076 = vadd.f32 %v3999, 1.0
  %v4077 = vadd.f32 %v4001, 1.0
  %v4078 = vadd.f32 %v4003, 1.0
  %v4079 = vadd.f32 %v4005, 1.0
  %v4080 = vadd.f32 %v4007, 1.0
  %v4081 = vadd.f32 %v4009, 1.0
  %v4082 = vadd.f32 %v4011, 1.0
  %v4083 = vadd.f32 %v4013, 1.0
  %v4084 = vadd.f32 %v4015, 1.0
  %v4085 = vadd.f32 %v4017, 1.0
  %v4086 = vadd.f32 %v4019, 1.0
  %v4087 = vadd.f32 %v4021, 1.0
  %v4088 = vadd.f32 %v4023, 1.0
  %v4089 = vadd.f32 %v4025, 1.0
  %v4090 = vrcp.pop %v4026
  %v4091 = vmul.f32 1.0, %v4090
  %v4092 = vrcp.pop %v4027
  %v4093 = vmul.f32 1.0, %v4092
  %v4094 = vrcp.pop %v4028
  %v4095 = vmul.f32 1.0, %v4094
  %v4096 = vrcp.pop %v4029
  %v4097 = vmul.f32 1.0, %v4096
  %v4098 = vrcp.pop %v4030
  %v4099 = vmul.f32 1.0, %v4098
  %v4100 = vrcp.pop %v4031
  %v4101 = vmul.f32 1.0, %v4100
  %v4102 = vrcp.pop %v4032
  %v4103 = vmul.f32 1.0, %v4102
  %v4104 = vrcp.pop %v4033
  %v4105 = vmul.f32 1.0, %v4104
  %v4106 = vrcp.pop %v4034
  %v4107 = vmul.f32 1.0, %v4106
  %v4108 = vrcp.pop %v4035
  %v4109 = vmul.f32 1.0, %v4108
  %v4110 = vrcp.pop %v4036
  %v4111 = vmul.f32 1.0, %v4110
  %v4112 = vrcp.pop %v4037
  %v4113 = vmul.f32 1.0, %v4112
  %v4114 = vrcp.pop %v4038
  %v4115 = vmul.f32 1.0, %v4114
  %v4116 = vrcp.pop %v4039
  %v4117 = vmul.f32 1.0, %v4116
  %v4118 = vrcp.pop %v4040
  %v4119 = vmul.f32 1.0, %v4118
  %v4120 = vrcp.pop %v4041
  %v4121 = vmul.f32 1.0, %v4120
  %v4122 = vrcp.pop %v4042
  %v4123 = vmul.f32 1.0, %v4122
  %v4124 = vrcp.pop %v4043
  %v4125 = vmul.f32 1.0, %v4124
  %v4126 = vrcp.pop %v4044
  %v4127 = vmul.f32 1.0, %v4126
  %v4128 = vrcp.pop %v4045
  %v4129 = vmul.f32 1.0, %v4128
  %v4130 = vrcp.pop %v4046
  %v4131 = vmul.f32 1.0, %v4130
  %v4132 = vrcp.pop %v4047
  %v4133 = vmul.f32 1.0, %v4132
  %v4134 = vrcp.pop %v4048
  %v4135 = vmul.f32 1.0, %v4134
  %v4136 = vrcp.pop %v4049
  %v4137 = vmul.f32 1.0, %v4136
  %v4138 = vrcp.pop %v4050
  %v4139 = vmul.f32 1.0, %v4138
  %v4140 = vrcp.pop %v4051
  %v4141 = vmul.f32 1.0, %v4140
  %v4142 = vrcp.pop %v4052
  %v4143 = vmul.f32 1.0, %v4142
  %v4144 = vrcp.pop %v4053
  %v4145 = vmul.f32 1.0, %v4144
  %v4146 = vrcp.pop %v4054
  %v4147 = vmul.f32 1.0, %v4146
  %v4148 = vrcp.pop %v4055
  %v4149 = vmul.f32 1.0, %v4148
  %v4150 = vrcp.pop %v4056
  %v4151 = vmul.f32 1.0, %v4150
  %v4152 = vrcp.pop %v4057
  %v4153 = vmul.f32 1.0, %v4152
  %v4154 = vrcp.pop %v4058
  %v4155 = vmul.f32 1.0, %v4154
  %v4156 = vrcp.pop %v4059
  %v4157 = vmul.f32 1.0, %v4156
  %v4158 = vrcp.pop %v4060
  %v4159 = vmul.f32 1.0, %v4158
  %v4160 = vrcp.pop %v4061
  %v4161 = vmul.f32 1.0, %v4160
  %v4162 = vrcp.pop %v4062
  %v4163 = vmul.f32 1.0, %v4162
  %v4164 = vrcp.pop %v4063
  %v4165 = vmul.f32 1.0, %v4164
  %v4166 = vrcp.pop %v4064
  %v4167 = vmul.f32 1.0, %v4166
  %v4168 = vrcp.pop %v4065
  %v4169 = vmul.f32 1.0, %v4168
  %v4170 = vrcp.pop %v4066
  %v4171 = vmul.f32 1.0, %v4170
  %v4172 = vrcp.pop %v4067
  %v4173 = vmul.f32 1.0, %v4172
  %v4174 = vrcp.pop %v4068
  %v4175 = vmul.f32 1.0, %v4174
  %v4176 = vrcp.pop %v4069
  %v4177 = vmul.f32 1.0, %v4176
  %v4178 = vrcp.pop %v4070
  %v4179 = vmul.f32 1.0, %v4178
  %v4180 = vrcp.pop %v4071
  %v4181 = vmul.f32 1.0, %v4180
  %v4182 = vrcp.pop %v4072
  %v4183 = vmul.f32 1.0, %v4182
  %v4184 = vrcp.pop %v4073
  %v4185 = vmul.f32 1.0, %v4184
  %v4186 = vrcp.pop %v4074
  %v4187 = vmul.f32 1.0, %v4186
  %v4188 = vrcp.pop %v4075
  %v4189 = vmul.f32 1.0, %v4188
  %v4190 = vrcp.pop %v4076
  %v4191 = vmul.f32 1.0, %v4190
  %v4192 = vrcp.pop %v4077
  %v4193 = vmul.f32 1.0, %v4192
  %v4194 = vrcp.pop %v4078
  %v4195 = vmul.f32 1.0, %v4194
  %v4196 = vrcp.pop %v4079
  %v4197 = vmul.f32 1.0, %v4196
  %v4198 = vrcp.pop %v4080
  %v4199 = vmul.f32 1.0, %v4198
  %v4200 = vrcp.pop %v4081
  %v4201 = vmul.f32 1.0, %v4200
  %v4202 = vrcp.pop %v4082
  %v4203 = vmul.f32 1.0, %v4202
  %v4204 = vrcp.pop %v4083
  %v4205 = vmul.f32 1.0, %v4204
  %v4206 = vrcp.pop %v4084
  %v4207 = vmul.f32 1.0, %v4206
  %v4208 = vrcp.pop %v4085
  %v4209 = vmul.f32 1.0, %v4208
  %v4210 = vrcp.pop %v4086
  %v4211 = vmul.f32 1.0, %v4210
  %v4212 = vrcp.pop %v4087
  %v4213 = vmul.f32 1.0, %v4212
  %v4214 = vrcp.pop %v4088
  %v4215 = vmul.f32 1.0, %v4214
  %v4216 = vrcp.pop %v4089
  %v4217 = vmul.f32 1.0, %v4216
  %s4218 = scalar_lea.vmem %s3, 1536
  %4219 = vst.msk [vmem:[%s4218] sm:$0xff] %vm1017, %v4091
  %4220 = vst.msk [vmem:[%s4218 + $0x8] sm:$0xff] %vm1017, %v4093
  %4221 = vst.msk [vmem:[%s4218 + $0x10] sm:$0xff] %vm1017, %v4095
  %4222 = vst.msk [vmem:[%s4218 + $0x18] sm:$0xff] %vm1017, %v4097
  %4223 = vst.msk [vmem:[%s4218 + $0x20] sm:$0xff] %vm1017, %v4099
  %4224 = vst.msk [vmem:[%s4218 + $0x28] sm:$0xff] %vm1017, %v4101
  %4225 = vst.msk [vmem:[%s4218 + $0x30] sm:$0xff] %vm1017, %v4103
  %4226 = vst.msk [vmem:[%s4218 + $0x38] sm:$0xff] %vm1017, %v4105
  %4227 = vst.msk [vmem:[%s4218 + $0x40] sm:$0xff] %vm1017, %v4107
  %4228 = vst.msk [vmem:[%s4218 + $0x48] sm:$0xff] %vm1017, %v4109
  %4229 = vst.msk [vmem:[%s4218 + $0x50] sm:$0xff] %vm1017, %v4111
  %4230 = vst.msk [vmem:[%s4218 + $0x58] sm:$0xff] %vm1017, %v4113
  %4231 = vst.msk [vmem:[%s4218 + $0x60] sm:$0xff] %vm1017, %v4115
  %4232 = vst.msk [vmem:[%s4218 + $0x68] sm:$0xff] %vm1017, %v4117
  %4233 = vst.msk [vmem:[%s4218 + $0x70] sm:$0xff] %vm1017, %v4119
  %4234 = vst.msk [vmem:[%s4218 + $0x78] sm:$0xff] %vm1017, %v4121
  %4235 = vst.msk [vmem:[%s4218 + $0x80] sm:$0xff] %vm1017, %v4123
  %4236 = vst.msk [vmem:[%s4218 + $0x88] sm:$0xff] %vm1017, %v4125
  %4237 = vst.msk [vmem:[%s4218 + $0x90] sm:$0xff] %vm1017, %v4127
  %4238 = vst.msk [vmem:[%s4218 + $0x98] sm:$0xff] %vm1017, %v4129
  %4239 = vst.msk [vmem:[%s4218 + $0xa0] sm:$0xff] %vm1017, %v4131
  %4240 = vst.msk [vmem:[%s4218 + $0xa8] sm:$0xff] %vm1017, %v4133
  %4241 = vst.msk [vmem:[%s4218 + $0xb0] sm:$0xff] %vm1017, %v4135
  %4242 = vst.msk [vmem:[%s4218 + $0xb8] sm:$0xff] %vm1017, %v4137
  %4243 = vst.msk [vmem:[%s4218 + $0xc0] sm:$0xff] %vm1017, %v4139
  %4244 = vst.msk [vmem:[%s4218 + $0xc8] sm:$0xff] %vm1017, %v4141
  %4245 = vst.msk [vmem:[%s4218 + $0xd0] sm:$0xff] %vm1017, %v4143
  %4246 = vst.msk [vmem:[%s4218 + $0xd8] sm:$0xff] %vm1017, %v4145
  %4247 = vst.msk [vmem:[%s4218 + $0xe0] sm:$0xff] %vm1017, %v4147
  %4248 = vst.msk [vmem:[%s4218 + $0xe8] sm:$0xff] %vm1017, %v4149
  %4249 = vst.msk [vmem:[%s4218 + $0xf0] sm:$0xff] %vm1017, %v4151
  %4250 = vst.msk [vmem:[%s4218 + $0xf8] sm:$0xff] %vm1017, %v4153
  %4251 = vst.msk [vmem:[%s4218 + $0x100] sm:$0xff] %vm1017, %v4155
  %4252 = vst.msk [vmem:[%s4218 + $0x108] sm:$0xff] %vm1017, %v4157
  %4253 = vst.msk [vmem:[%s4218 + $0x110] sm:$0xff] %vm1017, %v4159
  %4254 = vst.msk [vmem:[%s4218 + $0x118] sm:$0xff] %vm1017, %v4161
  %4255 = vst.msk [vmem:[%s4218 + $0x120] sm:$0xff] %vm1017, %v4163
  %4256 = vst.msk [vmem:[%s4218 + $0x128] sm:$0xff] %vm1017, %v4165
  %4257 = vst.msk [vmem:[%s4218 + $0x130] sm:$0xff] %vm1017, %v4167
  %4258 = vst.msk [vmem:[%s4218 + $0x138] sm:$0xff] %vm1017, %v4169
  %4259 = vst.msk [vmem:[%s4218 + $0x140] sm:$0xff] %vm1017, %v4171
  %4260 = vst.msk [vmem:[%s4218 + $0x148] sm:$0xff] %vm1017, %v4173
  %4261 = vst.msk [vmem:[%s4218 + $0x150] sm:$0xff] %vm1017, %v4175
  %4262 = vst.msk [vmem:[%s4218 + $0x158] sm:$0xff] %vm1017, %v4177
  %4263 = vst.msk [vmem:[%s4218 + $0x160] sm:$0xff] %vm1017, %v4179
  %4264 = vst.msk [vmem:[%s4218 + $0x168] sm:$0xff] %vm1017, %v4181
  %4265 = vst.msk [vmem:[%s4218 + $0x170] sm:$0xff] %vm1017, %v4183
  %4266 = vst.msk [vmem:[%s4218 + $0x178] sm:$0xff] %vm1017, %v4185
  %4267 = vst.msk [vmem:[%s4218 + $0x180] sm:$0xff] %vm1017, %v4187
  %4268 = vst.msk [vmem:[%s4218 + $0x188] sm:$0xff] %vm1017, %v4189
  %4269 = vst.msk [vmem:[%s4218 + $0x190] sm:$0xff] %vm1017, %v4191
  %4270 = vst.msk [vmem:[%s4218 + $0x198] sm:$0xff] %vm1017, %v4193
  %4271 = vst.msk [vmem:[%s4218 + $0x1a0] sm:$0xff] %vm1017, %v4195
  %4272 = vst.msk [vmem:[%s4218 + $0x1a8] sm:$0xff] %vm1017, %v4197
  %4273 = vst.msk [vmem:[%s4218 + $0x1b0] sm:$0xff] %vm1017, %v4199
  %4274 = vst.msk [vmem:[%s4218 + $0x1b8] sm:$0xff] %vm1017, %v4201
  %4275 = vst.msk [vmem:[%s4218 + $0x1c0] sm:$0xff] %vm1017, %v4203
  %4276 = vst.msk [vmem:[%s4218 + $0x1c8] sm:$0xff] %vm1017, %v4205
  %4277 = vst.msk [vmem:[%s4218 + $0x1d0] sm:$0xff] %vm1017, %v4207
  %4278 = vst.msk [vmem:[%s4218 + $0x1d8] sm:$0xff] %vm1017, %v4209
  %4279 = vst.msk [vmem:[%s4218 + $0x1e0] sm:$0xff] %vm1017, %v4211
  %4280 = vst.msk [vmem:[%s4218 + $0x1e8] sm:$0xff] %vm1017, %v4213
  %4281 = vst.msk [vmem:[%s4218 + $0x1f0] sm:$0xff] %vm1017, %v4215
  %4282 = vst.msk [vmem:[%s4218 + $0x1f8] sm:$0xff] %vm1017, %v4217
  // Predicated region
  $region14: #{vae_forward.15} parent=0 // pred_check
    _
  $region15: #{vae_forward.15} parent=0 // pred_check_branch
    %4284 = sbr.rel (0) target = $region17
  $region16: #{vae_forward.15} parent=0 // pred_region
    _
  $region17: #{vae_forward.15} parent=0 // pred_fallthru
    _
  // Predicated region
  $region18: #{vae_forward.15} parent=0 // pred_check
    _
  $region19: #{vae_forward.15} parent=0 // pred_check_branch
    %4286 = sbr.rel (0) target = $region21
  $region20: #{vae_forward.15} parent=0 // pred_region
    _
  $region21: #{vae_forward.15} parent=0 // pred_fallthru
    _

</llo_original>
